<compile_context>
chip_gen: v5e
topology: v5e:2x2
jax: 0.10.0
libtpu: 0.0.40
codegen_flags: <defaults>
</compile_context>

<pallas_src>
import jax
import jax.numpy as jnp
from jax import lax
from jax.experimental import pallas as pl
from jax.experimental.pallas import tpu as pltpu

SOS_token = 1

_VMEM = pl.BlockSpec(memory_space=pltpu.MemorySpace.VMEM)
_ANY = pl.BlockSpec(memory_space=pl.ANY)


def _gru_gates(gi, gh, h, H):
    """PyTorch nn.GRU cell gate math (gate order r, z, n); gi/gh are (1, 3H)."""
    r = jax.nn.sigmoid(gi[:, 0:H] + gh[:, 0:H])
    z = jax.nn.sigmoid(gi[:, H:2 * H] + gh[:, H:2 * H])
    n = jnp.tanh(gi[:, 2 * H:3 * H] + r * gh[:, 2 * H:3 * H])
    return (1.0 - z) * n + z * h


# --------------------------------------------------------------------------------------
# One fused kernel: bidirectional encoder GRU + full greedy decode loop.
# --------------------------------------------------------------------------------------
def greedy_decode_kernel(enc_emb_ref, emb_tbl_ref,
                         wih_f_ref, whh_f_ref, bih_f_ref, bhh_f_ref,
                         wih_b_ref, whh_b_ref, bih_b_ref, bhh_b_ref,
                         dwih_ref, dwhh_ref, dbih_ref, dbhh_ref,
                         wc_ref, bc_ref, wo_hbm_ref, bo_ref,
                         tok_ref, score_ref,
                         enc_out, bwd_out, gi_f_scr, gi_b_scr,
                         wo_vmem, wo_sem, idx_scr):
    S, H = enc_emb_ref.shape
    V = wo_vmem.shape[1]
    MAX_LEN = tok_ref.shape[1]

    # Start the (H,V) output-projection HBM->VMEM DMA now; wait just before the decode
    # loop so the transfer is hidden behind the encoder recurrence.
    wo_cp = pltpu.make_async_copy(wo_hbm_ref, wo_vmem, wo_sem)
    wo_cp.start()

    # ------------------------- Encoder: 1-layer bidirectional GRU -------------------------
    emb = enc_emb_ref[...]                                                      # (S, H)
    # Hoisted input projections: one MXU-friendly matmul per direction.
    gi_f_scr[...] = (jnp.dot(emb, wih_f_ref[...], preferred_element_type=jnp.float32)
                     + bih_f_ref[...])                                          # (S, 3H)
    gi_b_scr[...] = (jnp.dot(emb, wih_b_ref[...], preferred_element_type=jnp.float32)
                     + bih_b_ref[...])                                          # (S, 3H)

    h0 = jnp.zeros((1, H), jnp.float32)

    # Interleaved fwd/bwd recurrences: the two chains are independent, so computing both
    # per iteration doubles ILP on the serial GEMV -> gates latency chain.
    def enc_body(i, carry):
        h_f, h_b = carry
        tb = S - 1 - i

        gh_f = (jnp.dot(h_f, whh_f_ref[...], preferred_element_type=jnp.float32)
                + bhh_f_ref[...])
        h_f = _gru_gates(gi_f_scr[pl.ds(i, 1), :], gh_f, h_f, H)
        enc_out[pl.ds(i, 1), :] = h_f

        gh_b = (jnp.dot(h_b, whh_b_ref[...], preferred_element_type=jnp.float32)
                + bhh_b_ref[...])
        h_b = _gru_gates(gi_b_scr[pl.ds(tb, 1), :], gh_b, h_b, H)
        bwd_out[pl.ds(tb, 1), :] = h_b
        return (h_f, h_b)

    h_fwd_final, _ = lax.fori_loop(0, S, enc_body, (h0, h0), unroll=True)

    # encoder outputs = fwd + bwd direction (outputs[:,:,:H] + outputs[:,:,H:]).
    enc_out[...] = enc_out[...] + bwd_out[...]
    enc = enc_out[...]                  # loop-invariant; hoisted out of the decode loop

    # ------------------------- Fused greedy decode loop -----------------------------------
    tok_ref[...] = jnp.zeros((1, MAX_LEN), jnp.int32)
    score_ref[...] = jnp.zeros((1, MAX_LEN), jnp.float32)

    lane_out = lax.broadcasted_iota(jnp.int32, (1, MAX_LEN), 1)
    col_v = lax.broadcasted_iota(jnp.int32, (1, V), 1)

    x0 = emb_tbl_ref[pl.ds(SOS_token, 1), :]                                    # SOS embed (1, H)

    wo_cp.wait()   # output projection must be VMEM-resident before the first logits GEMV

    def dec_body(step, carry):
        x, h = carry

        # Decoder GRU step.
        gi = jnp.dot(x, dwih_ref[...], preferred_element_type=jnp.float32) + dbih_ref[...]
        gh = jnp.dot(h, dwhh_ref[...], preferred_element_type=jnp.float32) + dbhh_ref[...]
        rnn_out = _gru_gates(gi, gh, h, H)                                      # (1, H)

        # Luong "dot" attention: contract on H directly (no materialized transpose).
        e = lax.dot_general(rnn_out, enc, (((1,), (1,)), ((), ())),
                            preferred_element_type=jnp.float32)                 # (1, S)
        e = e - jnp.max(e, axis=1, keepdims=True)
        w = jnp.exp(e)
        w = w * pl.reciprocal(jnp.sum(w, axis=1, keepdims=True), approx=True)
        context = jnp.dot(w, enc, preferred_element_type=jnp.float32)           # (1, H)

        # Fused concat Linear: tanh(concat([rnn_out, context]) @ Wc + bc).
        cat = jnp.concatenate([rnn_out, context], axis=1)                       # (1, 2H)
        concat_out = jnp.tanh(
            jnp.dot(cat, wc_ref[...], preferred_element_type=jnp.float32) + bc_ref[...])

        # Vocab projection: (bf16 x bf16) -> f32 accumulate; logits stay f32.
        logits = (jnp.dot(concat_out.astype(wo_vmem.dtype), wo_vmem[...],
                          preferred_element_type=jnp.float32) + bo_ref[...])    # (1, V)

        # torch.max(softmax(logits), dim=1): max prob = 1/sum(exp(logits - max)),
        # argmax on logits with first-index tie-break.
        m = jnp.max(logits, axis=1, keepdims=True)                              # (1, 1)
        denom = jnp.sum(jnp.exp(logits - m), axis=1, keepdims=True)             # (1, 1)
        score = 1.0 / denom                                                     # exact reciprocal
        idx = jnp.min(jnp.where(logits == m, col_v, V), axis=1, keepdims=True)  # (1, 1) i32

        # Scalar-indexed embedding row gather (no (1,V)@(V,H) one-hot GEMV): stage the
        # argmax index through a (1,1) VMEM scratch and read it back as a scalar.
        idx_scr[...] = idx
        idx_s = idx_scr[0, 0]
        x_next = emb_tbl_ref[pl.ds(idx_s, 1), :]                                # (1, H)

        # Accumulate tokens/scores in lane-resident buffers (written back once).
        sel = lane_out == step
        tok_ref[...] = jnp.where(sel, idx, tok_ref[...])
        score_ref[...] = jnp.where(sel, score, score_ref[...])
        return (x_next, rnn_out)

    lax.fori_loop(0, MAX_LEN, dec_body, (x0, h_fwd_final), unroll=True)


# --------------------------------------------------------------------------------------
# Wrapper
# --------------------------------------------------------------------------------------
def greedy_search_decode(input_seq, input_length, max_length, params,
                         logits_weight_dtype=jnp.bfloat16):
    # input_seq: (S, 1) int32, time-major, batch=1.  input_length only feeds
    # pack_padded_sequence in the reference; with batch=1 and full length it is a no-op.
    del input_length
    emb_tbl = params['embedding']
    enc_emb = jnp.take(emb_tbl, input_seq[:, 0], axis=0)                        # (S, H) f32
    S, H = enc_emb.shape
    V = emb_tbl.shape[0]

    # The output projection is streamed every decode step -> store it in bf16 (the kernel
    # accumulates in f32).  Use jnp.float32 here for bit-exact parity with an f32 reference.
    out_w = params['out_w'].astype(logits_weight_dtype)

    args = (enc_emb, emb_tbl,
            params['enc_wih_f'], params['enc_whh_f'], params['enc_bih_f'], params['enc_bhh_f'],
            params['enc_wih_b'], params['enc_whh_b'], params['enc_bih_b'], params['enc_bhh_b'],
            params['dec_wih'], params['dec_whh'], params['dec_bih'], params['dec_bhh'],
            params['concat_w'], params['concat_b'], out_w, params['out_b'])

    scratch_shapes = [
        pltpu.VMEM((S, H), jnp.float32),       # encoder outputs (fwd, then summed)
        pltpu.VMEM((S, H), jnp.float32),       # backward-direction states
        pltpu.VMEM((S, 3 * H), jnp.float32),   # hoisted fwd input projections
        pltpu.VMEM((S, 3 * H), jnp.float32),   # hoisted bwd input projections
        pltpu.VMEM((H, V), out_w.dtype),       # VMEM-resident copy of out_w (manual DMA)
        pltpu.SemaphoreType.DMA(()),           # out_w DMA completion semaphore
        pltpu.VMEM((1, 1), jnp.int32),         # argmax index staging (vector -> scalar)
    ]

    def _nbytes(a):
        return int(a.size) * a.dtype.itemsize

    scratch_bytes = (4 * (2 * S * H + 2 * S * 3 * H)
                     + H * V * jnp.dtype(out_w.dtype).itemsize + 1024)
    out_bytes = max_length * (4 + 4)
    total = sum(_nbytes(a) for a in args) + scratch_bytes + out_bytes
    # Generous headroom, capped at 64 MiB (safe across v5e/v6e/v7x physical VMEM).
    vmem_limit = int(min(2 * total + (8 << 20), 64 << 20))

    toks, scores = pl.pallas_call(
        greedy_decode_kernel,
        out_shape=(jax.ShapeDtypeStruct((1, max_length), jnp.int32),
                   jax.ShapeDtypeStruct((1, max_length), jnp.float32)),
        in_specs=[_VMEM] * 16 + [_ANY, _VMEM],
        out_specs=(_VMEM, _VMEM),
        scratch_shapes=scratch_shapes,
        compiler_params=pltpu.CompilerParams(vmem_limit_bytes=vmem_limit),
    )(*args)
    return toks[0], scores[0]


# --------------------------------------------------------------------------------------
# Deterministic synthetic parameters
# --------------------------------------------------------------------------------------
def init_params(key, vocab, hidden):
    H = hidden
    ks = jax.random.split(key, 15)
    u = lambda k, shape: jax.random.uniform(k, shape, jnp.float32, -0.1, 0.1)
    return dict(
        embedding=u(ks[0], (vocab, H)),
        # encoder bidirectional GRU (weights stored pre-transposed: x @ W)
        enc_wih_f=u(ks[1], (H, 3 * H)), enc_whh_f=u(ks[2], (H, 3 * H)),
        enc_bih_f=u(ks[3], (1, 3 * H)), enc_bhh_f=u(ks[4], (1, 3 * H)),
        enc_wih_b=u(ks[5], (H, 3 * H)), enc_whh_b=u(ks[6], (H, 3 * H)),
        enc_bih_b=u(ks[7], (1, 3 * H)), enc_bhh_b=u(ks[8], (1, 3 * H)),
        # decoder GRU
        dec_wih=u(ks[9], (H, 3 * H)), dec_whh=u(ks[10], (H, 3 * H)),
        dec_bih=u(ks[11], (1, 3 * H)), dec_bhh=u(ks[12], (1, 3 * H)),
        # concat Linear (H, 2H) stored transposed+stacked as one (2H, H) weight
        concat_w=u(ks[13], (2 * H, H)),
        concat_b=jnp.zeros((1, H), jnp.float32),
        # out Linear (V, H) -> stored transposed (H, V)
        out_w=u(ks[14], (H, vocab)),
        out_b=jnp.zeros((1, vocab), jnp.float32),
    )


if __name__ == "__main__":
    # H and V chosen as multiples of 128 so GRU gate slices / vocab ops are lane-aligned.
    VOCAB, HIDDEN, SEQ_LEN, MAX_LEN = 256, 128, 8, 8
    key = jax.random.PRNGKey(0)
    k_params, k_seq = jax.random.split(key)
    params = init_params(k_params, VOCAB, HIDDEN)

    input_seq = jax.random.randint(k_seq, (SEQ_LEN, 1), 2, VOCAB, dtype=jnp.int32)
    input_length = jnp.array([SEQ_LEN], dtype=jnp.int32)

    tokens, scores = greedy_search_decode(input_seq, input_length, MAX_LEN, params)
    jax.block_until_ready((tokens, scores))
    assert tokens.shape == (MAX_LEN,) and scores.shape == (MAX_LEN,)
    assert tokens.dtype == jnp.int32 and scores.dtype == jnp.float32
    print("KERNEL_OK")
</pallas_src>

<mosaic_0001>
module attributes {stable_mosaic.version = 11 : i64} {
  func.func @greedy_decode_kernel(%arg0: memref<8x128xf32, #tpu.memory_space<vmem>>, %arg1: memref<256x128xf32, #tpu.memory_space<vmem>>, %arg2: memref<128x384xf32, #tpu.memory_space<vmem>>, %arg3: memref<128x384xf32, #tpu.memory_space<vmem>>, %arg4: memref<1x384xf32, #tpu.memory_space<vmem>>, %arg5: memref<1x384xf32, #tpu.memory_space<vmem>>, %arg6: memref<128x384xf32, #tpu.memory_space<vmem>>, %arg7: memref<128x384xf32, #tpu.memory_space<vmem>>, %arg8: memref<1x384xf32, #tpu.memory_space<vmem>>, %arg9: memref<1x384xf32, #tpu.memory_space<vmem>>, %arg10: memref<128x384xf32, #tpu.memory_space<vmem>>, %arg11: memref<128x384xf32, #tpu.memory_space<vmem>>, %arg12: memref<1x384xf32, #tpu.memory_space<vmem>>, %arg13: memref<1x384xf32, #tpu.memory_space<vmem>>, %arg14: memref<256x128xf32, #tpu.memory_space<vmem>>, %arg15: memref<1x128xf32, #tpu.memory_space<vmem>>, %arg16: memref<128x256xbf16, #tpu.memory_space<any>>, %arg17: memref<1x256xf32, #tpu.memory_space<vmem>>, %arg18: memref<1x8xi32, #tpu.memory_space<vmem>>, %arg19: memref<1x8xf32, #tpu.memory_space<vmem>>, %arg20: memref<8x128xf32, #tpu.memory_space<vmem>>, %arg21: memref<8x128xf32, #tpu.memory_space<vmem>>, %arg22: memref<8x384xf32, #tpu.memory_space<vmem>>, %arg23: memref<8x384xf32, #tpu.memory_space<vmem>>, %arg24: memref<128x256xbf16, #tpu.memory_space<vmem>>, %arg25: memref<!tpu.dma_semaphore, #tpu.memory_space<semaphore_mem>>, %arg26: memref<1x1xi32, #tpu.memory_space<vmem>>) attributes {dimension_semantics = [], scalar_prefetch = 0 : i64, scratch_operands = 7 : i64, tpu.core_type = #tpu.core_type<tc>} {
    tpu.enqueue_dma source(%arg16 : memref<128x256xbf16, #tpu.memory_space<any>>) target(%arg24 : memref<128x256xbf16, #tpu.memory_space<vmem>>) target_semaphore(%arg25 : memref<!tpu.dma_semaphore, #tpu.memory_space<semaphore_mem>>)
    %c0 = arith.constant 0 : index
    %c0_0 = arith.constant 0 : index
    %0 = vector.load %arg0[%c0, %c0_0] : memref<8x128xf32, #tpu.memory_space<vmem>>, vector<8x128xf32>
    %c0_1 = arith.constant 0 : index
    %c0_2 = arith.constant 0 : index
    %1 = vector.load %arg2[%c0_1, %c0_2] : memref<128x384xf32, #tpu.memory_space<vmem>>, vector<128x384xf32>
    %cst = arith.constant dense<0.000000e+00> : vector<8x384xf32>
    %2 = tpu.matmul %0, %1, %cst {dimension_numbers = #tpu.dot_dimension_numbers<[1], [0], [0], [1], [0, 0, 1, 1], [], []>} : vector<8x128xf32>, vector<128x384xf32>, vector<8x384xf32> -> vector<8x384xf32>
    %c0_3 = arith.constant 0 : index
    %c0_4 = arith.constant 0 : index
    %3 = vector.load %arg4[%c0_3, %c0_4] : memref<1x384xf32, #tpu.memory_space<vmem>>, vector<1x384xf32>
    %4 = vector.broadcast %3 : vector<1x384xf32> to vector<8x384xf32>
    %5 = arith.addf %2, %4 : vector<8x384xf32>
    %c0_5 = arith.constant 0 : index
    %c0_6 = arith.constant 0 : index
    %6 = vector.load %arg22[%c0_5, %c0_6] : memref<8x384xf32, #tpu.memory_space<vmem>>, vector<8x384xf32>
    tpu.vector_store %arg22[%c0_5, %c0_6], %5 {strides = array<i32>} : memref<8x384xf32, #tpu.memory_space<vmem>>, vector<8x384xf32>,
    %c0_7 = arith.constant 0 : index
    %c0_8 = arith.constant 0 : index
    %7 = vector.load %arg6[%c0_7, %c0_8] : memref<128x384xf32, #tpu.memory_space<vmem>>, vector<128x384xf32>
    %cst_9 = arith.constant dense<0.000000e+00> : vector<8x384xf32>
    %8 = tpu.matmul %0, %7, %cst_9 {dimension_numbers = #tpu.dot_dimension_numbers<[1], [0], [0], [1], [0, 0, 1, 1], [], []>} : vector<8x128xf32>, vector<128x384xf32>, vector<8x384xf32> -> vector<8x384xf32>
    %c0_10 = arith.constant 0 : index
    %c0_11 = arith.constant 0 : index
    %9 = vector.load %arg8[%c0_10, %c0_11] : memref<1x384xf32, #tpu.memory_space<vmem>>, vector<1x384xf32>
    %10 = vector.broadcast %9 : vector<1x384xf32> to vector<8x384xf32>
    %11 = arith.addf %8, %10 : vector<8x384xf32>
    %c0_12 = arith.constant 0 : index
    %c0_13 = arith.constant 0 : index
    %12 = vector.load %arg23[%c0_12, %c0_13] : memref<8x384xf32, #tpu.memory_space<vmem>>, vector<8x384xf32>
    tpu.vector_store %arg23[%c0_12, %c0_13], %11 {strides = array<i32>} : memref<8x384xf32, #tpu.memory_space<vmem>>, vector<8x384xf32>,
    %cst_14 = arith.constant 0.000000e+00 : f32
    %13 = vector.broadcast %cst_14 : f32 to vector<1x128xf32>
    %c0_i32 = arith.constant 0 : i32
    %c7_i32 = arith.constant 7 : i32
    %14 = arith.subi %c7_i32, %c0_i32 : i32
    %c0_15 = arith.constant 0 : index
    %c0_16 = arith.constant 0 : index
    %15 = vector.load %arg3[%c0_15, %c0_16] : memref<128x384xf32, #tpu.memory_space<vmem>>, vector<128x384xf32>
    %cst_17 = arith.constant dense<0.000000e+00> : vector<1x384xf32>
    %16 = tpu.matmul %13, %15, %cst_17 {dimension_numbers = #tpu.dot_dimension_numbers<[1], [0], [0], [1], [0, 0, 1, 1], [], []>} : vector<1x128xf32>, vector<128x384xf32>, vector<1x384xf32> -> vector<1x384xf32>
    %c0_18 = arith.constant 0 : index
    %c0_19 = arith.constant 0 : index
    %17 = vector.load %arg5[%c0_18, %c0_19] : memref<1x384xf32, #tpu.memory_space<vmem>>, vector<1x384xf32>
    %18 = arith.addf %16, %17 : vector<1x384xf32>
    %19 = arith.index_cast %c0_i32 : i32 to index
    %c0_20 = arith.constant 0 : index
    %20 = vector.load %arg22[%19, %c0_20] : memref<8x384xf32, #tpu.memory_space<vmem>>, vector<1x384xf32>
    %21 = vector.extract_strided_slice %20 {offsets = [0, 0], sizes = [1, 128], strides = [1, 1]} : vector<1x384xf32> to vector<1x128xf32>
    %22 = vector.extract_strided_slice %18 {offsets = [0, 0], sizes = [1, 128], strides = [1, 1]} : vector<1x384xf32> to vector<1x128xf32>
    %23 = arith.addf %21, %22 : vector<1x128xf32>
    %24 = arith.negf %23 : vector<1x128xf32>
    %25 = math.exp %24 : vector<1x128xf32>
    %cst_21 = arith.constant 1.000000e+00 : f32
    %26 = vector.broadcast %cst_21 : f32 to vector<1x128xf32>
    %27 = arith.addf %26, %25 : vector<1x128xf32>
    %28 = arith.divf %26, %27 : vector<1x128xf32>
    %29 = vector.extract_strided_slice %20 {offsets = [0, 128], sizes = [1, 128], strides = [1, 1]} : vector<1x384xf32> to vector<1x128xf32>
    %30 = vector.extract_strided_slice %18 {offsets = [0, 128], sizes = [1, 128], strides = [1, 1]} : vector<1x384xf32> to vector<1x128xf32>
    %31 = arith.addf %29, %30 : vector<1x128xf32>
    %32 = arith.negf %31 : vector<1x128xf32>
    %33 = math.exp %32 : vector<1x128xf32>
    %cst_22 = arith.constant 1.000000e+00 : f32
    %34 = vector.broadcast %cst_22 : f32 to vector<1x128xf32>
    %35 = arith.addf %34, %33 : vector<1x128xf32>
    %36 = arith.divf %34, %35 : vector<1x128xf32>
    %37 = vector.extract_strided_slice %20 {offsets = [0, 256], sizes = [1, 128], strides = [1, 1]} : vector<1x384xf32> to vector<1x128xf32>
    %38 = vector.extract_strided_slice %18 {offsets = [0, 256], sizes = [1, 128], strides = [1, 1]} : vector<1x384xf32> to vector<1x128xf32>
    %39 = arith.mulf %28, %38 : vector<1x128xf32>
    %40 = arith.addf %37, %39 : vector<1x128xf32>
    %41 = math.tanh %40 : vector<1x128xf32>
    %cst_23 = arith.constant 1.000000e+00 : f32
    %42 = vector.broadcast %cst_23 : f32 to vector<1x128xf32>
    %43 = arith.subf %42, %36 : vector<1x128xf32>
    %44 = arith.mulf %43, %41 : vector<1x128xf32>
    %45 = arith.mulf %36, %13 : vector<1x128xf32>
    %46 = arith.addf %44, %45 : vector<1x128xf32>
    %47 = arith.index_cast %c0_i32 : i32 to index
    %c0_24 = arith.constant 0 : index
    %48 = vector.load %arg20[%47, %c0_24] : memref<8x128xf32, #tpu.memory_space<vmem>>, vector<1x128xf32>
    tpu.vector_store %arg20[%47, %c0_24], %46 {strides = array<i32>} : memref<8x128xf32, #tpu.memory_space<vmem>>, vector<1x128xf32>,
    %c0_25 = arith.constant 0 : index
    %c0_26 = arith.constant 0 : index
    %49 = vector.load %arg7[%c0_25, %c0_26] : memref<128x384xf32, #tpu.memory_space<vmem>>, vector<128x384xf32>
    %cst_27 = arith.constant dense<0.000000e+00> : vector<1x384xf32>
    %50 = tpu.matmul %13, %49, %cst_27 {dimension_numbers = #tpu.dot_dimension_numbers<[1], [0], [0], [1], [0, 0, 1, 1], [], []>} : vector<1x128xf32>, vector<128x384xf32>, vector<1x384xf32> -> vector<1x384xf32>
    %c0_28 = arith.constant 0 : index
    %c0_29 = arith.constant 0 : index
    %51 = vector.load %arg9[%c0_28, %c0_29] : memref<1x384xf32, #tpu.memory_space<vmem>>, vector<1x384xf32>
    %52 = arith.addf %50, %51 : vector<1x384xf32>
    %53 = arith.index_cast %14 : i32 to index
    %c0_30 = arith.constant 0 : index
    %54 = vector.load %arg23[%53, %c0_30] : memref<8x384xf32, #tpu.memory_space<vmem>>, vector<1x384xf32>
    %55 = vector.extract_strided_slice %54 {offsets = [0, 0], sizes = [1, 128], strides = [1, 1]} : vector<1x384xf32> to vector<1x128xf32>
    %56 = vector.extract_strided_slice %52 {offsets = [0, 0], sizes = [1, 128], strides = [1, 1]} : vector<1x384xf32> to vector<1x128xf32>
    %57 = arith.addf %55, %56 : vector<1x128xf32>
    %58 = arith.negf %57 : vector<1x128xf32>
    %59 = math.exp %58 : vector<1x128xf32>
    %cst_31 = arith.constant 1.000000e+00 : f32
    %60 = vector.broadcast %cst_31 : f32 to vector<1x128xf32>
    %61 = arith.addf %60, %59 : vector<1x128xf32>
    %62 = arith.divf %60, %61 : vector<1x128xf32>
    %63 = vector.extract_strided_slice %54 {offsets = [0, 128], sizes = [1, 128], strides = [1, 1]} : vector<1x384xf32> to vector<1x128xf32>
    %64 = vector.extract_strided_slice %52 {offsets = [0, 128], sizes = [1, 128], strides = [1, 1]} : vector<1x384xf32> to vector<1x128xf32>
    %65 = arith.addf %63, %64 : vector<1x128xf32>
    %66 = arith.negf %65 : vector<1x128xf32>
    %67 = math.exp %66 : vector<1x128xf32>
    %cst_32 = arith.constant 1.000000e+00 : f32
    %68 = vector.broadcast %cst_32 : f32 to vector<1x128xf32>
    %69 = arith.addf %68, %67 : vector<1x128xf32>
    %70 = arith.divf %68, %69 : vector<1x128xf32>
    %71 = vector.extract_strided_slice %54 {offsets = [0, 256], sizes = [1, 128], strides = [1, 1]} : vector<1x384xf32> to vector<1x128xf32>
    %72 = vector.extract_strided_slice %52 {offsets = [0, 256], sizes = [1, 128], strides = [1, 1]} : vector<1x384xf32> to vector<1x128xf32>
    %73 = arith.mulf %62, %72 : vector<1x128xf32>
    %74 = arith.addf %71, %73 : vector<1x128xf32>
    %75 = math.tanh %74 : vector<1x128xf32>
    %cst_33 = arith.constant 1.000000e+00 : f32
    %76 = vector.broadcast %cst_33 : f32 to vector<1x128xf32>
    %77 = arith.subf %76, %70 : vector<1x128xf32>
    %78 = arith.mulf %77, %75 : vector<1x128xf32>
    %79 = arith.mulf %70, %13 : vector<1x128xf32>
    %80 = arith.addf %78, %79 : vector<1x128xf32>
    %81 = arith.index_cast %14 : i32 to index
    %c0_34 = arith.constant 0 : index
    %82 = vector.load %arg21[%81, %c0_34] : memref<8x128xf32, #tpu.memory_space<vmem>>, vector<1x128xf32>
    tpu.vector_store %arg21[%81, %c0_34], %80 {strides = array<i32>} : memref<8x128xf32, #tpu.memory_space<vmem>>, vector<1x128xf32>,
    %c1_i32 = arith.constant 1 : i32
    %c7_i32_35 = arith.constant 7 : i32
    %83 = arith.subi %c7_i32_35, %c1_i32 : i32
    %c0_36 = arith.constant 0 : index
    %c0_37 = arith.constant 0 : index
    %84 = vector.load %arg3[%c0_36, %c0_37] : memref<128x384xf32, #tpu.memory_space<vmem>>, vector<128x384xf32>
    %cst_38 = arith.constant dense<0.000000e+00> : vector<1x384xf32>
    %85 = tpu.matmul %46, %84, %cst_38 {dimension_numbers = #tpu.dot_dimension_numbers<[1], [0], [0], [1], [0, 0, 1, 1], [], []>} : vector<1x128xf32>, vector<128x384xf32>, vector<1x384xf32> -> vector<1x384xf32>
    %c0_39 = arith.constant 0 : index
    %c0_40 = arith.constant 0 : index
    %86 = vector.load %arg5[%c0_39, %c0_40] : memref<1x384xf32, #tpu.memory_space<vmem>>, vector<1x384xf32>
    %87 = arith.addf %85, %86 : vector<1x384xf32>
    %88 = arith.index_cast %c1_i32 : i32 to index
    %c0_41 = arith.constant 0 : index
    %89 = vector.load %arg22[%88, %c0_41] : memref<8x384xf32, #tpu.memory_space<vmem>>, vector<1x384xf32>
    %90 = vector.extract_strided_slice %89 {offsets = [0, 0], sizes = [1, 128], strides = [1, 1]} : vector<1x384xf32> to vector<1x128xf32>
    %91 = vector.extract_strided_slice %87 {offsets = [0, 0], sizes = [1, 128], strides = [1, 1]} : vector<1x384xf32> to vector<1x128xf32>
    %92 = arith.addf %90, %91 : vector<1x128xf32>
    %93 = arith.negf %92 : vector<1x128xf32>
    %94 = math.exp %93 : vector<1x128xf32>
    %cst_42 = arith.constant 1.000000e+00 : f32
    %95 = vector.broadcast %cst_42 : f32 to vector<1x128xf32>
    %96 = arith.addf %95, %94 : vector<1x128xf32>
    %97 = arith.divf %95, %96 : vector<1x128xf32>
    %98 = vector.extract_strided_slice %89 {offsets = [0, 128], sizes = [1, 128], strides = [1, 1]} : vector<1x384xf32> to vector<1x128xf32>
    %99 = vector.extract_strided_slice %87 {offsets = [0, 128], sizes = [1, 128], strides = [1, 1]} : vector<1x384xf32> to vector<1x128xf32>
    %100 = arith.addf %98, %99 : vector<1x128xf32>
    %101 = arith.negf %100 : vector<1x128xf32>
    %102 = math.exp %101 : vector<1x128xf32>
    %cst_43 = arith.constant 1.000000e+00 : f32
    %103 = vector.broadcast %cst_43 : f32 to vector<1x128xf32>
    %104 = arith.addf %103, %102 : vector<1x128xf32>
    %105 = arith.divf %103, %104 : vector<1x128xf32>
    %106 = vector.extract_strided_slice %89 {offsets = [0, 256], sizes = [1, 128], strides = [1, 1]} : vector<1x384xf32> to vector<1x128xf32>
    %107 = vector.extract_strided_slice %87 {offsets = [0, 256], sizes = [1, 128], strides = [1, 1]} : vector<1x384xf32> to vector<1x128xf32>
    %108 = arith.mulf %97, %107 : vector<1x128xf32>
    %109 = arith.addf %106, %108 : vector<1x128xf32>
    %110 = math.tanh %109 : vector<1x128xf32>
    %cst_44 = arith.constant 1.000000e+00 : f32
    %111 = vector.broadcast %cst_44 : f32 to vector<1x128xf32>
    %112 = arith.subf %111, %105 : vector<1x128xf32>
    %113 = arith.mulf %112, %110 : vector<1x128xf32>
    %114 = arith.mulf %105, %46 : vector<1x128xf32>
    %115 = arith.addf %113, %114 : vector<1x128xf32>
    %116 = arith.index_cast %c1_i32 : i32 to index
    %c0_45 = arith.constant 0 : index
    %117 = vector.load %arg20[%116, %c0_45] : memref<8x128xf32, #tpu.memory_space<vmem>>, vector<1x128xf32>
    tpu.vector_store %arg20[%116, %c0_45], %115 {strides = array<i32>} : memref<8x128xf32, #tpu.memory_space<vmem>>, vector<1x128xf32>,
    %c0_46 = arith.constant 0 : index
    %c0_47 = arith.constant 0 : index
    %118 = vector.load %arg7[%c0_46, %c0_47] : memref<128x384xf32, #tpu.memory_space<vmem>>, vector<128x384xf32>
    %cst_48 = arith.constant dense<0.000000e+00> : vector<1x384xf32>
    %119 = tpu.matmul %80, %118, %cst_48 {dimension_numbers = #tpu.dot_dimension_numbers<[1], [0], [0], [1], [0, 0, 1, 1], [], []>} : vector<1x128xf32>, vector<128x384xf32>, vector<1x384xf32> -> vector<1x384xf32>
    %c0_49 = arith.constant 0 : index
    %c0_50 = arith.constant 0 : index
    %120 = vector.load %arg9[%c0_49, %c0_50] : memref<1x384xf32, #tpu.memory_space<vmem>>, vector<1x384xf32>
    %121 = arith.addf %119, %120 : vector<1x384xf32>
    %122 = arith.index_cast %83 : i32 to index
    %c0_51 = arith.constant 0 : index
    %123 = vector.load %arg23[%122, %c0_51] : memref<8x384xf32, #tpu.memory_space<vmem>>, vector<1x384xf32>
    %124 = vector.extract_strided_slice %123 {offsets = [0, 0], sizes = [1, 128], strides = [1, 1]} : vector<1x384xf32> to vector<1x128xf32>
    %125 = vector.extract_strided_slice %121 {offsets = [0, 0], sizes = [1, 128], strides = [1, 1]} : vector<1x384xf32> to vector<1x128xf32>
    %126 = arith.addf %124, %125 : vector<1x128xf32>
    %127 = arith.negf %126 : vector<1x128xf32>
    %128 = math.exp %127 : vector<1x128xf32>
    %cst_52 = arith.constant 1.000000e+00 : f32
    %129 = vector.broadcast %cst_52 : f32 to vector<1x128xf32>
    %130 = arith.addf %129, %128 : vector<1x128xf32>
    %131 = arith.divf %129, %130 : vector<1x128xf32>
    %132 = vector.extract_strided_slice %123 {offsets = [0, 128], sizes = [1, 128], strides = [1, 1]} : vector<1x384xf32> to vector<1x128xf32>
    %133 = vector.extract_strided_slice %121 {offsets = [0, 128], sizes = [1, 128], strides = [1, 1]} : vector<1x384xf32> to vector<1x128xf32>
    %134 = arith.addf %132, %133 : vector<1x128xf32>
    %135 = arith.negf %134 : vector<1x128xf32>
    %136 = math.exp %135 : vector<1x128xf32>
    %cst_53 = arith.constant 1.000000e+00 : f32
    %137 = vector.broadcast %cst_53 : f32 to vector<1x128xf32>
    %138 = arith.addf %137, %136 : vector<1x128xf32>
    %139 = arith.divf %137, %138 : vector<1x128xf32>
    %140 = vector.extract_strided_slice %123 {offsets = [0, 256], sizes = [1, 128], strides = [1, 1]} : vector<1x384xf32> to vector<1x128xf32>
    %141 = vector.extract_strided_slice %121 {offsets = [0, 256], sizes = [1, 128], strides = [1, 1]} : vector<1x384xf32> to vector<1x128xf32>
    %142 = arith.mulf %131, %141 : vector<1x128xf32>
    %143 = arith.addf %140, %142 : vector<1x128xf32>
    %144 = math.tanh %143 : vector<1x128xf32>
    %cst_54 = arith.constant 1.000000e+00 : f32
    %145 = vector.broadcast %cst_54 : f32 to vector<1x128xf32>
    %146 = arith.subf %145, %139 : vector<1x128xf32>
    %147 = arith.mulf %146, %144 : vector<1x128xf32>
    %148 = arith.mulf %139, %80 : vector<1x128xf32>
    %149 = arith.addf %147, %148 : vector<1x128xf32>
    %150 = arith.index_cast %83 : i32 to index
    %c0_55 = arith.constant 0 : index
    %151 = vector.load %arg21[%150, %c0_55] : memref<8x128xf32, #tpu.memory_space<vmem>>, vector<1x128xf32>
    tpu.vector_store %arg21[%150, %c0_55], %149 {strides = array<i32>} : memref<8x128xf32, #tpu.memory_space<vmem>>, vector<1x128xf32>,
    %c2_i32 = arith.constant 2 : i32
    %c7_i32_56 = arith.constant 7 : i32
    %152 = arith.subi %c7_i32_56, %c2_i32 : i32
    %c0_57 = arith.constant 0 : index
    %c0_58 = arith.constant 0 : index
    %153 = vector.load %arg3[%c0_57, %c0_58] : memref<128x384xf32, #tpu.memory_space<vmem>>, vector<128x384xf32>
    %cst_59 = arith.constant dense<0.000000e+00> : vector<1x384xf32>
    %154 = tpu.matmul %115, %153, %cst_59 {dimension_numbers = #tpu.dot_dimension_numbers<[1], [0], [0], [1], [0, 0, 1, 1], [], []>} : vector<1x128xf32>, vector<128x384xf32>, vector<1x384xf32> -> vector<1x384xf32>
    %c0_60 = arith.constant 0 : index
    %c0_61 = arith.constant 0 : index
    %155 = vector.load %arg5[%c0_60, %c0_61] : memref<1x384xf32, #tpu.memory_space<vmem>>, vector<1x384xf32>
    %156 = arith.addf %154, %155 : vector<1x384xf32>
    %157 = arith.index_cast %c2_i32 : i32 to index
    %c0_62 = arith.constant 0 : index
    %158 = vector.load %arg22[%157, %c0_62] : memref<8x384xf32, #tpu.memory_space<vmem>>, vector<1x384xf32>
    %159 = vector.extract_strided_slice %158 {offsets = [0, 0], sizes = [1, 128], strides = [1, 1]} : vector<1x384xf32> to vector<1x128xf32>
    %160 = vector.extract_strided_slice %156 {offsets = [0, 0], sizes = [1, 128], strides = [1, 1]} : vector<1x384xf32> to vector<1x128xf32>
    %161 = arith.addf %159, %160 : vector<1x128xf32>
    %162 = arith.negf %161 : vector<1x128xf32>
    %163 = math.exp %162 : vector<1x128xf32>
    %cst_63 = arith.constant 1.000000e+00 : f32
    %164 = vector.broadcast %cst_63 : f32 to vector<1x128xf32>
    %165 = arith.addf %164, %163 : vector<1x128xf32>
    %166 = arith.divf %164, %165 : vector<1x128xf32>
    %167 = vector.extract_strided_slice %158 {offsets = [0, 128], sizes = [1, 128], strides = [1, 1]} : vector<1x384xf32> to vector<1x128xf32>
    %168 = vector.extract_strided_slice %156 {offsets = [0, 128], sizes = [1, 128], strides = [1, 1]} : vector<1x384xf32> to vector<1x128xf32>
    %169 = arith.addf %167, %168 : vector<1x128xf32>
    %170 = arith.negf %169 : vector<1x128xf32>
    %171 = math.exp %170 : vector<1x128xf32>
    %cst_64 = arith.constant 1.000000e+00 : f32
    %172 = vector.broadcast %cst_64 : f32 to vector<1x128xf32>
    %173 = arith.addf %172, %171 : vector<1x128xf32>
    %174 = arith.divf %172, %173 : vector<1x128xf32>
    %175 = vector.extract_strided_slice %158 {offsets = [0, 256], sizes = [1, 128], strides = [1, 1]} : vector<1x384xf32> to vector<1x128xf32>
    %176 = vector.extract_strided_slice %156 {offsets = [0, 256], sizes = [1, 128], strides = [1, 1]} : vector<1x384xf32> to vector<1x128xf32>
    %177 = arith.mulf %166, %176 : vector<1x128xf32>
    %178 = arith.addf %175, %177 : vector<1x128xf32>
    %179 = math.tanh %178 : vector<1x128xf32>
    %cst_65 = arith.constant 1.000000e+00 : f32
    %180 = vector.broadcast %cst_65 : f32 to vector<1x128xf32>
    %181 = arith.subf %180, %174 : vector<1x128xf32>
    %182 = arith.mulf %181, %179 : vector<1x128xf32>
    %183 = arith.mulf %174, %115 : vector<1x128xf32>
    %184 = arith.addf %182, %183 : vector<1x128xf32>
    %185 = arith.index_cast %c2_i32 : i32 to index
    %c0_66 = arith.constant 0 : index
    %186 = vector.load %arg20[%185, %c0_66] : memref<8x128xf32, #tpu.memory_space<vmem>>, vector<1x128xf32>
    tpu.vector_store %arg20[%185, %c0_66], %184 {strides = array<i32>} : memref<8x128xf32, #tpu.memory_space<vmem>>, vector<1x128xf32>,
    %c0_67 = arith.constant 0 : index
    %c0_68 = arith.constant 0 : index
    %187 = vector.load %arg7[%c0_67, %c0_68] : memref<128x384xf32, #tpu.memory_space<vmem>>, vector<128x384xf32>
    %cst_69 = arith.constant dense<0.000000e+00> : vector<1x384xf32>
    %188 = tpu.matmul %149, %187, %cst_69 {dimension_numbers = #tpu.dot_dimension_numbers<[1], [0], [0], [1], [0, 0, 1, 1], [], []>} : vector<1x128xf32>, vector<128x384xf32>, vector<1x384xf32> -> vector<1x384xf32>
    %c0_70 = arith.constant 0 : index
    %c0_71 = arith.constant 0 : index
    %189 = vector.load %arg9[%c0_70, %c0_71] : memref<1x384xf32, #tpu.memory_space<vmem>>, vector<1x384xf32>
    %190 = arith.addf %188, %189 : vector<1x384xf32>
    %191 = arith.index_cast %152 : i32 to index
    %c0_72 = arith.constant 0 : index
    %192 = vector.load %arg23[%191, %c0_72] : memref<8x384xf32, #tpu.memory_space<vmem>>, vector<1x384xf32>
    %193 = vector.extract_strided_slice %192 {offsets = [0, 0], sizes = [1, 128], strides = [1, 1]} : vector<1x384xf32> to vector<1x128xf32>
    %194 = vector.extract_strided_slice %190 {offsets = [0, 0], sizes = [1, 128], strides = [1, 1]} : vector<1x384xf32> to vector<1x128xf32>
    %195 = arith.addf %193, %194 : vector<1x128xf32>
    %196 = arith.negf %195 : vector<1x128xf32>
    %197 = math.exp %196 : vector<1x128xf32>
    %cst_73 = arith.constant 1.000000e+00 : f32
    %198 = vector.broadcast %cst_73 : f32 to vector<1x128xf32>
    %199 = arith.addf %198, %197 : vector<1x128xf32>
    %200 = arith.divf %198, %199 : vector<1x128xf32>
    %201 = vector.extract_strided_slice %192 {offsets = [0, 128], sizes = [1, 128], strides = [1, 1]} : vector<1x384xf32> to vector<1x128xf32>
    %202 = vector.extract_strided_slice %190 {offsets = [0, 128], sizes = [1, 128], strides = [1, 1]} : vector<1x384xf32> to vector<1x128xf32>
    %203 = arith.addf %201, %202 : vector<1x128xf32>
    %204 = arith.negf %203 : vector<1x128xf32>
    %205 = math.exp %204 : vector<1x128xf32>
    %cst_74 = arith.constant 1.000000e+00 : f32
    %206 = vector.broadcast %cst_74 : f32 to vector<1x128xf32>
    %207 = arith.addf %206, %205 : vector<1x128xf32>
    %208 = arith.divf %206, %207 : vector<1x128xf32>
    %209 = vector.extract_strided_slice %192 {offsets = [0, 256], sizes = [1, 128], strides = [1, 1]} : vector<1x384xf32> to vector<1x128xf32>
    %210 = vector.extract_strided_slice %190 {offsets = [0, 256], sizes = [1, 128], strides = [1, 1]} : vector<1x384xf32> to vector<1x128xf32>
    %211 = arith.mulf %200, %210 : vector<1x128xf32>
    %212 = arith.addf %209, %211 : vector<1x128xf32>
    %213 = math.tanh %212 : vector<1x128xf32>
    %cst_75 = arith.constant 1.000000e+00 : f32
    %214 = vector.broadcast %cst_75 : f32 to vector<1x128xf32>
    %215 = arith.subf %214, %208 : vector<1x128xf32>
    %216 = arith.mulf %215, %213 : vector<1x128xf32>
    %217 = arith.mulf %208, %149 : vector<1x128xf32>
    %218 = arith.addf %216, %217 : vector<1x128xf32>
    %219 = arith.index_cast %152 : i32 to index
    %c0_76 = arith.constant 0 : index
    %220 = vector.load %arg21[%219, %c0_76] : memref<8x128xf32, #tpu.memory_space<vmem>>, vector<1x128xf32>
    tpu.vector_store %arg21[%219, %c0_76], %218 {strides = array<i32>} : memref<8x128xf32, #tpu.memory_space<vmem>>, vector<1x128xf32>,
    %c3_i32 = arith.constant 3 : i32
    %c7_i32_77 = arith.constant 7 : i32
    %221 = arith.subi %c7_i32_77, %c3_i32 : i32
    %c0_78 = arith.constant 0 : index
    %c0_79 = arith.constant 0 : index
    %222 = vector.load %arg3[%c0_78, %c0_79] : memref<128x384xf32, #tpu.memory_space<vmem>>, vector<128x384xf32>
    %cst_80 = arith.constant dense<0.000000e+00> : vector<1x384xf32>
    %223 = tpu.matmul %184, %222, %cst_80 {dimension_numbers = #tpu.dot_dimension_numbers<[1], [0], [0], [1], [0, 0, 1, 1], [], []>} : vector<1x128xf32>, vector<128x384xf32>, vector<1x384xf32> -> vector<1x384xf32>
    %c0_81 = arith.constant 0 : index
    %c0_82 = arith.constant 0 : index
    %224 = vector.load %arg5[%c0_81, %c0_82] : memref<1x384xf32, #tpu.memory_space<vmem>>, vector<1x384xf32>
    %225 = arith.addf %223, %224 : vector<1x384xf32>
    %226 = arith.index_cast %c3_i32 : i32 to index
    %c0_83 = arith.constant 0 : index
    %227 = vector.load %arg22[%226, %c0_83] : memref<8x384xf32, #tpu.memory_space<vmem>>, vector<1x384xf32>
    %228 = vector.extract_strided_slice %227 {offsets = [0, 0], sizes = [1, 128], strides = [1, 1]} : vector<1x384xf32> to vector<1x128xf32>
    %229 = vector.extract_strided_slice %225 {offsets = [0, 0], sizes = [1, 128], strides = [1, 1]} : vector<1x384xf32> to vector<1x128xf32>
    %230 = arith.addf %228, %229 : vector<1x128xf32>
    %231 = arith.negf %230 : vector<1x128xf32>
    %232 = math.exp %231 : vector<1x128xf32>
    %cst_84 = arith.constant 1.000000e+00 : f32
    %233 = vector.broadcast %cst_84 : f32 to vector<1x128xf32>
    %234 = arith.addf %233, %232 : vector<1x128xf32>
    %235 = arith.divf %233, %234 : vector<1x128xf32>
    %236 = vector.extract_strided_slice %227 {offsets = [0, 128], sizes = [1, 128], strides = [1, 1]} : vector<1x384xf32> to vector<1x128xf32>
    %237 = vector.extract_strided_slice %225 {offsets = [0, 128], sizes = [1, 128], strides = [1, 1]} : vector<1x384xf32> to vector<1x128xf32>
    %238 = arith.addf %236, %237 : vector<1x128xf32>
    %239 = arith.negf %238 : vector<1x128xf32>
    %240 = math.exp %239 : vector<1x128xf32>
    %cst_85 = arith.constant 1.000000e+00 : f32
    %241 = vector.broadcast %cst_85 : f32 to vector<1x128xf32>
    %242 = arith.addf %241, %240 : vector<1x128xf32>
    %243 = arith.divf %241, %242 : vector<1x128xf32>
    %244 = vector.extract_strided_slice %227 {offsets = [0, 256], sizes = [1, 128], strides = [1, 1]} : vector<1x384xf32> to vector<1x128xf32>
    %245 = vector.extract_strided_slice %225 {offsets = [0, 256], sizes = [1, 128], strides = [1, 1]} : vector<1x384xf32> to vector<1x128xf32>
    %246 = arith.mulf %235, %245 : vector<1x128xf32>
    %247 = arith.addf %244, %246 : vector<1x128xf32>
    %248 = math.tanh %247 : vector<1x128xf32>
    %cst_86 = arith.constant 1.000000e+00 : f32
    %249 = vector.broadcast %cst_86 : f32 to vector<1x128xf32>
    %250 = arith.subf %249, %243 : vector<1x128xf32>
    %251 = arith.mulf %250, %248 : vector<1x128xf32>
    %252 = arith.mulf %243, %184 : vector<1x128xf32>
    %253 = arith.addf %251, %252 : vector<1x128xf32>
    %254 = arith.index_cast %c3_i32 : i32 to index
    %c0_87 = arith.constant 0 : index
    %255 = vector.load %arg20[%254, %c0_87] : memref<8x128xf32, #tpu.memory_space<vmem>>, vector<1x128xf32>
    tpu.vector_store %arg20[%254, %c0_87], %253 {strides = array<i32>} : memref<8x128xf32, #tpu.memory_space<vmem>>, vector<1x128xf32>,
    %c0_88 = arith.constant 0 : index
    %c0_89 = arith.constant 0 : index
    %256 = vector.load %arg7[%c0_88, %c0_89] : memref<128x384xf32, #tpu.memory_space<vmem>>, vector<128x384xf32>
    %cst_90 = arith.constant dense<0.000000e+00> : vector<1x384xf32>
    %257 = tpu.matmul %218, %256, %cst_90 {dimension_numbers = #tpu.dot_dimension_numbers<[1], [0], [0], [1], [0, 0, 1, 1], [], []>} : vector<1x128xf32>, vector<128x384xf32>, vector<1x384xf32> -> vector<1x384xf32>
    %c0_91 = arith.constant 0 : index
    %c0_92 = arith.constant 0 : index
    %258 = vector.load %arg9[%c0_91, %c0_92] : memref<1x384xf32, #tpu.memory_space<vmem>>, vector<1x384xf32>
    %259 = arith.addf %257, %258 : vector<1x384xf32>
    %260 = arith.index_cast %221 : i32 to index
    %c0_93 = arith.constant 0 : index
    %261 = vector.load %arg23[%260, %c0_93] : memref<8x384xf32, #tpu.memory_space<vmem>>, vector<1x384xf32>
    %262 = vector.extract_strided_slice %261 {offsets = [0, 0], sizes = [1, 128], strides = [1, 1]} : vector<1x384xf32> to vector<1x128xf32>
    %263 = vector.extract_strided_slice %259 {offsets = [0, 0], sizes = [1, 128], strides = [1, 1]} : vector<1x384xf32> to vector<1x128xf32>
    %264 = arith.addf %262, %263 : vector<1x128xf32>
    %265 = arith.negf %264 : vector<1x128xf32>
    %266 = math.exp %265 : vector<1x128xf32>
    %cst_94 = arith.constant 1.000000e+00 : f32
    %267 = vector.broadcast %cst_94 : f32 to vector<1x128xf32>
    %268 = arith.addf %267, %266 : vector<1x128xf32>
    %269 = arith.divf %267, %268 : vector<1x128xf32>
    %270 = vector.extract_strided_slice %261 {offsets = [0, 128], sizes = [1, 128], strides = [1, 1]} : vector<1x384xf32> to vector<1x128xf32>
    %271 = vector.extract_strided_slice %259 {offsets = [0, 128], sizes = [1, 128], strides = [1, 1]} : vector<1x384xf32> to vector<1x128xf32>
    %272 = arith.addf %270, %271 : vector<1x128xf32>
    %273 = arith.negf %272 : vector<1x128xf32>
    %274 = math.exp %273 : vector<1x128xf32>
    %cst_95 = arith.constant 1.000000e+00 : f32
    %275 = vector.broadcast %cst_95 : f32 to vector<1x128xf32>
    %276 = arith.addf %275, %274 : vector<1x128xf32>
    %277 = arith.divf %275, %276 : vector<1x128xf32>
    %278 = vector.extract_strided_slice %261 {offsets = [0, 256], sizes = [1, 128], strides = [1, 1]} : vector<1x384xf32> to vector<1x128xf32>
    %279 = vector.extract_strided_slice %259 {offsets = [0, 256], sizes = [1, 128], strides = [1, 1]} : vector<1x384xf32> to vector<1x128xf32>
    %280 = arith.mulf %269, %279 : vector<1x128xf32>
    %281 = arith.addf %278, %280 : vector<1x128xf32>
    %282 = math.tanh %281 : vector<1x128xf32>
    %cst_96 = arith.constant 1.000000e+00 : f32
    %283 = vector.broadcast %cst_96 : f32 to vector<1x128xf32>
    %284 = arith.subf %283, %277 : vector<1x128xf32>
    %285 = arith.mulf %284, %282 : vector<1x128xf32>
    %286 = arith.mulf %277, %218 : vector<1x128xf32>
    %287 = arith.addf %285, %286 : vector<1x128xf32>
    %288 = arith.index_cast %221 : i32 to index
    %c0_97 = arith.constant 0 : index
    %289 = vector.load %arg21[%288, %c0_97] : memref<8x128xf32, #tpu.memory_space<vmem>>, vector<1x128xf32>
    tpu.vector_store %arg21[%288, %c0_97], %287 {strides = array<i32>} : memref<8x128xf32, #tpu.memory_space<vmem>>, vector<1x128xf32>,
    %c4_i32 = arith.constant 4 : i32
    %c7_i32_98 = arith.constant 7 : i32
    %290 = arith.subi %c7_i32_98, %c4_i32 : i32
    %c0_99 = arith.constant 0 : index
    %c0_100 = arith.constant 0 : index
    %291 = vector.load %arg3[%c0_99, %c0_100] : memref<128x384xf32, #tpu.memory_space<vmem>>, vector<128x384xf32>
    %cst_101 = arith.constant dense<0.000000e+00> : vector<1x384xf32>
    %292 = tpu.matmul %253, %291, %cst_101 {dimension_numbers = #tpu.dot_dimension_numbers<[1], [0], [0], [1], [0, 0, 1, 1], [], []>} : vector<1x128xf32>, vector<128x384xf32>, vector<1x384xf32> -> vector<1x384xf32>
    %c0_102 = arith.constant 0 : index
    %c0_103 = arith.constant 0 : index
    %293 = vector.load %arg5[%c0_102, %c0_103] : memref<1x384xf32, #tpu.memory_space<vmem>>, vector<1x384xf32>
    %294 = arith.addf %292, %293 : vector<1x384xf32>
    %295 = arith.index_cast %c4_i32 : i32 to index
    %c0_104 = arith.constant 0 : index
    %296 = vector.load %arg22[%295, %c0_104] : memref<8x384xf32, #tpu.memory_space<vmem>>, vector<1x384xf32>
    %297 = vector.extract_strided_slice %296 {offsets = [0, 0], sizes = [1, 128], strides = [1, 1]} : vector<1x384xf32> to vector<1x128xf32>
    %298 = vector.extract_strided_slice %294 {offsets = [0, 0], sizes = [1, 128], strides = [1, 1]} : vector<1x384xf32> to vector<1x128xf32>
    %299 = arith.addf %297, %298 : vector<1x128xf32>
    %300 = arith.negf %299 : vector<1x128xf32>
    %301 = math.exp %300 : vector<1x128xf32>
    %cst_105 = arith.constant 1.000000e+00 : f32
    %302 = vector.broadcast %cst_105 : f32 to vector<1x128xf32>
    %303 = arith.addf %302, %301 : vector<1x128xf32>
    %304 = arith.divf %302, %303 : vector<1x128xf32>
    %305 = vector.extract_strided_slice %296 {offsets = [0, 128], sizes = [1, 128], strides = [1, 1]} : vector<1x384xf32> to vector<1x128xf32>
    %306 = vector.extract_strided_slice %294 {offsets = [0, 128], sizes = [1, 128], strides = [1, 1]} : vector<1x384xf32> to vector<1x128xf32>
    %307 = arith.addf %305, %306 : vector<1x128xf32>
    %308 = arith.negf %307 : vector<1x128xf32>
    %309 = math.exp %308 : vector<1x128xf32>
    %cst_106 = arith.constant 1.000000e+00 : f32
    %310 = vector.broadcast %cst_106 : f32 to vector<1x128xf32>
    %311 = arith.addf %310, %309 : vector<1x128xf32>
    %312 = arith.divf %310, %311 : vector<1x128xf32>
    %313 = vector.extract_strided_slice %296 {offsets = [0, 256], sizes = [1, 128], strides = [1, 1]} : vector<1x384xf32> to vector<1x128xf32>
    %314 = vector.extract_strided_slice %294 {offsets = [0, 256], sizes = [1, 128], strides = [1, 1]} : vector<1x384xf32> to vector<1x128xf32>
    %315 = arith.mulf %304, %314 : vector<1x128xf32>
    %316 = arith.addf %313, %315 : vector<1x128xf32>
    %317 = math.tanh %316 : vector<1x128xf32>
    %cst_107 = arith.constant 1.000000e+00 : f32
    %318 = vector.broadcast %cst_107 : f32 to vector<1x128xf32>
    %319 = arith.subf %318, %312 : vector<1x128xf32>
    %320 = arith.mulf %319, %317 : vector<1x128xf32>
    %321 = arith.mulf %312, %253 : vector<1x128xf32>
    %322 = arith.addf %320, %321 : vector<1x128xf32>
    %323 = arith.index_cast %c4_i32 : i32 to index
    %c0_108 = arith.constant 0 : index
    %324 = vector.load %arg20[%323, %c0_108] : memref<8x128xf32, #tpu.memory_space<vmem>>, vector<1x128xf32>
    tpu.vector_store %arg20[%323, %c0_108], %322 {strides = array<i32>} : memref<8x128xf32, #tpu.memory_space<vmem>>, vector<1x128xf32>,
    %c0_109 = arith.constant 0 : index
    %c0_110 = arith.constant 0 : index
    %325 = vector.load %arg7[%c0_109, %c0_110] : memref<128x384xf32, #tpu.memory_space<vmem>>, vector<128x384xf32>
    %cst_111 = arith.constant dense<0.000000e+00> : vector<1x384xf32>
    %326 = tpu.matmul %287, %325, %cst_111 {dimension_numbers = #tpu.dot_dimension_numbers<[1], [0], [0], [1], [0, 0, 1, 1], [], []>} : vector<1x128xf32>, vector<128x384xf32>, vector<1x384xf32> -> vector<1x384xf32>
    %c0_112 = arith.constant 0 : index
    %c0_113 = arith.constant 0 : index
    %327 = vector.load %arg9[%c0_112, %c0_113] : memref<1x384xf32, #tpu.memory_space<vmem>>, vector<1x384xf32>
    %328 = arith.addf %326, %327 : vector<1x384xf32>
    %329 = arith.index_cast %290 : i32 to index
    %c0_114 = arith.constant 0 : index
    %330 = vector.load %arg23[%329, %c0_114] : memref<8x384xf32, #tpu.memory_space<vmem>>, vector<1x384xf32>
    %331 = vector.extract_strided_slice %330 {offsets = [0, 0], sizes = [1, 128], strides = [1, 1]} : vector<1x384xf32> to vector<1x128xf32>
    %332 = vector.extract_strided_slice %328 {offsets = [0, 0], sizes = [1, 128], strides = [1, 1]} : vector<1x384xf32> to vector<1x128xf32>
    %333 = arith.addf %331, %332 : vector<1x128xf32>
    %334 = arith.negf %333 : vector<1x128xf32>
    %335 = math.exp %334 : vector<1x128xf32>
    %cst_115 = arith.constant 1.000000e+00 : f32
    %336 = vector.broadcast %cst_115 : f32 to vector<1x128xf32>
    %337 = arith.addf %336, %335 : vector<1x128xf32>
    %338 = arith.divf %336, %337 : vector<1x128xf32>
    %339 = vector.extract_strided_slice %330 {offsets = [0, 128], sizes = [1, 128], strides = [1, 1]} : vector<1x384xf32> to vector<1x128xf32>
    %340 = vector.extract_strided_slice %328 {offsets = [0, 128], sizes = [1, 128], strides = [1, 1]} : vector<1x384xf32> to vector<1x128xf32>
    %341 = arith.addf %339, %340 : vector<1x128xf32>
    %342 = arith.negf %341 : vector<1x128xf32>
    %343 = math.exp %342 : vector<1x128xf32>
    %cst_116 = arith.constant 1.000000e+00 : f32
    %344 = vector.broadcast %cst_116 : f32 to vector<1x128xf32>
    %345 = arith.addf %344, %343 : vector<1x128xf32>
    %346 = arith.divf %344, %345 : vector<1x128xf32>
    %347 = vector.extract_strided_slice %330 {offsets = [0, 256], sizes = [1, 128], strides = [1, 1]} : vector<1x384xf32> to vector<1x128xf32>
    %348 = vector.extract_strided_slice %328 {offsets = [0, 256], sizes = [1, 128], strides = [1, 1]} : vector<1x384xf32> to vector<1x128xf32>
    %349 = arith.mulf %338, %348 : vector<1x128xf32>
    %350 = arith.addf %347, %349 : vector<1x128xf32>
    %351 = math.tanh %350 : vector<1x128xf32>
    %cst_117 = arith.constant 1.000000e+00 : f32
    %352 = vector.broadcast %cst_117 : f32 to vector<1x128xf32>
    %353 = arith.subf %352, %346 : vector<1x128xf32>
    %354 = arith.mulf %353, %351 : vector<1x128xf32>
    %355 = arith.mulf %346, %287 : vector<1x128xf32>
    %356 = arith.addf %354, %355 : vector<1x128xf32>
    %357 = arith.index_cast %290 : i32 to index
    %c0_118 = arith.constant 0 : index
    %358 = vector.load %arg21[%357, %c0_118] : memref<8x128xf32, #tpu.memory_space<vmem>>, vector<1x128xf32>
    tpu.vector_store %arg21[%357, %c0_118], %356 {strides = array<i32>} : memref<8x128xf32, #tpu.memory_space<vmem>>, vector<1x128xf32>,
    %c5_i32 = arith.constant 5 : i32
    %c7_i32_119 = arith.constant 7 : i32
    %359 = arith.subi %c7_i32_119, %c5_i32 : i32
    %c0_120 = arith.constant 0 : index
    %c0_121 = arith.constant 0 : index
    %360 = vector.load %arg3[%c0_120, %c0_121] : memref<128x384xf32, #tpu.memory_space<vmem>>, vector<128x384xf32>
    %cst_122 = arith.constant dense<0.000000e+00> : vector<1x384xf32>
    %361 = tpu.matmul %322, %360, %cst_122 {dimension_numbers = #tpu.dot_dimension_numbers<[1], [0], [0], [1], [0, 0, 1, 1], [], []>} : vector<1x128xf32>, vector<128x384xf32>, vector<1x384xf32> -> vector<1x384xf32>
    %c0_123 = arith.constant 0 : index
    %c0_124 = arith.constant 0 : index
    %362 = vector.load %arg5[%c0_123, %c0_124] : memref<1x384xf32, #tpu.memory_space<vmem>>, vector<1x384xf32>
    %363 = arith.addf %361, %362 : vector<1x384xf32>
    %364 = arith.index_cast %c5_i32 : i32 to index
    %c0_125 = arith.constant 0 : index
    %365 = vector.load %arg22[%364, %c0_125] : memref<8x384xf32, #tpu.memory_space<vmem>>, vector<1x384xf32>
    %366 = vector.extract_strided_slice %365 {offsets = [0, 0], sizes = [1, 128], strides = [1, 1]} : vector<1x384xf32> to vector<1x128xf32>
    %367 = vector.extract_strided_slice %363 {offsets = [0, 0], sizes = [1, 128], strides = [1, 1]} : vector<1x384xf32> to vector<1x128xf32>
    %368 = arith.addf %366, %367 : vector<1x128xf32>
    %369 = arith.negf %368 : vector<1x128xf32>
    %370 = math.exp %369 : vector<1x128xf32>
    %cst_126 = arith.constant 1.000000e+00 : f32
    %371 = vector.broadcast %cst_126 : f32 to vector<1x128xf32>
    %372 = arith.addf %371, %370 : vector<1x128xf32>
    %373 = arith.divf %371, %372 : vector<1x128xf32>
    %374 = vector.extract_strided_slice %365 {offsets = [0, 128], sizes = [1, 128], strides = [1, 1]} : vector<1x384xf32> to vector<1x128xf32>
    %375 = vector.extract_strided_slice %363 {offsets = [0, 128], sizes = [1, 128], strides = [1, 1]} : vector<1x384xf32> to vector<1x128xf32>
    %376 = arith.addf %374, %375 : vector<1x128xf32>
    %377 = arith.negf %376 : vector<1x128xf32>
    %378 = math.exp %377 : vector<1x128xf32>
    %cst_127 = arith.constant 1.000000e+00 : f32
    %379 = vector.broadcast %cst_127 : f32 to vector<1x128xf32>
    %380 = arith.addf %379, %378 : vector<1x128xf32>
    %381 = arith.divf %379, %380 : vector<1x128xf32>
    %382 = vector.extract_strided_slice %365 {offsets = [0, 256], sizes = [1, 128], strides = [1, 1]} : vector<1x384xf32> to vector<1x128xf32>
    %383 = vector.extract_strided_slice %363 {offsets = [0, 256], sizes = [1, 128], strides = [1, 1]} : vector<1x384xf32> to vector<1x128xf32>
    %384 = arith.mulf %373, %383 : vector<1x128xf32>
    %385 = arith.addf %382, %384 : vector<1x128xf32>
    %386 = math.tanh %385 : vector<1x128xf32>
    %cst_128 = arith.constant 1.000000e+00 : f32
    %387 = vector.broadcast %cst_128 : f32 to vector<1x128xf32>
    %388 = arith.subf %387, %381 : vector<1x128xf32>
    %389 = arith.mulf %388, %386 : vector<1x128xf32>
    %390 = arith.mulf %381, %322 : vector<1x128xf32>
    %391 = arith.addf %389, %390 : vector<1x128xf32>
    %392 = arith.index_cast %c5_i32 : i32 to index
    %c0_129 = arith.constant 0 : index
    %393 = vector.load %arg20[%392, %c0_129] : memref<8x128xf32, #tpu.memory_space<vmem>>, vector<1x128xf32>
    tpu.vector_store %arg20[%392, %c0_129], %391 {strides = array<i32>} : memref<8x128xf32, #tpu.memory_space<vmem>>, vector<1x128xf32>,
    %c0_130 = arith.constant 0 : index
    %c0_131 = arith.constant 0 : index
    %394 = vector.load %arg7[%c0_130, %c0_131] : memref<128x384xf32, #tpu.memory_space<vmem>>, vector<128x384xf32>
    %cst_132 = arith.constant dense<0.000000e+00> : vector<1x384xf32>
    %395 = tpu.matmul %356, %394, %cst_132 {dimension_numbers = #tpu.dot_dimension_numbers<[1], [0], [0], [1], [0, 0, 1, 1], [], []>} : vector<1x128xf32>, vector<128x384xf32>, vector<1x384xf32> -> vector<1x384xf32>
    %c0_133 = arith.constant 0 : index
    %c0_134 = arith.constant 0 : index
    %396 = vector.load %arg9[%c0_133, %c0_134] : memref<1x384xf32, #tpu.memory_space<vmem>>, vector<1x384xf32>
    %397 = arith.addf %395, %396 : vector<1x384xf32>
    %398 = arith.index_cast %359 : i32 to index
    %c0_135 = arith.constant 0 : index
    %399 = vector.load %arg23[%398, %c0_135] : memref<8x384xf32, #tpu.memory_space<vmem>>, vector<1x384xf32>
    %400 = vector.extract_strided_slice %399 {offsets = [0, 0], sizes = [1, 128], strides = [1, 1]} : vector<1x384xf32> to vector<1x128xf32>
    %401 = vector.extract_strided_slice %397 {offsets = [0, 0], sizes = [1, 128], strides = [1, 1]} : vector<1x384xf32> to vector<1x128xf32>
    %402 = arith.addf %400, %401 : vector<1x128xf32>
    %403 = arith.negf %402 : vector<1x128xf32>
    %404 = math.exp %403 : vector<1x128xf32>
    %cst_136 = arith.constant 1.000000e+00 : f32
    %405 = vector.broadcast %cst_136 : f32 to vector<1x128xf32>
    %406 = arith.addf %405, %404 : vector<1x128xf32>
    %407 = arith.divf %405, %406 : vector<1x128xf32>
    %408 = vector.extract_strided_slice %399 {offsets = [0, 128], sizes = [1, 128], strides = [1, 1]} : vector<1x384xf32> to vector<1x128xf32>
    %409 = vector.extract_strided_slice %397 {offsets = [0, 128], sizes = [1, 128], strides = [1, 1]} : vector<1x384xf32> to vector<1x128xf32>
    %410 = arith.addf %408, %409 : vector<1x128xf32>
    %411 = arith.negf %410 : vector<1x128xf32>
    %412 = math.exp %411 : vector<1x128xf32>
    %cst_137 = arith.constant 1.000000e+00 : f32
    %413 = vector.broadcast %cst_137 : f32 to vector<1x128xf32>
    %414 = arith.addf %413, %412 : vector<1x128xf32>
    %415 = arith.divf %413, %414 : vector<1x128xf32>
    %416 = vector.extract_strided_slice %399 {offsets = [0, 256], sizes = [1, 128], strides = [1, 1]} : vector<1x384xf32> to vector<1x128xf32>
    %417 = vector.extract_strided_slice %397 {offsets = [0, 256], sizes = [1, 128], strides = [1, 1]} : vector<1x384xf32> to vector<1x128xf32>
    %418 = arith.mulf %407, %417 : vector<1x128xf32>
    %419 = arith.addf %416, %418 : vector<1x128xf32>
    %420 = math.tanh %419 : vector<1x128xf32>
    %cst_138 = arith.constant 1.000000e+00 : f32
    %421 = vector.broadcast %cst_138 : f32 to vector<1x128xf32>
    %422 = arith.subf %421, %415 : vector<1x128xf32>
    %423 = arith.mulf %422, %420 : vector<1x128xf32>
    %424 = arith.mulf %415, %356 : vector<1x128xf32>
    %425 = arith.addf %423, %424 : vector<1x128xf32>
    %426 = arith.index_cast %359 : i32 to index
    %c0_139 = arith.constant 0 : index
    %427 = vector.load %arg21[%426, %c0_139] : memref<8x128xf32, #tpu.memory_space<vmem>>, vector<1x128xf32>
    tpu.vector_store %arg21[%426, %c0_139], %425 {strides = array<i32>} : memref<8x128xf32, #tpu.memory_space<vmem>>, vector<1x128xf32>,
    %c6_i32 = arith.constant 6 : i32
    %c7_i32_140 = arith.constant 7 : i32
    %428 = arith.subi %c7_i32_140, %c6_i32 : i32
    %c0_141 = arith.constant 0 : index
    %c0_142 = arith.constant 0 : index
    %429 = vector.load %arg3[%c0_141, %c0_142] : memref<128x384xf32, #tpu.memory_space<vmem>>, vector<128x384xf32>
    %cst_143 = arith.constant dense<0.000000e+00> : vector<1x384xf32>
    %430 = tpu.matmul %391, %429, %cst_143 {dimension_numbers = #tpu.dot_dimension_numbers<[1], [0], [0], [1], [0, 0, 1, 1], [], []>} : vector<1x128xf32>, vector<128x384xf32>, vector<1x384xf32> -> vector<1x384xf32>
    %c0_144 = arith.constant 0 : index
    %c0_145 = arith.constant 0 : index
    %431 = vector.load %arg5[%c0_144, %c0_145] : memref<1x384xf32, #tpu.memory_space<vmem>>, vector<1x384xf32>
    %432 = arith.addf %430, %431 : vector<1x384xf32>
    %433 = arith.index_cast %c6_i32 : i32 to index
    %c0_146 = arith.constant 0 : index
    %434 = vector.load %arg22[%433, %c0_146] : memref<8x384xf32, #tpu.memory_space<vmem>>, vector<1x384xf32>
    %435 = vector.extract_strided_slice %434 {offsets = [0, 0], sizes = [1, 128], strides = [1, 1]} : vector<1x384xf32> to vector<1x128xf32>
    %436 = vector.extract_strided_slice %432 {offsets = [0, 0], sizes = [1, 128], strides = [1, 1]} : vector<1x384xf32> to vector<1x128xf32>
    %437 = arith.addf %435, %436 : vector<1x128xf32>
    %438 = arith.negf %437 : vector<1x128xf32>
    %439 = math.exp %438 : vector<1x128xf32>
    %cst_147 = arith.constant 1.000000e+00 : f32
    %440 = vector.broadcast %cst_147 : f32 to vector<1x128xf32>
    %441 = arith.addf %440, %439 : vector<1x128xf32>
    %442 = arith.divf %440, %441 : vector<1x128xf32>
    %443 = vector.extract_strided_slice %434 {offsets = [0, 128], sizes = [1, 128], strides = [1, 1]} : vector<1x384xf32> to vector<1x128xf32>
    %444 = vector.extract_strided_slice %432 {offsets = [0, 128], sizes = [1, 128], strides = [1, 1]} : vector<1x384xf32> to vector<1x128xf32>
    %445 = arith.addf %443, %444 : vector<1x128xf32>
    %446 = arith.negf %445 : vector<1x128xf32>
    %447 = math.exp %446 : vector<1x128xf32>
    %cst_148 = arith.constant 1.000000e+00 : f32
    %448 = vector.broadcast %cst_148 : f32 to vector<1x128xf32>
    %449 = arith.addf %448, %447 : vector<1x128xf32>
    %450 = arith.divf %448, %449 : vector<1x128xf32>
    %451 = vector.extract_strided_slice %434 {offsets = [0, 256], sizes = [1, 128], strides = [1, 1]} : vector<1x384xf32> to vector<1x128xf32>
    %452 = vector.extract_strided_slice %432 {offsets = [0, 256], sizes = [1, 128], strides = [1, 1]} : vector<1x384xf32> to vector<1x128xf32>
    %453 = arith.mulf %442, %452 : vector<1x128xf32>
    %454 = arith.addf %451, %453 : vector<1x128xf32>
    %455 = math.tanh %454 : vector<1x128xf32>
    %cst_149 = arith.constant 1.000000e+00 : f32
    %456 = vector.broadcast %cst_149 : f32 to vector<1x128xf32>
    %457 = arith.subf %456, %450 : vector<1x128xf32>
    %458 = arith.mulf %457, %455 : vector<1x128xf32>
    %459 = arith.mulf %450, %391 : vector<1x128xf32>
    %460 = arith.addf %458, %459 : vector<1x128xf32>
    %461 = arith.index_cast %c6_i32 : i32 to index
    %c0_150 = arith.constant 0 : index
    %462 = vector.load %arg20[%461, %c0_150] : memref<8x128xf32, #tpu.memory_space<vmem>>, vector<1x128xf32>
    tpu.vector_store %arg20[%461, %c0_150], %460 {strides = array<i32>} : memref<8x128xf32, #tpu.memory_space<vmem>>, vector<1x128xf32>,
    %c0_151 = arith.constant 0 : index
    %c0_152 = arith.constant 0 : index
    %463 = vector.load %arg7[%c0_151, %c0_152] : memref<128x384xf32, #tpu.memory_space<vmem>>, vector<128x384xf32>
    %cst_153 = arith.constant dense<0.000000e+00> : vector<1x384xf32>
    %464 = tpu.matmul %425, %463, %cst_153 {dimension_numbers = #tpu.dot_dimension_numbers<[1], [0], [0], [1], [0, 0, 1, 1], [], []>} : vector<1x128xf32>, vector<128x384xf32>, vector<1x384xf32> -> vector<1x384xf32>
    %c0_154 = arith.constant 0 : index
    %c0_155 = arith.constant 0 : index
    %465 = vector.load %arg9[%c0_154, %c0_155] : memref<1x384xf32, #tpu.memory_space<vmem>>, vector<1x384xf32>
    %466 = arith.addf %464, %465 : vector<1x384xf32>
    %467 = arith.index_cast %428 : i32 to index
    %c0_156 = arith.constant 0 : index
    %468 = vector.load %arg23[%467, %c0_156] : memref<8x384xf32, #tpu.memory_space<vmem>>, vector<1x384xf32>
    %469 = vector.extract_strided_slice %468 {offsets = [0, 0], sizes = [1, 128], strides = [1, 1]} : vector<1x384xf32> to vector<1x128xf32>
    %470 = vector.extract_strided_slice %466 {offsets = [0, 0], sizes = [1, 128], strides = [1, 1]} : vector<1x384xf32> to vector<1x128xf32>
    %471 = arith.addf %469, %470 : vector<1x128xf32>
    %472 = arith.negf %471 : vector<1x128xf32>
    %473 = math.exp %472 : vector<1x128xf32>
    %cst_157 = arith.constant 1.000000e+00 : f32
    %474 = vector.broadcast %cst_157 : f32 to vector<1x128xf32>
    %475 = arith.addf %474, %473 : vector<1x128xf32>
    %476 = arith.divf %474, %475 : vector<1x128xf32>
    %477 = vector.extract_strided_slice %468 {offsets = [0, 128], sizes = [1, 128], strides = [1, 1]} : vector<1x384xf32> to vector<1x128xf32>
    %478 = vector.extract_strided_slice %466 {offsets = [0, 128], sizes = [1, 128], strides = [1, 1]} : vector<1x384xf32> to vector<1x128xf32>
    %479 = arith.addf %477, %478 : vector<1x128xf32>
    %480 = arith.negf %479 : vector<1x128xf32>
    %481 = math.exp %480 : vector<1x128xf32>
    %cst_158 = arith.constant 1.000000e+00 : f32
    %482 = vector.broadcast %cst_158 : f32 to vector<1x128xf32>
    %483 = arith.addf %482, %481 : vector<1x128xf32>
    %484 = arith.divf %482, %483 : vector<1x128xf32>
    %485 = vector.extract_strided_slice %468 {offsets = [0, 256], sizes = [1, 128], strides = [1, 1]} : vector<1x384xf32> to vector<1x128xf32>
    %486 = vector.extract_strided_slice %466 {offsets = [0, 256], sizes = [1, 128], strides = [1, 1]} : vector<1x384xf32> to vector<1x128xf32>
    %487 = arith.mulf %476, %486 : vector<1x128xf32>
    %488 = arith.addf %485, %487 : vector<1x128xf32>
    %489 = math.tanh %488 : vector<1x128xf32>
    %cst_159 = arith.constant 1.000000e+00 : f32
    %490 = vector.broadcast %cst_159 : f32 to vector<1x128xf32>
    %491 = arith.subf %490, %484 : vector<1x128xf32>
    %492 = arith.mulf %491, %489 : vector<1x128xf32>
    %493 = arith.mulf %484, %425 : vector<1x128xf32>
    %494 = arith.addf %492, %493 : vector<1x128xf32>
    %495 = arith.index_cast %428 : i32 to index
    %c0_160 = arith.constant 0 : index
    %496 = vector.load %arg21[%495, %c0_160] : memref<8x128xf32, #tpu.memory_space<vmem>>, vector<1x128xf32>
    tpu.vector_store %arg21[%495, %c0_160], %494 {strides = array<i32>} : memref<8x128xf32, #tpu.memory_space<vmem>>, vector<1x128xf32>,
    %c7_i32_161 = arith.constant 7 : i32
    %c7_i32_162 = arith.constant 7 : i32
    %497 = arith.subi %c7_i32_162, %c7_i32_161 : i32
    %c0_163 = arith.constant 0 : index
    %c0_164 = arith.constant 0 : index
    %498 = vector.load %arg3[%c0_163, %c0_164] : memref<128x384xf32, #tpu.memory_space<vmem>>, vector<128x384xf32>
    %cst_165 = arith.constant dense<0.000000e+00> : vector<1x384xf32>
    %499 = tpu.matmul %460, %498, %cst_165 {dimension_numbers = #tpu.dot_dimension_numbers<[1], [0], [0], [1], [0, 0, 1, 1], [], []>} : vector<1x128xf32>, vector<128x384xf32>, vector<1x384xf32> -> vector<1x384xf32>
    %c0_166 = arith.constant 0 : index
    %c0_167 = arith.constant 0 : index
    %500 = vector.load %arg5[%c0_166, %c0_167] : memref<1x384xf32, #tpu.memory_space<vmem>>, vector<1x384xf32>
    %501 = arith.addf %499, %500 : vector<1x384xf32>
    %502 = arith.index_cast %c7_i32_161 : i32 to index
    %c0_168 = arith.constant 0 : index
    %503 = vector.load %arg22[%502, %c0_168] : memref<8x384xf32, #tpu.memory_space<vmem>>, vector<1x384xf32>
    %504 = vector.extract_strided_slice %503 {offsets = [0, 0], sizes = [1, 128], strides = [1, 1]} : vector<1x384xf32> to vector<1x128xf32>
    %505 = vector.extract_strided_slice %501 {offsets = [0, 0], sizes = [1, 128], strides = [1, 1]} : vector<1x384xf32> to vector<1x128xf32>
    %506 = arith.addf %504, %505 : vector<1x128xf32>
    %507 = arith.negf %506 : vector<1x128xf32>
    %508 = math.exp %507 : vector<1x128xf32>
    %cst_169 = arith.constant 1.000000e+00 : f32
    %509 = vector.broadcast %cst_169 : f32 to vector<1x128xf32>
    %510 = arith.addf %509, %508 : vector<1x128xf32>
    %511 = arith.divf %509, %510 : vector<1x128xf32>
    %512 = vector.extract_strided_slice %503 {offsets = [0, 128], sizes = [1, 128], strides = [1, 1]} : vector<1x384xf32> to vector<1x128xf32>
    %513 = vector.extract_strided_slice %501 {offsets = [0, 128], sizes = [1, 128], strides = [1, 1]} : vector<1x384xf32> to vector<1x128xf32>
    %514 = arith.addf %512, %513 : vector<1x128xf32>
    %515 = arith.negf %514 : vector<1x128xf32>
    %516 = math.exp %515 : vector<1x128xf32>
    %cst_170 = arith.constant 1.000000e+00 : f32
    %517 = vector.broadcast %cst_170 : f32 to vector<1x128xf32>
    %518 = arith.addf %517, %516 : vector<1x128xf32>
    %519 = arith.divf %517, %518 : vector<1x128xf32>
    %520 = vector.extract_strided_slice %503 {offsets = [0, 256], sizes = [1, 128], strides = [1, 1]} : vector<1x384xf32> to vector<1x128xf32>
    %521 = vector.extract_strided_slice %501 {offsets = [0, 256], sizes = [1, 128], strides = [1, 1]} : vector<1x384xf32> to vector<1x128xf32>
    %522 = arith.mulf %511, %521 : vector<1x128xf32>
    %523 = arith.addf %520, %522 : vector<1x128xf32>
    %524 = math.tanh %523 : vector<1x128xf32>
    %cst_171 = arith.constant 1.000000e+00 : f32
    %525 = vector.broadcast %cst_171 : f32 to vector<1x128xf32>
    %526 = arith.subf %525, %519 : vector<1x128xf32>
    %527 = arith.mulf %526, %524 : vector<1x128xf32>
    %528 = arith.mulf %519, %460 : vector<1x128xf32>
    %529 = arith.addf %527, %528 : vector<1x128xf32>
    %530 = arith.index_cast %c7_i32_161 : i32 to index
    %c0_172 = arith.constant 0 : index
    %531 = vector.load %arg20[%530, %c0_172] : memref<8x128xf32, #tpu.memory_space<vmem>>, vector<1x128xf32>
    tpu.vector_store %arg20[%530, %c0_172], %529 {strides = array<i32>} : memref<8x128xf32, #tpu.memory_space<vmem>>, vector<1x128xf32>,
    %c0_173 = arith.constant 0 : index
    %c0_174 = arith.constant 0 : index
    %532 = vector.load %arg7[%c0_173, %c0_174] : memref<128x384xf32, #tpu.memory_space<vmem>>, vector<128x384xf32>
    %cst_175 = arith.constant dense<0.000000e+00> : vector<1x384xf32>
    %533 = tpu.matmul %494, %532, %cst_175 {dimension_numbers = #tpu.dot_dimension_numbers<[1], [0], [0], [1], [0, 0, 1, 1], [], []>} : vector<1x128xf32>, vector<128x384xf32>, vector<1x384xf32> -> vector<1x384xf32>
    %c0_176 = arith.constant 0 : index
    %c0_177 = arith.constant 0 : index
    %534 = vector.load %arg9[%c0_176, %c0_177] : memref<1x384xf32, #tpu.memory_space<vmem>>, vector<1x384xf32>
    %535 = arith.addf %533, %534 : vector<1x384xf32>
    %536 = arith.index_cast %497 : i32 to index
    %c0_178 = arith.constant 0 : index
    %537 = vector.load %arg23[%536, %c0_178] : memref<8x384xf32, #tpu.memory_space<vmem>>, vector<1x384xf32>
    %538 = vector.extract_strided_slice %537 {offsets = [0, 0], sizes = [1, 128], strides = [1, 1]} : vector<1x384xf32> to vector<1x128xf32>
    %539 = vector.extract_strided_slice %535 {offsets = [0, 0], sizes = [1, 128], strides = [1, 1]} : vector<1x384xf32> to vector<1x128xf32>
    %540 = arith.addf %538, %539 : vector<1x128xf32>
    %541 = arith.negf %540 : vector<1x128xf32>
    %542 = math.exp %541 : vector<1x128xf32>
    %cst_179 = arith.constant 1.000000e+00 : f32
    %543 = vector.broadcast %cst_179 : f32 to vector<1x128xf32>
    %544 = arith.addf %543, %542 : vector<1x128xf32>
    %545 = arith.divf %543, %544 : vector<1x128xf32>
    %546 = vector.extract_strided_slice %537 {offsets = [0, 128], sizes = [1, 128], strides = [1, 1]} : vector<1x384xf32> to vector<1x128xf32>
    %547 = vector.extract_strided_slice %535 {offsets = [0, 128], sizes = [1, 128], strides = [1, 1]} : vector<1x384xf32> to vector<1x128xf32>
    %548 = arith.addf %546, %547 : vector<1x128xf32>
    %549 = arith.negf %548 : vector<1x128xf32>
    %550 = math.exp %549 : vector<1x128xf32>
    %cst_180 = arith.constant 1.000000e+00 : f32
    %551 = vector.broadcast %cst_180 : f32 to vector<1x128xf32>
    %552 = arith.addf %551, %550 : vector<1x128xf32>
    %553 = arith.divf %551, %552 : vector<1x128xf32>
    %554 = vector.extract_strided_slice %537 {offsets = [0, 256], sizes = [1, 128], strides = [1, 1]} : vector<1x384xf32> to vector<1x128xf32>
    %555 = vector.extract_strided_slice %535 {offsets = [0, 256], sizes = [1, 128], strides = [1, 1]} : vector<1x384xf32> to vector<1x128xf32>
    %556 = arith.mulf %545, %555 : vector<1x128xf32>
    %557 = arith.addf %554, %556 : vector<1x128xf32>
    %558 = math.tanh %557 : vector<1x128xf32>
    %cst_181 = arith.constant 1.000000e+00 : f32
    %559 = vector.broadcast %cst_181 : f32 to vector<1x128xf32>
    %560 = arith.subf %559, %553 : vector<1x128xf32>
    %561 = arith.mulf %560, %558 : vector<1x128xf32>
    %562 = arith.mulf %553, %494 : vector<1x128xf32>
    %563 = arith.addf %561, %562 : vector<1x128xf32>
    %564 = arith.index_cast %497 : i32 to index
    %c0_182 = arith.constant 0 : index
    %565 = vector.load %arg21[%564, %c0_182] : memref<8x128xf32, #tpu.memory_space<vmem>>, vector<1x128xf32>
    tpu.vector_store %arg21[%564, %c0_182], %563 {strides = array<i32>} : memref<8x128xf32, #tpu.memory_space<vmem>>, vector<1x128xf32>,
    %c8_i32 = arith.constant 8 : i32
    %c0_183 = arith.constant 0 : index
    %c0_184 = arith.constant 0 : index
    %566 = vector.load %arg20[%c0_183, %c0_184] : memref<8x128xf32, #tpu.memory_space<vmem>>, vector<8x128xf32>
    %c0_185 = arith.constant 0 : index
    %c0_186 = arith.constant 0 : index
    %567 = vector.load %arg21[%c0_185, %c0_186] : memref<8x128xf32, #tpu.memory_space<vmem>>, vector<8x128xf32>
    %568 = arith.addf %566, %567 : vector<8x128xf32>
    %c0_187 = arith.constant 0 : index
    %c0_188 = arith.constant 0 : index
    %569 = vector.load %arg20[%c0_187, %c0_188] : memref<8x128xf32, #tpu.memory_space<vmem>>, vector<8x128xf32>
    tpu.vector_store %arg20[%c0_187, %c0_188], %568 {strides = array<i32>} : memref<8x128xf32, #tpu.memory_space<vmem>>, vector<8x128xf32>,
    %c0_189 = arith.constant 0 : index
    %c0_190 = arith.constant 0 : index
    %570 = vector.load %arg20[%c0_189, %c0_190] : memref<8x128xf32, #tpu.memory_space<vmem>>, vector<8x128xf32>
    %c0_i32_191 = arith.constant 0 : i32
    %571 = vector.broadcast %c0_i32_191 : i32 to vector<1x8xi32>
    %c0_192 = arith.constant 0 : index
    %c0_193 = arith.constant 0 : index
    %572 = vector.load %arg18[%c0_192, %c0_193] : memref<1x8xi32, #tpu.memory_space<vmem>>, vector<1x8xi32>
    tpu.vector_store %arg18[%c0_192, %c0_193], %571 {strides = array<i32>} : memref<1x8xi32, #tpu.memory_space<vmem>>, vector<1x8xi32>,
    %cst_194 = arith.constant 0.000000e+00 : f32
    %573 = vector.broadcast %cst_194 : f32 to vector<1x8xf32>
    %c0_195 = arith.constant 0 : index
    %c0_196 = arith.constant 0 : index
    %574 = vector.load %arg19[%c0_195, %c0_196] : memref<1x8xf32, #tpu.memory_space<vmem>>, vector<1x8xf32>
    tpu.vector_store %arg19[%c0_195, %c0_196], %573 {strides = array<i32>} : memref<1x8xf32, #tpu.memory_space<vmem>>, vector<1x8xf32>,
    %575 = tpu.iota {dimensions = array<i32: 1>} : vector<1x8xi32>
    %576 = tpu.iota {dimensions = array<i32: 1>} : vector<1x256xi32>
    %c1 = arith.constant 1 : index
    %c0_197 = arith.constant 0 : index
    %577 = vector.load %arg1[%c1, %c0_197] : memref<256x128xf32, #tpu.memory_space<vmem>>, vector<1x128xf32>
    tpu.wait_dma2 semaphore(%arg25 : memref<!tpu.dma_semaphore, #tpu.memory_space<semaphore_mem>>) src(%arg16 : memref<128x256xbf16, #tpu.memory_space<any>>) dst(%arg24 : memref<128x256xbf16, #tpu.memory_space<vmem>>)
    %c0_i32_198 = arith.constant 0 : i32
    %c0_199 = arith.constant 0 : index
    %c0_200 = arith.constant 0 : index
    %578 = vector.load %arg10[%c0_199, %c0_200] : memref<128x384xf32, #tpu.memory_space<vmem>>, vector<128x384xf32>
    %cst_201 = arith.constant dense<0.000000e+00> : vector<1x384xf32>
    %579 = tpu.matmul %577, %578, %cst_201 {dimension_numbers = #tpu.dot_dimension_numbers<[1], [0], [0], [1], [0, 0, 1, 1], [], []>} : vector<1x128xf32>, vector<128x384xf32>, vector<1x384xf32> -> vector<1x384xf32>
    %c0_202 = arith.constant 0 : index
    %c0_203 = arith.constant 0 : index
    %580 = vector.load %arg12[%c0_202, %c0_203] : memref<1x384xf32, #tpu.memory_space<vmem>>, vector<1x384xf32>
    %581 = arith.addf %579, %580 : vector<1x384xf32>
    %c0_204 = arith.constant 0 : index
    %c0_205 = arith.constant 0 : index
    %582 = vector.load %arg11[%c0_204, %c0_205] : memref<128x384xf32, #tpu.memory_space<vmem>>, vector<128x384xf32>
    %cst_206 = arith.constant dense<0.000000e+00> : vector<1x384xf32>
    %583 = tpu.matmul %529, %582, %cst_206 {dimension_numbers = #tpu.dot_dimension_numbers<[1], [0], [0], [1], [0, 0, 1, 1], [], []>} : vector<1x128xf32>, vector<128x384xf32>, vector<1x384xf32> -> vector<1x384xf32>
    %c0_207 = arith.constant 0 : index
    %c0_208 = arith.constant 0 : index
    %584 = vector.load %arg13[%c0_207, %c0_208] : memref<1x384xf32, #tpu.memory_space<vmem>>, vector<1x384xf32>
    %585 = arith.addf %583, %584 : vector<1x384xf32>
    %586 = vector.extract_strided_slice %581 {offsets = [0, 0], sizes = [1, 128], strides = [1, 1]} : vector<1x384xf32> to vector<1x128xf32>
    %587 = vector.extract_strided_slice %585 {offsets = [0, 0], sizes = [1, 128], strides = [1, 1]} : vector<1x384xf32> to vector<1x128xf32>
    %588 = arith.addf %586, %587 : vector<1x128xf32>
    %589 = arith.negf %588 : vector<1x128xf32>
    %590 = math.exp %589 : vector<1x128xf32>
    %cst_209 = arith.constant 1.000000e+00 : f32
    %591 = vector.broadcast %cst_209 : f32 to vector<1x128xf32>
    %592 = arith.addf %591, %590 : vector<1x128xf32>
    %593 = arith.divf %591, %592 : vector<1x128xf32>
    %594 = vector.extract_strided_slice %581 {offsets = [0, 128], sizes = [1, 128], strides = [1, 1]} : vector<1x384xf32> to vector<1x128xf32>
    %595 = vector.extract_strided_slice %585 {offsets = [0, 128], sizes = [1, 128], strides = [1, 1]} : vector<1x384xf32> to vector<1x128xf32>
    %596 = arith.addf %594, %595 : vector<1x128xf32>
    %597 = arith.negf %596 : vector<1x128xf32>
    %598 = math.exp %597 : vector<1x128xf32>
    %cst_210 = arith.constant 1.000000e+00 : f32
    %599 = vector.broadcast %cst_210 : f32 to vector<1x128xf32>
    %600 = arith.addf %599, %598 : vector<1x128xf32>
    %601 = arith.divf %599, %600 : vector<1x128xf32>
    %602 = vector.extract_strided_slice %581 {offsets = [0, 256], sizes = [1, 128], strides = [1, 1]} : vector<1x384xf32> to vector<1x128xf32>
    %603 = vector.extract_strided_slice %585 {offsets = [0, 256], sizes = [1, 128], strides = [1, 1]} : vector<1x384xf32> to vector<1x128xf32>
    %604 = arith.mulf %593, %603 : vector<1x128xf32>
    %605 = arith.addf %602, %604 : vector<1x128xf32>
    %606 = math.tanh %605 : vector<1x128xf32>
    %cst_211 = arith.constant 1.000000e+00 : f32
    %607 = vector.broadcast %cst_211 : f32 to vector<1x128xf32>
    %608 = arith.subf %607, %601 : vector<1x128xf32>
    %609 = arith.mulf %608, %606 : vector<1x128xf32>
    %610 = arith.mulf %601, %529 : vector<1x128xf32>
    %611 = arith.addf %609, %610 : vector<1x128xf32>
    %cst_212 = arith.constant dense<0.000000e+00> : vector<1x8xf32>
    %612 = tpu.matmul %611, %570, %cst_212 {dimension_numbers = #tpu.dot_dimension_numbers<[1], [1], [0], [0], [0, 0, 1, 0], [], []>} : vector<1x128xf32>, vector<8x128xf32>, vector<1x8xf32> -> vector<1x8xf32>
    %cst_213 = arith.constant dense<0xFF800000> : vector<1xf32>
    %613 = vector.multi_reduction <maximumf>, %612, %cst_213 [1] : vector<1x8xf32> to vector<1xf32>
    %614 = vector.shape_cast %613 : vector<1xf32> to vector<1x1xf32>
    %615 = vector.broadcast %614 : vector<1x1xf32> to vector<1x8xf32>
    %616 = arith.subf %612, %615 : vector<1x8xf32>
    %617 = math.exp %616 : vector<1x8xf32>
    %cst_214 = arith.constant dense<0.000000e+00> : vector<1xf32>
    %618 = vector.multi_reduction <add>, %617, %cst_214 [1] : vector<1x8xf32> to vector<1xf32>
    %619 = vector.shape_cast %618 : vector<1xf32> to vector<1x1xf32>
    %620 = tpu.reciprocal %619 {approx = true} : vector<1x1xf32> -> vector<1x1xf32>
    %621 = vector.broadcast %620 : vector<1x1xf32> to vector<1x8xf32>
    %622 = arith.mulf %617, %621 : vector<1x8xf32>
    %cst_215 = arith.constant dense<0.000000e+00> : vector<1x128xf32>
    %623 = tpu.matmul %622, %570, %cst_215 {dimension_numbers = #tpu.dot_dimension_numbers<[1], [0], [0], [1], [0, 0, 1, 1], [], []>} : vector<1x8xf32>, vector<8x128xf32>, vector<1x128xf32> -> vector<1x128xf32>
    %624 = tpu.concatenate %611, %623 in 1 : vector<1x128xf32>, vector<1x128xf32> -> vector<1x256xf32>
    %c0_216 = arith.constant 0 : index
    %c0_217 = arith.constant 0 : index
    %625 = vector.load %arg14[%c0_216, %c0_217] : memref<256x128xf32, #tpu.memory_space<vmem>>, vector<256x128xf32>
    %cst_218 = arith.constant dense<0.000000e+00> : vector<1x128xf32>
    %626 = tpu.matmul %624, %625, %cst_218 {dimension_numbers = #tpu.dot_dimension_numbers<[1], [0], [0], [1], [0, 0, 1, 1], [], []>} : vector<1x256xf32>, vector<256x128xf32>, vector<1x128xf32> -> vector<1x128xf32>
    %c0_219 = arith.constant 0 : index
    %c0_220 = arith.constant 0 : index
    %627 = vector.load %arg15[%c0_219, %c0_220] : memref<1x128xf32, #tpu.memory_space<vmem>>, vector<1x128xf32>
    %628 = arith.addf %626, %627 : vector<1x128xf32>
    %629 = math.tanh %628 : vector<1x128xf32>
    %630 = arith.truncf %629 : vector<1x128xf32> to vector<1x128xbf16>
    %c0_221 = arith.constant 0 : index
    %c0_222 = arith.constant 0 : index
    %631 = vector.load %arg24[%c0_221, %c0_222] : memref<128x256xbf16, #tpu.memory_space<vmem>>, vector<128x256xbf16>
    %cst_223 = arith.constant dense<0.000000e+00> : vector<1x256xf32>
    %632 = tpu.matmul %630, %631, %cst_223 {dimension_numbers = #tpu.dot_dimension_numbers<[1], [0], [0], [1], [0, 0, 1, 1], [], []>} : vector<1x128xbf16>, vector<128x256xbf16>, vector<1x256xf32> -> vector<1x256xf32>
    %c0_224 = arith.constant 0 : index
    %c0_225 = arith.constant 0 : index
    %633 = vector.load %arg17[%c0_224, %c0_225] : memref<1x256xf32, #tpu.memory_space<vmem>>, vector<1x256xf32>
    %634 = arith.addf %632, %633 : vector<1x256xf32>
    %cst_226 = arith.constant dense<0xFF800000> : vector<1xf32>
    %635 = vector.multi_reduction <maximumf>, %634, %cst_226 [1] : vector<1x256xf32> to vector<1xf32>
    %636 = vector.shape_cast %635 : vector<1xf32> to vector<1x1xf32>
    %637 = vector.broadcast %636 : vector<1x1xf32> to vector<1x256xf32>
    %638 = arith.subf %634, %637 : vector<1x256xf32>
    %639 = math.exp %638 : vector<1x256xf32>
    %cst_227 = arith.constant dense<0.000000e+00> : vector<1xf32>
    %640 = vector.multi_reduction <add>, %639, %cst_227 [1] : vector<1x256xf32> to vector<1xf32>
    %641 = vector.shape_cast %640 : vector<1xf32> to vector<1x1xf32>
    %cst_228 = arith.constant 1.000000e+00 : f32
    %642 = vector.broadcast %cst_228 : f32 to vector<1x1xf32>
    %643 = arith.divf %642, %641 : vector<1x1xf32>
    %644 = vector.broadcast %636 : vector<1x1xf32> to vector<1x256xf32>
    %645 = arith.cmpf oeq, %634, %644 : vector<1x256xf32>
    %c256_i32 = arith.constant 256 : i32
    %646 = vector.broadcast %c256_i32 : i32 to vector<1x256xi32>
    %647 = arith.select %645, %576, %646 : vector<1x256xi1>, vector<1x256xi32>
    %cst_229 = arith.constant dense<2147483647> : vector<1xi32>
    %648 = vector.multi_reduction <minsi>, %647, %cst_229 [1] : vector<1x256xi32> to vector<1xi32>
    %649 = vector.shape_cast %648 : vector<1xi32> to vector<1x1xi32>
    %c0_230 = arith.constant 0 : index
    %c0_231 = arith.constant 0 : index
    %650 = vector.load %arg26[%c0_230, %c0_231] : memref<1x1xi32, #tpu.memory_space<vmem>>, vector<1x1xi32>
    tpu.vector_store %arg26[%c0_230, %c0_231], %649 {strides = array<i32>} : memref<1x1xi32, #tpu.memory_space<vmem>>, vector<1x1xi32>,
    %c0_232 = arith.constant 0 : index
    %c0_233 = arith.constant 0 : index
    %651 = vector.load %arg26[%c0_232, %c0_233] : memref<1x1xi32, #tpu.memory_space<vmem>>, vector<1x1xi32>
    %652 = vector.extract %651[0, 0] : i32 from vector<1x1xi32>
    %653 = arith.index_cast %652 : i32 to index
    %c0_234 = arith.constant 0 : index
    %654 = vector.load %arg1[%653, %c0_234] : memref<256x128xf32, #tpu.memory_space<vmem>>, vector<1x128xf32>
    %655 = vector.broadcast %c0_i32_198 : i32 to vector<1x8xi32>
    %656 = arith.cmpi eq, %575, %655 : vector<1x8xi32>
    %c0_235 = arith.constant 0 : index
    %c0_236 = arith.constant 0 : index
    %657 = vector.load %arg18[%c0_235, %c0_236] : memref<1x8xi32, #tpu.memory_space<vmem>>, vector<1x8xi32>
    %658 = vector.shape_cast %649 : vector<1x1xi32> to vector<1x1xi32>
    %659 = vector.broadcast %658 : vector<1x1xi32> to vector<1x8xi32>
    %660 = arith.select %656, %659, %657 : vector<1x8xi1>, vector<1x8xi32>
    %c0_237 = arith.constant 0 : index
    %c0_238 = arith.constant 0 : index
    %661 = vector.load %arg18[%c0_237, %c0_238] : memref<1x8xi32, #tpu.memory_space<vmem>>, vector<1x8xi32>
    tpu.vector_store %arg18[%c0_237, %c0_238], %660 {strides = array<i32>} : memref<1x8xi32, #tpu.memory_space<vmem>>, vector<1x8xi32>,
    %c0_239 = arith.constant 0 : index
    %c0_240 = arith.constant 0 : index
    %662 = vector.load %arg19[%c0_239, %c0_240] : memref<1x8xf32, #tpu.memory_space<vmem>>, vector<1x8xf32>
    %663 = vector.shape_cast %643 : vector<1x1xf32> to vector<1x1xf32>
    %664 = vector.broadcast %663 : vector<1x1xf32> to vector<1x8xf32>
    %665 = arith.select %656, %664, %662 : vector<1x8xi1>, vector<1x8xf32>
    %c0_241 = arith.constant 0 : index
    %c0_242 = arith.constant 0 : index
    %666 = vector.load %arg19[%c0_241, %c0_242] : memref<1x8xf32, #tpu.memory_space<vmem>>, vector<1x8xf32>
    tpu.vector_store %arg19[%c0_241, %c0_242], %665 {strides = array<i32>} : memref<1x8xf32, #tpu.memory_space<vmem>>, vector<1x8xf32>,
    %c1_i32_243 = arith.constant 1 : i32
    %c0_244 = arith.constant 0 : index
    %c0_245 = arith.constant 0 : index
    %667 = vector.load %arg10[%c0_244, %c0_245] : memref<128x384xf32, #tpu.memory_space<vmem>>, vector<128x384xf32>
    %cst_246 = arith.constant dense<0.000000e+00> : vector<1x384xf32>
    %668 = tpu.matmul %654, %667, %cst_246 {dimension_numbers = #tpu.dot_dimension_numbers<[1], [0], [0], [1], [0, 0, 1, 1], [], []>} : vector<1x128xf32>, vector<128x384xf32>, vector<1x384xf32> -> vector<1x384xf32>
    %c0_247 = arith.constant 0 : index
    %c0_248 = arith.constant 0 : index
    %669 = vector.load %arg12[%c0_247, %c0_248] : memref<1x384xf32, #tpu.memory_space<vmem>>, vector<1x384xf32>
    %670 = arith.addf %668, %669 : vector<1x384xf32>
    %c0_249 = arith.constant 0 : index
    %c0_250 = arith.constant 0 : index
    %671 = vector.load %arg11[%c0_249, %c0_250] : memref<128x384xf32, #tpu.memory_space<vmem>>, vector<128x384xf32>
    %cst_251 = arith.constant dense<0.000000e+00> : vector<1x384xf32>
    %672 = tpu.matmul %611, %671, %cst_251 {dimension_numbers = #tpu.dot_dimension_numbers<[1], [0], [0], [1], [0, 0, 1, 1], [], []>} : vector<1x128xf32>, vector<128x384xf32>, vector<1x384xf32> -> vector<1x384xf32>
    %c0_252 = arith.constant 0 : index
    %c0_253 = arith.constant 0 : index
    %673 = vector.load %arg13[%c0_252, %c0_253] : memref<1x384xf32, #tpu.memory_space<vmem>>, vector<1x384xf32>
    %674 = arith.addf %672, %673 : vector<1x384xf32>
    %675 = vector.extract_strided_slice %670 {offsets = [0, 0], sizes = [1, 128], strides = [1, 1]} : vector<1x384xf32> to vector<1x128xf32>
    %676 = vector.extract_strided_slice %674 {offsets = [0, 0], sizes = [1, 128], strides = [1, 1]} : vector<1x384xf32> to vector<1x128xf32>
    %677 = arith.addf %675, %676 : vector<1x128xf32>
    %678 = arith.negf %677 : vector<1x128xf32>
    %679 = math.exp %678 : vector<1x128xf32>
    %cst_254 = arith.constant 1.000000e+00 : f32
    %680 = vector.broadcast %cst_254 : f32 to vector<1x128xf32>
    %681 = arith.addf %680, %679 : vector<1x128xf32>
    %682 = arith.divf %680, %681 : vector<1x128xf32>
    %683 = vector.extract_strided_slice %670 {offsets = [0, 128], sizes = [1, 128], strides = [1, 1]} : vector<1x384xf32> to vector<1x128xf32>
    %684 = vector.extract_strided_slice %674 {offsets = [0, 128], sizes = [1, 128], strides = [1, 1]} : vector<1x384xf32> to vector<1x128xf32>
    %685 = arith.addf %683, %684 : vector<1x128xf32>
    %686 = arith.negf %685 : vector<1x128xf32>
    %687 = math.exp %686 : vector<1x128xf32>
    %cst_255 = arith.constant 1.000000e+00 : f32
    %688 = vector.broadcast %cst_255 : f32 to vector<1x128xf32>
    %689 = arith.addf %688, %687 : vector<1x128xf32>
    %690 = arith.divf %688, %689 : vector<1x128xf32>
    %691 = vector.extract_strided_slice %670 {offsets = [0, 256], sizes = [1, 128], strides = [1, 1]} : vector<1x384xf32> to vector<1x128xf32>
    %692 = vector.extract_strided_slice %674 {offsets = [0, 256], sizes = [1, 128], strides = [1, 1]} : vector<1x384xf32> to vector<1x128xf32>
    %693 = arith.mulf %682, %692 : vector<1x128xf32>
    %694 = arith.addf %691, %693 : vector<1x128xf32>
    %695 = math.tanh %694 : vector<1x128xf32>
    %cst_256 = arith.constant 1.000000e+00 : f32
    %696 = vector.broadcast %cst_256 : f32 to vector<1x128xf32>
    %697 = arith.subf %696, %690 : vector<1x128xf32>
    %698 = arith.mulf %697, %695 : vector<1x128xf32>
    %699 = arith.mulf %690, %611 : vector<1x128xf32>
    %700 = arith.addf %698, %699 : vector<1x128xf32>
    %cst_257 = arith.constant dense<0.000000e+00> : vector<1x8xf32>
    %701 = tpu.matmul %700, %570, %cst_257 {dimension_numbers = #tpu.dot_dimension_numbers<[1], [1], [0], [0], [0, 0, 1, 0], [], []>} : vector<1x128xf32>, vector<8x128xf32>, vector<1x8xf32> -> vector<1x8xf32>
    %cst_258 = arith.constant dense<0xFF800000> : vector<1xf32>
    %702 = vector.multi_reduction <maximumf>, %701, %cst_258 [1] : vector<1x8xf32> to vector<1xf32>
    %703 = vector.shape_cast %702 : vector<1xf32> to vector<1x1xf32>
    %704 = vector.broadcast %703 : vector<1x1xf32> to vector<1x8xf32>
    %705 = arith.subf %701, %704 : vector<1x8xf32>
    %706 = math.exp %705 : vector<1x8xf32>
    %cst_259 = arith.constant dense<0.000000e+00> : vector<1xf32>
    %707 = vector.multi_reduction <add>, %706, %cst_259 [1] : vector<1x8xf32> to vector<1xf32>
    %708 = vector.shape_cast %707 : vector<1xf32> to vector<1x1xf32>
    %709 = tpu.reciprocal %708 {approx = true} : vector<1x1xf32> -> vector<1x1xf32>
    %710 = vector.broadcast %709 : vector<1x1xf32> to vector<1x8xf32>
    %711 = arith.mulf %706, %710 : vector<1x8xf32>
    %cst_260 = arith.constant dense<0.000000e+00> : vector<1x128xf32>
    %712 = tpu.matmul %711, %570, %cst_260 {dimension_numbers = #tpu.dot_dimension_numbers<[1], [0], [0], [1], [0, 0, 1, 1], [], []>} : vector<1x8xf32>, vector<8x128xf32>, vector<1x128xf32> -> vector<1x128xf32>
    %713 = tpu.concatenate %700, %712 in 1 : vector<1x128xf32>, vector<1x128xf32> -> vector<1x256xf32>
    %c0_261 = arith.constant 0 : index
    %c0_262 = arith.constant 0 : index
    %714 = vector.load %arg14[%c0_261, %c0_262] : memref<256x128xf32, #tpu.memory_space<vmem>>, vector<256x128xf32>
    %cst_263 = arith.constant dense<0.000000e+00> : vector<1x128xf32>
    %715 = tpu.matmul %713, %714, %cst_263 {dimension_numbers = #tpu.dot_dimension_numbers<[1], [0], [0], [1], [0, 0, 1, 1], [], []>} : vector<1x256xf32>, vector<256x128xf32>, vector<1x128xf32> -> vector<1x128xf32>
    %c0_264 = arith.constant 0 : index
    %c0_265 = arith.constant 0 : index
    %716 = vector.load %arg15[%c0_264, %c0_265] : memref<1x128xf32, #tpu.memory_space<vmem>>, vector<1x128xf32>
    %717 = arith.addf %715, %716 : vector<1x128xf32>
    %718 = math.tanh %717 : vector<1x128xf32>
    %719 = arith.truncf %718 : vector<1x128xf32> to vector<1x128xbf16>
    %c0_266 = arith.constant 0 : index
    %c0_267 = arith.constant 0 : index
    %720 = vector.load %arg24[%c0_266, %c0_267] : memref<128x256xbf16, #tpu.memory_space<vmem>>, vector<128x256xbf16>
    %cst_268 = arith.constant dense<0.000000e+00> : vector<1x256xf32>
    %721 = tpu.matmul %719, %720, %cst_268 {dimension_numbers = #tpu.dot_dimension_numbers<[1], [0], [0], [1], [0, 0, 1, 1], [], []>} : vector<1x128xbf16>, vector<128x256xbf16>, vector<1x256xf32> -> vector<1x256xf32>
    %c0_269 = arith.constant 0 : index
    %c0_270 = arith.constant 0 : index
    %722 = vector.load %arg17[%c0_269, %c0_270] : memref<1x256xf32, #tpu.memory_space<vmem>>, vector<1x256xf32>
    %723 = arith.addf %721, %722 : vector<1x256xf32>
    %cst_271 = arith.constant dense<0xFF800000> : vector<1xf32>
    %724 = vector.multi_reduction <maximumf>, %723, %cst_271 [1] : vector<1x256xf32> to vector<1xf32>
    %725 = vector.shape_cast %724 : vector<1xf32> to vector<1x1xf32>
    %726 = vector.broadcast %725 : vector<1x1xf32> to vector<1x256xf32>
    %727 = arith.subf %723, %726 : vector<1x256xf32>
    %728 = math.exp %727 : vector<1x256xf32>
    %cst_272 = arith.constant dense<0.000000e+00> : vector<1xf32>
    %729 = vector.multi_reduction <add>, %728, %cst_272 [1] : vector<1x256xf32> to vector<1xf32>
    %730 = vector.shape_cast %729 : vector<1xf32> to vector<1x1xf32>
    %cst_273 = arith.constant 1.000000e+00 : f32
    %731 = vector.broadcast %cst_273 : f32 to vector<1x1xf32>
    %732 = arith.divf %731, %730 : vector<1x1xf32>
    %733 = vector.broadcast %725 : vector<1x1xf32> to vector<1x256xf32>
    %734 = arith.cmpf oeq, %723, %733 : vector<1x256xf32>
    %c256_i32_274 = arith.constant 256 : i32
    %735 = vector.broadcast %c256_i32_274 : i32 to vector<1x256xi32>
    %736 = arith.select %734, %576, %735 : vector<1x256xi1>, vector<1x256xi32>
    %cst_275 = arith.constant dense<2147483647> : vector<1xi32>
    %737 = vector.multi_reduction <minsi>, %736, %cst_275 [1] : vector<1x256xi32> to vector<1xi32>
    %738 = vector.shape_cast %737 : vector<1xi32> to vector<1x1xi32>
    %c0_276 = arith.constant 0 : index
    %c0_277 = arith.constant 0 : index
    %739 = vector.load %arg26[%c0_276, %c0_277] : memref<1x1xi32, #tpu.memory_space<vmem>>, vector<1x1xi32>
    tpu.vector_store %arg26[%c0_276, %c0_277], %738 {strides = array<i32>} : memref<1x1xi32, #tpu.memory_space<vmem>>, vector<1x1xi32>,
    %c0_278 = arith.constant 0 : index
    %c0_279 = arith.constant 0 : index
    %740 = vector.load %arg26[%c0_278, %c0_279] : memref<1x1xi32, #tpu.memory_space<vmem>>, vector<1x1xi32>
    %741 = vector.extract %740[0, 0] : i32 from vector<1x1xi32>
    %742 = arith.index_cast %741 : i32 to index
    %c0_280 = arith.constant 0 : index
    %743 = vector.load %arg1[%742, %c0_280] : memref<256x128xf32, #tpu.memory_space<vmem>>, vector<1x128xf32>
    %744 = vector.broadcast %c1_i32_243 : i32 to vector<1x8xi32>
    %745 = arith.cmpi eq, %575, %744 : vector<1x8xi32>
    %c0_281 = arith.constant 0 : index
    %c0_282 = arith.constant 0 : index
    %746 = vector.load %arg18[%c0_281, %c0_282] : memref<1x8xi32, #tpu.memory_space<vmem>>, vector<1x8xi32>
    %747 = vector.shape_cast %738 : vector<1x1xi32> to vector<1x1xi32>
    %748 = vector.broadcast %747 : vector<1x1xi32> to vector<1x8xi32>
    %749 = arith.select %745, %748, %746 : vector<1x8xi1>, vector<1x8xi32>
    %c0_283 = arith.constant 0 : index
    %c0_284 = arith.constant 0 : index
    %750 = vector.load %arg18[%c0_283, %c0_284] : memref<1x8xi32, #tpu.memory_space<vmem>>, vector<1x8xi32>
    tpu.vector_store %arg18[%c0_283, %c0_284], %749 {strides = array<i32>} : memref<1x8xi32, #tpu.memory_space<vmem>>, vector<1x8xi32>,
    %c0_285 = arith.constant 0 : index
    %c0_286 = arith.constant 0 : index
    %751 = vector.load %arg19[%c0_285, %c0_286] : memref<1x8xf32, #tpu.memory_space<vmem>>, vector<1x8xf32>
    %752 = vector.shape_cast %732 : vector<1x1xf32> to vector<1x1xf32>
    %753 = vector.broadcast %752 : vector<1x1xf32> to vector<1x8xf32>
    %754 = arith.select %745, %753, %751 : vector<1x8xi1>, vector<1x8xf32>
    %c0_287 = arith.constant 0 : index
    %c0_288 = arith.constant 0 : index
    %755 = vector.load %arg19[%c0_287, %c0_288] : memref<1x8xf32, #tpu.memory_space<vmem>>, vector<1x8xf32>
    tpu.vector_store %arg19[%c0_287, %c0_288], %754 {strides = array<i32>} : memref<1x8xf32, #tpu.memory_space<vmem>>, vector<1x8xf32>,
    %c2_i32_289 = arith.constant 2 : i32
    %c0_290 = arith.constant 0 : index
    %c0_291 = arith.constant 0 : index
    %756 = vector.load %arg10[%c0_290, %c0_291] : memref<128x384xf32, #tpu.memory_space<vmem>>, vector<128x384xf32>
    %cst_292 = arith.constant dense<0.000000e+00> : vector<1x384xf32>
    %757 = tpu.matmul %743, %756, %cst_292 {dimension_numbers = #tpu.dot_dimension_numbers<[1], [0], [0], [1], [0, 0, 1, 1], [], []>} : vector<1x128xf32>, vector<128x384xf32>, vector<1x384xf32> -> vector<1x384xf32>
    %c0_293 = arith.constant 0 : index
    %c0_294 = arith.constant 0 : index
    %758 = vector.load %arg12[%c0_293, %c0_294] : memref<1x384xf32, #tpu.memory_space<vmem>>, vector<1x384xf32>
    %759 = arith.addf %757, %758 : vector<1x384xf32>
    %c0_295 = arith.constant 0 : index
    %c0_296 = arith.constant 0 : index
    %760 = vector.load %arg11[%c0_295, %c0_296] : memref<128x384xf32, #tpu.memory_space<vmem>>, vector<128x384xf32>
    %cst_297 = arith.constant dense<0.000000e+00> : vector<1x384xf32>
    %761 = tpu.matmul %700, %760, %cst_297 {dimension_numbers = #tpu.dot_dimension_numbers<[1], [0], [0], [1], [0, 0, 1, 1], [], []>} : vector<1x128xf32>, vector<128x384xf32>, vector<1x384xf32> -> vector<1x384xf32>
    %c0_298 = arith.constant 0 : index
    %c0_299 = arith.constant 0 : index
    %762 = vector.load %arg13[%c0_298, %c0_299] : memref<1x384xf32, #tpu.memory_space<vmem>>, vector<1x384xf32>
    %763 = arith.addf %761, %762 : vector<1x384xf32>
    %764 = vector.extract_strided_slice %759 {offsets = [0, 0], sizes = [1, 128], strides = [1, 1]} : vector<1x384xf32> to vector<1x128xf32>
    %765 = vector.extract_strided_slice %763 {offsets = [0, 0], sizes = [1, 128], strides = [1, 1]} : vector<1x384xf32> to vector<1x128xf32>
    %766 = arith.addf %764, %765 : vector<1x128xf32>
    %767 = arith.negf %766 : vector<1x128xf32>
    %768 = math.exp %767 : vector<1x128xf32>
    %cst_300 = arith.constant 1.000000e+00 : f32
    %769 = vector.broadcast %cst_300 : f32 to vector<1x128xf32>
    %770 = arith.addf %769, %768 : vector<1x128xf32>
    %771 = arith.divf %769, %770 : vector<1x128xf32>
    %772 = vector.extract_strided_slice %759 {offsets = [0, 128], sizes = [1, 128], strides = [1, 1]} : vector<1x384xf32> to vector<1x128xf32>
    %773 = vector.extract_strided_slice %763 {offsets = [0, 128], sizes = [1, 128], strides = [1, 1]} : vector<1x384xf32> to vector<1x128xf32>
    %774 = arith.addf %772, %773 : vector<1x128xf32>
    %775 = arith.negf %774 : vector<1x128xf32>
    %776 = math.exp %775 : vector<1x128xf32>
    %cst_301 = arith.constant 1.000000e+00 : f32
    %777 = vector.broadcast %cst_301 : f32 to vector<1x128xf32>
    %778 = arith.addf %777, %776 : vector<1x128xf32>
    %779 = arith.divf %777, %778 : vector<1x128xf32>
    %780 = vector.extract_strided_slice %759 {offsets = [0, 256], sizes = [1, 128], strides = [1, 1]} : vector<1x384xf32> to vector<1x128xf32>
    %781 = vector.extract_strided_slice %763 {offsets = [0, 256], sizes = [1, 128], strides = [1, 1]} : vector<1x384xf32> to vector<1x128xf32>
    %782 = arith.mulf %771, %781 : vector<1x128xf32>
    %783 = arith.addf %780, %782 : vector<1x128xf32>
    %784 = math.tanh %783 : vector<1x128xf32>
    %cst_302 = arith.constant 1.000000e+00 : f32
    %785 = vector.broadcast %cst_302 : f32 to vector<1x128xf32>
    %786 = arith.subf %785, %779 : vector<1x128xf32>
    %787 = arith.mulf %786, %784 : vector<1x128xf32>
    %788 = arith.mulf %779, %700 : vector<1x128xf32>
    %789 = arith.addf %787, %788 : vector<1x128xf32>
    %cst_303 = arith.constant dense<0.000000e+00> : vector<1x8xf32>
    %790 = tpu.matmul %789, %570, %cst_303 {dimension_numbers = #tpu.dot_dimension_numbers<[1], [1], [0], [0], [0, 0, 1, 0], [], []>} : vector<1x128xf32>, vector<8x128xf32>, vector<1x8xf32> -> vector<1x8xf32>
    %cst_304 = arith.constant dense<0xFF800000> : vector<1xf32>
    %791 = vector.multi_reduction <maximumf>, %790, %cst_304 [1] : vector<1x8xf32> to vector<1xf32>
    %792 = vector.shape_cast %791 : vector<1xf32> to vector<1x1xf32>
    %793 = vector.broadcast %792 : vector<1x1xf32> to vector<1x8xf32>
    %794 = arith.subf %790, %793 : vector<1x8xf32>
    %795 = math.exp %794 : vector<1x8xf32>
    %cst_305 = arith.constant dense<0.000000e+00> : vector<1xf32>
    %796 = vector.multi_reduction <add>, %795, %cst_305 [1] : vector<1x8xf32> to vector<1xf32>
    %797 = vector.shape_cast %796 : vector<1xf32> to vector<1x1xf32>
    %798 = tpu.reciprocal %797 {approx = true} : vector<1x1xf32> -> vector<1x1xf32>
    %799 = vector.broadcast %798 : vector<1x1xf32> to vector<1x8xf32>
    %800 = arith.mulf %795, %799 : vector<1x8xf32>
    %cst_306 = arith.constant dense<0.000000e+00> : vector<1x128xf32>
    %801 = tpu.matmul %800, %570, %cst_306 {dimension_numbers = #tpu.dot_dimension_numbers<[1], [0], [0], [1], [0, 0, 1, 1], [], []>} : vector<1x8xf32>, vector<8x128xf32>, vector<1x128xf32> -> vector<1x128xf32>
    %802 = tpu.concatenate %789, %801 in 1 : vector<1x128xf32>, vector<1x128xf32> -> vector<1x256xf32>
    %c0_307 = arith.constant 0 : index
    %c0_308 = arith.constant 0 : index
    %803 = vector.load %arg14[%c0_307, %c0_308] : memref<256x128xf32, #tpu.memory_space<vmem>>, vector<256x128xf32>
    %cst_309 = arith.constant dense<0.000000e+00> : vector<1x128xf32>
    %804 = tpu.matmul %802, %803, %cst_309 {dimension_numbers = #tpu.dot_dimension_numbers<[1], [0], [0], [1], [0, 0, 1, 1], [], []>} : vector<1x256xf32>, vector<256x128xf32>, vector<1x128xf32> -> vector<1x128xf32>
    %c0_310 = arith.constant 0 : index
    %c0_311 = arith.constant 0 : index
    %805 = vector.load %arg15[%c0_310, %c0_311] : memref<1x128xf32, #tpu.memory_space<vmem>>, vector<1x128xf32>
    %806 = arith.addf %804, %805 : vector<1x128xf32>
    %807 = math.tanh %806 : vector<1x128xf32>
    %808 = arith.truncf %807 : vector<1x128xf32> to vector<1x128xbf16>
    %c0_312 = arith.constant 0 : index
    %c0_313 = arith.constant 0 : index
    %809 = vector.load %arg24[%c0_312, %c0_313] : memref<128x256xbf16, #tpu.memory_space<vmem>>, vector<128x256xbf16>
    %cst_314 = arith.constant dense<0.000000e+00> : vector<1x256xf32>
    %810 = tpu.matmul %808, %809, %cst_314 {dimension_numbers = #tpu.dot_dimension_numbers<[1], [0], [0], [1], [0, 0, 1, 1], [], []>} : vector<1x128xbf16>, vector<128x256xbf16>, vector<1x256xf32> -> vector<1x256xf32>
    %c0_315 = arith.constant 0 : index
    %c0_316 = arith.constant 0 : index
    %811 = vector.load %arg17[%c0_315, %c0_316] : memref<1x256xf32, #tpu.memory_space<vmem>>, vector<1x256xf32>
    %812 = arith.addf %810, %811 : vector<1x256xf32>
    %cst_317 = arith.constant dense<0xFF800000> : vector<1xf32>
    %813 = vector.multi_reduction <maximumf>, %812, %cst_317 [1] : vector<1x256xf32> to vector<1xf32>
    %814 = vector.shape_cast %813 : vector<1xf32> to vector<1x1xf32>
    %815 = vector.broadcast %814 : vector<1x1xf32> to vector<1x256xf32>
    %816 = arith.subf %812, %815 : vector<1x256xf32>
    %817 = math.exp %816 : vector<1x256xf32>
    %cst_318 = arith.constant dense<0.000000e+00> : vector<1xf32>
    %818 = vector.multi_reduction <add>, %817, %cst_318 [1] : vector<1x256xf32> to vector<1xf32>
    %819 = vector.shape_cast %818 : vector<1xf32> to vector<1x1xf32>
    %cst_319 = arith.constant 1.000000e+00 : f32
    %820 = vector.broadcast %cst_319 : f32 to vector<1x1xf32>
    %821 = arith.divf %820, %819 : vector<1x1xf32>
    %822 = vector.broadcast %814 : vector<1x1xf32> to vector<1x256xf32>
    %823 = arith.cmpf oeq, %812, %822 : vector<1x256xf32>
    %c256_i32_320 = arith.constant 256 : i32
    %824 = vector.broadcast %c256_i32_320 : i32 to vector<1x256xi32>
    %825 = arith.select %823, %576, %824 : vector<1x256xi1>, vector<1x256xi32>
    %cst_321 = arith.constant dense<2147483647> : vector<1xi32>
    %826 = vector.multi_reduction <minsi>, %825, %cst_321 [1] : vector<1x256xi32> to vector<1xi32>
    %827 = vector.shape_cast %826 : vector<1xi32> to vector<1x1xi32>
    %c0_322 = arith.constant 0 : index
    %c0_323 = arith.constant 0 : index
    %828 = vector.load %arg26[%c0_322, %c0_323] : memref<1x1xi32, #tpu.memory_space<vmem>>, vector<1x1xi32>
    tpu.vector_store %arg26[%c0_322, %c0_323], %827 {strides = array<i32>} : memref<1x1xi32, #tpu.memory_space<vmem>>, vector<1x1xi32>,
    %c0_324 = arith.constant 0 : index
    %c0_325 = arith.constant 0 : index
    %829 = vector.load %arg26[%c0_324, %c0_325] : memref<1x1xi32, #tpu.memory_space<vmem>>, vector<1x1xi32>
    %830 = vector.extract %829[0, 0] : i32 from vector<1x1xi32>
    %831 = arith.index_cast %830 : i32 to index
    %c0_326 = arith.constant 0 : index
    %832 = vector.load %arg1[%831, %c0_326] : memref<256x128xf32, #tpu.memory_space<vmem>>, vector<1x128xf32>
    %833 = vector.broadcast %c2_i32_289 : i32 to vector<1x8xi32>
    %834 = arith.cmpi eq, %575, %833 : vector<1x8xi32>
    %c0_327 = arith.constant 0 : index
    %c0_328 = arith.constant 0 : index
    %835 = vector.load %arg18[%c0_327, %c0_328] : memref<1x8xi32, #tpu.memory_space<vmem>>, vector<1x8xi32>
    %836 = vector.shape_cast %827 : vector<1x1xi32> to vector<1x1xi32>
    %837 = vector.broadcast %836 : vector<1x1xi32> to vector<1x8xi32>
    %838 = arith.select %834, %837, %835 : vector<1x8xi1>, vector<1x8xi32>
    %c0_329 = arith.constant 0 : index
    %c0_330 = arith.constant 0 : index
    %839 = vector.load %arg18[%c0_329, %c0_330] : memref<1x8xi32, #tpu.memory_space<vmem>>, vector<1x8xi32>
    tpu.vector_store %arg18[%c0_329, %c0_330], %838 {strides = array<i32>} : memref<1x8xi32, #tpu.memory_space<vmem>>, vector<1x8xi32>,
    %c0_331 = arith.constant 0 : index
    %c0_332 = arith.constant 0 : index
    %840 = vector.load %arg19[%c0_331, %c0_332] : memref<1x8xf32, #tpu.memory_space<vmem>>, vector<1x8xf32>
    %841 = vector.shape_cast %821 : vector<1x1xf32> to vector<1x1xf32>
    %842 = vector.broadcast %841 : vector<1x1xf32> to vector<1x8xf32>
    %843 = arith.select %834, %842, %840 : vector<1x8xi1>, vector<1x8xf32>
    %c0_333 = arith.constant 0 : index
    %c0_334 = arith.constant 0 : index
    %844 = vector.load %arg19[%c0_333, %c0_334] : memref<1x8xf32, #tpu.memory_space<vmem>>, vector<1x8xf32>
    tpu.vector_store %arg19[%c0_333, %c0_334], %843 {strides = array<i32>} : memref<1x8xf32, #tpu.memory_space<vmem>>, vector<1x8xf32>,
    %c3_i32_335 = arith.constant 3 : i32
    %c0_336 = arith.constant 0 : index
    %c0_337 = arith.constant 0 : index
    %845 = vector.load %arg10[%c0_336, %c0_337] : memref<128x384xf32, #tpu.memory_space<vmem>>, vector<128x384xf32>
    %cst_338 = arith.constant dense<0.000000e+00> : vector<1x384xf32>
    %846 = tpu.matmul %832, %845, %cst_338 {dimension_numbers = #tpu.dot_dimension_numbers<[1], [0], [0], [1], [0, 0, 1, 1], [], []>} : vector<1x128xf32>, vector<128x384xf32>, vector<1x384xf32> -> vector<1x384xf32>
    %c0_339 = arith.constant 0 : index
    %c0_340 = arith.constant 0 : index
    %847 = vector.load %arg12[%c0_339, %c0_340] : memref<1x384xf32, #tpu.memory_space<vmem>>, vector<1x384xf32>
    %848 = arith.addf %846, %847 : vector<1x384xf32>
    %c0_341 = arith.constant 0 : index
    %c0_342 = arith.constant 0 : index
    %849 = vector.load %arg11[%c0_341, %c0_342] : memref<128x384xf32, #tpu.memory_space<vmem>>, vector<128x384xf32>
    %cst_343 = arith.constant dense<0.000000e+00> : vector<1x384xf32>
    %850 = tpu.matmul %789, %849, %cst_343 {dimension_numbers = #tpu.dot_dimension_numbers<[1], [0], [0], [1], [0, 0, 1, 1], [], []>} : vector<1x128xf32>, vector<128x384xf32>, vector<1x384xf32> -> vector<1x384xf32>
    %c0_344 = arith.constant 0 : index
    %c0_345 = arith.constant 0 : index
    %851 = vector.load %arg13[%c0_344, %c0_345] : memref<1x384xf32, #tpu.memory_space<vmem>>, vector<1x384xf32>
    %852 = arith.addf %850, %851 : vector<1x384xf32>
    %853 = vector.extract_strided_slice %848 {offsets = [0, 0], sizes = [1, 128], strides = [1, 1]} : vector<1x384xf32> to vector<1x128xf32>
    %854 = vector.extract_strided_slice %852 {offsets = [0, 0], sizes = [1, 128], strides = [1, 1]} : vector<1x384xf32> to vector<1x128xf32>
    %855 = arith.addf %853, %854 : vector<1x128xf32>
    %856 = arith.negf %855 : vector<1x128xf32>
    %857 = math.exp %856 : vector<1x128xf32>
    %cst_346 = arith.constant 1.000000e+00 : f32
    %858 = vector.broadcast %cst_346 : f32 to vector<1x128xf32>
    %859 = arith.addf %858, %857 : vector<1x128xf32>
    %860 = arith.divf %858, %859 : vector<1x128xf32>
    %861 = vector.extract_strided_slice %848 {offsets = [0, 128], sizes = [1, 128], strides = [1, 1]} : vector<1x384xf32> to vector<1x128xf32>
    %862 = vector.extract_strided_slice %852 {offsets = [0, 128], sizes = [1, 128], strides = [1, 1]} : vector<1x384xf32> to vector<1x128xf32>
    %863 = arith.addf %861, %862 : vector<1x128xf32>
    %864 = arith.negf %863 : vector<1x128xf32>
    %865 = math.exp %864 : vector<1x128xf32>
    %cst_347 = arith.constant 1.000000e+00 : f32
    %866 = vector.broadcast %cst_347 : f32 to vector<1x128xf32>
    %867 = arith.addf %866, %865 : vector<1x128xf32>
    %868 = arith.divf %866, %867 : vector<1x128xf32>
    %869 = vector.extract_strided_slice %848 {offsets = [0, 256], sizes = [1, 128], strides = [1, 1]} : vector<1x384xf32> to vector<1x128xf32>
    %870 = vector.extract_strided_slice %852 {offsets = [0, 256], sizes = [1, 128], strides = [1, 1]} : vector<1x384xf32> to vector<1x128xf32>
    %871 = arith.mulf %860, %870 : vector<1x128xf32>
    %872 = arith.addf %869, %871 : vector<1x128xf32>
    %873 = math.tanh %872 : vector<1x128xf32>
    %cst_348 = arith.constant 1.000000e+00 : f32
    %874 = vector.broadcast %cst_348 : f32 to vector<1x128xf32>
    %875 = arith.subf %874, %868 : vector<1x128xf32>
    %876 = arith.mulf %875, %873 : vector<1x128xf32>
    %877 = arith.mulf %868, %789 : vector<1x128xf32>
    %878 = arith.addf %876, %877 : vector<1x128xf32>
    %cst_349 = arith.constant dense<0.000000e+00> : vector<1x8xf32>
    %879 = tpu.matmul %878, %570, %cst_349 {dimension_numbers = #tpu.dot_dimension_numbers<[1], [1], [0], [0], [0, 0, 1, 0], [], []>} : vector<1x128xf32>, vector<8x128xf32>, vector<1x8xf32> -> vector<1x8xf32>
    %cst_350 = arith.constant dense<0xFF800000> : vector<1xf32>
    %880 = vector.multi_reduction <maximumf>, %879, %cst_350 [1] : vector<1x8xf32> to vector<1xf32>
    %881 = vector.shape_cast %880 : vector<1xf32> to vector<1x1xf32>
    %882 = vector.broadcast %881 : vector<1x1xf32> to vector<1x8xf32>
    %883 = arith.subf %879, %882 : vector<1x8xf32>
    %884 = math.exp %883 : vector<1x8xf32>
    %cst_351 = arith.constant dense<0.000000e+00> : vector<1xf32>
    %885 = vector.multi_reduction <add>, %884, %cst_351 [1] : vector<1x8xf32> to vector<1xf32>
    %886 = vector.shape_cast %885 : vector<1xf32> to vector<1x1xf32>
    %887 = tpu.reciprocal %886 {approx = true} : vector<1x1xf32> -> vector<1x1xf32>
    %888 = vector.broadcast %887 : vector<1x1xf32> to vector<1x8xf32>
    %889 = arith.mulf %884, %888 : vector<1x8xf32>
    %cst_352 = arith.constant dense<0.000000e+00> : vector<1x128xf32>
    %890 = tpu.matmul %889, %570, %cst_352 {dimension_numbers = #tpu.dot_dimension_numbers<[1], [0], [0], [1], [0, 0, 1, 1], [], []>} : vector<1x8xf32>, vector<8x128xf32>, vector<1x128xf32> -> vector<1x128xf32>
    %891 = tpu.concatenate %878, %890 in 1 : vector<1x128xf32>, vector<1x128xf32> -> vector<1x256xf32>
    %c0_353 = arith.constant 0 : index
    %c0_354 = arith.constant 0 : index
    %892 = vector.load %arg14[%c0_353, %c0_354] : memref<256x128xf32, #tpu.memory_space<vmem>>, vector<256x128xf32>
    %cst_355 = arith.constant dense<0.000000e+00> : vector<1x128xf32>
    %893 = tpu.matmul %891, %892, %cst_355 {dimension_numbers = #tpu.dot_dimension_numbers<[1], [0], [0], [1], [0, 0, 1, 1], [], []>} : vector<1x256xf32>, vector<256x128xf32>, vector<1x128xf32> -> vector<1x128xf32>
    %c0_356 = arith.constant 0 : index
    %c0_357 = arith.constant 0 : index
    %894 = vector.load %arg15[%c0_356, %c0_357] : memref<1x128xf32, #tpu.memory_space<vmem>>, vector<1x128xf32>
    %895 = arith.addf %893, %894 : vector<1x128xf32>
    %896 = math.tanh %895 : vector<1x128xf32>
    %897 = arith.truncf %896 : vector<1x128xf32> to vector<1x128xbf16>
    %c0_358 = arith.constant 0 : index
    %c0_359 = arith.constant 0 : index
    %898 = vector.load %arg24[%c0_358, %c0_359] : memref<128x256xbf16, #tpu.memory_space<vmem>>, vector<128x256xbf16>
    %cst_360 = arith.constant dense<0.000000e+00> : vector<1x256xf32>
    %899 = tpu.matmul %897, %898, %cst_360 {dimension_numbers = #tpu.dot_dimension_numbers<[1], [0], [0], [1], [0, 0, 1, 1], [], []>} : vector<1x128xbf16>, vector<128x256xbf16>, vector<1x256xf32> -> vector<1x256xf32>
    %c0_361 = arith.constant 0 : index
    %c0_362 = arith.constant 0 : index
    %900 = vector.load %arg17[%c0_361, %c0_362] : memref<1x256xf32, #tpu.memory_space<vmem>>, vector<1x256xf32>
    %901 = arith.addf %899, %900 : vector<1x256xf32>
    %cst_363 = arith.constant dense<0xFF800000> : vector<1xf32>
    %902 = vector.multi_reduction <maximumf>, %901, %cst_363 [1] : vector<1x256xf32> to vector<1xf32>
    %903 = vector.shape_cast %902 : vector<1xf32> to vector<1x1xf32>
    %904 = vector.broadcast %903 : vector<1x1xf32> to vector<1x256xf32>
    %905 = arith.subf %901, %904 : vector<1x256xf32>
    %906 = math.exp %905 : vector<1x256xf32>
    %cst_364 = arith.constant dense<0.000000e+00> : vector<1xf32>
    %907 = vector.multi_reduction <add>, %906, %cst_364 [1] : vector<1x256xf32> to vector<1xf32>
    %908 = vector.shape_cast %907 : vector<1xf32> to vector<1x1xf32>
    %cst_365 = arith.constant 1.000000e+00 : f32
    %909 = vector.broadcast %cst_365 : f32 to vector<1x1xf32>
    %910 = arith.divf %909, %908 : vector<1x1xf32>
    %911 = vector.broadcast %903 : vector<1x1xf32> to vector<1x256xf32>
    %912 = arith.cmpf oeq, %901, %911 : vector<1x256xf32>
    %c256_i32_366 = arith.constant 256 : i32
    %913 = vector.broadcast %c256_i32_366 : i32 to vector<1x256xi32>
    %914 = arith.select %912, %576, %913 : vector<1x256xi1>, vector<1x256xi32>
    %cst_367 = arith.constant dense<2147483647> : vector<1xi32>
    %915 = vector.multi_reduction <minsi>, %914, %cst_367 [1] : vector<1x256xi32> to vector<1xi32>
    %916 = vector.shape_cast %915 : vector<1xi32> to vector<1x1xi32>
    %c0_368 = arith.constant 0 : index
    %c0_369 = arith.constant 0 : index
    %917 = vector.load %arg26[%c0_368, %c0_369] : memref<1x1xi32, #tpu.memory_space<vmem>>, vector<1x1xi32>
    tpu.vector_store %arg26[%c0_368, %c0_369], %916 {strides = array<i32>} : memref<1x1xi32, #tpu.memory_space<vmem>>, vector<1x1xi32>,
    %c0_370 = arith.constant 0 : index
    %c0_371 = arith.constant 0 : index
    %918 = vector.load %arg26[%c0_370, %c0_371] : memref<1x1xi32, #tpu.memory_space<vmem>>, vector<1x1xi32>
    %919 = vector.extract %918[0, 0] : i32 from vector<1x1xi32>
    %920 = arith.index_cast %919 : i32 to index
    %c0_372 = arith.constant 0 : index
    %921 = vector.load %arg1[%920, %c0_372] : memref<256x128xf32, #tpu.memory_space<vmem>>, vector<1x128xf32>
    %922 = vector.broadcast %c3_i32_335 : i32 to vector<1x8xi32>
    %923 = arith.cmpi eq, %575, %922 : vector<1x8xi32>
    %c0_373 = arith.constant 0 : index
    %c0_374 = arith.constant 0 : index
    %924 = vector.load %arg18[%c0_373, %c0_374] : memref<1x8xi32, #tpu.memory_space<vmem>>, vector<1x8xi32>
    %925 = vector.shape_cast %916 : vector<1x1xi32> to vector<1x1xi32>
    %926 = vector.broadcast %925 : vector<1x1xi32> to vector<1x8xi32>
    %927 = arith.select %923, %926, %924 : vector<1x8xi1>, vector<1x8xi32>
    %c0_375 = arith.constant 0 : index
    %c0_376 = arith.constant 0 : index
    %928 = vector.load %arg18[%c0_375, %c0_376] : memref<1x8xi32, #tpu.memory_space<vmem>>, vector<1x8xi32>
    tpu.vector_store %arg18[%c0_375, %c0_376], %927 {strides = array<i32>} : memref<1x8xi32, #tpu.memory_space<vmem>>, vector<1x8xi32>,
    %c0_377 = arith.constant 0 : index
    %c0_378 = arith.constant 0 : index
    %929 = vector.load %arg19[%c0_377, %c0_378] : memref<1x8xf32, #tpu.memory_space<vmem>>, vector<1x8xf32>
    %930 = vector.shape_cast %910 : vector<1x1xf32> to vector<1x1xf32>
    %931 = vector.broadcast %930 : vector<1x1xf32> to vector<1x8xf32>
    %932 = arith.select %923, %931, %929 : vector<1x8xi1>, vector<1x8xf32>
    %c0_379 = arith.constant 0 : index
    %c0_380 = arith.constant 0 : index
    %933 = vector.load %arg19[%c0_379, %c0_380] : memref<1x8xf32, #tpu.memory_space<vmem>>, vector<1x8xf32>
    tpu.vector_store %arg19[%c0_379, %c0_380], %932 {strides = array<i32>} : memref<1x8xf32, #tpu.memory_space<vmem>>, vector<1x8xf32>,
    %c4_i32_381 = arith.constant 4 : i32
    %c0_382 = arith.constant 0 : index
    %c0_383 = arith.constant 0 : index
    %934 = vector.load %arg10[%c0_382, %c0_383] : memref<128x384xf32, #tpu.memory_space<vmem>>, vector<128x384xf32>
    %cst_384 = arith.constant dense<0.000000e+00> : vector<1x384xf32>
    %935 = tpu.matmul %921, %934, %cst_384 {dimension_numbers = #tpu.dot_dimension_numbers<[1], [0], [0], [1], [0, 0, 1, 1], [], []>} : vector<1x128xf32>, vector<128x384xf32>, vector<1x384xf32> -> vector<1x384xf32>
    %c0_385 = arith.constant 0 : index
    %c0_386 = arith.constant 0 : index
    %936 = vector.load %arg12[%c0_385, %c0_386] : memref<1x384xf32, #tpu.memory_space<vmem>>, vector<1x384xf32>
    %937 = arith.addf %935, %936 : vector<1x384xf32>
    %c0_387 = arith.constant 0 : index
    %c0_388 = arith.constant 0 : index
    %938 = vector.load %arg11[%c0_387, %c0_388] : memref<128x384xf32, #tpu.memory_space<vmem>>, vector<128x384xf32>
    %cst_389 = arith.constant dense<0.000000e+00> : vector<1x384xf32>
    %939 = tpu.matmul %878, %938, %cst_389 {dimension_numbers = #tpu.dot_dimension_numbers<[1], [0], [0], [1], [0, 0, 1, 1], [], []>} : vector<1x128xf32>, vector<128x384xf32>, vector<1x384xf32> -> vector<1x384xf32>
    %c0_390 = arith.constant 0 : index
    %c0_391 = arith.constant 0 : index
    %940 = vector.load %arg13[%c0_390, %c0_391] : memref<1x384xf32, #tpu.memory_space<vmem>>, vector<1x384xf32>
    %941 = arith.addf %939, %940 : vector<1x384xf32>
    %942 = vector.extract_strided_slice %937 {offsets = [0, 0], sizes = [1, 128], strides = [1, 1]} : vector<1x384xf32> to vector<1x128xf32>
    %943 = vector.extract_strided_slice %941 {offsets = [0, 0], sizes = [1, 128], strides = [1, 1]} : vector<1x384xf32> to vector<1x128xf32>
    %944 = arith.addf %942, %943 : vector<1x128xf32>
    %945 = arith.negf %944 : vector<1x128xf32>
    %946 = math.exp %945 : vector<1x128xf32>
    %cst_392 = arith.constant 1.000000e+00 : f32
    %947 = vector.broadcast %cst_392 : f32 to vector<1x128xf32>
    %948 = arith.addf %947, %946 : vector<1x128xf32>
    %949 = arith.divf %947, %948 : vector<1x128xf32>
    %950 = vector.extract_strided_slice %937 {offsets = [0, 128], sizes = [1, 128], strides = [1, 1]} : vector<1x384xf32> to vector<1x128xf32>
    %951 = vector.extract_strided_slice %941 {offsets = [0, 128], sizes = [1, 128], strides = [1, 1]} : vector<1x384xf32> to vector<1x128xf32>
    %952 = arith.addf %950, %951 : vector<1x128xf32>
    %953 = arith.negf %952 : vector<1x128xf32>
    %954 = math.exp %953 : vector<1x128xf32>
    %cst_393 = arith.constant 1.000000e+00 : f32
    %955 = vector.broadcast %cst_393 : f32 to vector<1x128xf32>
    %956 = arith.addf %955, %954 : vector<1x128xf32>
    %957 = arith.divf %955, %956 : vector<1x128xf32>
    %958 = vector.extract_strided_slice %937 {offsets = [0, 256], sizes = [1, 128], strides = [1, 1]} : vector<1x384xf32> to vector<1x128xf32>
    %959 = vector.extract_strided_slice %941 {offsets = [0, 256], sizes = [1, 128], strides = [1, 1]} : vector<1x384xf32> to vector<1x128xf32>
    %960 = arith.mulf %949, %959 : vector<1x128xf32>
    %961 = arith.addf %958, %960 : vector<1x128xf32>
    %962 = math.tanh %961 : vector<1x128xf32>
    %cst_394 = arith.constant 1.000000e+00 : f32
    %963 = vector.broadcast %cst_394 : f32 to vector<1x128xf32>
    %964 = arith.subf %963, %957 : vector<1x128xf32>
    %965 = arith.mulf %964, %962 : vector<1x128xf32>
    %966 = arith.mulf %957, %878 : vector<1x128xf32>
    %967 = arith.addf %965, %966 : vector<1x128xf32>
    %cst_395 = arith.constant dense<0.000000e+00> : vector<1x8xf32>
    %968 = tpu.matmul %967, %570, %cst_395 {dimension_numbers = #tpu.dot_dimension_numbers<[1], [1], [0], [0], [0, 0, 1, 0], [], []>} : vector<1x128xf32>, vector<8x128xf32>, vector<1x8xf32> -> vector<1x8xf32>
    %cst_396 = arith.constant dense<0xFF800000> : vector<1xf32>
    %969 = vector.multi_reduction <maximumf>, %968, %cst_396 [1] : vector<1x8xf32> to vector<1xf32>
    %970 = vector.shape_cast %969 : vector<1xf32> to vector<1x1xf32>
    %971 = vector.broadcast %970 : vector<1x1xf32> to vector<1x8xf32>
    %972 = arith.subf %968, %971 : vector<1x8xf32>
    %973 = math.exp %972 : vector<1x8xf32>
    %cst_397 = arith.constant dense<0.000000e+00> : vector<1xf32>
    %974 = vector.multi_reduction <add>, %973, %cst_397 [1] : vector<1x8xf32> to vector<1xf32>
    %975 = vector.shape_cast %974 : vector<1xf32> to vector<1x1xf32>
    %976 = tpu.reciprocal %975 {approx = true} : vector<1x1xf32> -> vector<1x1xf32>
    %977 = vector.broadcast %976 : vector<1x1xf32> to vector<1x8xf32>
    %978 = arith.mulf %973, %977 : vector<1x8xf32>
    %cst_398 = arith.constant dense<0.000000e+00> : vector<1x128xf32>
    %979 = tpu.matmul %978, %570, %cst_398 {dimension_numbers = #tpu.dot_dimension_numbers<[1], [0], [0], [1], [0, 0, 1, 1], [], []>} : vector<1x8xf32>, vector<8x128xf32>, vector<1x128xf32> -> vector<1x128xf32>
    %980 = tpu.concatenate %967, %979 in 1 : vector<1x128xf32>, vector<1x128xf32> -> vector<1x256xf32>
    %c0_399 = arith.constant 0 : index
    %c0_400 = arith.constant 0 : index
    %981 = vector.load %arg14[%c0_399, %c0_400] : memref<256x128xf32, #tpu.memory_space<vmem>>, vector<256x128xf32>
    %cst_401 = arith.constant dense<0.000000e+00> : vector<1x128xf32>
    %982 = tpu.matmul %980, %981, %cst_401 {dimension_numbers = #tpu.dot_dimension_numbers<[1], [0], [0], [1], [0, 0, 1, 1], [], []>} : vector<1x256xf32>, vector<256x128xf32>, vector<1x128xf32> -> vector<1x128xf32>
    %c0_402 = arith.constant 0 : index
    %c0_403 = arith.constant 0 : index
    %983 = vector.load %arg15[%c0_402, %c0_403] : memref<1x128xf32, #tpu.memory_space<vmem>>, vector<1x128xf32>
    %984 = arith.addf %982, %983 : vector<1x128xf32>
    %985 = math.tanh %984 : vector<1x128xf32>
    %986 = arith.truncf %985 : vector<1x128xf32> to vector<1x128xbf16>
    %c0_404 = arith.constant 0 : index
    %c0_405 = arith.constant 0 : index
    %987 = vector.load %arg24[%c0_404, %c0_405] : memref<128x256xbf16, #tpu.memory_space<vmem>>, vector<128x256xbf16>
    %cst_406 = arith.constant dense<0.000000e+00> : vector<1x256xf32>
    %988 = tpu.matmul %986, %987, %cst_406 {dimension_numbers = #tpu.dot_dimension_numbers<[1], [0], [0], [1], [0, 0, 1, 1], [], []>} : vector<1x128xbf16>, vector<128x256xbf16>, vector<1x256xf32> -> vector<1x256xf32>
    %c0_407 = arith.constant 0 : index
    %c0_408 = arith.constant 0 : index
    %989 = vector.load %arg17[%c0_407, %c0_408] : memref<1x256xf32, #tpu.memory_space<vmem>>, vector<1x256xf32>
    %990 = arith.addf %988, %989 : vector<1x256xf32>
    %cst_409 = arith.constant dense<0xFF800000> : vector<1xf32>
    %991 = vector.multi_reduction <maximumf>, %990, %cst_409 [1] : vector<1x256xf32> to vector<1xf32>
    %992 = vector.shape_cast %991 : vector<1xf32> to vector<1x1xf32>
    %993 = vector.broadcast %992 : vector<1x1xf32> to vector<1x256xf32>
    %994 = arith.subf %990, %993 : vector<1x256xf32>
    %995 = math.exp %994 : vector<1x256xf32>
    %cst_410 = arith.constant dense<0.000000e+00> : vector<1xf32>
    %996 = vector.multi_reduction <add>, %995, %cst_410 [1] : vector<1x256xf32> to vector<1xf32>
    %997 = vector.shape_cast %996 : vector<1xf32> to vector<1x1xf32>
    %cst_411 = arith.constant 1.000000e+00 : f32
    %998 = vector.broadcast %cst_411 : f32 to vector<1x1xf32>
    %999 = arith.divf %998, %997 : vector<1x1xf32>
    %1000 = vector.broadcast %992 : vector<1x1xf32> to vector<1x256xf32>
    %1001 = arith.cmpf oeq, %990, %1000 : vector<1x256xf32>
    %c256_i32_412 = arith.constant 256 : i32
    %1002 = vector.broadcast %c256_i32_412 : i32 to vector<1x256xi32>
    %1003 = arith.select %1001, %576, %1002 : vector<1x256xi1>, vector<1x256xi32>
    %cst_413 = arith.constant dense<2147483647> : vector<1xi32>
    %1004 = vector.multi_reduction <minsi>, %1003, %cst_413 [1] : vector<1x256xi32> to vector<1xi32>
    %1005 = vector.shape_cast %1004 : vector<1xi32> to vector<1x1xi32>
    %c0_414 = arith.constant 0 : index
    %c0_415 = arith.constant 0 : index
    %1006 = vector.load %arg26[%c0_414, %c0_415] : memref<1x1xi32, #tpu.memory_space<vmem>>, vector<1x1xi32>
    tpu.vector_store %arg26[%c0_414, %c0_415], %1005 {strides = array<i32>} : memref<1x1xi32, #tpu.memory_space<vmem>>, vector<1x1xi32>,
    %c0_416 = arith.constant 0 : index
    %c0_417 = arith.constant 0 : index
    %1007 = vector.load %arg26[%c0_416, %c0_417] : memref<1x1xi32, #tpu.memory_space<vmem>>, vector<1x1xi32>
    %1008 = vector.extract %1007[0, 0] : i32 from vector<1x1xi32>
    %1009 = arith.index_cast %1008 : i32 to index
    %c0_418 = arith.constant 0 : index
    %1010 = vector.load %arg1[%1009, %c0_418] : memref<256x128xf32, #tpu.memory_space<vmem>>, vector<1x128xf32>
    %1011 = vector.broadcast %c4_i32_381 : i32 to vector<1x8xi32>
    %1012 = arith.cmpi eq, %575, %1011 : vector<1x8xi32>
    %c0_419 = arith.constant 0 : index
    %c0_420 = arith.constant 0 : index
    %1013 = vector.load %arg18[%c0_419, %c0_420] : memref<1x8xi32, #tpu.memory_space<vmem>>, vector<1x8xi32>
    %1014 = vector.shape_cast %1005 : vector<1x1xi32> to vector<1x1xi32>
    %1015 = vector.broadcast %1014 : vector<1x1xi32> to vector<1x8xi32>
    %1016 = arith.select %1012, %1015, %1013 : vector<1x8xi1>, vector<1x8xi32>
    %c0_421 = arith.constant 0 : index
    %c0_422 = arith.constant 0 : index
    %1017 = vector.load %arg18[%c0_421, %c0_422] : memref<1x8xi32, #tpu.memory_space<vmem>>, vector<1x8xi32>
    tpu.vector_store %arg18[%c0_421, %c0_422], %1016 {strides = array<i32>} : memref<1x8xi32, #tpu.memory_space<vmem>>, vector<1x8xi32>,
    %c0_423 = arith.constant 0 : index
    %c0_424 = arith.constant 0 : index
    %1018 = vector.load %arg19[%c0_423, %c0_424] : memref<1x8xf32, #tpu.memory_space<vmem>>, vector<1x8xf32>
    %1019 = vector.shape_cast %999 : vector<1x1xf32> to vector<1x1xf32>
    %1020 = vector.broadcast %1019 : vector<1x1xf32> to vector<1x8xf32>
    %1021 = arith.select %1012, %1020, %1018 : vector<1x8xi1>, vector<1x8xf32>
    %c0_425 = arith.constant 0 : index
    %c0_426 = arith.constant 0 : index
    %1022 = vector.load %arg19[%c0_425, %c0_426] : memref<1x8xf32, #tpu.memory_space<vmem>>, vector<1x8xf32>
    tpu.vector_store %arg19[%c0_425, %c0_426], %1021 {strides = array<i32>} : memref<1x8xf32, #tpu.memory_space<vmem>>, vector<1x8xf32>,
    %c5_i32_427 = arith.constant 5 : i32
    %c0_428 = arith.constant 0 : index
    %c0_429 = arith.constant 0 : index
    %1023 = vector.load %arg10[%c0_428, %c0_429] : memref<128x384xf32, #tpu.memory_space<vmem>>, vector<128x384xf32>
    %cst_430 = arith.constant dense<0.000000e+00> : vector<1x384xf32>
    %1024 = tpu.matmul %1010, %1023, %cst_430 {dimension_numbers = #tpu.dot_dimension_numbers<[1], [0], [0], [1], [0, 0, 1, 1], [], []>} : vector<1x128xf32>, vector<128x384xf32>, vector<1x384xf32> -> vector<1x384xf32>
    %c0_431 = arith.constant 0 : index
    %c0_432 = arith.constant 0 : index
    %1025 = vector.load %arg12[%c0_431, %c0_432] : memref<1x384xf32, #tpu.memory_space<vmem>>, vector<1x384xf32>
    %1026 = arith.addf %1024, %1025 : vector<1x384xf32>
    %c0_433 = arith.constant 0 : index
    %c0_434 = arith.constant 0 : index
    %1027 = vector.load %arg11[%c0_433, %c0_434] : memref<128x384xf32, #tpu.memory_space<vmem>>, vector<128x384xf32>
    %cst_435 = arith.constant dense<0.000000e+00> : vector<1x384xf32>
    %1028 = tpu.matmul %967, %1027, %cst_435 {dimension_numbers = #tpu.dot_dimension_numbers<[1], [0], [0], [1], [0, 0, 1, 1], [], []>} : vector<1x128xf32>, vector<128x384xf32>, vector<1x384xf32> -> vector<1x384xf32>
    %c0_436 = arith.constant 0 : index
    %c0_437 = arith.constant 0 : index
    %1029 = vector.load %arg13[%c0_436, %c0_437] : memref<1x384xf32, #tpu.memory_space<vmem>>, vector<1x384xf32>
    %1030 = arith.addf %1028, %1029 : vector<1x384xf32>
    %1031 = vector.extract_strided_slice %1026 {offsets = [0, 0], sizes = [1, 128], strides = [1, 1]} : vector<1x384xf32> to vector<1x128xf32>
    %1032 = vector.extract_strided_slice %1030 {offsets = [0, 0], sizes = [1, 128], strides = [1, 1]} : vector<1x384xf32> to vector<1x128xf32>
    %1033 = arith.addf %1031, %1032 : vector<1x128xf32>
    %1034 = arith.negf %1033 : vector<1x128xf32>
    %1035 = math.exp %1034 : vector<1x128xf32>
    %cst_438 = arith.constant 1.000000e+00 : f32
    %1036 = vector.broadcast %cst_438 : f32 to vector<1x128xf32>
    %1037 = arith.addf %1036, %1035 : vector<1x128xf32>
    %1038 = arith.divf %1036, %1037 : vector<1x128xf32>
    %1039 = vector.extract_strided_slice %1026 {offsets = [0, 128], sizes = [1, 128], strides = [1, 1]} : vector<1x384xf32> to vector<1x128xf32>
    %1040 = vector.extract_strided_slice %1030 {offsets = [0, 128], sizes = [1, 128], strides = [1, 1]} : vector<1x384xf32> to vector<1x128xf32>
    %1041 = arith.addf %1039, %1040 : vector<1x128xf32>
    %1042 = arith.negf %1041 : vector<1x128xf32>
    %1043 = math.exp %1042 : vector<1x128xf32>
    %cst_439 = arith.constant 1.000000e+00 : f32
    %1044 = vector.broadcast %cst_439 : f32 to vector<1x128xf32>
    %1045 = arith.addf %1044, %1043 : vector<1x128xf32>
    %1046 = arith.divf %1044, %1045 : vector<1x128xf32>
    %1047 = vector.extract_strided_slice %1026 {offsets = [0, 256], sizes = [1, 128], strides = [1, 1]} : vector<1x384xf32> to vector<1x128xf32>
    %1048 = vector.extract_strided_slice %1030 {offsets = [0, 256], sizes = [1, 128], strides = [1, 1]} : vector<1x384xf32> to vector<1x128xf32>
    %1049 = arith.mulf %1038, %1048 : vector<1x128xf32>
    %1050 = arith.addf %1047, %1049 : vector<1x128xf32>
    %1051 = math.tanh %1050 : vector<1x128xf32>
    %cst_440 = arith.constant 1.000000e+00 : f32
    %1052 = vector.broadcast %cst_440 : f32 to vector<1x128xf32>
    %1053 = arith.subf %1052, %1046 : vector<1x128xf32>
    %1054 = arith.mulf %1053, %1051 : vector<1x128xf32>
    %1055 = arith.mulf %1046, %967 : vector<1x128xf32>
    %1056 = arith.addf %1054, %1055 : vector<1x128xf32>
    %cst_441 = arith.constant dense<0.000000e+00> : vector<1x8xf32>
    %1057 = tpu.matmul %1056, %570, %cst_441 {dimension_numbers = #tpu.dot_dimension_numbers<[1], [1], [0], [0], [0, 0, 1, 0], [], []>} : vector<1x128xf32>, vector<8x128xf32>, vector<1x8xf32> -> vector<1x8xf32>
    %cst_442 = arith.constant dense<0xFF800000> : vector<1xf32>
    %1058 = vector.multi_reduction <maximumf>, %1057, %cst_442 [1] : vector<1x8xf32> to vector<1xf32>
    %1059 = vector.shape_cast %1058 : vector<1xf32> to vector<1x1xf32>
    %1060 = vector.broadcast %1059 : vector<1x1xf32> to vector<1x8xf32>
    %1061 = arith.subf %1057, %1060 : vector<1x8xf32>
    %1062 = math.exp %1061 : vector<1x8xf32>
    %cst_443 = arith.constant dense<0.000000e+00> : vector<1xf32>
    %1063 = vector.multi_reduction <add>, %1062, %cst_443 [1] : vector<1x8xf32> to vector<1xf32>
    %1064 = vector.shape_cast %1063 : vector<1xf32> to vector<1x1xf32>
    %1065 = tpu.reciprocal %1064 {approx = true} : vector<1x1xf32> -> vector<1x1xf32>
    %1066 = vector.broadcast %1065 : vector<1x1xf32> to vector<1x8xf32>
    %1067 = arith.mulf %1062, %1066 : vector<1x8xf32>
    %cst_444 = arith.constant dense<0.000000e+00> : vector<1x128xf32>
    %1068 = tpu.matmul %1067, %570, %cst_444 {dimension_numbers = #tpu.dot_dimension_numbers<[1], [0], [0], [1], [0, 0, 1, 1], [], []>} : vector<1x8xf32>, vector<8x128xf32>, vector<1x128xf32> -> vector<1x128xf32>
    %1069 = tpu.concatenate %1056, %1068 in 1 : vector<1x128xf32>, vector<1x128xf32> -> vector<1x256xf32>
    %c0_445 = arith.constant 0 : index
    %c0_446 = arith.constant 0 : index
    %1070 = vector.load %arg14[%c0_445, %c0_446] : memref<256x128xf32, #tpu.memory_space<vmem>>, vector<256x128xf32>
    %cst_447 = arith.constant dense<0.000000e+00> : vector<1x128xf32>
    %1071 = tpu.matmul %1069, %1070, %cst_447 {dimension_numbers = #tpu.dot_dimension_numbers<[1], [0], [0], [1], [0, 0, 1, 1], [], []>} : vector<1x256xf32>, vector<256x128xf32>, vector<1x128xf32> -> vector<1x128xf32>
    %c0_448 = arith.constant 0 : index
    %c0_449 = arith.constant 0 : index
    %1072 = vector.load %arg15[%c0_448, %c0_449] : memref<1x128xf32, #tpu.memory_space<vmem>>, vector<1x128xf32>
    %1073 = arith.addf %1071, %1072 : vector<1x128xf32>
    %1074 = math.tanh %1073 : vector<1x128xf32>
    %1075 = arith.truncf %1074 : vector<1x128xf32> to vector<1x128xbf16>
    %c0_450 = arith.constant 0 : index
    %c0_451 = arith.constant 0 : index
    %1076 = vector.load %arg24[%c0_450, %c0_451] : memref<128x256xbf16, #tpu.memory_space<vmem>>, vector<128x256xbf16>
    %cst_452 = arith.constant dense<0.000000e+00> : vector<1x256xf32>
    %1077 = tpu.matmul %1075, %1076, %cst_452 {dimension_numbers = #tpu.dot_dimension_numbers<[1], [0], [0], [1], [0, 0, 1, 1], [], []>} : vector<1x128xbf16>, vector<128x256xbf16>, vector<1x256xf32> -> vector<1x256xf32>
    %c0_453 = arith.constant 0 : index
    %c0_454 = arith.constant 0 : index
    %1078 = vector.load %arg17[%c0_453, %c0_454] : memref<1x256xf32, #tpu.memory_space<vmem>>, vector<1x256xf32>
    %1079 = arith.addf %1077, %1078 : vector<1x256xf32>
    %cst_455 = arith.constant dense<0xFF800000> : vector<1xf32>
    %1080 = vector.multi_reduction <maximumf>, %1079, %cst_455 [1] : vector<1x256xf32> to vector<1xf32>
    %1081 = vector.shape_cast %1080 : vector<1xf32> to vector<1x1xf32>
    %1082 = vector.broadcast %1081 : vector<1x1xf32> to vector<1x256xf32>
    %1083 = arith.subf %1079, %1082 : vector<1x256xf32>
    %1084 = math.exp %1083 : vector<1x256xf32>
    %cst_456 = arith.constant dense<0.000000e+00> : vector<1xf32>
    %1085 = vector.multi_reduction <add>, %1084, %cst_456 [1] : vector<1x256xf32> to vector<1xf32>
    %1086 = vector.shape_cast %1085 : vector<1xf32> to vector<1x1xf32>
    %cst_457 = arith.constant 1.000000e+00 : f32
    %1087 = vector.broadcast %cst_457 : f32 to vector<1x1xf32>
    %1088 = arith.divf %1087, %1086 : vector<1x1xf32>
    %1089 = vector.broadcast %1081 : vector<1x1xf32> to vector<1x256xf32>
    %1090 = arith.cmpf oeq, %1079, %1089 : vector<1x256xf32>
    %c256_i32_458 = arith.constant 256 : i32
    %1091 = vector.broadcast %c256_i32_458 : i32 to vector<1x256xi32>
    %1092 = arith.select %1090, %576, %1091 : vector<1x256xi1>, vector<1x256xi32>
    %cst_459 = arith.constant dense<2147483647> : vector<1xi32>
    %1093 = vector.multi_reduction <minsi>, %1092, %cst_459 [1] : vector<1x256xi32> to vector<1xi32>
    %1094 = vector.shape_cast %1093 : vector<1xi32> to vector<1x1xi32>
    %c0_460 = arith.constant 0 : index
    %c0_461 = arith.constant 0 : index
    %1095 = vector.load %arg26[%c0_460, %c0_461] : memref<1x1xi32, #tpu.memory_space<vmem>>, vector<1x1xi32>
    tpu.vector_store %arg26[%c0_460, %c0_461], %1094 {strides = array<i32>} : memref<1x1xi32, #tpu.memory_space<vmem>>, vector<1x1xi32>,
    %c0_462 = arith.constant 0 : index
    %c0_463 = arith.constant 0 : index
    %1096 = vector.load %arg26[%c0_462, %c0_463] : memref<1x1xi32, #tpu.memory_space<vmem>>, vector<1x1xi32>
    %1097 = vector.extract %1096[0, 0] : i32 from vector<1x1xi32>
    %1098 = arith.index_cast %1097 : i32 to index
    %c0_464 = arith.constant 0 : index
    %1099 = vector.load %arg1[%1098, %c0_464] : memref<256x128xf32, #tpu.memory_space<vmem>>, vector<1x128xf32>
    %1100 = vector.broadcast %c5_i32_427 : i32 to vector<1x8xi32>
    %1101 = arith.cmpi eq, %575, %1100 : vector<1x8xi32>
    %c0_465 = arith.constant 0 : index
    %c0_466 = arith.constant 0 : index
    %1102 = vector.load %arg18[%c0_465, %c0_466] : memref<1x8xi32, #tpu.memory_space<vmem>>, vector<1x8xi32>
    %1103 = vector.shape_cast %1094 : vector<1x1xi32> to vector<1x1xi32>
    %1104 = vector.broadcast %1103 : vector<1x1xi32> to vector<1x8xi32>
    %1105 = arith.select %1101, %1104, %1102 : vector<1x8xi1>, vector<1x8xi32>
    %c0_467 = arith.constant 0 : index
    %c0_468 = arith.constant 0 : index
    %1106 = vector.load %arg18[%c0_467, %c0_468] : memref<1x8xi32, #tpu.memory_space<vmem>>, vector<1x8xi32>
    tpu.vector_store %arg18[%c0_467, %c0_468], %1105 {strides = array<i32>} : memref<1x8xi32, #tpu.memory_space<vmem>>, vector<1x8xi32>,
    %c0_469 = arith.constant 0 : index
    %c0_470 = arith.constant 0 : index
    %1107 = vector.load %arg19[%c0_469, %c0_470] : memref<1x8xf32, #tpu.memory_space<vmem>>, vector<1x8xf32>
    %1108 = vector.shape_cast %1088 : vector<1x1xf32> to vector<1x1xf32>
    %1109 = vector.broadcast %1108 : vector<1x1xf32> to vector<1x8xf32>
    %1110 = arith.select %1101, %1109, %1107 : vector<1x8xi1>, vector<1x8xf32>
    %c0_471 = arith.constant 0 : index
    %c0_472 = arith.constant 0 : index
    %1111 = vector.load %arg19[%c0_471, %c0_472] : memref<1x8xf32, #tpu.memory_space<vmem>>, vector<1x8xf32>
    tpu.vector_store %arg19[%c0_471, %c0_472], %1110 {strides = array<i32>} : memref<1x8xf32, #tpu.memory_space<vmem>>, vector<1x8xf32>,
    %c6_i32_473 = arith.constant 6 : i32
    %c0_474 = arith.constant 0 : index
    %c0_475 = arith.constant 0 : index
    %1112 = vector.load %arg10[%c0_474, %c0_475] : memref<128x384xf32, #tpu.memory_space<vmem>>, vector<128x384xf32>
    %cst_476 = arith.constant dense<0.000000e+00> : vector<1x384xf32>
    %1113 = tpu.matmul %1099, %1112, %cst_476 {dimension_numbers = #tpu.dot_dimension_numbers<[1], [0], [0], [1], [0, 0, 1, 1], [], []>} : vector<1x128xf32>, vector<128x384xf32>, vector<1x384xf32> -> vector<1x384xf32>
    %c0_477 = arith.constant 0 : index
    %c0_478 = arith.constant 0 : index
    %1114 = vector.load %arg12[%c0_477, %c0_478] : memref<1x384xf32, #tpu.memory_space<vmem>>, vector<1x384xf32>
    %1115 = arith.addf %1113, %1114 : vector<1x384xf32>
    %c0_479 = arith.constant 0 : index
    %c0_480 = arith.constant 0 : index
    %1116 = vector.load %arg11[%c0_479, %c0_480] : memref<128x384xf32, #tpu.memory_space<vmem>>, vector<128x384xf32>
    %cst_481 = arith.constant dense<0.000000e+00> : vector<1x384xf32>
    %1117 = tpu.matmul %1056, %1116, %cst_481 {dimension_numbers = #tpu.dot_dimension_numbers<[1], [0], [0], [1], [0, 0, 1, 1], [], []>} : vector<1x128xf32>, vector<128x384xf32>, vector<1x384xf32> -> vector<1x384xf32>
    %c0_482 = arith.constant 0 : index
    %c0_483 = arith.constant 0 : index
    %1118 = vector.load %arg13[%c0_482, %c0_483] : memref<1x384xf32, #tpu.memory_space<vmem>>, vector<1x384xf32>
    %1119 = arith.addf %1117, %1118 : vector<1x384xf32>
    %1120 = vector.extract_strided_slice %1115 {offsets = [0, 0], sizes = [1, 128], strides = [1, 1]} : vector<1x384xf32> to vector<1x128xf32>
    %1121 = vector.extract_strided_slice %1119 {offsets = [0, 0], sizes = [1, 128], strides = [1, 1]} : vector<1x384xf32> to vector<1x128xf32>
    %1122 = arith.addf %1120, %1121 : vector<1x128xf32>
    %1123 = arith.negf %1122 : vector<1x128xf32>
    %1124 = math.exp %1123 : vector<1x128xf32>
    %cst_484 = arith.constant 1.000000e+00 : f32
    %1125 = vector.broadcast %cst_484 : f32 to vector<1x128xf32>
    %1126 = arith.addf %1125, %1124 : vector<1x128xf32>
    %1127 = arith.divf %1125, %1126 : vector<1x128xf32>
    %1128 = vector.extract_strided_slice %1115 {offsets = [0, 128], sizes = [1, 128], strides = [1, 1]} : vector<1x384xf32> to vector<1x128xf32>
    %1129 = vector.extract_strided_slice %1119 {offsets = [0, 128], sizes = [1, 128], strides = [1, 1]} : vector<1x384xf32> to vector<1x128xf32>
    %1130 = arith.addf %1128, %1129 : vector<1x128xf32>
    %1131 = arith.negf %1130 : vector<1x128xf32>
    %1132 = math.exp %1131 : vector<1x128xf32>
    %cst_485 = arith.constant 1.000000e+00 : f32
    %1133 = vector.broadcast %cst_485 : f32 to vector<1x128xf32>
    %1134 = arith.addf %1133, %1132 : vector<1x128xf32>
    %1135 = arith.divf %1133, %1134 : vector<1x128xf32>
    %1136 = vector.extract_strided_slice %1115 {offsets = [0, 256], sizes = [1, 128], strides = [1, 1]} : vector<1x384xf32> to vector<1x128xf32>
    %1137 = vector.extract_strided_slice %1119 {offsets = [0, 256], sizes = [1, 128], strides = [1, 1]} : vector<1x384xf32> to vector<1x128xf32>
    %1138 = arith.mulf %1127, %1137 : vector<1x128xf32>
    %1139 = arith.addf %1136, %1138 : vector<1x128xf32>
    %1140 = math.tanh %1139 : vector<1x128xf32>
    %cst_486 = arith.constant 1.000000e+00 : f32
    %1141 = vector.broadcast %cst_486 : f32 to vector<1x128xf32>
    %1142 = arith.subf %1141, %1135 : vector<1x128xf32>
    %1143 = arith.mulf %1142, %1140 : vector<1x128xf32>
    %1144 = arith.mulf %1135, %1056 : vector<1x128xf32>
    %1145 = arith.addf %1143, %1144 : vector<1x128xf32>
    %cst_487 = arith.constant dense<0.000000e+00> : vector<1x8xf32>
    %1146 = tpu.matmul %1145, %570, %cst_487 {dimension_numbers = #tpu.dot_dimension_numbers<[1], [1], [0], [0], [0, 0, 1, 0], [], []>} : vector<1x128xf32>, vector<8x128xf32>, vector<1x8xf32> -> vector<1x8xf32>
    %cst_488 = arith.constant dense<0xFF800000> : vector<1xf32>
    %1147 = vector.multi_reduction <maximumf>, %1146, %cst_488 [1] : vector<1x8xf32> to vector<1xf32>
    %1148 = vector.shape_cast %1147 : vector<1xf32> to vector<1x1xf32>
    %1149 = vector.broadcast %1148 : vector<1x1xf32> to vector<1x8xf32>
    %1150 = arith.subf %1146, %1149 : vector<1x8xf32>
    %1151 = math.exp %1150 : vector<1x8xf32>
    %cst_489 = arith.constant dense<0.000000e+00> : vector<1xf32>
    %1152 = vector.multi_reduction <add>, %1151, %cst_489 [1] : vector<1x8xf32> to vector<1xf32>
    %1153 = vector.shape_cast %1152 : vector<1xf32> to vector<1x1xf32>
    %1154 = tpu.reciprocal %1153 {approx = true} : vector<1x1xf32> -> vector<1x1xf32>
    %1155 = vector.broadcast %1154 : vector<1x1xf32> to vector<1x8xf32>
    %1156 = arith.mulf %1151, %1155 : vector<1x8xf32>
    %cst_490 = arith.constant dense<0.000000e+00> : vector<1x128xf32>
    %1157 = tpu.matmul %1156, %570, %cst_490 {dimension_numbers = #tpu.dot_dimension_numbers<[1], [0], [0], [1], [0, 0, 1, 1], [], []>} : vector<1x8xf32>, vector<8x128xf32>, vector<1x128xf32> -> vector<1x128xf32>
    %1158 = tpu.concatenate %1145, %1157 in 1 : vector<1x128xf32>, vector<1x128xf32> -> vector<1x256xf32>
    %c0_491 = arith.constant 0 : index
    %c0_492 = arith.constant 0 : index
    %1159 = vector.load %arg14[%c0_491, %c0_492] : memref<256x128xf32, #tpu.memory_space<vmem>>, vector<256x128xf32>
    %cst_493 = arith.constant dense<0.000000e+00> : vector<1x128xf32>
    %1160 = tpu.matmul %1158, %1159, %cst_493 {dimension_numbers = #tpu.dot_dimension_numbers<[1], [0], [0], [1], [0, 0, 1, 1], [], []>} : vector<1x256xf32>, vector<256x128xf32>, vector<1x128xf32> -> vector<1x128xf32>
    %c0_494 = arith.constant 0 : index
    %c0_495 = arith.constant 0 : index
    %1161 = vector.load %arg15[%c0_494, %c0_495] : memref<1x128xf32, #tpu.memory_space<vmem>>, vector<1x128xf32>
    %1162 = arith.addf %1160, %1161 : vector<1x128xf32>
    %1163 = math.tanh %1162 : vector<1x128xf32>
    %1164 = arith.truncf %1163 : vector<1x128xf32> to vector<1x128xbf16>
    %c0_496 = arith.constant 0 : index
    %c0_497 = arith.constant 0 : index
    %1165 = vector.load %arg24[%c0_496, %c0_497] : memref<128x256xbf16, #tpu.memory_space<vmem>>, vector<128x256xbf16>
    %cst_498 = arith.constant dense<0.000000e+00> : vector<1x256xf32>
    %1166 = tpu.matmul %1164, %1165, %cst_498 {dimension_numbers = #tpu.dot_dimension_numbers<[1], [0], [0], [1], [0, 0, 1, 1], [], []>} : vector<1x128xbf16>, vector<128x256xbf16>, vector<1x256xf32> -> vector<1x256xf32>
    %c0_499 = arith.constant 0 : index
    %c0_500 = arith.constant 0 : index
    %1167 = vector.load %arg17[%c0_499, %c0_500] : memref<1x256xf32, #tpu.memory_space<vmem>>, vector<1x256xf32>
    %1168 = arith.addf %1166, %1167 : vector<1x256xf32>
    %cst_501 = arith.constant dense<0xFF800000> : vector<1xf32>
    %1169 = vector.multi_reduction <maximumf>, %1168, %cst_501 [1] : vector<1x256xf32> to vector<1xf32>
    %1170 = vector.shape_cast %1169 : vector<1xf32> to vector<1x1xf32>
    %1171 = vector.broadcast %1170 : vector<1x1xf32> to vector<1x256xf32>
    %1172 = arith.subf %1168, %1171 : vector<1x256xf32>
    %1173 = math.exp %1172 : vector<1x256xf32>
    %cst_502 = arith.constant dense<0.000000e+00> : vector<1xf32>
    %1174 = vector.multi_reduction <add>, %1173, %cst_502 [1] : vector<1x256xf32> to vector<1xf32>
    %1175 = vector.shape_cast %1174 : vector<1xf32> to vector<1x1xf32>
    %cst_503 = arith.constant 1.000000e+00 : f32
    %1176 = vector.broadcast %cst_503 : f32 to vector<1x1xf32>
    %1177 = arith.divf %1176, %1175 : vector<1x1xf32>
    %1178 = vector.broadcast %1170 : vector<1x1xf32> to vector<1x256xf32>
    %1179 = arith.cmpf oeq, %1168, %1178 : vector<1x256xf32>
    %c256_i32_504 = arith.constant 256 : i32
    %1180 = vector.broadcast %c256_i32_504 : i32 to vector<1x256xi32>
    %1181 = arith.select %1179, %576, %1180 : vector<1x256xi1>, vector<1x256xi32>
    %cst_505 = arith.constant dense<2147483647> : vector<1xi32>
    %1182 = vector.multi_reduction <minsi>, %1181, %cst_505 [1] : vector<1x256xi32> to vector<1xi32>
    %1183 = vector.shape_cast %1182 : vector<1xi32> to vector<1x1xi32>
    %c0_506 = arith.constant 0 : index
    %c0_507 = arith.constant 0 : index
    %1184 = vector.load %arg26[%c0_506, %c0_507] : memref<1x1xi32, #tpu.memory_space<vmem>>, vector<1x1xi32>
    tpu.vector_store %arg26[%c0_506, %c0_507], %1183 {strides = array<i32>} : memref<1x1xi32, #tpu.memory_space<vmem>>, vector<1x1xi32>,
    %c0_508 = arith.constant 0 : index
    %c0_509 = arith.constant 0 : index
    %1185 = vector.load %arg26[%c0_508, %c0_509] : memref<1x1xi32, #tpu.memory_space<vmem>>, vector<1x1xi32>
    %1186 = vector.extract %1185[0, 0] : i32 from vector<1x1xi32>
    %1187 = arith.index_cast %1186 : i32 to index
    %c0_510 = arith.constant 0 : index
    %1188 = vector.load %arg1[%1187, %c0_510] : memref<256x128xf32, #tpu.memory_space<vmem>>, vector<1x128xf32>
    %1189 = vector.broadcast %c6_i32_473 : i32 to vector<1x8xi32>
    %1190 = arith.cmpi eq, %575, %1189 : vector<1x8xi32>
    %c0_511 = arith.constant 0 : index
    %c0_512 = arith.constant 0 : index
    %1191 = vector.load %arg18[%c0_511, %c0_512] : memref<1x8xi32, #tpu.memory_space<vmem>>, vector<1x8xi32>
    %1192 = vector.shape_cast %1183 : vector<1x1xi32> to vector<1x1xi32>
    %1193 = vector.broadcast %1192 : vector<1x1xi32> to vector<1x8xi32>
    %1194 = arith.select %1190, %1193, %1191 : vector<1x8xi1>, vector<1x8xi32>
    %c0_513 = arith.constant 0 : index
    %c0_514 = arith.constant 0 : index
    %1195 = vector.load %arg18[%c0_513, %c0_514] : memref<1x8xi32, #tpu.memory_space<vmem>>, vector<1x8xi32>
    tpu.vector_store %arg18[%c0_513, %c0_514], %1194 {strides = array<i32>} : memref<1x8xi32, #tpu.memory_space<vmem>>, vector<1x8xi32>,
    %c0_515 = arith.constant 0 : index
    %c0_516 = arith.constant 0 : index
    %1196 = vector.load %arg19[%c0_515, %c0_516] : memref<1x8xf32, #tpu.memory_space<vmem>>, vector<1x8xf32>
    %1197 = vector.shape_cast %1177 : vector<1x1xf32> to vector<1x1xf32>
    %1198 = vector.broadcast %1197 : vector<1x1xf32> to vector<1x8xf32>
    %1199 = arith.select %1190, %1198, %1196 : vector<1x8xi1>, vector<1x8xf32>
    %c0_517 = arith.constant 0 : index
    %c0_518 = arith.constant 0 : index
    %1200 = vector.load %arg19[%c0_517, %c0_518] : memref<1x8xf32, #tpu.memory_space<vmem>>, vector<1x8xf32>
    tpu.vector_store %arg19[%c0_517, %c0_518], %1199 {strides = array<i32>} : memref<1x8xf32, #tpu.memory_space<vmem>>, vector<1x8xf32>,
    %c7_i32_519 = arith.constant 7 : i32
    %c0_520 = arith.constant 0 : index
    %c0_521 = arith.constant 0 : index
    %1201 = vector.load %arg10[%c0_520, %c0_521] : memref<128x384xf32, #tpu.memory_space<vmem>>, vector<128x384xf32>
    %cst_522 = arith.constant dense<0.000000e+00> : vector<1x384xf32>
    %1202 = tpu.matmul %1188, %1201, %cst_522 {dimension_numbers = #tpu.dot_dimension_numbers<[1], [0], [0], [1], [0, 0, 1, 1], [], []>} : vector<1x128xf32>, vector<128x384xf32>, vector<1x384xf32> -> vector<1x384xf32>
    %c0_523 = arith.constant 0 : index
    %c0_524 = arith.constant 0 : index
    %1203 = vector.load %arg12[%c0_523, %c0_524] : memref<1x384xf32, #tpu.memory_space<vmem>>, vector<1x384xf32>
    %1204 = arith.addf %1202, %1203 : vector<1x384xf32>
    %c0_525 = arith.constant 0 : index
    %c0_526 = arith.constant 0 : index
    %1205 = vector.load %arg11[%c0_525, %c0_526] : memref<128x384xf32, #tpu.memory_space<vmem>>, vector<128x384xf32>
    %cst_527 = arith.constant dense<0.000000e+00> : vector<1x384xf32>
    %1206 = tpu.matmul %1145, %1205, %cst_527 {dimension_numbers = #tpu.dot_dimension_numbers<[1], [0], [0], [1], [0, 0, 1, 1], [], []>} : vector<1x128xf32>, vector<128x384xf32>, vector<1x384xf32> -> vector<1x384xf32>
    %c0_528 = arith.constant 0 : index
    %c0_529 = arith.constant 0 : index
    %1207 = vector.load %arg13[%c0_528, %c0_529] : memref<1x384xf32, #tpu.memory_space<vmem>>, vector<1x384xf32>
    %1208 = arith.addf %1206, %1207 : vector<1x384xf32>
    %1209 = vector.extract_strided_slice %1204 {offsets = [0, 0], sizes = [1, 128], strides = [1, 1]} : vector<1x384xf32> to vector<1x128xf32>
    %1210 = vector.extract_strided_slice %1208 {offsets = [0, 0], sizes = [1, 128], strides = [1, 1]} : vector<1x384xf32> to vector<1x128xf32>
    %1211 = arith.addf %1209, %1210 : vector<1x128xf32>
    %1212 = arith.negf %1211 : vector<1x128xf32>
    %1213 = math.exp %1212 : vector<1x128xf32>
    %cst_530 = arith.constant 1.000000e+00 : f32
    %1214 = vector.broadcast %cst_530 : f32 to vector<1x128xf32>
    %1215 = arith.addf %1214, %1213 : vector<1x128xf32>
    %1216 = arith.divf %1214, %1215 : vector<1x128xf32>
    %1217 = vector.extract_strided_slice %1204 {offsets = [0, 128], sizes = [1, 128], strides = [1, 1]} : vector<1x384xf32> to vector<1x128xf32>
    %1218 = vector.extract_strided_slice %1208 {offsets = [0, 128], sizes = [1, 128], strides = [1, 1]} : vector<1x384xf32> to vector<1x128xf32>
    %1219 = arith.addf %1217, %1218 : vector<1x128xf32>
    %1220 = arith.negf %1219 : vector<1x128xf32>
    %1221 = math.exp %1220 : vector<1x128xf32>
    %cst_531 = arith.constant 1.000000e+00 : f32
    %1222 = vector.broadcast %cst_531 : f32 to vector<1x128xf32>
    %1223 = arith.addf %1222, %1221 : vector<1x128xf32>
    %1224 = arith.divf %1222, %1223 : vector<1x128xf32>
    %1225 = vector.extract_strided_slice %1204 {offsets = [0, 256], sizes = [1, 128], strides = [1, 1]} : vector<1x384xf32> to vector<1x128xf32>
    %1226 = vector.extract_strided_slice %1208 {offsets = [0, 256], sizes = [1, 128], strides = [1, 1]} : vector<1x384xf32> to vector<1x128xf32>
    %1227 = arith.mulf %1216, %1226 : vector<1x128xf32>
    %1228 = arith.addf %1225, %1227 : vector<1x128xf32>
    %1229 = math.tanh %1228 : vector<1x128xf32>
    %cst_532 = arith.constant 1.000000e+00 : f32
    %1230 = vector.broadcast %cst_532 : f32 to vector<1x128xf32>
    %1231 = arith.subf %1230, %1224 : vector<1x128xf32>
    %1232 = arith.mulf %1231, %1229 : vector<1x128xf32>
    %1233 = arith.mulf %1224, %1145 : vector<1x128xf32>
    %1234 = arith.addf %1232, %1233 : vector<1x128xf32>
    %cst_533 = arith.constant dense<0.000000e+00> : vector<1x8xf32>
    %1235 = tpu.matmul %1234, %570, %cst_533 {dimension_numbers = #tpu.dot_dimension_numbers<[1], [1], [0], [0], [0, 0, 1, 0], [], []>} : vector<1x128xf32>, vector<8x128xf32>, vector<1x8xf32> -> vector<1x8xf32>
    %cst_534 = arith.constant dense<0xFF800000> : vector<1xf32>
    %1236 = vector.multi_reduction <maximumf>, %1235, %cst_534 [1] : vector<1x8xf32> to vector<1xf32>
    %1237 = vector.shape_cast %1236 : vector<1xf32> to vector<1x1xf32>
    %1238 = vector.broadcast %1237 : vector<1x1xf32> to vector<1x8xf32>
    %1239 = arith.subf %1235, %1238 : vector<1x8xf32>
    %1240 = math.exp %1239 : vector<1x8xf32>
    %cst_535 = arith.constant dense<0.000000e+00> : vector<1xf32>
    %1241 = vector.multi_reduction <add>, %1240, %cst_535 [1] : vector<1x8xf32> to vector<1xf32>
    %1242 = vector.shape_cast %1241 : vector<1xf32> to vector<1x1xf32>
    %1243 = tpu.reciprocal %1242 {approx = true} : vector<1x1xf32> -> vector<1x1xf32>
    %1244 = vector.broadcast %1243 : vector<1x1xf32> to vector<1x8xf32>
    %1245 = arith.mulf %1240, %1244 : vector<1x8xf32>
    %cst_536 = arith.constant dense<0.000000e+00> : vector<1x128xf32>
    %1246 = tpu.matmul %1245, %570, %cst_536 {dimension_numbers = #tpu.dot_dimension_numbers<[1], [0], [0], [1], [0, 0, 1, 1], [], []>} : vector<1x8xf32>, vector<8x128xf32>, vector<1x128xf32> -> vector<1x128xf32>
    %1247 = tpu.concatenate %1234, %1246 in 1 : vector<1x128xf32>, vector<1x128xf32> -> vector<1x256xf32>
    %c0_537 = arith.constant 0 : index
    %c0_538 = arith.constant 0 : index
    %1248 = vector.load %arg14[%c0_537, %c0_538] : memref<256x128xf32, #tpu.memory_space<vmem>>, vector<256x128xf32>
    %cst_539 = arith.constant dense<0.000000e+00> : vector<1x128xf32>
    %1249 = tpu.matmul %1247, %1248, %cst_539 {dimension_numbers = #tpu.dot_dimension_numbers<[1], [0], [0], [1], [0, 0, 1, 1], [], []>} : vector<1x256xf32>, vector<256x128xf32>, vector<1x128xf32> -> vector<1x128xf32>
    %c0_540 = arith.constant 0 : index
    %c0_541 = arith.constant 0 : index
    %1250 = vector.load %arg15[%c0_540, %c0_541] : memref<1x128xf32, #tpu.memory_space<vmem>>, vector<1x128xf32>
    %1251 = arith.addf %1249, %1250 : vector<1x128xf32>
    %1252 = math.tanh %1251 : vector<1x128xf32>
    %1253 = arith.truncf %1252 : vector<1x128xf32> to vector<1x128xbf16>
    %c0_542 = arith.constant 0 : index
    %c0_543 = arith.constant 0 : index
    %1254 = vector.load %arg24[%c0_542, %c0_543] : memref<128x256xbf16, #tpu.memory_space<vmem>>, vector<128x256xbf16>
    %cst_544 = arith.constant dense<0.000000e+00> : vector<1x256xf32>
    %1255 = tpu.matmul %1253, %1254, %cst_544 {dimension_numbers = #tpu.dot_dimension_numbers<[1], [0], [0], [1], [0, 0, 1, 1], [], []>} : vector<1x128xbf16>, vector<128x256xbf16>, vector<1x256xf32> -> vector<1x256xf32>
    %c0_545 = arith.constant 0 : index
    %c0_546 = arith.constant 0 : index
    %1256 = vector.load %arg17[%c0_545, %c0_546] : memref<1x256xf32, #tpu.memory_space<vmem>>, vector<1x256xf32>
    %1257 = arith.addf %1255, %1256 : vector<1x256xf32>
    %cst_547 = arith.constant dense<0xFF800000> : vector<1xf32>
    %1258 = vector.multi_reduction <maximumf>, %1257, %cst_547 [1] : vector<1x256xf32> to vector<1xf32>
    %1259 = vector.shape_cast %1258 : vector<1xf32> to vector<1x1xf32>
    %1260 = vector.broadcast %1259 : vector<1x1xf32> to vector<1x256xf32>
    %1261 = arith.subf %1257, %1260 : vector<1x256xf32>
    %1262 = math.exp %1261 : vector<1x256xf32>
    %cst_548 = arith.constant dense<0.000000e+00> : vector<1xf32>
    %1263 = vector.multi_reduction <add>, %1262, %cst_548 [1] : vector<1x256xf32> to vector<1xf32>
    %1264 = vector.shape_cast %1263 : vector<1xf32> to vector<1x1xf32>
    %cst_549 = arith.constant 1.000000e+00 : f32
    %1265 = vector.broadcast %cst_549 : f32 to vector<1x1xf32>
    %1266 = arith.divf %1265, %1264 : vector<1x1xf32>
    %1267 = vector.broadcast %1259 : vector<1x1xf32> to vector<1x256xf32>
    %1268 = arith.cmpf oeq, %1257, %1267 : vector<1x256xf32>
    %c256_i32_550 = arith.constant 256 : i32
    %1269 = vector.broadcast %c256_i32_550 : i32 to vector<1x256xi32>
    %1270 = arith.select %1268, %576, %1269 : vector<1x256xi1>, vector<1x256xi32>
    %cst_551 = arith.constant dense<2147483647> : vector<1xi32>
    %1271 = vector.multi_reduction <minsi>, %1270, %cst_551 [1] : vector<1x256xi32> to vector<1xi32>
    %1272 = vector.shape_cast %1271 : vector<1xi32> to vector<1x1xi32>
    %c0_552 = arith.constant 0 : index
    %c0_553 = arith.constant 0 : index
    %1273 = vector.load %arg26[%c0_552, %c0_553] : memref<1x1xi32, #tpu.memory_space<vmem>>, vector<1x1xi32>
    tpu.vector_store %arg26[%c0_552, %c0_553], %1272 {strides = array<i32>} : memref<1x1xi32, #tpu.memory_space<vmem>>, vector<1x1xi32>,
    %c0_554 = arith.constant 0 : index
    %c0_555 = arith.constant 0 : index
    %1274 = vector.load %arg26[%c0_554, %c0_555] : memref<1x1xi32, #tpu.memory_space<vmem>>, vector<1x1xi32>
    %1275 = vector.extract %1274[0, 0] : i32 from vector<1x1xi32>
    %1276 = arith.index_cast %1275 : i32 to index
    %c0_556 = arith.constant 0 : index
    %1277 = vector.load %arg1[%1276, %c0_556] : memref<256x128xf32, #tpu.memory_space<vmem>>, vector<1x128xf32>
    %1278 = vector.broadcast %c7_i32_519 : i32 to vector<1x8xi32>
    %1279 = arith.cmpi eq, %575, %1278 : vector<1x8xi32>
    %c0_557 = arith.constant 0 : index
    %c0_558 = arith.constant 0 : index
    %1280 = vector.load %arg18[%c0_557, %c0_558] : memref<1x8xi32, #tpu.memory_space<vmem>>, vector<1x8xi32>
    %1281 = vector.shape_cast %1272 : vector<1x1xi32> to vector<1x1xi32>
    %1282 = vector.broadcast %1281 : vector<1x1xi32> to vector<1x8xi32>
    %1283 = arith.select %1279, %1282, %1280 : vector<1x8xi1>, vector<1x8xi32>
    %c0_559 = arith.constant 0 : index
    %c0_560 = arith.constant 0 : index
    %1284 = vector.load %arg18[%c0_559, %c0_560] : memref<1x8xi32, #tpu.memory_space<vmem>>, vector<1x8xi32>
    tpu.vector_store %arg18[%c0_559, %c0_560], %1283 {strides = array<i32>} : memref<1x8xi32, #tpu.memory_space<vmem>>, vector<1x8xi32>,
    %c0_561 = arith.constant 0 : index
    %c0_562 = arith.constant 0 : index
    %1285 = vector.load %arg19[%c0_561, %c0_562] : memref<1x8xf32, #tpu.memory_space<vmem>>, vector<1x8xf32>
    %1286 = vector.shape_cast %1266 : vector<1x1xf32> to vector<1x1xf32>
    %1287 = vector.broadcast %1286 : vector<1x1xf32> to vector<1x8xf32>
    %1288 = arith.select %1279, %1287, %1285 : vector<1x8xi1>, vector<1x8xf32>
    %c0_563 = arith.constant 0 : index
    %c0_564 = arith.constant 0 : index
    %1289 = vector.load %arg19[%c0_563, %c0_564] : memref<1x8xf32, #tpu.memory_space<vmem>>, vector<1x8xf32>
    tpu.vector_store %arg19[%c0_563, %c0_564], %1288 {strides = array<i32>} : memref<1x8xf32, #tpu.memory_space<vmem>>, vector<1x8xf32>,
    %c8_i32_565 = arith.constant 8 : i32
    return
  }
}

</mosaic_0001>

<llo_original>
// kernel: tpu_custom_call.1
$region0: #{tpu_custom_call.1}
  #allocation0 [shape = 'u32[]', space=smem, size = 0x4, offset = 0x4, fixed_abs, tag = 'smem constant byte address 0x4 - core index']
  #allocation1 [shape = 'u32[72,128]{1,0:T(1,128)}', space=vmem, size = 0x9000, scoped, tag = 'internal scratch']
  #allocation2 [shape = 'f32[8,128]{1,0:T(8,128)}', space=vmem, size = 0x1000, scoped, tag = 'scratch operand']
  #allocation3 [shape = 'f32[8,128]{1,0:T(8,128)}', space=vmem, size = 0x1000, scoped, tag = 'scratch operand']
  #allocation4 [shape = 'f32[8,384]{1,0:T(8,128)}', space=vmem, size = 0x3000, scoped, tag = 'scratch operand']
  #allocation5 [shape = 'f32[8,384]{1,0:T(8,128)}', space=vmem, size = 0x3000, scoped, tag = 'scratch operand']
  #allocation6 [shape = 'bf16[128,256]{1,0:T(8,128)(2,1)}', space=vmem, size = 0x10000, scoped, tag = 'scratch operand']
  #allocation7 [shape = 's32[1]{0}', space=sflag, size = 0x4, scoped, tag = 'scratch operand']
  #allocation8 [shape = 's32[1,1]{1,0:T(1,128)}', space=vmem, size = 0x200, scoped, tag = 'scratch operand']
  #allocation32 [shape = 's32[]', space=sflag, size = 0x4, offset = 0, fixed_abs, tag = 'sflag constant byte address 0x0 - dummy sync flag']
  #allocation33 [shape = 's32[]', space=sflag, size = 0x4, offset = 0, fixed_abs, tag = 'sflag constant byte address 0x0 - dummy sync flag']
  #allocation34 [shape = 'u32[]', space=smem, size = 0x4, offset = 0x44, fixed_abs, tag = 'smem constant byte address 0x44 - assertion arg 0']
  #allocation35 [shape = 'u32[]', space=smem, size = 0x4, offset = 0x48, fixed_abs, tag = 'smem constant byte address 0x48 - assertion arg 1']
  %s0 = inlined_call_operand.hbm [shape: f32[8,128], index: 0, kind: input, shape index: {}]
  %s1 = inlined_call_operand.hbm [shape: f32[256,128], index: 1, kind: input, shape index: {}]
  %s2 = inlined_call_operand.hbm [shape: f32[128,384], index: 2, kind: input, shape index: {}]
  %s3 = inlined_call_operand.hbm [shape: f32[128,384], index: 3, kind: input, shape index: {}]
  %s4 = inlined_call_operand.vmem [shape: f32[1,384], index: 4, kind: input, shape index: {}]
  %s5 = inlined_call_operand.hbm [shape: f32[1,384], index: 5, kind: input, shape index: {}]
  %s6 = inlined_call_operand.hbm [shape: f32[128,384], index: 6, kind: input, shape index: {}]
  %s7 = inlined_call_operand.hbm [shape: f32[128,384], index: 7, kind: input, shape index: {}]
  %s8 = inlined_call_operand.vmem [shape: f32[1,384], index: 8, kind: input, shape index: {}]
  %s9 = inlined_call_operand.hbm [shape: f32[1,384], index: 9, kind: input, shape index: {}]
  %s10 = inlined_call_operand.hbm [shape: f32[128,384], index: 10, kind: input, shape index: {}]
  %s11 = inlined_call_operand.hbm [shape: f32[128,384], index: 11, kind: input, shape index: {}]
  %s12 = inlined_call_operand.vmem [shape: f32[1,384], index: 12, kind: input, shape index: {}]
  %s13 = inlined_call_operand.vmem [shape: f32[1,384], index: 13, kind: input, shape index: {}]
  %s14 = inlined_call_operand.hbm [shape: f32[256,128], index: 14, kind: input, shape index: {}]
  %s15 = inlined_call_operand.hbm [shape: f32[1,128], index: 15, kind: input, shape index: {}]
  %s16 = inlined_call_operand.hbm [shape: bf16[128,256], index: 16, kind: input, shape index: {}]
  %s17 = inlined_call_operand.vmem [shape: f32[1,256], index: 17, kind: input, shape index: {}]
  %s18 = inlined_call_operand.hbm [shape: s32[1,8], index: 18, kind: output, shape index: {0}]
  %s19 = inlined_call_operand.hbm [shape: f32[1,8], index: 19, kind: output, shape index: {1}]
  %20 = xla_tuple %s18, %s19
  %s21 = sld [smem:[#allocation0]]
  $region138: #{tpu_custom_call.1} parent=0
    _
  %s23 = ssub.s32 1, %s21
  %s24 = scalar_select 0, %s23, %s21
  $region1: #{tpu_custom_call.1} parent=0
    #allocation9 [shape = 'u8[4096]{0}', space=vmem, size = 0x1000, scoped, tag = 'input window, operand 0, single buffered']
    #allocation10 [shape = 's32[1]{0}', space=sflag, size = 0x4, scoped, tag = 'scoped memory for tpu_custom_call.1']
    #allocation11 [shape = 's32[1]{0}', space=sflag, size = 0x4, scoped, tag = 'scoped memory for tpu_custom_call.1']
    #allocation12 [shape = 'u8[131072]{0}', space=vmem, size = 0x20000, scoped, tag = 'input window, operand 1, single buffered']
    #allocation13 [shape = 's32[1]{0}', space=sflag, size = 0x4, scoped, tag = 'scoped memory for tpu_custom_call.1']
    #allocation14 [shape = 'u8[196608]{0}', space=vmem, size = 0x30000, scoped, tag = 'input window, operand 2, single buffered']
    #allocation15 [shape = 'u8[196608]{0}', space=vmem, size = 0x30000, scoped, tag = 'input window, operand 3, single buffered']
    #allocation16 [shape = 's32[1]{0}', space=sflag, size = 0x4, scoped, tag = 'scoped memory for tpu_custom_call.1']
    #allocation17 [shape = 'u8[1536]{0}', space=vmem, size = 0x800, scoped, tag = 'input window, operand 5, single buffered']
    #allocation18 [shape = 'u8[196608]{0}', space=vmem, size = 0x30000, scoped, tag = 'input window, operand 6, single buffered']
    #allocation19 [shape = 's32[1]{0}', space=sflag, size = 0x4, scoped, tag = 'scoped memory for tpu_custom_call.1']
    #allocation20 [shape = 'u8[196608]{0}', space=vmem, size = 0x30000, scoped, tag = 'input window, operand 7, single buffered']
    #allocation21 [shape = 'u8[1536]{0}', space=vmem, size = 0x800, scoped, tag = 'input window, operand 9, single buffered']
    #allocation22 [shape = 's32[1]{0}', space=sflag, size = 0x4, scoped, tag = 'scoped memory for tpu_custom_call.1']
    #allocation23 [shape = 'u8[196608]{0}', space=vmem, size = 0x30000, scoped, tag = 'input window, operand 10, single buffered']
    #allocation24 [shape = 'u8[196608]{0}', space=vmem, size = 0x30000, scoped, tag = 'input window, operand 11, single buffered']
    #allocation25 [shape = 's32[1]{0}', space=sflag, size = 0x4, scoped, tag = 'scoped memory for tpu_custom_call.1']
    #allocation26 [shape = 'u8[131072]{0}', space=vmem, size = 0x20000, scoped, tag = 'input window, operand 14, single buffered']
    #allocation27 [shape = 'u8[512]{0}', space=vmem, size = 0x400, scoped, tag = 'input window, operand 15, single buffered']
    #allocation28 [shape = 's32[1]{0}', space=sflag, size = 0x4, scoped, tag = 'scoped memory for tpu_custom_call.1']
    #allocation29 [shape = 'u8[512]{0}', space=vmem, size = 0x400, scoped, tag = 'output window, operand 0, single buffered']
    #allocation30 [shape = 'u8[512]{0}', space=vmem, size = 0x400, scoped, tag = 'output window, operand 1, single buffered']
    #allocation31 [shape = 's32[1]{0}', space=sflag, size = 0x4, scoped, tag = 'scoped memory for tpu_custom_call.1']
    %25 = vsyncpa [#allocation10], 0
    %26 = vsyncpa [#allocation13], 0
    %27 = vsyncpa [#allocation16], 0
    %28 = vsyncpa [#allocation19], 0
    %29 = vsyncpa [#allocation22], 0
    %30 = vsyncpa [#allocation25], 0
    %31 = vsyncpa [#allocation28], 0
    %32 = vsyncpa [#allocation11], 0
    %33 = vsyncpa [#allocation31], 0
    // Predicated region
    $region2: #{tpu_custom_call.1} parent=1 // pred_check
      _
    $region3: #{tpu_custom_call.1} parent=1 // pred_check_branch
      %35 = sbr.rel (0) target = $region5
    $region4: #{tpu_custom_call.1} parent=1 // pred_region
      %37 = vsyncadd [#allocation10], 0
      %s39 = sshll.u32 %s0, 4
      %s40 = int_to_ptr.hbm [resolvable:$true] %s39
      %s41 = sshll.u32 [#allocation9], 4
      %s42 = int_to_ptr.vmem [resolvable:$true] %s41
      %44 = dma.hbm_to_vmem [thread:$0]  %s40, 128, %s42, [#allocation10]
    $region5: #{tpu_custom_call.1} parent=1 // pred_fallthru
      _
    // Predicated region
    $region6: #{tpu_custom_call.1} parent=1 // pred_check
      _
    $region7: #{tpu_custom_call.1} parent=1 // pred_check_branch
      %46 = sbr.rel (0) target = $region9
    $region8: #{tpu_custom_call.1} parent=1 // pred_region
      %48 = vsyncadd [#allocation13], 0
      %s49 = sshll.u32 %s1, 4
      %s50 = int_to_ptr.hbm [resolvable:$true] %s49
      %s51 = sshll.u32 [#allocation12], 4
      %s52 = int_to_ptr.vmem [resolvable:$true] %s51
      %57 = dma.hbm_to_vmem [thread:$0]  %s50, 4096, %s52, [#allocation13], 128, 128, 8
    $region9: #{tpu_custom_call.1} parent=1 // pred_fallthru
      _
    // Predicated region
    $region10: #{tpu_custom_call.1} parent=1 // pred_check
      _
    $region11: #{tpu_custom_call.1} parent=1 // pred_check_branch
      %59 = sbr.rel (0) target = $region13
    $region12: #{tpu_custom_call.1} parent=1 // pred_region
      %61 = vsyncadd [#allocation13], 0
      %s62 = sshll.u32 %s2, 4
      %s63 = int_to_ptr.hbm [resolvable:$true] %s62
      %s64 = sshll.u32 [#allocation14], 4
      %s65 = int_to_ptr.vmem [resolvable:$true] %s64
      %70 = dma.hbm_to_vmem [thread:$0]  %s63, 6144, %s65, [#allocation13], 384, 384, 24
    $region13: #{tpu_custom_call.1} parent=1 // pred_fallthru
      _
    // Predicated region
    $region14: #{tpu_custom_call.1} parent=1 // pred_check
      _
    $region15: #{tpu_custom_call.1} parent=1 // pred_check_branch
      %72 = sbr.rel (0) target = $region17
    $region16: #{tpu_custom_call.1} parent=1 // pred_region
      %74 = vsyncadd [#allocation16], 0
      %s75 = sshll.u32 %s3, 4
      %s76 = int_to_ptr.hbm [resolvable:$true] %s75
      %s77 = sshll.u32 [#allocation15], 4
      %s78 = int_to_ptr.vmem [resolvable:$true] %s77
      %83 = dma.hbm_to_vmem [thread:$0]  %s76, 6144, %s78, [#allocation16], 384, 384, 24
    $region17: #{tpu_custom_call.1} parent=1 // pred_fallthru
      _
    // Predicated region
    $region18: #{tpu_custom_call.1} parent=1 // pred_check
      _
    $region19: #{tpu_custom_call.1} parent=1 // pred_check_branch
      %85 = sbr.rel (0) target = $region21
    $region20: #{tpu_custom_call.1} parent=1 // pred_region
      _
    $region21: #{tpu_custom_call.1} parent=1 // pred_fallthru
      _
    // Predicated region
    $region22: #{tpu_custom_call.1} parent=1 // pred_check
      _
    $region23: #{tpu_custom_call.1} parent=1 // pred_check_branch
      %87 = sbr.rel (0) target = $region25
    $region24: #{tpu_custom_call.1} parent=1 // pred_region
      %89 = vsyncadd [#allocation16], 0
      %s91 = sshll.u32 %s5, 4
      %s92 = int_to_ptr.hbm [resolvable:$true] %s91
      %s93 = sshll.u32 [#allocation17], 4
      %s94 = int_to_ptr.vmem [resolvable:$true] %s93
      %96 = dma.hbm_to_vmem [thread:$0]  %s92, 48, %s94, [#allocation16]
    $region25: #{tpu_custom_call.1} parent=1 // pred_fallthru
      _
    // Predicated region
    $region26: #{tpu_custom_call.1} parent=1 // pred_check
      _
    $region27: #{tpu_custom_call.1} parent=1 // pred_check_branch
      %98 = sbr.rel (0) target = $region29
    $region28: #{tpu_custom_call.1} parent=1 // pred_region
      %100 = vsyncadd [#allocation19], 0
      %s101 = sshll.u32 %s6, 4
      %s102 = int_to_ptr.hbm [resolvable:$true] %s101
      %s103 = sshll.u32 [#allocation18], 4
      %s104 = int_to_ptr.vmem [resolvable:$true] %s103
      %109 = dma.hbm_to_vmem [thread:$0]  %s102, 6144, %s104, [#allocation19], 384, 384, 24
    $region29: #{tpu_custom_call.1} parent=1 // pred_fallthru
      _
    // Predicated region
    $region30: #{tpu_custom_call.1} parent=1 // pred_check
      _
    $region31: #{tpu_custom_call.1} parent=1 // pred_check_branch
      %111 = sbr.rel (0) target = $region33
    $region32: #{tpu_custom_call.1} parent=1 // pred_region
      %113 = vsyncadd [#allocation19], 0
      %s114 = sshll.u32 %s7, 4
      %s115 = int_to_ptr.hbm [resolvable:$true] %s114
      %s116 = sshll.u32 [#allocation20], 4
      %s117 = int_to_ptr.vmem [resolvable:$true] %s116
      %122 = dma.hbm_to_vmem [thread:$0]  %s115, 6144, %s117, [#allocation19], 384, 384, 24
    $region33: #{tpu_custom_call.1} parent=1 // pred_fallthru
      _
    // Predicated region
    $region34: #{tpu_custom_call.1} parent=1 // pred_check
      _
    $region35: #{tpu_custom_call.1} parent=1 // pred_check_branch
      %124 = sbr.rel (0) target = $region37
    $region36: #{tpu_custom_call.1} parent=1 // pred_region
      _
    $region37: #{tpu_custom_call.1} parent=1 // pred_fallthru
      _
    // Predicated region
    $region38: #{tpu_custom_call.1} parent=1 // pred_check
      _
    $region39: #{tpu_custom_call.1} parent=1 // pred_check_branch
      %126 = sbr.rel (0) target = $region41
    $region40: #{tpu_custom_call.1} parent=1 // pred_region
      %128 = vsyncadd [#allocation22], 0
      %s130 = sshll.u32 %s9, 4
      %s131 = int_to_ptr.hbm [resolvable:$true] %s130
      %s132 = sshll.u32 [#allocation21], 4
      %s133 = int_to_ptr.vmem [resolvable:$true] %s132
      %135 = dma.hbm_to_vmem [thread:$0]  %s131, 48, %s133, [#allocation22]
    $region41: #{tpu_custom_call.1} parent=1 // pred_fallthru
      _
    // Predicated region
    $region42: #{tpu_custom_call.1} parent=1 // pred_check
      _
    $region43: #{tpu_custom_call.1} parent=1 // pred_check_branch
      %137 = sbr.rel (0) target = $region45
    $region44: #{tpu_custom_call.1} parent=1 // pred_region
      %139 = vsyncadd [#allocation22], 0
      %s140 = sshll.u32 %s10, 4
      %s141 = int_to_ptr.hbm [resolvable:$true] %s140
      %s142 = sshll.u32 [#allocation23], 4
      %s143 = int_to_ptr.vmem [resolvable:$true] %s142
      %148 = dma.hbm_to_vmem [thread:$0]  %s141, 6144, %s143, [#allocation22], 384, 384, 24
    $region45: #{tpu_custom_call.1} parent=1 // pred_fallthru
      _
    // Predicated region
    $region46: #{tpu_custom_call.1} parent=1 // pred_check
      _
    $region47: #{tpu_custom_call.1} parent=1 // pred_check_branch
      %150 = sbr.rel (0) target = $region49
    $region48: #{tpu_custom_call.1} parent=1 // pred_region
      %152 = vsyncadd [#allocation25], 0
      %s153 = sshll.u32 %s11, 4
      %s154 = int_to_ptr.hbm [resolvable:$true] %s153
      %s155 = sshll.u32 [#allocation24], 4
      %s156 = int_to_ptr.vmem [resolvable:$true] %s155
      %161 = dma.hbm_to_vmem [thread:$0]  %s154, 6144, %s156, [#allocation25], 384, 384, 24
    $region49: #{tpu_custom_call.1} parent=1 // pred_fallthru
      _
    // Predicated region
    $region50: #{tpu_custom_call.1} parent=1 // pred_check
      _
    $region51: #{tpu_custom_call.1} parent=1 // pred_check_branch
      %163 = sbr.rel (0) target = $region53
    $region52: #{tpu_custom_call.1} parent=1 // pred_region
      _
    $region53: #{tpu_custom_call.1} parent=1 // pred_fallthru
      _
    // Predicated region
    $region54: #{tpu_custom_call.1} parent=1 // pred_check
      _
    $region55: #{tpu_custom_call.1} parent=1 // pred_check_branch
      %165 = sbr.rel (0) target = $region57
    $region56: #{tpu_custom_call.1} parent=1 // pred_region
      _
    $region57: #{tpu_custom_call.1} parent=1 // pred_fallthru
      _
    // Predicated region
    $region58: #{tpu_custom_call.1} parent=1 // pred_check
      _
    $region59: #{tpu_custom_call.1} parent=1 // pred_check_branch
      %167 = sbr.rel (0) target = $region61
    $region60: #{tpu_custom_call.1} parent=1 // pred_region
      %169 = vsyncadd [#allocation25], 0
      %s170 = sshll.u32 %s14, 4
      %s171 = int_to_ptr.hbm [resolvable:$true] %s170
      %s172 = sshll.u32 [#allocation26], 4
      %s173 = int_to_ptr.vmem [resolvable:$true] %s172
      %178 = dma.hbm_to_vmem [thread:$0]  %s171, 4096, %s173, [#allocation25], 128, 128, 8
    $region61: #{tpu_custom_call.1} parent=1 // pred_fallthru
      _
    // Predicated region
    $region62: #{tpu_custom_call.1} parent=1 // pred_check
      _
    $region63: #{tpu_custom_call.1} parent=1 // pred_check_branch
      %180 = sbr.rel (0) target = $region65
    $region64: #{tpu_custom_call.1} parent=1 // pred_region
      %182 = vsyncadd [#allocation28], 0
      %s184 = sshll.u32 %s15, 4
      %s185 = int_to_ptr.hbm [resolvable:$true] %s184
      %s186 = sshll.u32 [#allocation27], 4
      %s187 = int_to_ptr.vmem [resolvable:$true] %s186
      %189 = dma.hbm_to_vmem [thread:$0]  %s185, 16, %s187, [#allocation28]
    $region65: #{tpu_custom_call.1} parent=1 // pred_fallthru
      _
    // Predicated region
    $region66: #{tpu_custom_call.1} parent=1 // pred_check
      _
    $region67: #{tpu_custom_call.1} parent=1 // pred_check_branch
      %191 = sbr.rel (0) target = $region69
    $region68: #{tpu_custom_call.1} parent=1 // pred_region
      _
    $region69: #{tpu_custom_call.1} parent=1 // pred_fallthru
      _
    // Predicated region
    $region70: #{tpu_custom_call.1} parent=1 // pred_check
      _
    $region71: #{tpu_custom_call.1} parent=1 // pred_check_branch
      %193 = sbr.rel (0) target = $region73
    $region72: #{tpu_custom_call.1} parent=1 // pred_region
      %195 = dma.done [#allocation10], 128
    $region73: #{tpu_custom_call.1} parent=1 // pred_fallthru
      _
    // Predicated region
    $region74: #{tpu_custom_call.1} parent=1 // pred_check
      _
    $region75: #{tpu_custom_call.1} parent=1 // pred_check_branch
      %197 = sbr.rel (0) target = $region77
    $region76: #{tpu_custom_call.1} parent=1 // pred_region
      %199 = dma.done [#allocation13], 4096
    $region77: #{tpu_custom_call.1} parent=1 // pred_fallthru
      _
    // Predicated region
    $region78: #{tpu_custom_call.1} parent=1 // pred_check
      _
    $region79: #{tpu_custom_call.1} parent=1 // pred_check_branch
      %201 = sbr.rel (0) target = $region81
    $region80: #{tpu_custom_call.1} parent=1 // pred_region
      %203 = dma.done [#allocation13], 6144
    $region81: #{tpu_custom_call.1} parent=1 // pred_fallthru
      _
    // Predicated region
    $region82: #{tpu_custom_call.1} parent=1 // pred_check
      _
    $region83: #{tpu_custom_call.1} parent=1 // pred_check_branch
      %205 = sbr.rel (0) target = $region85
    $region84: #{tpu_custom_call.1} parent=1 // pred_region
      %207 = dma.done [#allocation16], 6144
    $region85: #{tpu_custom_call.1} parent=1 // pred_fallthru
      _
    // Predicated region
    $region86: #{tpu_custom_call.1} parent=1 // pred_check
      _
    $region87: #{tpu_custom_call.1} parent=1 // pred_check_branch
      %209 = sbr.rel (0) target = $region89
    $region88: #{tpu_custom_call.1} parent=1 // pred_region
      %211 = dma.done [#allocation16], 48
    $region89: #{tpu_custom_call.1} parent=1 // pred_fallthru
      _
    // Predicated region
    $region90: #{tpu_custom_call.1} parent=1 // pred_check
      _
    $region91: #{tpu_custom_call.1} parent=1 // pred_check_branch
      %213 = sbr.rel (0) target = $region93
    $region92: #{tpu_custom_call.1} parent=1 // pred_region
      %215 = dma.done [#allocation19], 6144
    $region93: #{tpu_custom_call.1} parent=1 // pred_fallthru
      _
    // Predicated region
    $region94: #{tpu_custom_call.1} parent=1 // pred_check
      _
    $region95: #{tpu_custom_call.1} parent=1 // pred_check_branch
      %217 = sbr.rel (0) target = $region97
    $region96: #{tpu_custom_call.1} parent=1 // pred_region
      %219 = dma.done [#allocation19], 6144
    $region97: #{tpu_custom_call.1} parent=1 // pred_fallthru
      _
    // Predicated region
    $region98: #{tpu_custom_call.1} parent=1 // pred_check
      _
    $region99: #{tpu_custom_call.1} parent=1 // pred_check_branch
      %221 = sbr.rel (0) target = $region101
    $region100: #{tpu_custom_call.1} parent=1 // pred_region
      %223 = dma.done [#allocation22], 48
    $region101: #{tpu_custom_call.1} parent=1 // pred_fallthru
      _
    // Predicated region
    $region102: #{tpu_custom_call.1} parent=1 // pred_check
      _
    $region103: #{tpu_custom_call.1} parent=1 // pred_check_branch
      %225 = sbr.rel (0) target = $region105
    $region104: #{tpu_custom_call.1} parent=1 // pred_region
      %227 = dma.done [#allocation22], 6144
    $region105: #{tpu_custom_call.1} parent=1 // pred_fallthru
      _
    // Predicated region
    $region106: #{tpu_custom_call.1} parent=1 // pred_check
      _
    $region107: #{tpu_custom_call.1} parent=1 // pred_check_branch
      %229 = sbr.rel (0) target = $region109
    $region108: #{tpu_custom_call.1} parent=1 // pred_region
      %231 = dma.done [#allocation25], 6144
    $region109: #{tpu_custom_call.1} parent=1 // pred_fallthru
      _
    // Predicated region
    $region110: #{tpu_custom_call.1} parent=1 // pred_check
      _
    $region111: #{tpu_custom_call.1} parent=1 // pred_check_branch
      %233 = sbr.rel (0) target = $region113
    $region112: #{tpu_custom_call.1} parent=1 // pred_region
      %235 = dma.done [#allocation25], 4096
    $region113: #{tpu_custom_call.1} parent=1 // pred_fallthru
      _
    // Predicated region
    $region114: #{tpu_custom_call.1} parent=1 // pred_check
      _
    $region115: #{tpu_custom_call.1} parent=1 // pred_check_branch
      %237 = sbr.rel (0) target = $region117
    $region116: #{tpu_custom_call.1} parent=1 // pred_region
      %239 = dma.done [#allocation28], 16
    $region117: #{tpu_custom_call.1} parent=1 // pred_fallthru
      _
    // Predicated region
    $region118: #{tpu_custom_call.1} parent=1 // pred_check
      _
    $region119: #{tpu_custom_call.1} parent=1 // pred_check_branch
      %241 = sbr.rel target = $region121
    $region120: #{tpu_custom_call.1} parent=1 // pred_region
      %242 = sst [smem:[#allocation34]] [#allocation33]
      %243 = sst [smem:[#allocation35]] [#allocation32]
    $region121: #{tpu_custom_call.1} parent=1 // pred_fallthru
      _
    %245 = shalt.err (0)
    %s247 = sshll.u32 %s16, 4
    %s248 = int_to_ptr.hbm [resolvable:$true] %s247
    %s249 = sshll.u32 [#allocation6], 4
    %s250 = int_to_ptr.vmem [resolvable:$true] %s249
    %252 = dma.hbm_to_vmem [thread:$0]  %s248, 2048, %s250, [#allocation7]
    %v253 = vld [vmem:[#allocation9] sm:$0xff]
    %v254 = vld [vmem:[#allocation14] sm:$0xff]
    %v255 = vld [vmem:[#allocation14 + $0x8] sm:$0xff]
    %v256 = vld [vmem:[#allocation14 + $0x10] sm:$0xff]
    %v257 = vld [vmem:[#allocation14 + $0x18] sm:$0xff]
    %v258 = vld [vmem:[#allocation14 + $0x20] sm:$0xff]
    %v259 = vld [vmem:[#allocation14 + $0x28] sm:$0xff]
    %v260 = vld [vmem:[#allocation14 + $0x30] sm:$0xff]
    %v261 = vld [vmem:[#allocation14 + $0x38] sm:$0xff]
    %v262 = vld [vmem:[#allocation14 + $0x40] sm:$0xff]
    %v263 = vld [vmem:[#allocation14 + $0x48] sm:$0xff]
    %v264 = vld [vmem:[#allocation14 + $0x50] sm:$0xff]
    %v265 = vld [vmem:[#allocation14 + $0x58] sm:$0xff]
    %v266 = vld [vmem:[#allocation14 + $0x60] sm:$0xff]
    %v267 = vld [vmem:[#allocation14 + $0x68] sm:$0xff]
    %v268 = vld [vmem:[#allocation14 + $0x70] sm:$0xff]
    %v269 = vld [vmem:[#allocation14 + $0x78] sm:$0xff]
    %v270 = vld [vmem:[#allocation14 + $0x80] sm:$0xff]
    %v271 = vld [vmem:[#allocation14 + $0x88] sm:$0xff]
    %v272 = vld [vmem:[#allocation14 + $0x90] sm:$0xff]
    %v273 = vld [vmem:[#allocation14 + $0x98] sm:$0xff]
    %v274 = vld [vmem:[#allocation14 + $0xa0] sm:$0xff]
    %v275 = vld [vmem:[#allocation14 + $0xa8] sm:$0xff]
    %v276 = vld [vmem:[#allocation14 + $0xb0] sm:$0xff]
    %v277 = vld [vmem:[#allocation14 + $0xb8] sm:$0xff]
    %v278 = vld [vmem:[#allocation14 + $0xc0] sm:$0xff]
    %v279 = vld [vmem:[#allocation14 + $0xc8] sm:$0xff]
    %v280 = vld [vmem:[#allocation14 + $0xd0] sm:$0xff]
    %v281 = vld [vmem:[#allocation14 + $0xd8] sm:$0xff]
    %v282 = vld [vmem:[#allocation14 + $0xe0] sm:$0xff]
    %v283 = vld [vmem:[#allocation14 + $0xe8] sm:$0xff]
    %v284 = vld [vmem:[#allocation14 + $0xf0] sm:$0xff]
    %v285 = vld [vmem:[#allocation14 + $0xf8] sm:$0xff]
    %v286 = vld [vmem:[#allocation14 + $0x100] sm:$0xff]
    %v287 = vld [vmem:[#allocation14 + $0x108] sm:$0xff]
    %v288 = vld [vmem:[#allocation14 + $0x110] sm:$0xff]
    %v289 = vld [vmem:[#allocation14 + $0x118] sm:$0xff]
    %v290 = vld [vmem:[#allocation14 + $0x120] sm:$0xff]
    %v291 = vld [vmem:[#allocation14 + $0x128] sm:$0xff]
    %v292 = vld [vmem:[#allocation14 + $0x130] sm:$0xff]
    %v293 = vld [vmem:[#allocation14 + $0x138] sm:$0xff]
    %v294 = vld [vmem:[#allocation14 + $0x140] sm:$0xff]
    %v295 = vld [vmem:[#allocation14 + $0x148] sm:$0xff]
    %v296 = vld [vmem:[#allocation14 + $0x150] sm:$0xff]
    %v297 = vld [vmem:[#allocation14 + $0x158] sm:$0xff]
    %v298 = vld [vmem:[#allocation14 + $0x160] sm:$0xff]
    %v299 = vld [vmem:[#allocation14 + $0x168] sm:$0xff]
    %v300 = vld [vmem:[#allocation14 + $0x170] sm:$0xff]
    %v301 = vld [vmem:[#allocation14 + $0x178] sm:$0xff]
    %v302 = vld [vmem:[%s4] sm:$0x7]
    %v304 = vperm.slane %v302, 0
    %v305 = vperm.slane %v302, 1
    %v306 = vperm.slane %v302, 2
    %310 = vmatpush.msra.mxu0 %v299
    %311 = vmatpush.msra.mxu0 %v296
    %312 = vmatpush.msra.mxu0 %v293
    %313 = vmatpush.msra.mxu0 %v290
    %314 = vmatpush.msra.mxu0 %v287
    %315 = vmatpush.msra.mxu0 %v284
    %316 = vmatpush.msra.mxu0 %v281
    %317 = vmatpush.msra.mxu0 %v278
    %318 = vmatpush.msra.mxu0 %v275
    %319 = vmatpush.msra.mxu0 %v272
    %320 = vmatpush.msra.mxu0 %v269
    %321 = vmatpush.msra.mxu0 %v266
    %322 = vmatpush.msra.mxu0 %v263
    %323 = vmatpush.msra.mxu0 %v260
    %324 = vmatpush.msra.mxu0 %v257
    %325 = vmatpush.msra.mxu0 %v254
    %326 = vmatmul.f32.gmra.mxu0 %v253
    %v327 = vpop.f32.mrf.mxu0
    %v328 = vadd.f32 %v304, %v327
    %329 = vdwg.mxu0
    %330 = vmatpush.msra.mxu0 %v300
    %331 = vmatpush.msra.mxu0 %v297
    %332 = vmatpush.msra.mxu0 %v294
    %333 = vmatpush.msra.mxu0 %v291
    %334 = vmatpush.msra.mxu0 %v288
    %335 = vmatpush.msra.mxu0 %v285
    %336 = vmatpush.msra.mxu0 %v282
    %337 = vmatpush.msra.mxu0 %v279
    %338 = vmatpush.msra.mxu0 %v276
    %339 = vmatpush.msra.mxu0 %v273
    %340 = vmatpush.msra.mxu0 %v270
    %341 = vmatpush.msra.mxu0 %v267
    %342 = vmatpush.msra.mxu0 %v264
    %343 = vmatpush.msra.mxu0 %v261
    %344 = vmatpush.msra.mxu0 %v258
    %345 = vmatpush.msra.mxu0 %v255
    %346 = vmatmul.f32.gmra.mxu0 %v253
    %v347 = vpop.f32.mrf.mxu0
    %v348 = vadd.f32 %v305, %v347
    %349 = vdwg.mxu0
    %350 = vmatpush.msra.mxu0 %v301
    %351 = vmatpush.msra.mxu0 %v298
    %352 = vmatpush.msra.mxu0 %v295
    %353 = vmatpush.msra.mxu0 %v292
    %354 = vmatpush.msra.mxu0 %v289
    %355 = vmatpush.msra.mxu0 %v286
    %356 = vmatpush.msra.mxu0 %v283
    %357 = vmatpush.msra.mxu0 %v280
    %358 = vmatpush.msra.mxu0 %v277
    %359 = vmatpush.msra.mxu0 %v274
    %360 = vmatpush.msra.mxu0 %v271
    %361 = vmatpush.msra.mxu0 %v268
    %362 = vmatpush.msra.mxu0 %v265
    %363 = vmatpush.msra.mxu0 %v262
    %364 = vmatpush.msra.mxu0 %v259
    %365 = vmatpush.msra.mxu0 %v256
    %366 = vmatmul.f32.gmra.mxu0 %v253
    %v367 = vpop.f32.mrf.mxu0
    %v368 = vadd.f32 %v306, %v367
    %369 = vdwg.mxu0
    %370 = vst [vmem:[#allocation4] sm:$0xff] %v328
    %371 = vst [vmem:[#allocation4 + $0x8] sm:$0xff] %v348
    %372 = vst [vmem:[#allocation4 + $0x10] sm:$0xff] %v368
    %v373 = vld [vmem:[#allocation18] sm:$0xff]
    %v374 = vld [vmem:[#allocation18 + $0x8] sm:$0xff]
    %v375 = vld [vmem:[#allocation18 + $0x10] sm:$0xff]
    %v376 = vld [vmem:[#allocation18 + $0x18] sm:$0xff]
    %v377 = vld [vmem:[#allocation18 + $0x20] sm:$0xff]
    %v378 = vld [vmem:[#allocation18 + $0x28] sm:$0xff]
    %v379 = vld [vmem:[#allocation18 + $0x30] sm:$0xff]
    %v380 = vld [vmem:[#allocation18 + $0x38] sm:$0xff]
    %v381 = vld [vmem:[#allocation18 + $0x40] sm:$0xff]
    %v382 = vld [vmem:[#allocation18 + $0x48] sm:$0xff]
    %v383 = vld [vmem:[#allocation18 + $0x50] sm:$0xff]
    %v384 = vld [vmem:[#allocation18 + $0x58] sm:$0xff]
    %v385 = vld [vmem:[#allocation18 + $0x60] sm:$0xff]
    %v386 = vld [vmem:[#allocation18 + $0x68] sm:$0xff]
    %v387 = vld [vmem:[#allocation18 + $0x70] sm:$0xff]
    %v388 = vld [vmem:[#allocation18 + $0x78] sm:$0xff]
    %v389 = vld [vmem:[#allocation18 + $0x80] sm:$0xff]
    %v390 = vld [vmem:[#allocation18 + $0x88] sm:$0xff]
    %v391 = vld [vmem:[#allocation18 + $0x90] sm:$0xff]
    %v392 = vld [vmem:[#allocation18 + $0x98] sm:$0xff]
    %v393 = vld [vmem:[#allocation18 + $0xa0] sm:$0xff]
    %v394 = vld [vmem:[#allocation18 + $0xa8] sm:$0xff]
    %v395 = vld [vmem:[#allocation18 + $0xb0] sm:$0xff]
    %v396 = vld [vmem:[#allocation18 + $0xb8] sm:$0xff]
    %v397 = vld [vmem:[#allocation18 + $0xc0] sm:$0xff]
    %v398 = vld [vmem:[#allocation18 + $0xc8] sm:$0xff]
    %v399 = vld [vmem:[#allocation18 + $0xd0] sm:$0xff]
    %v400 = vld [vmem:[#allocation18 + $0xd8] sm:$0xff]
    %v401 = vld [vmem:[#allocation18 + $0xe0] sm:$0xff]
    %v402 = vld [vmem:[#allocation18 + $0xe8] sm:$0xff]
    %v403 = vld [vmem:[#allocation18 + $0xf0] sm:$0xff]
    %v404 = vld [vmem:[#allocation18 + $0xf8] sm:$0xff]
    %v405 = vld [vmem:[#allocation18 + $0x100] sm:$0xff]
    %v406 = vld [vmem:[#allocation18 + $0x108] sm:$0xff]
    %v407 = vld [vmem:[#allocation18 + $0x110] sm:$0xff]
    %v408 = vld [vmem:[#allocation18 + $0x118] sm:$0xff]
    %v409 = vld [vmem:[#allocation18 + $0x120] sm:$0xff]
    %v410 = vld [vmem:[#allocation18 + $0x128] sm:$0xff]
    %v411 = vld [vmem:[#allocation18 + $0x130] sm:$0xff]
    %v412 = vld [vmem:[#allocation18 + $0x138] sm:$0xff]
    %v413 = vld [vmem:[#allocation18 + $0x140] sm:$0xff]
    %v414 = vld [vmem:[#allocation18 + $0x148] sm:$0xff]
    %v415 = vld [vmem:[#allocation18 + $0x150] sm:$0xff]
    %v416 = vld [vmem:[#allocation18 + $0x158] sm:$0xff]
    %v417 = vld [vmem:[#allocation18 + $0x160] sm:$0xff]
    %v418 = vld [vmem:[#allocation18 + $0x168] sm:$0xff]
    %v419 = vld [vmem:[#allocation18 + $0x170] sm:$0xff]
    %v420 = vld [vmem:[#allocation18 + $0x178] sm:$0xff]
    %v421 = vld [vmem:[%s8] sm:$0x7]
    %v423 = vperm.slane %v421, 0
    %v424 = vperm.slane %v421, 1
    %v425 = vperm.slane %v421, 2
    %429 = vmatpush.msra.mxu0 %v418
    %430 = vmatpush.msra.mxu0 %v415
    %431 = vmatpush.msra.mxu0 %v412
    %432 = vmatpush.msra.mxu0 %v409
    %433 = vmatpush.msra.mxu0 %v406
    %434 = vmatpush.msra.mxu0 %v403
    %435 = vmatpush.msra.mxu0 %v400
    %436 = vmatpush.msra.mxu0 %v397
    %437 = vmatpush.msra.mxu0 %v394
    %438 = vmatpush.msra.mxu0 %v391
    %439 = vmatpush.msra.mxu0 %v388
    %440 = vmatpush.msra.mxu0 %v385
    %441 = vmatpush.msra.mxu0 %v382
    %442 = vmatpush.msra.mxu0 %v379
    %443 = vmatpush.msra.mxu0 %v376
    %444 = vmatpush.msra.mxu0 %v373
    %445 = vmatmul.f32.gmra.mxu0 %v253
    %v446 = vpop.f32.mrf.mxu0
    %v447 = vadd.f32 %v423, %v446
    %448 = vdwg.mxu0
    %449 = vmatpush.msra.mxu0 %v419
    %450 = vmatpush.msra.mxu0 %v416
    %451 = vmatpush.msra.mxu0 %v413
    %452 = vmatpush.msra.mxu0 %v410
    %453 = vmatpush.msra.mxu0 %v407
    %454 = vmatpush.msra.mxu0 %v404
    %455 = vmatpush.msra.mxu0 %v401
    %456 = vmatpush.msra.mxu0 %v398
    %457 = vmatpush.msra.mxu0 %v395
    %458 = vmatpush.msra.mxu0 %v392
    %459 = vmatpush.msra.mxu0 %v389
    %460 = vmatpush.msra.mxu0 %v386
    %461 = vmatpush.msra.mxu0 %v383
    %462 = vmatpush.msra.mxu0 %v380
    %463 = vmatpush.msra.mxu0 %v377
    %464 = vmatpush.msra.mxu0 %v374
    %465 = vmatmul.f32.gmra.mxu0 %v253
    %v466 = vpop.f32.mrf.mxu0
    %v467 = vadd.f32 %v424, %v466
    %468 = vdwg.mxu0
    %469 = vmatpush.msra.mxu0 %v420
    %470 = vmatpush.msra.mxu0 %v417
    %471 = vmatpush.msra.mxu0 %v414
    %472 = vmatpush.msra.mxu0 %v411
    %473 = vmatpush.msra.mxu0 %v408
    %474 = vmatpush.msra.mxu0 %v405
    %475 = vmatpush.msra.mxu0 %v402
    %476 = vmatpush.msra.mxu0 %v399
    %477 = vmatpush.msra.mxu0 %v396
    %478 = vmatpush.msra.mxu0 %v393
    %479 = vmatpush.msra.mxu0 %v390
    %480 = vmatpush.msra.mxu0 %v387
    %481 = vmatpush.msra.mxu0 %v384
    %482 = vmatpush.msra.mxu0 %v381
    %483 = vmatpush.msra.mxu0 %v378
    %484 = vmatpush.msra.mxu0 %v375
    %485 = vmatmul.f32.gmra.mxu0 %v253
    %v486 = vpop.f32.mrf.mxu0
    %v487 = vadd.f32 %v425, %v486
    %488 = vdwg.mxu0
    %489 = vst [vmem:[#allocation5] sm:$0xff] %v447
    %490 = vst [vmem:[#allocation5 + $0x8] sm:$0xff] %v467
    %491 = vst [vmem:[#allocation5 + $0x10] sm:$0xff] %v487
    %v492 = vld [vmem:[#allocation15] sm:$0xff]
    %v493 = vld [vmem:[#allocation15 + $0x8] sm:$0xff]
    %v494 = vld [vmem:[#allocation15 + $0x10] sm:$0xff]
    %v495 = vld [vmem:[#allocation15 + $0x18] sm:$0xff]
    %v496 = vld [vmem:[#allocation15 + $0x20] sm:$0xff]
    %v497 = vld [vmem:[#allocation15 + $0x28] sm:$0xff]
    %v498 = vld [vmem:[#allocation15 + $0x30] sm:$0xff]
    %v499 = vld [vmem:[#allocation15 + $0x38] sm:$0xff]
    %v500 = vld [vmem:[#allocation15 + $0x40] sm:$0xff]
    %v501 = vld [vmem:[#allocation15 + $0x48] sm:$0xff]
    %v502 = vld [vmem:[#allocation15 + $0x50] sm:$0xff]
    %v503 = vld [vmem:[#allocation15 + $0x58] sm:$0xff]
    %v504 = vld [vmem:[#allocation15 + $0x60] sm:$0xff]
    %v505 = vld [vmem:[#allocation15 + $0x68] sm:$0xff]
    %v506 = vld [vmem:[#allocation15 + $0x70] sm:$0xff]
    %v507 = vld [vmem:[#allocation15 + $0x78] sm:$0xff]
    %v508 = vld [vmem:[#allocation15 + $0x80] sm:$0xff]
    %v509 = vld [vmem:[#allocation15 + $0x88] sm:$0xff]
    %v510 = vld [vmem:[#allocation15 + $0x90] sm:$0xff]
    %v511 = vld [vmem:[#allocation15 + $0x98] sm:$0xff]
    %v512 = vld [vmem:[#allocation15 + $0xa0] sm:$0xff]
    %v513 = vld [vmem:[#allocation15 + $0xa8] sm:$0xff]
    %v514 = vld [vmem:[#allocation15 + $0xb0] sm:$0xff]
    %v515 = vld [vmem:[#allocation15 + $0xb8] sm:$0xff]
    %v516 = vld [vmem:[#allocation15 + $0xc0] sm:$0xff]
    %v517 = vld [vmem:[#allocation15 + $0xc8] sm:$0xff]
    %v518 = vld [vmem:[#allocation15 + $0xd0] sm:$0xff]
    %v519 = vld [vmem:[#allocation15 + $0xd8] sm:$0xff]
    %v520 = vld [vmem:[#allocation15 + $0xe0] sm:$0xff]
    %v521 = vld [vmem:[#allocation15 + $0xe8] sm:$0xff]
    %v522 = vld [vmem:[#allocation15 + $0xf0] sm:$0xff]
    %v523 = vld [vmem:[#allocation15 + $0xf8] sm:$0xff]
    %v524 = vld [vmem:[#allocation15 + $0x100] sm:$0xff]
    %v525 = vld [vmem:[#allocation15 + $0x108] sm:$0xff]
    %v526 = vld [vmem:[#allocation15 + $0x110] sm:$0xff]
    %v527 = vld [vmem:[#allocation15 + $0x118] sm:$0xff]
    %v528 = vld [vmem:[#allocation15 + $0x120] sm:$0xff]
    %v529 = vld [vmem:[#allocation15 + $0x128] sm:$0xff]
    %v530 = vld [vmem:[#allocation15 + $0x130] sm:$0xff]
    %v531 = vld [vmem:[#allocation15 + $0x138] sm:$0xff]
    %v532 = vld [vmem:[#allocation15 + $0x140] sm:$0xff]
    %v533 = vld [vmem:[#allocation15 + $0x148] sm:$0xff]
    %v534 = vld [vmem:[#allocation15 + $0x150] sm:$0xff]
    %v535 = vld [vmem:[#allocation15 + $0x158] sm:$0xff]
    %v536 = vld [vmem:[#allocation15 + $0x160] sm:$0xff]
    %v537 = vld [vmem:[#allocation15 + $0x168] sm:$0xff]
    %v538 = vld [vmem:[#allocation15 + $0x170] sm:$0xff]
    %v539 = vld [vmem:[#allocation15 + $0x178] sm:$0xff]
    %v540 = vld [vmem:[#allocation17] sm:$0x7]
    %v542 = vperm.slane %v540, 0
    %v543 = vperm.slane %v540, 1
    %v544 = vperm.slane %v540, 2
    %548 = vmatpush.msra.mxu0 %v537
    %549 = vmatpush.msra.mxu0 %v534
    %550 = vmatpush.msra.mxu0 %v531
    %551 = vmatpush.msra.mxu0 %v528
    %552 = vmatpush.msra.mxu0 %v525
    %553 = vmatpush.msra.mxu0 %v522
    %554 = vmatpush.msra.mxu0 %v519
    %555 = vmatpush.msra.mxu0 %v516
    %556 = vmatpush.msra.mxu0 %v513
    %557 = vmatpush.msra.mxu0 %v510
    %558 = vmatpush.msra.mxu0 %v507
    %559 = vmatpush.msra.mxu0 %v504
    %560 = vmatpush.msra.mxu0 %v501
    %561 = vmatpush.msra.mxu0 %v498
    %562 = vmatpush.msra.mxu0 %v495
    %563 = vmatpush.msra.mxu0 %v492
    %564 = vmatmul.f32.gmra.mxu0 0.0
    %v565 = vpop.f32.mrf.mxu0
    %v566 = vadd.f32 %v542, %v565
    %567 = vdwg.mxu0
    %568 = vmatpush.msra.mxu0 %v538
    %569 = vmatpush.msra.mxu0 %v535
    %570 = vmatpush.msra.mxu0 %v532
    %571 = vmatpush.msra.mxu0 %v529
    %572 = vmatpush.msra.mxu0 %v526
    %573 = vmatpush.msra.mxu0 %v523
    %574 = vmatpush.msra.mxu0 %v520
    %575 = vmatpush.msra.mxu0 %v517
    %576 = vmatpush.msra.mxu0 %v514
    %577 = vmatpush.msra.mxu0 %v511
    %578 = vmatpush.msra.mxu0 %v508
    %579 = vmatpush.msra.mxu0 %v505
    %580 = vmatpush.msra.mxu0 %v502
    %581 = vmatpush.msra.mxu0 %v499
    %582 = vmatpush.msra.mxu0 %v496
    %583 = vmatpush.msra.mxu0 %v493
    %584 = vmatmul.f32.gmra.mxu0 0.0
    %v585 = vpop.f32.mrf.mxu0
    %v586 = vadd.f32 %v543, %v585
    %587 = vdwg.mxu0
    %588 = vmatpush.msra.mxu0 %v539
    %589 = vmatpush.msra.mxu0 %v536
    %590 = vmatpush.msra.mxu0 %v533
    %591 = vmatpush.msra.mxu0 %v530
    %592 = vmatpush.msra.mxu0 %v527
    %593 = vmatpush.msra.mxu0 %v524
    %594 = vmatpush.msra.mxu0 %v521
    %595 = vmatpush.msra.mxu0 %v518
    %596 = vmatpush.msra.mxu0 %v515
    %597 = vmatpush.msra.mxu0 %v512
    %598 = vmatpush.msra.mxu0 %v509
    %599 = vmatpush.msra.mxu0 %v506
    %600 = vmatpush.msra.mxu0 %v503
    %601 = vmatpush.msra.mxu0 %v500
    %602 = vmatpush.msra.mxu0 %v497
    %603 = vmatpush.msra.mxu0 %v494
    %604 = vmatmul.f32.gmra.mxu0 0.0
    %v605 = vpop.f32.mrf.mxu0
    %v606 = vadd.f32 %v544, %v605
    %607 = vdwg.mxu0
    %v608 = vld [vmem:[#allocation4] ss:$8 sm:$0x7]
    %v609 = vadd.f32 %v608, %v566
    %v610 = vxor.u32 %v609, 2147483648
    %v611 = vmul.f32 %v610, 1.442695
    %v612 = vpow.pop %v611
    %v613 = vadd.f32 %v612, 1.0
    %v614 = vrcp.pop %v613
    %v615 = vmul.f32 %v613, %v614
    %v616 = vsub.f32 1.0, %v615
    %v617 = vmul.f32 %v614, %v616
    %v618 = vadd.f32 %v614, %v617
    %vm619 = vweird.f32 %v613
    %vm620 = vweird.f32 %v614
    %vm621 = vmor %vm619, %vm620
    %v622 = vsel %vm621, %v614, %v618
    %v623 = vand.u32 2147483647, %v613
    %vm624 = vcmp.eq.f32.partialorder %v623, 8.507059e+37
    %v625 = vand.u32 %v613, 2147483648
    %v626 = vor.u32 1.1754944e-38, %v625
    %v627 = vsel %vm624, %v626, %v622
    %v628 = vmul.f32 1.0, %v627
    %v630 = vrot.slane %v608, 1
    %v632 = vadd.f32 %v630, %v586
    %v633 = vxor.u32 %v632, 2147483648
    %v634 = vmul.f32 %v633, 1.442695
    %v635 = vpow.pop %v634
    %v636 = vadd.f32 %v635, 1.0
    %v637 = vrcp.pop %v636
    %v638 = vmul.f32 %v636, %v637
    %v639 = vsub.f32 1.0, %v638
    %v640 = vmul.f32 %v637, %v639
    %v641 = vadd.f32 %v637, %v640
    %vm642 = vweird.f32 %v636
    %vm643 = vweird.f32 %v637
    %vm644 = vmor %vm642, %vm643
    %v645 = vsel %vm644, %v637, %v641
    %v646 = vand.u32 2147483647, %v636
    %vm647 = vcmp.eq.f32.partialorder %v646, 8.507059e+37
    %v648 = vand.u32 %v636, 2147483648
    %v649 = vor.u32 1.1754944e-38, %v648
    %v650 = vsel %vm647, %v649, %v645
    %v651 = vmul.f32 1.0, %v650
    %v652 = vmul.f32 %v628, %v606
    %v653 = vrot.slane %v608, 2
    %v655 = vadd.f32 %v653, %v652
    %v656 = vtanh.pop %v655
    %v657 = vsub.f32 1.0, %v651
    %v658 = vmul.f32 %v657, %v656
    %v659 = vmul.f32 %v651, 0.0
    %v660 = vadd.f32 %v658, %v659
    %661 = vst [vmem:[#allocation2] sm:$0x1] %v660
    %v662 = vld [vmem:[#allocation20] sm:$0xff]
    %v663 = vld [vmem:[#allocation20 + $0x8] sm:$0xff]
    %v664 = vld [vmem:[#allocation20 + $0x10] sm:$0xff]
    %v665 = vld [vmem:[#allocation20 + $0x18] sm:$0xff]
    %v666 = vld [vmem:[#allocation20 + $0x20] sm:$0xff]
    %v667 = vld [vmem:[#allocation20 + $0x28] sm:$0xff]
    %v668 = vld [vmem:[#allocation20 + $0x30] sm:$0xff]
    %v669 = vld [vmem:[#allocation20 + $0x38] sm:$0xff]
    %v670 = vld [vmem:[#allocation20 + $0x40] sm:$0xff]
    %v671 = vld [vmem:[#allocation20 + $0x48] sm:$0xff]
    %v672 = vld [vmem:[#allocation20 + $0x50] sm:$0xff]
    %v673 = vld [vmem:[#allocation20 + $0x58] sm:$0xff]
    %v674 = vld [vmem:[#allocation20 + $0x60] sm:$0xff]
    %v675 = vld [vmem:[#allocation20 + $0x68] sm:$0xff]
    %v676 = vld [vmem:[#allocation20 + $0x70] sm:$0xff]
    %v677 = vld [vmem:[#allocation20 + $0x78] sm:$0xff]
    %v678 = vld [vmem:[#allocation20 + $0x80] sm:$0xff]
    %v679 = vld [vmem:[#allocation20 + $0x88] sm:$0xff]
    %v680 = vld [vmem:[#allocation20 + $0x90] sm:$0xff]
    %v681 = vld [vmem:[#allocation20 + $0x98] sm:$0xff]
    %v682 = vld [vmem:[#allocation20 + $0xa0] sm:$0xff]
    %v683 = vld [vmem:[#allocation20 + $0xa8] sm:$0xff]
    %v684 = vld [vmem:[#allocation20 + $0xb0] sm:$0xff]
    %v685 = vld [vmem:[#allocation20 + $0xb8] sm:$0xff]
    %v686 = vld [vmem:[#allocation20 + $0xc0] sm:$0xff]
    %v687 = vld [vmem:[#allocation20 + $0xc8] sm:$0xff]
    %v688 = vld [vmem:[#allocation20 + $0xd0] sm:$0xff]
    %v689 = vld [vmem:[#allocation20 + $0xd8] sm:$0xff]
    %v690 = vld [vmem:[#allocation20 + $0xe0] sm:$0xff]
    %v691 = vld [vmem:[#allocation20 + $0xe8] sm:$0xff]
    %v692 = vld [vmem:[#allocation20 + $0xf0] sm:$0xff]
    %v693 = vld [vmem:[#allocation20 + $0xf8] sm:$0xff]
    %v694 = vld [vmem:[#allocation20 + $0x100] sm:$0xff]
    %v695 = vld [vmem:[#allocation20 + $0x108] sm:$0xff]
    %v696 = vld [vmem:[#allocation20 + $0x110] sm:$0xff]
    %v697 = vld [vmem:[#allocation20 + $0x118] sm:$0xff]
    %v698 = vld [vmem:[#allocation20 + $0x120] sm:$0xff]
    %v699 = vld [vmem:[#allocation20 + $0x128] sm:$0xff]
    %v700 = vld [vmem:[#allocation20 + $0x130] sm:$0xff]
    %v701 = vld [vmem:[#allocation20 + $0x138] sm:$0xff]
    %v702 = vld [vmem:[#allocation20 + $0x140] sm:$0xff]
    %v703 = vld [vmem:[#allocation20 + $0x148] sm:$0xff]
    %v704 = vld [vmem:[#allocation20 + $0x150] sm:$0xff]
    %v705 = vld [vmem:[#allocation20 + $0x158] sm:$0xff]
    %v706 = vld [vmem:[#allocation20 + $0x160] sm:$0xff]
    %v707 = vld [vmem:[#allocation20 + $0x168] sm:$0xff]
    %v708 = vld [vmem:[#allocation20 + $0x170] sm:$0xff]
    %v709 = vld [vmem:[#allocation20 + $0x178] sm:$0xff]
    %v710 = vld [vmem:[#allocation21] sm:$0x7]
    %v712 = vperm.slane %v710, 0
    %v713 = vperm.slane %v710, 1
    %v714 = vperm.slane %v710, 2
    %718 = vmatpush.msra.mxu0 %v707
    %719 = vmatpush.msra.mxu0 %v704
    %720 = vmatpush.msra.mxu0 %v701
    %721 = vmatpush.msra.mxu0 %v698
    %722 = vmatpush.msra.mxu0 %v695
    %723 = vmatpush.msra.mxu0 %v692
    %724 = vmatpush.msra.mxu0 %v689
    %725 = vmatpush.msra.mxu0 %v686
    %726 = vmatpush.msra.mxu0 %v683
    %727 = vmatpush.msra.mxu0 %v680
    %728 = vmatpush.msra.mxu0 %v677
    %729 = vmatpush.msra.mxu0 %v674
    %730 = vmatpush.msra.mxu0 %v671
    %731 = vmatpush.msra.mxu0 %v668
    %732 = vmatpush.msra.mxu0 %v665
    %733 = vmatpush.msra.mxu0 %v662
    %734 = vmatmul.f32.gmra.mxu0 0.0
    %v735 = vpop.f32.mrf.mxu0
    %v736 = vadd.f32 %v712, %v735
    %737 = vdwg.mxu0
    %738 = vmatpush.msra.mxu0 %v708
    %739 = vmatpush.msra.mxu0 %v705
    %740 = vmatpush.msra.mxu0 %v702
    %741 = vmatpush.msra.mxu0 %v699
    %742 = vmatpush.msra.mxu0 %v696
    %743 = vmatpush.msra.mxu0 %v693
    %744 = vmatpush.msra.mxu0 %v690
    %745 = vmatpush.msra.mxu0 %v687
    %746 = vmatpush.msra.mxu0 %v684
    %747 = vmatpush.msra.mxu0 %v681
    %748 = vmatpush.msra.mxu0 %v678
    %749 = vmatpush.msra.mxu0 %v675
    %750 = vmatpush.msra.mxu0 %v672
    %751 = vmatpush.msra.mxu0 %v669
    %752 = vmatpush.msra.mxu0 %v666
    %753 = vmatpush.msra.mxu0 %v663
    %754 = vmatmul.f32.gmra.mxu0 0.0
    %v755 = vpop.f32.mrf.mxu0
    %v756 = vadd.f32 %v713, %v755
    %757 = vdwg.mxu0
    %758 = vmatpush.msra.mxu0 %v709
    %759 = vmatpush.msra.mxu0 %v706
    %760 = vmatpush.msra.mxu0 %v703
    %761 = vmatpush.msra.mxu0 %v700
    %762 = vmatpush.msra.mxu0 %v697
    %763 = vmatpush.msra.mxu0 %v694
    %764 = vmatpush.msra.mxu0 %v691
    %765 = vmatpush.msra.mxu0 %v688
    %766 = vmatpush.msra.mxu0 %v685
    %767 = vmatpush.msra.mxu0 %v682
    %768 = vmatpush.msra.mxu0 %v679
    %769 = vmatpush.msra.mxu0 %v676
    %770 = vmatpush.msra.mxu0 %v673
    %771 = vmatpush.msra.mxu0 %v670
    %772 = vmatpush.msra.mxu0 %v667
    %773 = vmatpush.msra.mxu0 %v664
    %774 = vmatmul.f32.gmra.mxu0 0.0
    %v775 = vpop.f32.mrf.mxu0
    %v776 = vadd.f32 %v714, %v775
    %777 = vdwg.mxu0
    %s778 = scalar_lea.vmem [#allocation5], 7
    %v779 = vld [vmem:[%s778] ss:$8 sm:$0x7]
    %v780 = vadd.f32 %v779, %v736
    %v781 = vxor.u32 %v780, 2147483648
    %v782 = vmul.f32 %v781, 1.442695
    %v783 = vpow.pop %v782
    %v784 = vadd.f32 %v783, 1.0
    %v785 = vrcp.pop %v784
    %v786 = vmul.f32 %v784, %v785
    %v787 = vsub.f32 1.0, %v786
    %v788 = vmul.f32 %v785, %v787
    %v789 = vadd.f32 %v785, %v788
    %vm790 = vweird.f32 %v784
    %vm791 = vweird.f32 %v785
    %vm792 = vmor %vm790, %vm791
    %v793 = vsel %vm792, %v785, %v789
    %v794 = vand.u32 2147483647, %v784
    %vm795 = vcmp.eq.f32.partialorder %v794, 8.507059e+37
    %v796 = vand.u32 %v784, 2147483648
    %v797 = vor.u32 1.1754944e-38, %v796
    %v798 = vsel %vm795, %v797, %v793
    %v799 = vmul.f32 1.0, %v798
    %v801 = vrot.slane %v779, 1
    %v803 = vadd.f32 %v801, %v756
    %v804 = vxor.u32 %v803, 2147483648
    %v805 = vmul.f32 %v804, 1.442695
    %v806 = vpow.pop %v805
    %v807 = vadd.f32 %v806, 1.0
    %v808 = vrcp.pop %v807
    %v809 = vmul.f32 %v807, %v808
    %v810 = vsub.f32 1.0, %v809
    %v811 = vmul.f32 %v808, %v810
    %v812 = vadd.f32 %v808, %v811
    %vm813 = vweird.f32 %v807
    %vm814 = vweird.f32 %v808
    %vm815 = vmor %vm813, %vm814
    %v816 = vsel %vm815, %v808, %v812
    %v817 = vand.u32 2147483647, %v807
    %vm818 = vcmp.eq.f32.partialorder %v817, 8.507059e+37
    %v819 = vand.u32 %v807, 2147483648
    %v820 = vor.u32 1.1754944e-38, %v819
    %v821 = vsel %vm818, %v820, %v816
    %v822 = vmul.f32 1.0, %v821
    %v823 = vmul.f32 %v799, %v776
    %v824 = vrot.slane %v779, 2
    %v826 = vadd.f32 %v824, %v823
    %v827 = vtanh.pop %v826
    %v828 = vsub.f32 1.0, %v822
    %v829 = vmul.f32 %v828, %v827
    %v830 = vmul.f32 %v822, 0.0
    %v831 = vadd.f32 %v829, %v830
    %832 = vst [vmem:[#allocation3 + $0x7] sm:$0x1] %v831
    %v833 = vld [vmem:[#allocation15] sm:$0xff]
    %v834 = vld [vmem:[#allocation15 + $0x8] sm:$0xff]
    %v835 = vld [vmem:[#allocation15 + $0x10] sm:$0xff]
    %v836 = vld [vmem:[#allocation15 + $0x18] sm:$0xff]
    %v837 = vld [vmem:[#allocation15 + $0x20] sm:$0xff]
    %v838 = vld [vmem:[#allocation15 + $0x28] sm:$0xff]
    %v839 = vld [vmem:[#allocation15 + $0x30] sm:$0xff]
    %v840 = vld [vmem:[#allocation15 + $0x38] sm:$0xff]
    %v841 = vld [vmem:[#allocation15 + $0x40] sm:$0xff]
    %v842 = vld [vmem:[#allocation15 + $0x48] sm:$0xff]
    %v843 = vld [vmem:[#allocation15 + $0x50] sm:$0xff]
    %v844 = vld [vmem:[#allocation15 + $0x58] sm:$0xff]
    %v845 = vld [vmem:[#allocation15 + $0x60] sm:$0xff]
    %v846 = vld [vmem:[#allocation15 + $0x68] sm:$0xff]
    %v847 = vld [vmem:[#allocation15 + $0x70] sm:$0xff]
    %v848 = vld [vmem:[#allocation15 + $0x78] sm:$0xff]
    %v849 = vld [vmem:[#allocation15 + $0x80] sm:$0xff]
    %v850 = vld [vmem:[#allocation15 + $0x88] sm:$0xff]
    %v851 = vld [vmem:[#allocation15 + $0x90] sm:$0xff]
    %v852 = vld [vmem:[#allocation15 + $0x98] sm:$0xff]
    %v853 = vld [vmem:[#allocation15 + $0xa0] sm:$0xff]
    %v854 = vld [vmem:[#allocation15 + $0xa8] sm:$0xff]
    %v855 = vld [vmem:[#allocation15 + $0xb0] sm:$0xff]
    %v856 = vld [vmem:[#allocation15 + $0xb8] sm:$0xff]
    %v857 = vld [vmem:[#allocation15 + $0xc0] sm:$0xff]
    %v858 = vld [vmem:[#allocation15 + $0xc8] sm:$0xff]
    %v859 = vld [vmem:[#allocation15 + $0xd0] sm:$0xff]
    %v860 = vld [vmem:[#allocation15 + $0xd8] sm:$0xff]
    %v861 = vld [vmem:[#allocation15 + $0xe0] sm:$0xff]
    %v862 = vld [vmem:[#allocation15 + $0xe8] sm:$0xff]
    %v863 = vld [vmem:[#allocation15 + $0xf0] sm:$0xff]
    %v864 = vld [vmem:[#allocation15 + $0xf8] sm:$0xff]
    %v865 = vld [vmem:[#allocation15 + $0x100] sm:$0xff]
    %v866 = vld [vmem:[#allocation15 + $0x108] sm:$0xff]
    %v867 = vld [vmem:[#allocation15 + $0x110] sm:$0xff]
    %v868 = vld [vmem:[#allocation15 + $0x118] sm:$0xff]
    %v869 = vld [vmem:[#allocation15 + $0x120] sm:$0xff]
    %v870 = vld [vmem:[#allocation15 + $0x128] sm:$0xff]
    %v871 = vld [vmem:[#allocation15 + $0x130] sm:$0xff]
    %v872 = vld [vmem:[#allocation15 + $0x138] sm:$0xff]
    %v873 = vld [vmem:[#allocation15 + $0x140] sm:$0xff]
    %v874 = vld [vmem:[#allocation15 + $0x148] sm:$0xff]
    %v875 = vld [vmem:[#allocation15 + $0x150] sm:$0xff]
    %v876 = vld [vmem:[#allocation15 + $0x158] sm:$0xff]
    %v877 = vld [vmem:[#allocation15 + $0x160] sm:$0xff]
    %v878 = vld [vmem:[#allocation15 + $0x168] sm:$0xff]
    %v879 = vld [vmem:[#allocation15 + $0x170] sm:$0xff]
    %v880 = vld [vmem:[#allocation15 + $0x178] sm:$0xff]
    %v881 = vld [vmem:[#allocation17] sm:$0x7]
    %v883 = vperm.slane %v881, 0
    %v884 = vperm.slane %v881, 1
    %v885 = vperm.slane %v881, 2
    %889 = vmatpush.msra.mxu0 %v878
    %890 = vmatpush.msra.mxu0 %v875
    %891 = vmatpush.msra.mxu0 %v872
    %892 = vmatpush.msra.mxu0 %v869
    %893 = vmatpush.msra.mxu0 %v866
    %894 = vmatpush.msra.mxu0 %v863
    %895 = vmatpush.msra.mxu0 %v860
    %896 = vmatpush.msra.mxu0 %v857
    %897 = vmatpush.msra.mxu0 %v854
    %898 = vmatpush.msra.mxu0 %v851
    %899 = vmatpush.msra.mxu0 %v848
    %900 = vmatpush.msra.mxu0 %v845
    %901 = vmatpush.msra.mxu0 %v842
    %902 = vmatpush.msra.mxu0 %v839
    %903 = vmatpush.msra.mxu0 %v836
    %904 = vmatpush.msra.mxu0 %v833
    %905 = vmatmul.f32.gmra.mxu0 %v660
    %v906 = vpop.f32.mrf.mxu0
    %v907 = vadd.f32 %v883, %v906
    %908 = vdwg.mxu0
    %909 = vmatpush.msra.mxu0 %v879
    %910 = vmatpush.msra.mxu0 %v876
    %911 = vmatpush.msra.mxu0 %v873
    %912 = vmatpush.msra.mxu0 %v870
    %913 = vmatpush.msra.mxu0 %v867
    %914 = vmatpush.msra.mxu0 %v864
    %915 = vmatpush.msra.mxu0 %v861
    %916 = vmatpush.msra.mxu0 %v858
    %917 = vmatpush.msra.mxu0 %v855
    %918 = vmatpush.msra.mxu0 %v852
    %919 = vmatpush.msra.mxu0 %v849
    %920 = vmatpush.msra.mxu0 %v846
    %921 = vmatpush.msra.mxu0 %v843
    %922 = vmatpush.msra.mxu0 %v840
    %923 = vmatpush.msra.mxu0 %v837
    %924 = vmatpush.msra.mxu0 %v834
    %925 = vmatmul.f32.gmra.mxu0 %v660
    %v926 = vpop.f32.mrf.mxu0
    %v927 = vadd.f32 %v884, %v926
    %928 = vdwg.mxu0
    %929 = vmatpush.msra.mxu0 %v880
    %930 = vmatpush.msra.mxu0 %v877
    %931 = vmatpush.msra.mxu0 %v874
    %932 = vmatpush.msra.mxu0 %v871
    %933 = vmatpush.msra.mxu0 %v868
    %934 = vmatpush.msra.mxu0 %v865
    %935 = vmatpush.msra.mxu0 %v862
    %936 = vmatpush.msra.mxu0 %v859
    %937 = vmatpush.msra.mxu0 %v856
    %938 = vmatpush.msra.mxu0 %v853
    %939 = vmatpush.msra.mxu0 %v850
    %940 = vmatpush.msra.mxu0 %v847
    %941 = vmatpush.msra.mxu0 %v844
    %942 = vmatpush.msra.mxu0 %v841
    %943 = vmatpush.msra.mxu0 %v838
    %944 = vmatpush.msra.mxu0 %v835
    %945 = vmatmul.f32.gmra.mxu0 %v660
    %v946 = vpop.f32.mrf.mxu0
    %v947 = vadd.f32 %v885, %v946
    %948 = vdwg.mxu0
    %s949 = scalar_lea.vmem [#allocation4], 1
    %v950 = vld [vmem:[%s949] ss:$8 sm:$0x7]
    %v951 = vadd.f32 %v950, %v907
    %v952 = vxor.u32 %v951, 2147483648
    %v953 = vmul.f32 %v952, 1.442695
    %v954 = vpow.pop %v953
    %v955 = vadd.f32 %v954, 1.0
    %v956 = vrcp.pop %v955
    %v957 = vmul.f32 %v955, %v956
    %v958 = vsub.f32 1.0, %v957
    %v959 = vmul.f32 %v956, %v958
    %v960 = vadd.f32 %v956, %v959
    %vm961 = vweird.f32 %v955
    %vm962 = vweird.f32 %v956
    %vm963 = vmor %vm961, %vm962
    %v964 = vsel %vm963, %v956, %v960
    %v965 = vand.u32 2147483647, %v955
    %vm966 = vcmp.eq.f32.partialorder %v965, 8.507059e+37
    %v967 = vand.u32 %v955, 2147483648
    %v968 = vor.u32 1.1754944e-38, %v967
    %v969 = vsel %vm966, %v968, %v964
    %v970 = vmul.f32 1.0, %v969
    %v972 = vrot.slane %v950, 1
    %v974 = vadd.f32 %v972, %v927
    %v975 = vxor.u32 %v974, 2147483648
    %v976 = vmul.f32 %v975, 1.442695
    %v977 = vpow.pop %v976
    %v978 = vadd.f32 %v977, 1.0
    %v979 = vrcp.pop %v978
    %v980 = vmul.f32 %v978, %v979
    %v981 = vsub.f32 1.0, %v980
    %v982 = vmul.f32 %v979, %v981
    %v983 = vadd.f32 %v979, %v982
    %vm984 = vweird.f32 %v978
    %vm985 = vweird.f32 %v979
    %vm986 = vmor %vm984, %vm985
    %v987 = vsel %vm986, %v979, %v983
    %v988 = vand.u32 2147483647, %v978
    %vm989 = vcmp.eq.f32.partialorder %v988, 8.507059e+37
    %v990 = vand.u32 %v978, 2147483648
    %v991 = vor.u32 1.1754944e-38, %v990
    %v992 = vsel %vm989, %v991, %v987
    %v993 = vmul.f32 1.0, %v992
    %v994 = vmul.f32 %v970, %v947
    %v995 = vrot.slane %v950, 2
    %v997 = vadd.f32 %v995, %v994
    %v998 = vtanh.pop %v997
    %v999 = vsub.f32 1.0, %v993
    %v1000 = vmul.f32 %v999, %v998
    %v1001 = vmul.f32 %v993, %v660
    %v1002 = vadd.f32 %v1000, %v1001
    %1003 = vst [vmem:[#allocation2 + $0x1] sm:$0x1] %v1002
    %v1004 = vld [vmem:[#allocation20] sm:$0xff]
    %v1005 = vld [vmem:[#allocation20 + $0x8] sm:$0xff]
    %v1006 = vld [vmem:[#allocation20 + $0x10] sm:$0xff]
    %v1007 = vld [vmem:[#allocation20 + $0x18] sm:$0xff]
    %v1008 = vld [vmem:[#allocation20 + $0x20] sm:$0xff]
    %v1009 = vld [vmem:[#allocation20 + $0x28] sm:$0xff]
    %v1010 = vld [vmem:[#allocation20 + $0x30] sm:$0xff]
    %v1011 = vld [vmem:[#allocation20 + $0x38] sm:$0xff]
    %v1012 = vld [vmem:[#allocation20 + $0x40] sm:$0xff]
    %v1013 = vld [vmem:[#allocation20 + $0x48] sm:$0xff]
    %v1014 = vld [vmem:[#allocation20 + $0x50] sm:$0xff]
    %v1015 = vld [vmem:[#allocation20 + $0x58] sm:$0xff]
    %v1016 = vld [vmem:[#allocation20 + $0x60] sm:$0xff]
    %v1017 = vld [vmem:[#allocation20 + $0x68] sm:$0xff]
    %v1018 = vld [vmem:[#allocation20 + $0x70] sm:$0xff]
    %v1019 = vld [vmem:[#allocation20 + $0x78] sm:$0xff]
    %v1020 = vld [vmem:[#allocation20 + $0x80] sm:$0xff]
    %v1021 = vld [vmem:[#allocation20 + $0x88] sm:$0xff]
    %v1022 = vld [vmem:[#allocation20 + $0x90] sm:$0xff]
    %v1023 = vld [vmem:[#allocation20 + $0x98] sm:$0xff]
    %v1024 = vld [vmem:[#allocation20 + $0xa0] sm:$0xff]
    %v1025 = vld [vmem:[#allocation20 + $0xa8] sm:$0xff]
    %v1026 = vld [vmem:[#allocation20 + $0xb0] sm:$0xff]
    %v1027 = vld [vmem:[#allocation20 + $0xb8] sm:$0xff]
    %v1028 = vld [vmem:[#allocation20 + $0xc0] sm:$0xff]
    %v1029 = vld [vmem:[#allocation20 + $0xc8] sm:$0xff]
    %v1030 = vld [vmem:[#allocation20 + $0xd0] sm:$0xff]
    %v1031 = vld [vmem:[#allocation20 + $0xd8] sm:$0xff]
    %v1032 = vld [vmem:[#allocation20 + $0xe0] sm:$0xff]
    %v1033 = vld [vmem:[#allocation20 + $0xe8] sm:$0xff]
    %v1034 = vld [vmem:[#allocation20 + $0xf0] sm:$0xff]
    %v1035 = vld [vmem:[#allocation20 + $0xf8] sm:$0xff]
    %v1036 = vld [vmem:[#allocation20 + $0x100] sm:$0xff]
    %v1037 = vld [vmem:[#allocation20 + $0x108] sm:$0xff]
    %v1038 = vld [vmem:[#allocation20 + $0x110] sm:$0xff]
    %v1039 = vld [vmem:[#allocation20 + $0x118] sm:$0xff]
    %v1040 = vld [vmem:[#allocation20 + $0x120] sm:$0xff]
    %v1041 = vld [vmem:[#allocation20 + $0x128] sm:$0xff]
    %v1042 = vld [vmem:[#allocation20 + $0x130] sm:$0xff]
    %v1043 = vld [vmem:[#allocation20 + $0x138] sm:$0xff]
    %v1044 = vld [vmem:[#allocation20 + $0x140] sm:$0xff]
    %v1045 = vld [vmem:[#allocation20 + $0x148] sm:$0xff]
    %v1046 = vld [vmem:[#allocation20 + $0x150] sm:$0xff]
    %v1047 = vld [vmem:[#allocation20 + $0x158] sm:$0xff]
    %v1048 = vld [vmem:[#allocation20 + $0x160] sm:$0xff]
    %v1049 = vld [vmem:[#allocation20 + $0x168] sm:$0xff]
    %v1050 = vld [vmem:[#allocation20 + $0x170] sm:$0xff]
    %v1051 = vld [vmem:[#allocation20 + $0x178] sm:$0xff]
    %v1052 = vld [vmem:[#allocation21] sm:$0x7]
    %v1054 = vperm.slane %v1052, 0
    %v1055 = vperm.slane %v1052, 1
    %v1056 = vperm.slane %v1052, 2
    %1060 = vmatpush.msra.mxu0 %v1049
    %1061 = vmatpush.msra.mxu0 %v1046
    %1062 = vmatpush.msra.mxu0 %v1043
    %1063 = vmatpush.msra.mxu0 %v1040
    %1064 = vmatpush.msra.mxu0 %v1037
    %1065 = vmatpush.msra.mxu0 %v1034
    %1066 = vmatpush.msra.mxu0 %v1031
    %1067 = vmatpush.msra.mxu0 %v1028
    %1068 = vmatpush.msra.mxu0 %v1025
    %1069 = vmatpush.msra.mxu0 %v1022
    %1070 = vmatpush.msra.mxu0 %v1019
    %1071 = vmatpush.msra.mxu0 %v1016
    %1072 = vmatpush.msra.mxu0 %v1013
    %1073 = vmatpush.msra.mxu0 %v1010
    %1074 = vmatpush.msra.mxu0 %v1007
    %1075 = vmatpush.msra.mxu0 %v1004
    %1076 = vmatmul.f32.gmra.mxu0 %v831
    %v1077 = vpop.f32.mrf.mxu0
    %v1078 = vadd.f32 %v1054, %v1077
    %1079 = vdwg.mxu0
    %1080 = vmatpush.msra.mxu0 %v1050
    %1081 = vmatpush.msra.mxu0 %v1047
    %1082 = vmatpush.msra.mxu0 %v1044
    %1083 = vmatpush.msra.mxu0 %v1041
    %1084 = vmatpush.msra.mxu0 %v1038
    %1085 = vmatpush.msra.mxu0 %v1035
    %1086 = vmatpush.msra.mxu0 %v1032
    %1087 = vmatpush.msra.mxu0 %v1029
    %1088 = vmatpush.msra.mxu0 %v1026
    %1089 = vmatpush.msra.mxu0 %v1023
    %1090 = vmatpush.msra.mxu0 %v1020
    %1091 = vmatpush.msra.mxu0 %v1017
    %1092 = vmatpush.msra.mxu0 %v1014
    %1093 = vmatpush.msra.mxu0 %v1011
    %1094 = vmatpush.msra.mxu0 %v1008
    %1095 = vmatpush.msra.mxu0 %v1005
    %1096 = vmatmul.f32.gmra.mxu0 %v831
    %v1097 = vpop.f32.mrf.mxu0
    %v1098 = vadd.f32 %v1055, %v1097
    %1099 = vdwg.mxu0
    %1100 = vmatpush.msra.mxu0 %v1051
    %1101 = vmatpush.msra.mxu0 %v1048
    %1102 = vmatpush.msra.mxu0 %v1045
    %1103 = vmatpush.msra.mxu0 %v1042
    %1104 = vmatpush.msra.mxu0 %v1039
    %1105 = vmatpush.msra.mxu0 %v1036
    %1106 = vmatpush.msra.mxu0 %v1033
    %1107 = vmatpush.msra.mxu0 %v1030
    %1108 = vmatpush.msra.mxu0 %v1027
    %1109 = vmatpush.msra.mxu0 %v1024
    %1110 = vmatpush.msra.mxu0 %v1021
    %1111 = vmatpush.msra.mxu0 %v1018
    %1112 = vmatpush.msra.mxu0 %v1015
    %1113 = vmatpush.msra.mxu0 %v1012
    %1114 = vmatpush.msra.mxu0 %v1009
    %1115 = vmatpush.msra.mxu0 %v1006
    %1116 = vmatmul.f32.gmra.mxu0 %v831
    %v1117 = vpop.f32.mrf.mxu0
    %v1118 = vadd.f32 %v1056, %v1117
    %1119 = vdwg.mxu0
    %s1120 = scalar_lea.vmem [#allocation5], 6
    %v1121 = vld [vmem:[%s1120] ss:$8 sm:$0x7]
    %v1122 = vadd.f32 %v1121, %v1078
    %v1123 = vxor.u32 %v1122, 2147483648
    %v1124 = vmul.f32 %v1123, 1.442695
    %v1125 = vpow.pop %v1124
    %v1126 = vadd.f32 %v1125, 1.0
    %v1127 = vrcp.pop %v1126
    %v1128 = vmul.f32 %v1126, %v1127
    %v1129 = vsub.f32 1.0, %v1128
    %v1130 = vmul.f32 %v1127, %v1129
    %v1131 = vadd.f32 %v1127, %v1130
    %vm1132 = vweird.f32 %v1126
    %vm1133 = vweird.f32 %v1127
    %vm1134 = vmor %vm1132, %vm1133
    %v1135 = vsel %vm1134, %v1127, %v1131
    %v1136 = vand.u32 2147483647, %v1126
    %vm1137 = vcmp.eq.f32.partialorder %v1136, 8.507059e+37
    %v1138 = vand.u32 %v1126, 2147483648
    %v1139 = vor.u32 1.1754944e-38, %v1138
    %v1140 = vsel %vm1137, %v1139, %v1135
    %v1141 = vmul.f32 1.0, %v1140
    %v1143 = vrot.slane %v1121, 1
    %v1145 = vadd.f32 %v1143, %v1098
    %v1146 = vxor.u32 %v1145, 2147483648
    %v1147 = vmul.f32 %v1146, 1.442695
    %v1148 = vpow.pop %v1147
    %v1149 = vadd.f32 %v1148, 1.0
    %v1150 = vrcp.pop %v1149
    %v1151 = vmul.f32 %v1149, %v1150
    %v1152 = vsub.f32 1.0, %v1151
    %v1153 = vmul.f32 %v1150, %v1152
    %v1154 = vadd.f32 %v1150, %v1153
    %vm1155 = vweird.f32 %v1149
    %vm1156 = vweird.f32 %v1150
    %vm1157 = vmor %vm1155, %vm1156
    %v1158 = vsel %vm1157, %v1150, %v1154
    %v1159 = vand.u32 2147483647, %v1149
    %vm1160 = vcmp.eq.f32.partialorder %v1159, 8.507059e+37
    %v1161 = vand.u32 %v1149, 2147483648
    %v1162 = vor.u32 1.1754944e-38, %v1161
    %v1163 = vsel %vm1160, %v1162, %v1158
    %v1164 = vmul.f32 1.0, %v1163
    %v1165 = vmul.f32 %v1141, %v1118
    %v1166 = vrot.slane %v1121, 2
    %v1168 = vadd.f32 %v1166, %v1165
    %v1169 = vtanh.pop %v1168
    %v1170 = vsub.f32 1.0, %v1164
    %v1171 = vmul.f32 %v1170, %v1169
    %v1172 = vmul.f32 %v1164, %v831
    %v1173 = vadd.f32 %v1171, %v1172
    %1174 = vst [vmem:[#allocation3 + $0x6] sm:$0x1] %v1173
    %v1175 = vld [vmem:[#allocation15] sm:$0xff]
    %v1176 = vld [vmem:[#allocation15 + $0x8] sm:$0xff]
    %v1177 = vld [vmem:[#allocation15 + $0x10] sm:$0xff]
    %v1178 = vld [vmem:[#allocation15 + $0x18] sm:$0xff]
    %v1179 = vld [vmem:[#allocation15 + $0x20] sm:$0xff]
    %v1180 = vld [vmem:[#allocation15 + $0x28] sm:$0xff]
    %v1181 = vld [vmem:[#allocation15 + $0x30] sm:$0xff]
    %v1182 = vld [vmem:[#allocation15 + $0x38] sm:$0xff]
    %v1183 = vld [vmem:[#allocation15 + $0x40] sm:$0xff]
    %v1184 = vld [vmem:[#allocation15 + $0x48] sm:$0xff]
    %v1185 = vld [vmem:[#allocation15 + $0x50] sm:$0xff]
    %v1186 = vld [vmem:[#allocation15 + $0x58] sm:$0xff]
    %v1187 = vld [vmem:[#allocation15 + $0x60] sm:$0xff]
    %v1188 = vld [vmem:[#allocation15 + $0x68] sm:$0xff]
    %v1189 = vld [vmem:[#allocation15 + $0x70] sm:$0xff]
    %v1190 = vld [vmem:[#allocation15 + $0x78] sm:$0xff]
    %v1191 = vld [vmem:[#allocation15 + $0x80] sm:$0xff]
    %v1192 = vld [vmem:[#allocation15 + $0x88] sm:$0xff]
    %v1193 = vld [vmem:[#allocation15 + $0x90] sm:$0xff]
    %v1194 = vld [vmem:[#allocation15 + $0x98] sm:$0xff]
    %v1195 = vld [vmem:[#allocation15 + $0xa0] sm:$0xff]
    %v1196 = vld [vmem:[#allocation15 + $0xa8] sm:$0xff]
    %v1197 = vld [vmem:[#allocation15 + $0xb0] sm:$0xff]
    %v1198 = vld [vmem:[#allocation15 + $0xb8] sm:$0xff]
    %v1199 = vld [vmem:[#allocation15 + $0xc0] sm:$0xff]
    %v1200 = vld [vmem:[#allocation15 + $0xc8] sm:$0xff]
    %v1201 = vld [vmem:[#allocation15 + $0xd0] sm:$0xff]
    %v1202 = vld [vmem:[#allocation15 + $0xd8] sm:$0xff]
    %v1203 = vld [vmem:[#allocation15 + $0xe0] sm:$0xff]
    %v1204 = vld [vmem:[#allocation15 + $0xe8] sm:$0xff]
    %v1205 = vld [vmem:[#allocation15 + $0xf0] sm:$0xff]
    %v1206 = vld [vmem:[#allocation15 + $0xf8] sm:$0xff]
    %v1207 = vld [vmem:[#allocation15 + $0x100] sm:$0xff]
    %v1208 = vld [vmem:[#allocation15 + $0x108] sm:$0xff]
    %v1209 = vld [vmem:[#allocation15 + $0x110] sm:$0xff]
    %v1210 = vld [vmem:[#allocation15 + $0x118] sm:$0xff]
    %v1211 = vld [vmem:[#allocation15 + $0x120] sm:$0xff]
    %v1212 = vld [vmem:[#allocation15 + $0x128] sm:$0xff]
    %v1213 = vld [vmem:[#allocation15 + $0x130] sm:$0xff]
    %v1214 = vld [vmem:[#allocation15 + $0x138] sm:$0xff]
    %v1215 = vld [vmem:[#allocation15 + $0x140] sm:$0xff]
    %v1216 = vld [vmem:[#allocation15 + $0x148] sm:$0xff]
    %v1217 = vld [vmem:[#allocation15 + $0x150] sm:$0xff]
    %v1218 = vld [vmem:[#allocation15 + $0x158] sm:$0xff]
    %v1219 = vld [vmem:[#allocation15 + $0x160] sm:$0xff]
    %v1220 = vld [vmem:[#allocation15 + $0x168] sm:$0xff]
    %v1221 = vld [vmem:[#allocation15 + $0x170] sm:$0xff]
    %v1222 = vld [vmem:[#allocation15 + $0x178] sm:$0xff]
    %v1223 = vld [vmem:[#allocation17] sm:$0x7]
    %v1225 = vperm.slane %v1223, 0
    %v1226 = vperm.slane %v1223, 1
    %v1227 = vperm.slane %v1223, 2
    %1231 = vmatpush.msra.mxu0 %v1220
    %1232 = vmatpush.msra.mxu0 %v1217
    %1233 = vmatpush.msra.mxu0 %v1214
    %1234 = vmatpush.msra.mxu0 %v1211
    %1235 = vmatpush.msra.mxu0 %v1208
    %1236 = vmatpush.msra.mxu0 %v1205
    %1237 = vmatpush.msra.mxu0 %v1202
    %1238 = vmatpush.msra.mxu0 %v1199
    %1239 = vmatpush.msra.mxu0 %v1196
    %1240 = vmatpush.msra.mxu0 %v1193
    %1241 = vmatpush.msra.mxu0 %v1190
    %1242 = vmatpush.msra.mxu0 %v1187
    %1243 = vmatpush.msra.mxu0 %v1184
    %1244 = vmatpush.msra.mxu0 %v1181
    %1245 = vmatpush.msra.mxu0 %v1178
    %1246 = vmatpush.msra.mxu0 %v1175
    %1247 = vmatmul.f32.gmra.mxu0 %v1002
    %v1248 = vpop.f32.mrf.mxu0
    %v1249 = vadd.f32 %v1225, %v1248
    %1250 = vdwg.mxu0
    %1251 = vmatpush.msra.mxu0 %v1221
    %1252 = vmatpush.msra.mxu0 %v1218
    %1253 = vmatpush.msra.mxu0 %v1215
    %1254 = vmatpush.msra.mxu0 %v1212
    %1255 = vmatpush.msra.mxu0 %v1209
    %1256 = vmatpush.msra.mxu0 %v1206
    %1257 = vmatpush.msra.mxu0 %v1203
    %1258 = vmatpush.msra.mxu0 %v1200
    %1259 = vmatpush.msra.mxu0 %v1197
    %1260 = vmatpush.msra.mxu0 %v1194
    %1261 = vmatpush.msra.mxu0 %v1191
    %1262 = vmatpush.msra.mxu0 %v1188
    %1263 = vmatpush.msra.mxu0 %v1185
    %1264 = vmatpush.msra.mxu0 %v1182
    %1265 = vmatpush.msra.mxu0 %v1179
    %1266 = vmatpush.msra.mxu0 %v1176
    %1267 = vmatmul.f32.gmra.mxu0 %v1002
    %v1268 = vpop.f32.mrf.mxu0
    %v1269 = vadd.f32 %v1226, %v1268
    %1270 = vdwg.mxu0
    %1271 = vmatpush.msra.mxu0 %v1222
    %1272 = vmatpush.msra.mxu0 %v1219
    %1273 = vmatpush.msra.mxu0 %v1216
    %1274 = vmatpush.msra.mxu0 %v1213
    %1275 = vmatpush.msra.mxu0 %v1210
    %1276 = vmatpush.msra.mxu0 %v1207
    %1277 = vmatpush.msra.mxu0 %v1204
    %1278 = vmatpush.msra.mxu0 %v1201
    %1279 = vmatpush.msra.mxu0 %v1198
    %1280 = vmatpush.msra.mxu0 %v1195
    %1281 = vmatpush.msra.mxu0 %v1192
    %1282 = vmatpush.msra.mxu0 %v1189
    %1283 = vmatpush.msra.mxu0 %v1186
    %1284 = vmatpush.msra.mxu0 %v1183
    %1285 = vmatpush.msra.mxu0 %v1180
    %1286 = vmatpush.msra.mxu0 %v1177
    %1287 = vmatmul.f32.gmra.mxu0 %v1002
    %v1288 = vpop.f32.mrf.mxu0
    %v1289 = vadd.f32 %v1227, %v1288
    %1290 = vdwg.mxu0
    %s1291 = scalar_lea.vmem [#allocation4], 2
    %v1292 = vld [vmem:[%s1291] ss:$8 sm:$0x7]
    %v1293 = vadd.f32 %v1292, %v1249
    %v1294 = vxor.u32 %v1293, 2147483648
    %v1295 = vmul.f32 %v1294, 1.442695
    %v1296 = vpow.pop %v1295
    %v1297 = vadd.f32 %v1296, 1.0
    %v1298 = vrcp.pop %v1297
    %v1299 = vmul.f32 %v1297, %v1298
    %v1300 = vsub.f32 1.0, %v1299
    %v1301 = vmul.f32 %v1298, %v1300
    %v1302 = vadd.f32 %v1298, %v1301
    %vm1303 = vweird.f32 %v1297
    %vm1304 = vweird.f32 %v1298
    %vm1305 = vmor %vm1303, %vm1304
    %v1306 = vsel %vm1305, %v1298, %v1302
    %v1307 = vand.u32 2147483647, %v1297
    %vm1308 = vcmp.eq.f32.partialorder %v1307, 8.507059e+37
    %v1309 = vand.u32 %v1297, 2147483648
    %v1310 = vor.u32 1.1754944e-38, %v1309
    %v1311 = vsel %vm1308, %v1310, %v1306
    %v1312 = vmul.f32 1.0, %v1311
    %v1314 = vrot.slane %v1292, 1
    %v1316 = vadd.f32 %v1314, %v1269
    %v1317 = vxor.u32 %v1316, 2147483648
    %v1318 = vmul.f32 %v1317, 1.442695
    %v1319 = vpow.pop %v1318
    %v1320 = vadd.f32 %v1319, 1.0
    %v1321 = vrcp.pop %v1320
    %v1322 = vmul.f32 %v1320, %v1321
    %v1323 = vsub.f32 1.0, %v1322
    %v1324 = vmul.f32 %v1321, %v1323
    %v1325 = vadd.f32 %v1321, %v1324
    %vm1326 = vweird.f32 %v1320
    %vm1327 = vweird.f32 %v1321
    %vm1328 = vmor %vm1326, %vm1327
    %v1329 = vsel %vm1328, %v1321, %v1325
    %v1330 = vand.u32 2147483647, %v1320
    %vm1331 = vcmp.eq.f32.partialorder %v1330, 8.507059e+37
    %v1332 = vand.u32 %v1320, 2147483648
    %v1333 = vor.u32 1.1754944e-38, %v1332
    %v1334 = vsel %vm1331, %v1333, %v1329
    %v1335 = vmul.f32 1.0, %v1334
    %v1336 = vmul.f32 %v1312, %v1289
    %v1337 = vrot.slane %v1292, 2
    %v1339 = vadd.f32 %v1337, %v1336
    %v1340 = vtanh.pop %v1339
    %v1341 = vsub.f32 1.0, %v1335
    %v1342 = vmul.f32 %v1341, %v1340
    %v1343 = vmul.f32 %v1335, %v1002
    %v1344 = vadd.f32 %v1342, %v1343
    %1345 = vst [vmem:[#allocation2 + $0x2] sm:$0x1] %v1344
    %v1346 = vld [vmem:[#allocation20] sm:$0xff]
    %v1347 = vld [vmem:[#allocation20 + $0x8] sm:$0xff]
    %v1348 = vld [vmem:[#allocation20 + $0x10] sm:$0xff]
    %v1349 = vld [vmem:[#allocation20 + $0x18] sm:$0xff]
    %v1350 = vld [vmem:[#allocation20 + $0x20] sm:$0xff]
    %v1351 = vld [vmem:[#allocation20 + $0x28] sm:$0xff]
    %v1352 = vld [vmem:[#allocation20 + $0x30] sm:$0xff]
    %v1353 = vld [vmem:[#allocation20 + $0x38] sm:$0xff]
    %v1354 = vld [vmem:[#allocation20 + $0x40] sm:$0xff]
    %v1355 = vld [vmem:[#allocation20 + $0x48] sm:$0xff]
    %v1356 = vld [vmem:[#allocation20 + $0x50] sm:$0xff]
    %v1357 = vld [vmem:[#allocation20 + $0x58] sm:$0xff]
    %v1358 = vld [vmem:[#allocation20 + $0x60] sm:$0xff]
    %v1359 = vld [vmem:[#allocation20 + $0x68] sm:$0xff]
    %v1360 = vld [vmem:[#allocation20 + $0x70] sm:$0xff]
    %v1361 = vld [vmem:[#allocation20 + $0x78] sm:$0xff]
    %v1362 = vld [vmem:[#allocation20 + $0x80] sm:$0xff]
    %v1363 = vld [vmem:[#allocation20 + $0x88] sm:$0xff]
    %v1364 = vld [vmem:[#allocation20 + $0x90] sm:$0xff]
    %v1365 = vld [vmem:[#allocation20 + $0x98] sm:$0xff]
    %v1366 = vld [vmem:[#allocation20 + $0xa0] sm:$0xff]
    %v1367 = vld [vmem:[#allocation20 + $0xa8] sm:$0xff]
    %v1368 = vld [vmem:[#allocation20 + $0xb0] sm:$0xff]
    %v1369 = vld [vmem:[#allocation20 + $0xb8] sm:$0xff]
    %v1370 = vld [vmem:[#allocation20 + $0xc0] sm:$0xff]
    %v1371 = vld [vmem:[#allocation20 + $0xc8] sm:$0xff]
    %v1372 = vld [vmem:[#allocation20 + $0xd0] sm:$0xff]
    %v1373 = vld [vmem:[#allocation20 + $0xd8] sm:$0xff]
    %v1374 = vld [vmem:[#allocation20 + $0xe0] sm:$0xff]
    %v1375 = vld [vmem:[#allocation20 + $0xe8] sm:$0xff]
    %v1376 = vld [vmem:[#allocation20 + $0xf0] sm:$0xff]
    %v1377 = vld [vmem:[#allocation20 + $0xf8] sm:$0xff]
    %v1378 = vld [vmem:[#allocation20 + $0x100] sm:$0xff]
    %v1379 = vld [vmem:[#allocation20 + $0x108] sm:$0xff]
    %v1380 = vld [vmem:[#allocation20 + $0x110] sm:$0xff]
    %v1381 = vld [vmem:[#allocation20 + $0x118] sm:$0xff]
    %v1382 = vld [vmem:[#allocation20 + $0x120] sm:$0xff]
    %v1383 = vld [vmem:[#allocation20 + $0x128] sm:$0xff]
    %v1384 = vld [vmem:[#allocation20 + $0x130] sm:$0xff]
    %v1385 = vld [vmem:[#allocation20 + $0x138] sm:$0xff]
    %v1386 = vld [vmem:[#allocation20 + $0x140] sm:$0xff]
    %v1387 = vld [vmem:[#allocation20 + $0x148] sm:$0xff]
    %v1388 = vld [vmem:[#allocation20 + $0x150] sm:$0xff]
    %v1389 = vld [vmem:[#allocation20 + $0x158] sm:$0xff]
    %v1390 = vld [vmem:[#allocation20 + $0x160] sm:$0xff]
    %v1391 = vld [vmem:[#allocation20 + $0x168] sm:$0xff]
    %v1392 = vld [vmem:[#allocation20 + $0x170] sm:$0xff]
    %v1393 = vld [vmem:[#allocation20 + $0x178] sm:$0xff]
    %v1394 = vld [vmem:[#allocation21] sm:$0x7]
    %v1396 = vperm.slane %v1394, 0
    %v1397 = vperm.slane %v1394, 1
    %v1398 = vperm.slane %v1394, 2
    %1402 = vmatpush.msra.mxu0 %v1391
    %1403 = vmatpush.msra.mxu0 %v1388
    %1404 = vmatpush.msra.mxu0 %v1385
    %1405 = vmatpush.msra.mxu0 %v1382
    %1406 = vmatpush.msra.mxu0 %v1379
    %1407 = vmatpush.msra.mxu0 %v1376
    %1408 = vmatpush.msra.mxu0 %v1373
    %1409 = vmatpush.msra.mxu0 %v1370
    %1410 = vmatpush.msra.mxu0 %v1367
    %1411 = vmatpush.msra.mxu0 %v1364
    %1412 = vmatpush.msra.mxu0 %v1361
    %1413 = vmatpush.msra.mxu0 %v1358
    %1414 = vmatpush.msra.mxu0 %v1355
    %1415 = vmatpush.msra.mxu0 %v1352
    %1416 = vmatpush.msra.mxu0 %v1349
    %1417 = vmatpush.msra.mxu0 %v1346
    %1418 = vmatmul.f32.gmra.mxu0 %v1173
    %v1419 = vpop.f32.mrf.mxu0
    %v1420 = vadd.f32 %v1396, %v1419
    %1421 = vdwg.mxu0
    %1422 = vmatpush.msra.mxu0 %v1392
    %1423 = vmatpush.msra.mxu0 %v1389
    %1424 = vmatpush.msra.mxu0 %v1386
    %1425 = vmatpush.msra.mxu0 %v1383
    %1426 = vmatpush.msra.mxu0 %v1380
    %1427 = vmatpush.msra.mxu0 %v1377
    %1428 = vmatpush.msra.mxu0 %v1374
    %1429 = vmatpush.msra.mxu0 %v1371
    %1430 = vmatpush.msra.mxu0 %v1368
    %1431 = vmatpush.msra.mxu0 %v1365
    %1432 = vmatpush.msra.mxu0 %v1362
    %1433 = vmatpush.msra.mxu0 %v1359
    %1434 = vmatpush.msra.mxu0 %v1356
    %1435 = vmatpush.msra.mxu0 %v1353
    %1436 = vmatpush.msra.mxu0 %v1350
    %1437 = vmatpush.msra.mxu0 %v1347
    %1438 = vmatmul.f32.gmra.mxu0 %v1173
    %v1439 = vpop.f32.mrf.mxu0
    %v1440 = vadd.f32 %v1397, %v1439
    %1441 = vdwg.mxu0
    %1442 = vmatpush.msra.mxu0 %v1393
    %1443 = vmatpush.msra.mxu0 %v1390
    %1444 = vmatpush.msra.mxu0 %v1387
    %1445 = vmatpush.msra.mxu0 %v1384
    %1446 = vmatpush.msra.mxu0 %v1381
    %1447 = vmatpush.msra.mxu0 %v1378
    %1448 = vmatpush.msra.mxu0 %v1375
    %1449 = vmatpush.msra.mxu0 %v1372
    %1450 = vmatpush.msra.mxu0 %v1369
    %1451 = vmatpush.msra.mxu0 %v1366
    %1452 = vmatpush.msra.mxu0 %v1363
    %1453 = vmatpush.msra.mxu0 %v1360
    %1454 = vmatpush.msra.mxu0 %v1357
    %1455 = vmatpush.msra.mxu0 %v1354
    %1456 = vmatpush.msra.mxu0 %v1351
    %1457 = vmatpush.msra.mxu0 %v1348
    %1458 = vmatmul.f32.gmra.mxu0 %v1173
    %v1459 = vpop.f32.mrf.mxu0
    %v1460 = vadd.f32 %v1398, %v1459
    %1461 = vdwg.mxu0
    %s1462 = scalar_lea.vmem [#allocation5], 5
    %v1463 = vld [vmem:[%s1462] ss:$8 sm:$0x7]
    %v1464 = vadd.f32 %v1463, %v1420
    %v1465 = vxor.u32 %v1464, 2147483648
    %v1466 = vmul.f32 %v1465, 1.442695
    %v1467 = vpow.pop %v1466
    %v1468 = vadd.f32 %v1467, 1.0
    %v1469 = vrcp.pop %v1468
    %v1470 = vmul.f32 %v1468, %v1469
    %v1471 = vsub.f32 1.0, %v1470
    %v1472 = vmul.f32 %v1469, %v1471
    %v1473 = vadd.f32 %v1469, %v1472
    %vm1474 = vweird.f32 %v1468
    %vm1475 = vweird.f32 %v1469
    %vm1476 = vmor %vm1474, %vm1475
    %v1477 = vsel %vm1476, %v1469, %v1473
    %v1478 = vand.u32 2147483647, %v1468
    %vm1479 = vcmp.eq.f32.partialorder %v1478, 8.507059e+37
    %v1480 = vand.u32 %v1468, 2147483648
    %v1481 = vor.u32 1.1754944e-38, %v1480
    %v1482 = vsel %vm1479, %v1481, %v1477
    %v1483 = vmul.f32 1.0, %v1482
    %v1485 = vrot.slane %v1463, 1
    %v1487 = vadd.f32 %v1485, %v1440
    %v1488 = vxor.u32 %v1487, 2147483648
    %v1489 = vmul.f32 %v1488, 1.442695
    %v1490 = vpow.pop %v1489
    %v1491 = vadd.f32 %v1490, 1.0
    %v1492 = vrcp.pop %v1491
    %v1493 = vmul.f32 %v1491, %v1492
    %v1494 = vsub.f32 1.0, %v1493
    %v1495 = vmul.f32 %v1492, %v1494
    %v1496 = vadd.f32 %v1492, %v1495
    %vm1497 = vweird.f32 %v1491
    %vm1498 = vweird.f32 %v1492
    %vm1499 = vmor %vm1497, %vm1498
    %v1500 = vsel %vm1499, %v1492, %v1496
    %v1501 = vand.u32 2147483647, %v1491
    %vm1502 = vcmp.eq.f32.partialorder %v1501, 8.507059e+37
    %v1503 = vand.u32 %v1491, 2147483648
    %v1504 = vor.u32 1.1754944e-38, %v1503
    %v1505 = vsel %vm1502, %v1504, %v1500
    %v1506 = vmul.f32 1.0, %v1505
    %v1507 = vmul.f32 %v1483, %v1460
    %v1508 = vrot.slane %v1463, 2
    %v1510 = vadd.f32 %v1508, %v1507
    %v1511 = vtanh.pop %v1510
    %v1512 = vsub.f32 1.0, %v1506
    %v1513 = vmul.f32 %v1512, %v1511
    %v1514 = vmul.f32 %v1506, %v1173
    %v1515 = vadd.f32 %v1513, %v1514
    %1516 = vst [vmem:[#allocation3 + $0x5] sm:$0x1] %v1515
    %v1517 = vld [vmem:[#allocation15] sm:$0xff]
    %v1518 = vld [vmem:[#allocation15 + $0x8] sm:$0xff]
    %v1519 = vld [vmem:[#allocation15 + $0x10] sm:$0xff]
    %v1520 = vld [vmem:[#allocation15 + $0x18] sm:$0xff]
    %v1521 = vld [vmem:[#allocation15 + $0x20] sm:$0xff]
    %v1522 = vld [vmem:[#allocation15 + $0x28] sm:$0xff]
    %v1523 = vld [vmem:[#allocation15 + $0x30] sm:$0xff]
    %v1524 = vld [vmem:[#allocation15 + $0x38] sm:$0xff]
    %v1525 = vld [vmem:[#allocation15 + $0x40] sm:$0xff]
    %v1526 = vld [vmem:[#allocation15 + $0x48] sm:$0xff]
    %v1527 = vld [vmem:[#allocation15 + $0x50] sm:$0xff]
    %v1528 = vld [vmem:[#allocation15 + $0x58] sm:$0xff]
    %v1529 = vld [vmem:[#allocation15 + $0x60] sm:$0xff]
    %v1530 = vld [vmem:[#allocation15 + $0x68] sm:$0xff]
    %v1531 = vld [vmem:[#allocation15 + $0x70] sm:$0xff]
    %v1532 = vld [vmem:[#allocation15 + $0x78] sm:$0xff]
    %v1533 = vld [vmem:[#allocation15 + $0x80] sm:$0xff]
    %v1534 = vld [vmem:[#allocation15 + $0x88] sm:$0xff]
    %v1535 = vld [vmem:[#allocation15 + $0x90] sm:$0xff]
    %v1536 = vld [vmem:[#allocation15 + $0x98] sm:$0xff]
    %v1537 = vld [vmem:[#allocation15 + $0xa0] sm:$0xff]
    %v1538 = vld [vmem:[#allocation15 + $0xa8] sm:$0xff]
    %v1539 = vld [vmem:[#allocation15 + $0xb0] sm:$0xff]
    %v1540 = vld [vmem:[#allocation15 + $0xb8] sm:$0xff]
    %v1541 = vld [vmem:[#allocation15 + $0xc0] sm:$0xff]
    %v1542 = vld [vmem:[#allocation15 + $0xc8] sm:$0xff]
    %v1543 = vld [vmem:[#allocation15 + $0xd0] sm:$0xff]
    %v1544 = vld [vmem:[#allocation15 + $0xd8] sm:$0xff]
    %v1545 = vld [vmem:[#allocation15 + $0xe0] sm:$0xff]
    %v1546 = vld [vmem:[#allocation15 + $0xe8] sm:$0xff]
    %v1547 = vld [vmem:[#allocation15 + $0xf0] sm:$0xff]
    %v1548 = vld [vmem:[#allocation15 + $0xf8] sm:$0xff]
    %v1549 = vld [vmem:[#allocation15 + $0x100] sm:$0xff]
    %v1550 = vld [vmem:[#allocation15 + $0x108] sm:$0xff]
    %v1551 = vld [vmem:[#allocation15 + $0x110] sm:$0xff]
    %v1552 = vld [vmem:[#allocation15 + $0x118] sm:$0xff]
    %v1553 = vld [vmem:[#allocation15 + $0x120] sm:$0xff]
    %v1554 = vld [vmem:[#allocation15 + $0x128] sm:$0xff]
    %v1555 = vld [vmem:[#allocation15 + $0x130] sm:$0xff]
    %v1556 = vld [vmem:[#allocation15 + $0x138] sm:$0xff]
    %v1557 = vld [vmem:[#allocation15 + $0x140] sm:$0xff]
    %v1558 = vld [vmem:[#allocation15 + $0x148] sm:$0xff]
    %v1559 = vld [vmem:[#allocation15 + $0x150] sm:$0xff]
    %v1560 = vld [vmem:[#allocation15 + $0x158] sm:$0xff]
    %v1561 = vld [vmem:[#allocation15 + $0x160] sm:$0xff]
    %v1562 = vld [vmem:[#allocation15 + $0x168] sm:$0xff]
    %v1563 = vld [vmem:[#allocation15 + $0x170] sm:$0xff]
    %v1564 = vld [vmem:[#allocation15 + $0x178] sm:$0xff]
    %v1565 = vld [vmem:[#allocation17] sm:$0x7]
    %v1567 = vperm.slane %v1565, 0
    %v1568 = vperm.slane %v1565, 1
    %v1569 = vperm.slane %v1565, 2
    %1573 = vmatpush.msra.mxu0 %v1562
    %1574 = vmatpush.msra.mxu0 %v1559
    %1575 = vmatpush.msra.mxu0 %v1556
    %1576 = vmatpush.msra.mxu0 %v1553
    %1577 = vmatpush.msra.mxu0 %v1550
    %1578 = vmatpush.msra.mxu0 %v1547
    %1579 = vmatpush.msra.mxu0 %v1544
    %1580 = vmatpush.msra.mxu0 %v1541
    %1581 = vmatpush.msra.mxu0 %v1538
    %1582 = vmatpush.msra.mxu0 %v1535
    %1583 = vmatpush.msra.mxu0 %v1532
    %1584 = vmatpush.msra.mxu0 %v1529
    %1585 = vmatpush.msra.mxu0 %v1526
    %1586 = vmatpush.msra.mxu0 %v1523
    %1587 = vmatpush.msra.mxu0 %v1520
    %1588 = vmatpush.msra.mxu0 %v1517
    %1589 = vmatmul.f32.gmra.mxu0 %v1344
    %v1590 = vpop.f32.mrf.mxu0
    %v1591 = vadd.f32 %v1567, %v1590
    %1592 = vdwg.mxu0
    %1593 = vmatpush.msra.mxu0 %v1563
    %1594 = vmatpush.msra.mxu0 %v1560
    %1595 = vmatpush.msra.mxu0 %v1557
    %1596 = vmatpush.msra.mxu0 %v1554
    %1597 = vmatpush.msra.mxu0 %v1551
    %1598 = vmatpush.msra.mxu0 %v1548
    %1599 = vmatpush.msra.mxu0 %v1545
    %1600 = vmatpush.msra.mxu0 %v1542
    %1601 = vmatpush.msra.mxu0 %v1539
    %1602 = vmatpush.msra.mxu0 %v1536
    %1603 = vmatpush.msra.mxu0 %v1533
    %1604 = vmatpush.msra.mxu0 %v1530
    %1605 = vmatpush.msra.mxu0 %v1527
    %1606 = vmatpush.msra.mxu0 %v1524
    %1607 = vmatpush.msra.mxu0 %v1521
    %1608 = vmatpush.msra.mxu0 %v1518
    %1609 = vmatmul.f32.gmra.mxu0 %v1344
    %v1610 = vpop.f32.mrf.mxu0
    %v1611 = vadd.f32 %v1568, %v1610
    %1612 = vdwg.mxu0
    %1613 = vmatpush.msra.mxu0 %v1564
    %1614 = vmatpush.msra.mxu0 %v1561
    %1615 = vmatpush.msra.mxu0 %v1558
    %1616 = vmatpush.msra.mxu0 %v1555
    %1617 = vmatpush.msra.mxu0 %v1552
    %1618 = vmatpush.msra.mxu0 %v1549
    %1619 = vmatpush.msra.mxu0 %v1546
    %1620 = vmatpush.msra.mxu0 %v1543
    %1621 = vmatpush.msra.mxu0 %v1540
    %1622 = vmatpush.msra.mxu0 %v1537
    %1623 = vmatpush.msra.mxu0 %v1534
    %1624 = vmatpush.msra.mxu0 %v1531
    %1625 = vmatpush.msra.mxu0 %v1528
    %1626 = vmatpush.msra.mxu0 %v1525
    %1627 = vmatpush.msra.mxu0 %v1522
    %1628 = vmatpush.msra.mxu0 %v1519
    %1629 = vmatmul.f32.gmra.mxu0 %v1344
    %v1630 = vpop.f32.mrf.mxu0
    %v1631 = vadd.f32 %v1569, %v1630
    %1632 = vdwg.mxu0
    %s1633 = scalar_lea.vmem [#allocation4], 3
    %v1634 = vld [vmem:[%s1633] ss:$8 sm:$0x7]
    %v1635 = vadd.f32 %v1634, %v1591
    %v1636 = vxor.u32 %v1635, 2147483648
    %v1637 = vmul.f32 %v1636, 1.442695
    %v1638 = vpow.pop %v1637
    %v1639 = vadd.f32 %v1638, 1.0
    %v1640 = vrcp.pop %v1639
    %v1641 = vmul.f32 %v1639, %v1640
    %v1642 = vsub.f32 1.0, %v1641
    %v1643 = vmul.f32 %v1640, %v1642
    %v1644 = vadd.f32 %v1640, %v1643
    %vm1645 = vweird.f32 %v1639
    %vm1646 = vweird.f32 %v1640
    %vm1647 = vmor %vm1645, %vm1646
    %v1648 = vsel %vm1647, %v1640, %v1644
    %v1649 = vand.u32 2147483647, %v1639
    %vm1650 = vcmp.eq.f32.partialorder %v1649, 8.507059e+37
    %v1651 = vand.u32 %v1639, 2147483648
    %v1652 = vor.u32 1.1754944e-38, %v1651
    %v1653 = vsel %vm1650, %v1652, %v1648
    %v1654 = vmul.f32 1.0, %v1653
    %v1656 = vrot.slane %v1634, 1
    %v1658 = vadd.f32 %v1656, %v1611
    %v1659 = vxor.u32 %v1658, 2147483648
    %v1660 = vmul.f32 %v1659, 1.442695
    %v1661 = vpow.pop %v1660
    %v1662 = vadd.f32 %v1661, 1.0
    %v1663 = vrcp.pop %v1662
    %v1664 = vmul.f32 %v1662, %v1663
    %v1665 = vsub.f32 1.0, %v1664
    %v1666 = vmul.f32 %v1663, %v1665
    %v1667 = vadd.f32 %v1663, %v1666
    %vm1668 = vweird.f32 %v1662
    %vm1669 = vweird.f32 %v1663
    %vm1670 = vmor %vm1668, %vm1669
    %v1671 = vsel %vm1670, %v1663, %v1667
    %v1672 = vand.u32 2147483647, %v1662
    %vm1673 = vcmp.eq.f32.partialorder %v1672, 8.507059e+37
    %v1674 = vand.u32 %v1662, 2147483648
    %v1675 = vor.u32 1.1754944e-38, %v1674
    %v1676 = vsel %vm1673, %v1675, %v1671
    %v1677 = vmul.f32 1.0, %v1676
    %v1678 = vmul.f32 %v1654, %v1631
    %v1679 = vrot.slane %v1634, 2
    %v1681 = vadd.f32 %v1679, %v1678
    %v1682 = vtanh.pop %v1681
    %v1683 = vsub.f32 1.0, %v1677
    %v1684 = vmul.f32 %v1683, %v1682
    %v1685 = vmul.f32 %v1677, %v1344
    %v1686 = vadd.f32 %v1684, %v1685
    %1687 = vst [vmem:[#allocation2 + $0x3] sm:$0x1] %v1686
    %v1688 = vld [vmem:[#allocation20] sm:$0xff]
    %v1689 = vld [vmem:[#allocation20 + $0x8] sm:$0xff]
    %v1690 = vld [vmem:[#allocation20 + $0x10] sm:$0xff]
    %v1691 = vld [vmem:[#allocation20 + $0x18] sm:$0xff]
    %v1692 = vld [vmem:[#allocation20 + $0x20] sm:$0xff]
    %v1693 = vld [vmem:[#allocation20 + $0x28] sm:$0xff]
    %v1694 = vld [vmem:[#allocation20 + $0x30] sm:$0xff]
    %v1695 = vld [vmem:[#allocation20 + $0x38] sm:$0xff]
    %v1696 = vld [vmem:[#allocation20 + $0x40] sm:$0xff]
    %v1697 = vld [vmem:[#allocation20 + $0x48] sm:$0xff]
    %v1698 = vld [vmem:[#allocation20 + $0x50] sm:$0xff]
    %v1699 = vld [vmem:[#allocation20 + $0x58] sm:$0xff]
    %v1700 = vld [vmem:[#allocation20 + $0x60] sm:$0xff]
    %v1701 = vld [vmem:[#allocation20 + $0x68] sm:$0xff]
    %v1702 = vld [vmem:[#allocation20 + $0x70] sm:$0xff]
    %v1703 = vld [vmem:[#allocation20 + $0x78] sm:$0xff]
    %v1704 = vld [vmem:[#allocation20 + $0x80] sm:$0xff]
    %v1705 = vld [vmem:[#allocation20 + $0x88] sm:$0xff]
    %v1706 = vld [vmem:[#allocation20 + $0x90] sm:$0xff]
    %v1707 = vld [vmem:[#allocation20 + $0x98] sm:$0xff]
    %v1708 = vld [vmem:[#allocation20 + $0xa0] sm:$0xff]
    %v1709 = vld [vmem:[#allocation20 + $0xa8] sm:$0xff]
    %v1710 = vld [vmem:[#allocation20 + $0xb0] sm:$0xff]
    %v1711 = vld [vmem:[#allocation20 + $0xb8] sm:$0xff]
    %v1712 = vld [vmem:[#allocation20 + $0xc0] sm:$0xff]
    %v1713 = vld [vmem:[#allocation20 + $0xc8] sm:$0xff]
    %v1714 = vld [vmem:[#allocation20 + $0xd0] sm:$0xff]
    %v1715 = vld [vmem:[#allocation20 + $0xd8] sm:$0xff]
    %v1716 = vld [vmem:[#allocation20 + $0xe0] sm:$0xff]
    %v1717 = vld [vmem:[#allocation20 + $0xe8] sm:$0xff]
    %v1718 = vld [vmem:[#allocation20 + $0xf0] sm:$0xff]
    %v1719 = vld [vmem:[#allocation20 + $0xf8] sm:$0xff]
    %v1720 = vld [vmem:[#allocation20 + $0x100] sm:$0xff]
    %v1721 = vld [vmem:[#allocation20 + $0x108] sm:$0xff]
    %v1722 = vld [vmem:[#allocation20 + $0x110] sm:$0xff]
    %v1723 = vld [vmem:[#allocation20 + $0x118] sm:$0xff]
    %v1724 = vld [vmem:[#allocation20 + $0x120] sm:$0xff]
    %v1725 = vld [vmem:[#allocation20 + $0x128] sm:$0xff]
    %v1726 = vld [vmem:[#allocation20 + $0x130] sm:$0xff]
    %v1727 = vld [vmem:[#allocation20 + $0x138] sm:$0xff]
    %v1728 = vld [vmem:[#allocation20 + $0x140] sm:$0xff]
    %v1729 = vld [vmem:[#allocation20 + $0x148] sm:$0xff]
    %v1730 = vld [vmem:[#allocation20 + $0x150] sm:$0xff]
    %v1731 = vld [vmem:[#allocation20 + $0x158] sm:$0xff]
    %v1732 = vld [vmem:[#allocation20 + $0x160] sm:$0xff]
    %v1733 = vld [vmem:[#allocation20 + $0x168] sm:$0xff]
    %v1734 = vld [vmem:[#allocation20 + $0x170] sm:$0xff]
    %v1735 = vld [vmem:[#allocation20 + $0x178] sm:$0xff]
    %v1736 = vld [vmem:[#allocation21] sm:$0x7]
    %v1738 = vperm.slane %v1736, 0
    %v1739 = vperm.slane %v1736, 1
    %v1740 = vperm.slane %v1736, 2
    %1744 = vmatpush.msra.mxu0 %v1733
    %1745 = vmatpush.msra.mxu0 %v1730
    %1746 = vmatpush.msra.mxu0 %v1727
    %1747 = vmatpush.msra.mxu0 %v1724
    %1748 = vmatpush.msra.mxu0 %v1721
    %1749 = vmatpush.msra.mxu0 %v1718
    %1750 = vmatpush.msra.mxu0 %v1715
    %1751 = vmatpush.msra.mxu0 %v1712
    %1752 = vmatpush.msra.mxu0 %v1709
    %1753 = vmatpush.msra.mxu0 %v1706
    %1754 = vmatpush.msra.mxu0 %v1703
    %1755 = vmatpush.msra.mxu0 %v1700
    %1756 = vmatpush.msra.mxu0 %v1697
    %1757 = vmatpush.msra.mxu0 %v1694
    %1758 = vmatpush.msra.mxu0 %v1691
    %1759 = vmatpush.msra.mxu0 %v1688
    %1760 = vmatmul.f32.gmra.mxu0 %v1515
    %v1761 = vpop.f32.mrf.mxu0
    %v1762 = vadd.f32 %v1738, %v1761
    %1763 = vdwg.mxu0
    %1764 = vmatpush.msra.mxu0 %v1734
    %1765 = vmatpush.msra.mxu0 %v1731
    %1766 = vmatpush.msra.mxu0 %v1728
    %1767 = vmatpush.msra.mxu0 %v1725
    %1768 = vmatpush.msra.mxu0 %v1722
    %1769 = vmatpush.msra.mxu0 %v1719
    %1770 = vmatpush.msra.mxu0 %v1716
    %1771 = vmatpush.msra.mxu0 %v1713
    %1772 = vmatpush.msra.mxu0 %v1710
    %1773 = vmatpush.msra.mxu0 %v1707
    %1774 = vmatpush.msra.mxu0 %v1704
    %1775 = vmatpush.msra.mxu0 %v1701
    %1776 = vmatpush.msra.mxu0 %v1698
    %1777 = vmatpush.msra.mxu0 %v1695
    %1778 = vmatpush.msra.mxu0 %v1692
    %1779 = vmatpush.msra.mxu0 %v1689
    %1780 = vmatmul.f32.gmra.mxu0 %v1515
    %v1781 = vpop.f32.mrf.mxu0
    %v1782 = vadd.f32 %v1739, %v1781
    %1783 = vdwg.mxu0
    %1784 = vmatpush.msra.mxu0 %v1735
    %1785 = vmatpush.msra.mxu0 %v1732
    %1786 = vmatpush.msra.mxu0 %v1729
    %1787 = vmatpush.msra.mxu0 %v1726
    %1788 = vmatpush.msra.mxu0 %v1723
    %1789 = vmatpush.msra.mxu0 %v1720
    %1790 = vmatpush.msra.mxu0 %v1717
    %1791 = vmatpush.msra.mxu0 %v1714
    %1792 = vmatpush.msra.mxu0 %v1711
    %1793 = vmatpush.msra.mxu0 %v1708
    %1794 = vmatpush.msra.mxu0 %v1705
    %1795 = vmatpush.msra.mxu0 %v1702
    %1796 = vmatpush.msra.mxu0 %v1699
    %1797 = vmatpush.msra.mxu0 %v1696
    %1798 = vmatpush.msra.mxu0 %v1693
    %1799 = vmatpush.msra.mxu0 %v1690
    %1800 = vmatmul.f32.gmra.mxu0 %v1515
    %v1801 = vpop.f32.mrf.mxu0
    %v1802 = vadd.f32 %v1740, %v1801
    %1803 = vdwg.mxu0
    %s1804 = scalar_lea.vmem [#allocation5], 4
    %v1805 = vld [vmem:[%s1804] ss:$8 sm:$0x7]
    %v1806 = vadd.f32 %v1805, %v1762
    %v1807 = vxor.u32 %v1806, 2147483648
    %v1808 = vmul.f32 %v1807, 1.442695
    %v1809 = vpow.pop %v1808
    %v1810 = vadd.f32 %v1809, 1.0
    %v1811 = vrcp.pop %v1810
    %v1812 = vmul.f32 %v1810, %v1811
    %v1813 = vsub.f32 1.0, %v1812
    %v1814 = vmul.f32 %v1811, %v1813
    %v1815 = vadd.f32 %v1811, %v1814
    %vm1816 = vweird.f32 %v1810
    %vm1817 = vweird.f32 %v1811
    %vm1818 = vmor %vm1816, %vm1817
    %v1819 = vsel %vm1818, %v1811, %v1815
    %v1820 = vand.u32 2147483647, %v1810
    %vm1821 = vcmp.eq.f32.partialorder %v1820, 8.507059e+37
    %v1822 = vand.u32 %v1810, 2147483648
    %v1823 = vor.u32 1.1754944e-38, %v1822
    %v1824 = vsel %vm1821, %v1823, %v1819
    %v1825 = vmul.f32 1.0, %v1824
    %v1827 = vrot.slane %v1805, 1
    %v1829 = vadd.f32 %v1827, %v1782
    %v1830 = vxor.u32 %v1829, 2147483648
    %v1831 = vmul.f32 %v1830, 1.442695
    %v1832 = vpow.pop %v1831
    %v1833 = vadd.f32 %v1832, 1.0
    %v1834 = vrcp.pop %v1833
    %v1835 = vmul.f32 %v1833, %v1834
    %v1836 = vsub.f32 1.0, %v1835
    %v1837 = vmul.f32 %v1834, %v1836
    %v1838 = vadd.f32 %v1834, %v1837
    %vm1839 = vweird.f32 %v1833
    %vm1840 = vweird.f32 %v1834
    %vm1841 = vmor %vm1839, %vm1840
    %v1842 = vsel %vm1841, %v1834, %v1838
    %v1843 = vand.u32 2147483647, %v1833
    %vm1844 = vcmp.eq.f32.partialorder %v1843, 8.507059e+37
    %v1845 = vand.u32 %v1833, 2147483648
    %v1846 = vor.u32 1.1754944e-38, %v1845
    %v1847 = vsel %vm1844, %v1846, %v1842
    %v1848 = vmul.f32 1.0, %v1847
    %v1849 = vmul.f32 %v1825, %v1802
    %v1850 = vrot.slane %v1805, 2
    %v1852 = vadd.f32 %v1850, %v1849
    %v1853 = vtanh.pop %v1852
    %v1854 = vsub.f32 1.0, %v1848
    %v1855 = vmul.f32 %v1854, %v1853
    %v1856 = vmul.f32 %v1848, %v1515
    %v1857 = vadd.f32 %v1855, %v1856
    %1858 = vst [vmem:[#allocation3 + $0x4] sm:$0x1] %v1857
    %v1859 = vld [vmem:[#allocation15] sm:$0xff]
    %v1860 = vld [vmem:[#allocation15 + $0x8] sm:$0xff]
    %v1861 = vld [vmem:[#allocation15 + $0x10] sm:$0xff]
    %v1862 = vld [vmem:[#allocation15 + $0x18] sm:$0xff]
    %v1863 = vld [vmem:[#allocation15 + $0x20] sm:$0xff]
    %v1864 = vld [vmem:[#allocation15 + $0x28] sm:$0xff]
    %v1865 = vld [vmem:[#allocation15 + $0x30] sm:$0xff]
    %v1866 = vld [vmem:[#allocation15 + $0x38] sm:$0xff]
    %v1867 = vld [vmem:[#allocation15 + $0x40] sm:$0xff]
    %v1868 = vld [vmem:[#allocation15 + $0x48] sm:$0xff]
    %v1869 = vld [vmem:[#allocation15 + $0x50] sm:$0xff]
    %v1870 = vld [vmem:[#allocation15 + $0x58] sm:$0xff]
    %v1871 = vld [vmem:[#allocation15 + $0x60] sm:$0xff]
    %v1872 = vld [vmem:[#allocation15 + $0x68] sm:$0xff]
    %v1873 = vld [vmem:[#allocation15 + $0x70] sm:$0xff]
    %v1874 = vld [vmem:[#allocation15 + $0x78] sm:$0xff]
    %v1875 = vld [vmem:[#allocation15 + $0x80] sm:$0xff]
    %v1876 = vld [vmem:[#allocation15 + $0x88] sm:$0xff]
    %v1877 = vld [vmem:[#allocation15 + $0x90] sm:$0xff]
    %v1878 = vld [vmem:[#allocation15 + $0x98] sm:$0xff]
    %v1879 = vld [vmem:[#allocation15 + $0xa0] sm:$0xff]
    %v1880 = vld [vmem:[#allocation15 + $0xa8] sm:$0xff]
    %v1881 = vld [vmem:[#allocation15 + $0xb0] sm:$0xff]
    %v1882 = vld [vmem:[#allocation15 + $0xb8] sm:$0xff]
    %v1883 = vld [vmem:[#allocation15 + $0xc0] sm:$0xff]
    %v1884 = vld [vmem:[#allocation15 + $0xc8] sm:$0xff]
    %v1885 = vld [vmem:[#allocation15 + $0xd0] sm:$0xff]
    %v1886 = vld [vmem:[#allocation15 + $0xd8] sm:$0xff]
    %v1887 = vld [vmem:[#allocation15 + $0xe0] sm:$0xff]
    %v1888 = vld [vmem:[#allocation15 + $0xe8] sm:$0xff]
    %v1889 = vld [vmem:[#allocation15 + $0xf0] sm:$0xff]
    %v1890 = vld [vmem:[#allocation15 + $0xf8] sm:$0xff]
    %v1891 = vld [vmem:[#allocation15 + $0x100] sm:$0xff]
    %v1892 = vld [vmem:[#allocation15 + $0x108] sm:$0xff]
    %v1893 = vld [vmem:[#allocation15 + $0x110] sm:$0xff]
    %v1894 = vld [vmem:[#allocation15 + $0x118] sm:$0xff]
    %v1895 = vld [vmem:[#allocation15 + $0x120] sm:$0xff]
    %v1896 = vld [vmem:[#allocation15 + $0x128] sm:$0xff]
    %v1897 = vld [vmem:[#allocation15 + $0x130] sm:$0xff]
    %v1898 = vld [vmem:[#allocation15 + $0x138] sm:$0xff]
    %v1899 = vld [vmem:[#allocation15 + $0x140] sm:$0xff]
    %v1900 = vld [vmem:[#allocation15 + $0x148] sm:$0xff]
    %v1901 = vld [vmem:[#allocation15 + $0x150] sm:$0xff]
    %v1902 = vld [vmem:[#allocation15 + $0x158] sm:$0xff]
    %v1903 = vld [vmem:[#allocation15 + $0x160] sm:$0xff]
    %v1904 = vld [vmem:[#allocation15 + $0x168] sm:$0xff]
    %v1905 = vld [vmem:[#allocation15 + $0x170] sm:$0xff]
    %v1906 = vld [vmem:[#allocation15 + $0x178] sm:$0xff]
    %v1907 = vld [vmem:[#allocation17] sm:$0x7]
    %v1909 = vperm.slane %v1907, 0
    %v1910 = vperm.slane %v1907, 1
    %v1911 = vperm.slane %v1907, 2
    %1915 = vmatpush.msra.mxu0 %v1904
    %1916 = vmatpush.msra.mxu0 %v1901
    %1917 = vmatpush.msra.mxu0 %v1898
    %1918 = vmatpush.msra.mxu0 %v1895
    %1919 = vmatpush.msra.mxu0 %v1892
    %1920 = vmatpush.msra.mxu0 %v1889
    %1921 = vmatpush.msra.mxu0 %v1886
    %1922 = vmatpush.msra.mxu0 %v1883
    %1923 = vmatpush.msra.mxu0 %v1880
    %1924 = vmatpush.msra.mxu0 %v1877
    %1925 = vmatpush.msra.mxu0 %v1874
    %1926 = vmatpush.msra.mxu0 %v1871
    %1927 = vmatpush.msra.mxu0 %v1868
    %1928 = vmatpush.msra.mxu0 %v1865
    %1929 = vmatpush.msra.mxu0 %v1862
    %1930 = vmatpush.msra.mxu0 %v1859
    %1931 = vmatmul.f32.gmra.mxu0 %v1686
    %v1932 = vpop.f32.mrf.mxu0
    %v1933 = vadd.f32 %v1909, %v1932
    %1934 = vdwg.mxu0
    %1935 = vmatpush.msra.mxu0 %v1905
    %1936 = vmatpush.msra.mxu0 %v1902
    %1937 = vmatpush.msra.mxu0 %v1899
    %1938 = vmatpush.msra.mxu0 %v1896
    %1939 = vmatpush.msra.mxu0 %v1893
    %1940 = vmatpush.msra.mxu0 %v1890
    %1941 = vmatpush.msra.mxu0 %v1887
    %1942 = vmatpush.msra.mxu0 %v1884
    %1943 = vmatpush.msra.mxu0 %v1881
    %1944 = vmatpush.msra.mxu0 %v1878
    %1945 = vmatpush.msra.mxu0 %v1875
    %1946 = vmatpush.msra.mxu0 %v1872
    %1947 = vmatpush.msra.mxu0 %v1869
    %1948 = vmatpush.msra.mxu0 %v1866
    %1949 = vmatpush.msra.mxu0 %v1863
    %1950 = vmatpush.msra.mxu0 %v1860
    %1951 = vmatmul.f32.gmra.mxu0 %v1686
    %v1952 = vpop.f32.mrf.mxu0
    %v1953 = vadd.f32 %v1910, %v1952
    %1954 = vdwg.mxu0
    %1955 = vmatpush.msra.mxu0 %v1906
    %1956 = vmatpush.msra.mxu0 %v1903
    %1957 = vmatpush.msra.mxu0 %v1900
    %1958 = vmatpush.msra.mxu0 %v1897
    %1959 = vmatpush.msra.mxu0 %v1894
    %1960 = vmatpush.msra.mxu0 %v1891
    %1961 = vmatpush.msra.mxu0 %v1888
    %1962 = vmatpush.msra.mxu0 %v1885
    %1963 = vmatpush.msra.mxu0 %v1882
    %1964 = vmatpush.msra.mxu0 %v1879
    %1965 = vmatpush.msra.mxu0 %v1876
    %1966 = vmatpush.msra.mxu0 %v1873
    %1967 = vmatpush.msra.mxu0 %v1870
    %1968 = vmatpush.msra.mxu0 %v1867
    %1969 = vmatpush.msra.mxu0 %v1864
    %1970 = vmatpush.msra.mxu0 %v1861
    %1971 = vmatmul.f32.gmra.mxu0 %v1686
    %v1972 = vpop.f32.mrf.mxu0
    %v1973 = vadd.f32 %v1911, %v1972
    %1974 = vdwg.mxu0
    %s1975 = scalar_lea.vmem [#allocation4], 4
    %v1976 = vld [vmem:[%s1975] ss:$8 sm:$0x7]
    %v1977 = vadd.f32 %v1976, %v1933
    %v1978 = vxor.u32 %v1977, 2147483648
    %v1979 = vmul.f32 %v1978, 1.442695
    %v1980 = vpow.pop %v1979
    %v1981 = vadd.f32 %v1980, 1.0
    %v1982 = vrcp.pop %v1981
    %v1983 = vmul.f32 %v1981, %v1982
    %v1984 = vsub.f32 1.0, %v1983
    %v1985 = vmul.f32 %v1982, %v1984
    %v1986 = vadd.f32 %v1982, %v1985
    %vm1987 = vweird.f32 %v1981
    %vm1988 = vweird.f32 %v1982
    %vm1989 = vmor %vm1987, %vm1988
    %v1990 = vsel %vm1989, %v1982, %v1986
    %v1991 = vand.u32 2147483647, %v1981
    %vm1992 = vcmp.eq.f32.partialorder %v1991, 8.507059e+37
    %v1993 = vand.u32 %v1981, 2147483648
    %v1994 = vor.u32 1.1754944e-38, %v1993
    %v1995 = vsel %vm1992, %v1994, %v1990
    %v1996 = vmul.f32 1.0, %v1995
    %v1998 = vrot.slane %v1976, 1
    %v2000 = vadd.f32 %v1998, %v1953
    %v2001 = vxor.u32 %v2000, 2147483648
    %v2002 = vmul.f32 %v2001, 1.442695
    %v2003 = vpow.pop %v2002
    %v2004 = vadd.f32 %v2003, 1.0
    %v2005 = vrcp.pop %v2004
    %v2006 = vmul.f32 %v2004, %v2005
    %v2007 = vsub.f32 1.0, %v2006
    %v2008 = vmul.f32 %v2005, %v2007
    %v2009 = vadd.f32 %v2005, %v2008
    %vm2010 = vweird.f32 %v2004
    %vm2011 = vweird.f32 %v2005
    %vm2012 = vmor %vm2010, %vm2011
    %v2013 = vsel %vm2012, %v2005, %v2009
    %v2014 = vand.u32 2147483647, %v2004
    %vm2015 = vcmp.eq.f32.partialorder %v2014, 8.507059e+37
    %v2016 = vand.u32 %v2004, 2147483648
    %v2017 = vor.u32 1.1754944e-38, %v2016
    %v2018 = vsel %vm2015, %v2017, %v2013
    %v2019 = vmul.f32 1.0, %v2018
    %v2020 = vmul.f32 %v1996, %v1973
    %v2021 = vrot.slane %v1976, 2
    %v2023 = vadd.f32 %v2021, %v2020
    %v2024 = vtanh.pop %v2023
    %v2025 = vsub.f32 1.0, %v2019
    %v2026 = vmul.f32 %v2025, %v2024
    %v2027 = vmul.f32 %v2019, %v1686
    %v2028 = vadd.f32 %v2026, %v2027
    %2029 = vst [vmem:[#allocation2 + $0x4] sm:$0x1] %v2028
    %v2030 = vld [vmem:[#allocation20] sm:$0xff]
    %v2031 = vld [vmem:[#allocation20 + $0x8] sm:$0xff]
    %v2032 = vld [vmem:[#allocation20 + $0x10] sm:$0xff]
    %v2033 = vld [vmem:[#allocation20 + $0x18] sm:$0xff]
    %v2034 = vld [vmem:[#allocation20 + $0x20] sm:$0xff]
    %v2035 = vld [vmem:[#allocation20 + $0x28] sm:$0xff]
    %v2036 = vld [vmem:[#allocation20 + $0x30] sm:$0xff]
    %v2037 = vld [vmem:[#allocation20 + $0x38] sm:$0xff]
    %v2038 = vld [vmem:[#allocation20 + $0x40] sm:$0xff]
    %v2039 = vld [vmem:[#allocation20 + $0x48] sm:$0xff]
    %v2040 = vld [vmem:[#allocation20 + $0x50] sm:$0xff]
    %v2041 = vld [vmem:[#allocation20 + $0x58] sm:$0xff]
    %v2042 = vld [vmem:[#allocation20 + $0x60] sm:$0xff]
    %v2043 = vld [vmem:[#allocation20 + $0x68] sm:$0xff]
    %v2044 = vld [vmem:[#allocation20 + $0x70] sm:$0xff]
    %v2045 = vld [vmem:[#allocation20 + $0x78] sm:$0xff]
    %v2046 = vld [vmem:[#allocation20 + $0x80] sm:$0xff]
    %v2047 = vld [vmem:[#allocation20 + $0x88] sm:$0xff]
    %v2048 = vld [vmem:[#allocation20 + $0x90] sm:$0xff]
    %v2049 = vld [vmem:[#allocation20 + $0x98] sm:$0xff]
    %v2050 = vld [vmem:[#allocation20 + $0xa0] sm:$0xff]
    %v2051 = vld [vmem:[#allocation20 + $0xa8] sm:$0xff]
    %v2052 = vld [vmem:[#allocation20 + $0xb0] sm:$0xff]
    %v2053 = vld [vmem:[#allocation20 + $0xb8] sm:$0xff]
    %v2054 = vld [vmem:[#allocation20 + $0xc0] sm:$0xff]
    %v2055 = vld [vmem:[#allocation20 + $0xc8] sm:$0xff]
    %v2056 = vld [vmem:[#allocation20 + $0xd0] sm:$0xff]
    %v2057 = vld [vmem:[#allocation20 + $0xd8] sm:$0xff]
    %v2058 = vld [vmem:[#allocation20 + $0xe0] sm:$0xff]
    %v2059 = vld [vmem:[#allocation20 + $0xe8] sm:$0xff]
    %v2060 = vld [vmem:[#allocation20 + $0xf0] sm:$0xff]
    %v2061 = vld [vmem:[#allocation20 + $0xf8] sm:$0xff]
    %v2062 = vld [vmem:[#allocation20 + $0x100] sm:$0xff]
    %v2063 = vld [vmem:[#allocation20 + $0x108] sm:$0xff]
    %v2064 = vld [vmem:[#allocation20 + $0x110] sm:$0xff]
    %v2065 = vld [vmem:[#allocation20 + $0x118] sm:$0xff]
    %v2066 = vld [vmem:[#allocation20 + $0x120] sm:$0xff]
    %v2067 = vld [vmem:[#allocation20 + $0x128] sm:$0xff]
    %v2068 = vld [vmem:[#allocation20 + $0x130] sm:$0xff]
    %v2069 = vld [vmem:[#allocation20 + $0x138] sm:$0xff]
    %v2070 = vld [vmem:[#allocation20 + $0x140] sm:$0xff]
    %v2071 = vld [vmem:[#allocation20 + $0x148] sm:$0xff]
    %v2072 = vld [vmem:[#allocation20 + $0x150] sm:$0xff]
    %v2073 = vld [vmem:[#allocation20 + $0x158] sm:$0xff]
    %v2074 = vld [vmem:[#allocation20 + $0x160] sm:$0xff]
    %v2075 = vld [vmem:[#allocation20 + $0x168] sm:$0xff]
    %v2076 = vld [vmem:[#allocation20 + $0x170] sm:$0xff]
    %v2077 = vld [vmem:[#allocation20 + $0x178] sm:$0xff]
    %v2078 = vld [vmem:[#allocation21] sm:$0x7]
    %v2080 = vperm.slane %v2078, 0
    %v2081 = vperm.slane %v2078, 1
    %v2082 = vperm.slane %v2078, 2
    %2086 = vmatpush.msra.mxu0 %v2075
    %2087 = vmatpush.msra.mxu0 %v2072
    %2088 = vmatpush.msra.mxu0 %v2069
    %2089 = vmatpush.msra.mxu0 %v2066
    %2090 = vmatpush.msra.mxu0 %v2063
    %2091 = vmatpush.msra.mxu0 %v2060
    %2092 = vmatpush.msra.mxu0 %v2057
    %2093 = vmatpush.msra.mxu0 %v2054
    %2094 = vmatpush.msra.mxu0 %v2051
    %2095 = vmatpush.msra.mxu0 %v2048
    %2096 = vmatpush.msra.mxu0 %v2045
    %2097 = vmatpush.msra.mxu0 %v2042
    %2098 = vmatpush.msra.mxu0 %v2039
    %2099 = vmatpush.msra.mxu0 %v2036
    %2100 = vmatpush.msra.mxu0 %v2033
    %2101 = vmatpush.msra.mxu0 %v2030
    %2102 = vmatmul.f32.gmra.mxu0 %v1857
    %v2103 = vpop.f32.mrf.mxu0
    %v2104 = vadd.f32 %v2080, %v2103
    %2105 = vdwg.mxu0
    %2106 = vmatpush.msra.mxu0 %v2076
    %2107 = vmatpush.msra.mxu0 %v2073
    %2108 = vmatpush.msra.mxu0 %v2070
    %2109 = vmatpush.msra.mxu0 %v2067
    %2110 = vmatpush.msra.mxu0 %v2064
    %2111 = vmatpush.msra.mxu0 %v2061
    %2112 = vmatpush.msra.mxu0 %v2058
    %2113 = vmatpush.msra.mxu0 %v2055
    %2114 = vmatpush.msra.mxu0 %v2052
    %2115 = vmatpush.msra.mxu0 %v2049
    %2116 = vmatpush.msra.mxu0 %v2046
    %2117 = vmatpush.msra.mxu0 %v2043
    %2118 = vmatpush.msra.mxu0 %v2040
    %2119 = vmatpush.msra.mxu0 %v2037
    %2120 = vmatpush.msra.mxu0 %v2034
    %2121 = vmatpush.msra.mxu0 %v2031
    %2122 = vmatmul.f32.gmra.mxu0 %v1857
    %v2123 = vpop.f32.mrf.mxu0
    %v2124 = vadd.f32 %v2081, %v2123
    %2125 = vdwg.mxu0
    %2126 = vmatpush.msra.mxu0 %v2077
    %2127 = vmatpush.msra.mxu0 %v2074
    %2128 = vmatpush.msra.mxu0 %v2071
    %2129 = vmatpush.msra.mxu0 %v2068
    %2130 = vmatpush.msra.mxu0 %v2065
    %2131 = vmatpush.msra.mxu0 %v2062
    %2132 = vmatpush.msra.mxu0 %v2059
    %2133 = vmatpush.msra.mxu0 %v2056
    %2134 = vmatpush.msra.mxu0 %v2053
    %2135 = vmatpush.msra.mxu0 %v2050
    %2136 = vmatpush.msra.mxu0 %v2047
    %2137 = vmatpush.msra.mxu0 %v2044
    %2138 = vmatpush.msra.mxu0 %v2041
    %2139 = vmatpush.msra.mxu0 %v2038
    %2140 = vmatpush.msra.mxu0 %v2035
    %2141 = vmatpush.msra.mxu0 %v2032
    %2142 = vmatmul.f32.gmra.mxu0 %v1857
    %v2143 = vpop.f32.mrf.mxu0
    %v2144 = vadd.f32 %v2082, %v2143
    %2145 = vdwg.mxu0
    %s2146 = scalar_lea.vmem [#allocation5], 3
    %v2147 = vld [vmem:[%s2146] ss:$8 sm:$0x7]
    %v2148 = vadd.f32 %v2147, %v2104
    %v2149 = vxor.u32 %v2148, 2147483648
    %v2150 = vmul.f32 %v2149, 1.442695
    %v2151 = vpow.pop %v2150
    %v2152 = vadd.f32 %v2151, 1.0
    %v2153 = vrcp.pop %v2152
    %v2154 = vmul.f32 %v2152, %v2153
    %v2155 = vsub.f32 1.0, %v2154
    %v2156 = vmul.f32 %v2153, %v2155
    %v2157 = vadd.f32 %v2153, %v2156
    %vm2158 = vweird.f32 %v2152
    %vm2159 = vweird.f32 %v2153
    %vm2160 = vmor %vm2158, %vm2159
    %v2161 = vsel %vm2160, %v2153, %v2157
    %v2162 = vand.u32 2147483647, %v2152
    %vm2163 = vcmp.eq.f32.partialorder %v2162, 8.507059e+37
    %v2164 = vand.u32 %v2152, 2147483648
    %v2165 = vor.u32 1.1754944e-38, %v2164
    %v2166 = vsel %vm2163, %v2165, %v2161
    %v2167 = vmul.f32 1.0, %v2166
    %v2169 = vrot.slane %v2147, 1
    %v2171 = vadd.f32 %v2169, %v2124
    %v2172 = vxor.u32 %v2171, 2147483648
    %v2173 = vmul.f32 %v2172, 1.442695
    %v2174 = vpow.pop %v2173
    %v2175 = vadd.f32 %v2174, 1.0
    %v2176 = vrcp.pop %v2175
    %v2177 = vmul.f32 %v2175, %v2176
    %v2178 = vsub.f32 1.0, %v2177
    %v2179 = vmul.f32 %v2176, %v2178
    %v2180 = vadd.f32 %v2176, %v2179
    %vm2181 = vweird.f32 %v2175
    %vm2182 = vweird.f32 %v2176
    %vm2183 = vmor %vm2181, %vm2182
    %v2184 = vsel %vm2183, %v2176, %v2180
    %v2185 = vand.u32 2147483647, %v2175
    %vm2186 = vcmp.eq.f32.partialorder %v2185, 8.507059e+37
    %v2187 = vand.u32 %v2175, 2147483648
    %v2188 = vor.u32 1.1754944e-38, %v2187
    %v2189 = vsel %vm2186, %v2188, %v2184
    %v2190 = vmul.f32 1.0, %v2189
    %v2191 = vmul.f32 %v2167, %v2144
    %v2192 = vrot.slane %v2147, 2
    %v2194 = vadd.f32 %v2192, %v2191
    %v2195 = vtanh.pop %v2194
    %v2196 = vsub.f32 1.0, %v2190
    %v2197 = vmul.f32 %v2196, %v2195
    %v2198 = vmul.f32 %v2190, %v1857
    %v2199 = vadd.f32 %v2197, %v2198
    %2200 = vst [vmem:[#allocation3 + $0x3] sm:$0x1] %v2199
    %v2201 = vld [vmem:[#allocation15] sm:$0xff]
    %v2202 = vld [vmem:[#allocation15 + $0x8] sm:$0xff]
    %v2203 = vld [vmem:[#allocation15 + $0x10] sm:$0xff]
    %v2204 = vld [vmem:[#allocation15 + $0x18] sm:$0xff]
    %v2205 = vld [vmem:[#allocation15 + $0x20] sm:$0xff]
    %v2206 = vld [vmem:[#allocation15 + $0x28] sm:$0xff]
    %v2207 = vld [vmem:[#allocation15 + $0x30] sm:$0xff]
    %v2208 = vld [vmem:[#allocation15 + $0x38] sm:$0xff]
    %v2209 = vld [vmem:[#allocation15 + $0x40] sm:$0xff]
    %v2210 = vld [vmem:[#allocation15 + $0x48] sm:$0xff]
    %v2211 = vld [vmem:[#allocation15 + $0x50] sm:$0xff]
    %v2212 = vld [vmem:[#allocation15 + $0x58] sm:$0xff]
    %v2213 = vld [vmem:[#allocation15 + $0x60] sm:$0xff]
    %v2214 = vld [vmem:[#allocation15 + $0x68] sm:$0xff]
    %v2215 = vld [vmem:[#allocation15 + $0x70] sm:$0xff]
    %v2216 = vld [vmem:[#allocation15 + $0x78] sm:$0xff]
    %v2217 = vld [vmem:[#allocation15 + $0x80] sm:$0xff]
    %v2218 = vld [vmem:[#allocation15 + $0x88] sm:$0xff]
    %v2219 = vld [vmem:[#allocation15 + $0x90] sm:$0xff]
    %v2220 = vld [vmem:[#allocation15 + $0x98] sm:$0xff]
    %v2221 = vld [vmem:[#allocation15 + $0xa0] sm:$0xff]
    %v2222 = vld [vmem:[#allocation15 + $0xa8] sm:$0xff]
    %v2223 = vld [vmem:[#allocation15 + $0xb0] sm:$0xff]
    %v2224 = vld [vmem:[#allocation15 + $0xb8] sm:$0xff]
    %v2225 = vld [vmem:[#allocation15 + $0xc0] sm:$0xff]
    %v2226 = vld [vmem:[#allocation15 + $0xc8] sm:$0xff]
    %v2227 = vld [vmem:[#allocation15 + $0xd0] sm:$0xff]
    %v2228 = vld [vmem:[#allocation15 + $0xd8] sm:$0xff]
    %v2229 = vld [vmem:[#allocation15 + $0xe0] sm:$0xff]
    %v2230 = vld [vmem:[#allocation15 + $0xe8] sm:$0xff]
    %v2231 = vld [vmem:[#allocation15 + $0xf0] sm:$0xff]
    %v2232 = vld [vmem:[#allocation15 + $0xf8] sm:$0xff]
    %v2233 = vld [vmem:[#allocation15 + $0x100] sm:$0xff]
    %v2234 = vld [vmem:[#allocation15 + $0x108] sm:$0xff]
    %v2235 = vld [vmem:[#allocation15 + $0x110] sm:$0xff]
    %v2236 = vld [vmem:[#allocation15 + $0x118] sm:$0xff]
    %v2237 = vld [vmem:[#allocation15 + $0x120] sm:$0xff]
    %v2238 = vld [vmem:[#allocation15 + $0x128] sm:$0xff]
    %v2239 = vld [vmem:[#allocation15 + $0x130] sm:$0xff]
    %v2240 = vld [vmem:[#allocation15 + $0x138] sm:$0xff]
    %v2241 = vld [vmem:[#allocation15 + $0x140] sm:$0xff]
    %v2242 = vld [vmem:[#allocation15 + $0x148] sm:$0xff]
    %v2243 = vld [vmem:[#allocation15 + $0x150] sm:$0xff]
    %v2244 = vld [vmem:[#allocation15 + $0x158] sm:$0xff]
    %v2245 = vld [vmem:[#allocation15 + $0x160] sm:$0xff]
    %v2246 = vld [vmem:[#allocation15 + $0x168] sm:$0xff]
    %v2247 = vld [vmem:[#allocation15 + $0x170] sm:$0xff]
    %v2248 = vld [vmem:[#allocation15 + $0x178] sm:$0xff]
    %v2249 = vld [vmem:[#allocation17] sm:$0x7]
    %v2251 = vperm.slane %v2249, 0
    %v2252 = vperm.slane %v2249, 1
    %v2253 = vperm.slane %v2249, 2
    %2257 = vmatpush.msra.mxu0 %v2246
    %2258 = vmatpush.msra.mxu0 %v2243
    %2259 = vmatpush.msra.mxu0 %v2240
    %2260 = vmatpush.msra.mxu0 %v2237
    %2261 = vmatpush.msra.mxu0 %v2234
    %2262 = vmatpush.msra.mxu0 %v2231
    %2263 = vmatpush.msra.mxu0 %v2228
    %2264 = vmatpush.msra.mxu0 %v2225
    %2265 = vmatpush.msra.mxu0 %v2222
    %2266 = vmatpush.msra.mxu0 %v2219
    %2267 = vmatpush.msra.mxu0 %v2216
    %2268 = vmatpush.msra.mxu0 %v2213
    %2269 = vmatpush.msra.mxu0 %v2210
    %2270 = vmatpush.msra.mxu0 %v2207
    %2271 = vmatpush.msra.mxu0 %v2204
    %2272 = vmatpush.msra.mxu0 %v2201
    %2273 = vmatmul.f32.gmra.mxu0 %v2028
    %v2274 = vpop.f32.mrf.mxu0
    %v2275 = vadd.f32 %v2251, %v2274
    %2276 = vdwg.mxu0
    %2277 = vmatpush.msra.mxu0 %v2247
    %2278 = vmatpush.msra.mxu0 %v2244
    %2279 = vmatpush.msra.mxu0 %v2241
    %2280 = vmatpush.msra.mxu0 %v2238
    %2281 = vmatpush.msra.mxu0 %v2235
    %2282 = vmatpush.msra.mxu0 %v2232
    %2283 = vmatpush.msra.mxu0 %v2229
    %2284 = vmatpush.msra.mxu0 %v2226
    %2285 = vmatpush.msra.mxu0 %v2223
    %2286 = vmatpush.msra.mxu0 %v2220
    %2287 = vmatpush.msra.mxu0 %v2217
    %2288 = vmatpush.msra.mxu0 %v2214
    %2289 = vmatpush.msra.mxu0 %v2211
    %2290 = vmatpush.msra.mxu0 %v2208
    %2291 = vmatpush.msra.mxu0 %v2205
    %2292 = vmatpush.msra.mxu0 %v2202
    %2293 = vmatmul.f32.gmra.mxu0 %v2028
    %v2294 = vpop.f32.mrf.mxu0
    %v2295 = vadd.f32 %v2252, %v2294
    %2296 = vdwg.mxu0
    %2297 = vmatpush.msra.mxu0 %v2248
    %2298 = vmatpush.msra.mxu0 %v2245
    %2299 = vmatpush.msra.mxu0 %v2242
    %2300 = vmatpush.msra.mxu0 %v2239
    %2301 = vmatpush.msra.mxu0 %v2236
    %2302 = vmatpush.msra.mxu0 %v2233
    %2303 = vmatpush.msra.mxu0 %v2230
    %2304 = vmatpush.msra.mxu0 %v2227
    %2305 = vmatpush.msra.mxu0 %v2224
    %2306 = vmatpush.msra.mxu0 %v2221
    %2307 = vmatpush.msra.mxu0 %v2218
    %2308 = vmatpush.msra.mxu0 %v2215
    %2309 = vmatpush.msra.mxu0 %v2212
    %2310 = vmatpush.msra.mxu0 %v2209
    %2311 = vmatpush.msra.mxu0 %v2206
    %2312 = vmatpush.msra.mxu0 %v2203
    %2313 = vmatmul.f32.gmra.mxu0 %v2028
    %v2314 = vpop.f32.mrf.mxu0
    %v2315 = vadd.f32 %v2253, %v2314
    %2316 = vdwg.mxu0
    %s2317 = scalar_lea.vmem [#allocation4], 5
    %v2318 = vld [vmem:[%s2317] ss:$8 sm:$0x7]
    %v2319 = vadd.f32 %v2318, %v2275
    %v2320 = vxor.u32 %v2319, 2147483648
    %v2321 = vmul.f32 %v2320, 1.442695
    %v2322 = vpow.pop %v2321
    %v2323 = vadd.f32 %v2322, 1.0
    %v2324 = vrcp.pop %v2323
    %v2325 = vmul.f32 %v2323, %v2324
    %v2326 = vsub.f32 1.0, %v2325
    %v2327 = vmul.f32 %v2324, %v2326
    %v2328 = vadd.f32 %v2324, %v2327
    %vm2329 = vweird.f32 %v2323
    %vm2330 = vweird.f32 %v2324
    %vm2331 = vmor %vm2329, %vm2330
    %v2332 = vsel %vm2331, %v2324, %v2328
    %v2333 = vand.u32 2147483647, %v2323
    %vm2334 = vcmp.eq.f32.partialorder %v2333, 8.507059e+37
    %v2335 = vand.u32 %v2323, 2147483648
    %v2336 = vor.u32 1.1754944e-38, %v2335
    %v2337 = vsel %vm2334, %v2336, %v2332
    %v2338 = vmul.f32 1.0, %v2337
    %v2340 = vrot.slane %v2318, 1
    %v2342 = vadd.f32 %v2340, %v2295
    %v2343 = vxor.u32 %v2342, 2147483648
    %v2344 = vmul.f32 %v2343, 1.442695
    %v2345 = vpow.pop %v2344
    %v2346 = vadd.f32 %v2345, 1.0
    %v2347 = vrcp.pop %v2346
    %v2348 = vmul.f32 %v2346, %v2347
    %v2349 = vsub.f32 1.0, %v2348
    %v2350 = vmul.f32 %v2347, %v2349
    %v2351 = vadd.f32 %v2347, %v2350
    %vm2352 = vweird.f32 %v2346
    %vm2353 = vweird.f32 %v2347
    %vm2354 = vmor %vm2352, %vm2353
    %v2355 = vsel %vm2354, %v2347, %v2351
    %v2356 = vand.u32 2147483647, %v2346
    %vm2357 = vcmp.eq.f32.partialorder %v2356, 8.507059e+37
    %v2358 = vand.u32 %v2346, 2147483648
    %v2359 = vor.u32 1.1754944e-38, %v2358
    %v2360 = vsel %vm2357, %v2359, %v2355
    %v2361 = vmul.f32 1.0, %v2360
    %v2362 = vmul.f32 %v2338, %v2315
    %v2363 = vrot.slane %v2318, 2
    %v2365 = vadd.f32 %v2363, %v2362
    %v2366 = vtanh.pop %v2365
    %v2367 = vsub.f32 1.0, %v2361
    %v2368 = vmul.f32 %v2367, %v2366
    %v2369 = vmul.f32 %v2361, %v2028
    %v2370 = vadd.f32 %v2368, %v2369
    %2371 = vst [vmem:[#allocation2 + $0x5] sm:$0x1] %v2370
    %v2372 = vld [vmem:[#allocation20] sm:$0xff]
    %v2373 = vld [vmem:[#allocation20 + $0x8] sm:$0xff]
    %v2374 = vld [vmem:[#allocation20 + $0x10] sm:$0xff]
    %v2375 = vld [vmem:[#allocation20 + $0x18] sm:$0xff]
    %v2376 = vld [vmem:[#allocation20 + $0x20] sm:$0xff]
    %v2377 = vld [vmem:[#allocation20 + $0x28] sm:$0xff]
    %v2378 = vld [vmem:[#allocation20 + $0x30] sm:$0xff]
    %v2379 = vld [vmem:[#allocation20 + $0x38] sm:$0xff]
    %v2380 = vld [vmem:[#allocation20 + $0x40] sm:$0xff]
    %v2381 = vld [vmem:[#allocation20 + $0x48] sm:$0xff]
    %v2382 = vld [vmem:[#allocation20 + $0x50] sm:$0xff]
    %v2383 = vld [vmem:[#allocation20 + $0x58] sm:$0xff]
    %v2384 = vld [vmem:[#allocation20 + $0x60] sm:$0xff]
    %v2385 = vld [vmem:[#allocation20 + $0x68] sm:$0xff]
    %v2386 = vld [vmem:[#allocation20 + $0x70] sm:$0xff]
    %v2387 = vld [vmem:[#allocation20 + $0x78] sm:$0xff]
    %v2388 = vld [vmem:[#allocation20 + $0x80] sm:$0xff]
    %v2389 = vld [vmem:[#allocation20 + $0x88] sm:$0xff]
    %v2390 = vld [vmem:[#allocation20 + $0x90] sm:$0xff]
    %v2391 = vld [vmem:[#allocation20 + $0x98] sm:$0xff]
    %v2392 = vld [vmem:[#allocation20 + $0xa0] sm:$0xff]
    %v2393 = vld [vmem:[#allocation20 + $0xa8] sm:$0xff]
    %v2394 = vld [vmem:[#allocation20 + $0xb0] sm:$0xff]
    %v2395 = vld [vmem:[#allocation20 + $0xb8] sm:$0xff]
    %v2396 = vld [vmem:[#allocation20 + $0xc0] sm:$0xff]
    %v2397 = vld [vmem:[#allocation20 + $0xc8] sm:$0xff]
    %v2398 = vld [vmem:[#allocation20 + $0xd0] sm:$0xff]
    %v2399 = vld [vmem:[#allocation20 + $0xd8] sm:$0xff]
    %v2400 = vld [vmem:[#allocation20 + $0xe0] sm:$0xff]
    %v2401 = vld [vmem:[#allocation20 + $0xe8] sm:$0xff]
    %v2402 = vld [vmem:[#allocation20 + $0xf0] sm:$0xff]
    %v2403 = vld [vmem:[#allocation20 + $0xf8] sm:$0xff]
    %v2404 = vld [vmem:[#allocation20 + $0x100] sm:$0xff]
    %v2405 = vld [vmem:[#allocation20 + $0x108] sm:$0xff]
    %v2406 = vld [vmem:[#allocation20 + $0x110] sm:$0xff]
    %v2407 = vld [vmem:[#allocation20 + $0x118] sm:$0xff]
    %v2408 = vld [vmem:[#allocation20 + $0x120] sm:$0xff]
    %v2409 = vld [vmem:[#allocation20 + $0x128] sm:$0xff]
    %v2410 = vld [vmem:[#allocation20 + $0x130] sm:$0xff]
    %v2411 = vld [vmem:[#allocation20 + $0x138] sm:$0xff]
    %v2412 = vld [vmem:[#allocation20 + $0x140] sm:$0xff]
    %v2413 = vld [vmem:[#allocation20 + $0x148] sm:$0xff]
    %v2414 = vld [vmem:[#allocation20 + $0x150] sm:$0xff]
    %v2415 = vld [vmem:[#allocation20 + $0x158] sm:$0xff]
    %v2416 = vld [vmem:[#allocation20 + $0x160] sm:$0xff]
    %v2417 = vld [vmem:[#allocation20 + $0x168] sm:$0xff]
    %v2418 = vld [vmem:[#allocation20 + $0x170] sm:$0xff]
    %v2419 = vld [vmem:[#allocation20 + $0x178] sm:$0xff]
    %v2420 = vld [vmem:[#allocation21] sm:$0x7]
    %v2422 = vperm.slane %v2420, 0
    %v2423 = vperm.slane %v2420, 1
    %v2424 = vperm.slane %v2420, 2
    %2428 = vmatpush.msra.mxu0 %v2417
    %2429 = vmatpush.msra.mxu0 %v2414
    %2430 = vmatpush.msra.mxu0 %v2411
    %2431 = vmatpush.msra.mxu0 %v2408
    %2432 = vmatpush.msra.mxu0 %v2405
    %2433 = vmatpush.msra.mxu0 %v2402
    %2434 = vmatpush.msra.mxu0 %v2399
    %2435 = vmatpush.msra.mxu0 %v2396
    %2436 = vmatpush.msra.mxu0 %v2393
    %2437 = vmatpush.msra.mxu0 %v2390
    %2438 = vmatpush.msra.mxu0 %v2387
    %2439 = vmatpush.msra.mxu0 %v2384
    %2440 = vmatpush.msra.mxu0 %v2381
    %2441 = vmatpush.msra.mxu0 %v2378
    %2442 = vmatpush.msra.mxu0 %v2375
    %2443 = vmatpush.msra.mxu0 %v2372
    %2444 = vmatmul.f32.gmra.mxu0 %v2199
    %v2445 = vpop.f32.mrf.mxu0
    %v2446 = vadd.f32 %v2422, %v2445
    %2447 = vdwg.mxu0
    %2448 = vmatpush.msra.mxu0 %v2418
    %2449 = vmatpush.msra.mxu0 %v2415
    %2450 = vmatpush.msra.mxu0 %v2412
    %2451 = vmatpush.msra.mxu0 %v2409
    %2452 = vmatpush.msra.mxu0 %v2406
    %2453 = vmatpush.msra.mxu0 %v2403
    %2454 = vmatpush.msra.mxu0 %v2400
    %2455 = vmatpush.msra.mxu0 %v2397
    %2456 = vmatpush.msra.mxu0 %v2394
    %2457 = vmatpush.msra.mxu0 %v2391
    %2458 = vmatpush.msra.mxu0 %v2388
    %2459 = vmatpush.msra.mxu0 %v2385
    %2460 = vmatpush.msra.mxu0 %v2382
    %2461 = vmatpush.msra.mxu0 %v2379
    %2462 = vmatpush.msra.mxu0 %v2376
    %2463 = vmatpush.msra.mxu0 %v2373
    %2464 = vmatmul.f32.gmra.mxu0 %v2199
    %v2465 = vpop.f32.mrf.mxu0
    %v2466 = vadd.f32 %v2423, %v2465
    %2467 = vdwg.mxu0
    %2468 = vmatpush.msra.mxu0 %v2419
    %2469 = vmatpush.msra.mxu0 %v2416
    %2470 = vmatpush.msra.mxu0 %v2413
    %2471 = vmatpush.msra.mxu0 %v2410
    %2472 = vmatpush.msra.mxu0 %v2407
    %2473 = vmatpush.msra.mxu0 %v2404
    %2474 = vmatpush.msra.mxu0 %v2401
    %2475 = vmatpush.msra.mxu0 %v2398
    %2476 = vmatpush.msra.mxu0 %v2395
    %2477 = vmatpush.msra.mxu0 %v2392
    %2478 = vmatpush.msra.mxu0 %v2389
    %2479 = vmatpush.msra.mxu0 %v2386
    %2480 = vmatpush.msra.mxu0 %v2383
    %2481 = vmatpush.msra.mxu0 %v2380
    %2482 = vmatpush.msra.mxu0 %v2377
    %2483 = vmatpush.msra.mxu0 %v2374
    %2484 = vmatmul.f32.gmra.mxu0 %v2199
    %v2485 = vpop.f32.mrf.mxu0
    %v2486 = vadd.f32 %v2424, %v2485
    %2487 = vdwg.mxu0
    %s2488 = scalar_lea.vmem [#allocation5], 2
    %v2489 = vld [vmem:[%s2488] ss:$8 sm:$0x7]
    %v2490 = vadd.f32 %v2489, %v2446
    %v2491 = vxor.u32 %v2490, 2147483648
    %v2492 = vmul.f32 %v2491, 1.442695
    %v2493 = vpow.pop %v2492
    %v2494 = vadd.f32 %v2493, 1.0
    %v2495 = vrcp.pop %v2494
    %v2496 = vmul.f32 %v2494, %v2495
    %v2497 = vsub.f32 1.0, %v2496
    %v2498 = vmul.f32 %v2495, %v2497
    %v2499 = vadd.f32 %v2495, %v2498
    %vm2500 = vweird.f32 %v2494
    %vm2501 = vweird.f32 %v2495
    %vm2502 = vmor %vm2500, %vm2501
    %v2503 = vsel %vm2502, %v2495, %v2499
    %v2504 = vand.u32 2147483647, %v2494
    %vm2505 = vcmp.eq.f32.partialorder %v2504, 8.507059e+37
    %v2506 = vand.u32 %v2494, 2147483648
    %v2507 = vor.u32 1.1754944e-38, %v2506
    %v2508 = vsel %vm2505, %v2507, %v2503
    %v2509 = vmul.f32 1.0, %v2508
    %v2511 = vrot.slane %v2489, 1
    %v2513 = vadd.f32 %v2511, %v2466
    %v2514 = vxor.u32 %v2513, 2147483648
    %v2515 = vmul.f32 %v2514, 1.442695
    %v2516 = vpow.pop %v2515
    %v2517 = vadd.f32 %v2516, 1.0
    %v2518 = vrcp.pop %v2517
    %v2519 = vmul.f32 %v2517, %v2518
    %v2520 = vsub.f32 1.0, %v2519
    %v2521 = vmul.f32 %v2518, %v2520
    %v2522 = vadd.f32 %v2518, %v2521
    %vm2523 = vweird.f32 %v2517
    %vm2524 = vweird.f32 %v2518
    %vm2525 = vmor %vm2523, %vm2524
    %v2526 = vsel %vm2525, %v2518, %v2522
    %v2527 = vand.u32 2147483647, %v2517
    %vm2528 = vcmp.eq.f32.partialorder %v2527, 8.507059e+37
    %v2529 = vand.u32 %v2517, 2147483648
    %v2530 = vor.u32 1.1754944e-38, %v2529
    %v2531 = vsel %vm2528, %v2530, %v2526
    %v2532 = vmul.f32 1.0, %v2531
    %v2533 = vmul.f32 %v2509, %v2486
    %v2534 = vrot.slane %v2489, 2
    %v2536 = vadd.f32 %v2534, %v2533
    %v2537 = vtanh.pop %v2536
    %v2538 = vsub.f32 1.0, %v2532
    %v2539 = vmul.f32 %v2538, %v2537
    %v2540 = vmul.f32 %v2532, %v2199
    %v2541 = vadd.f32 %v2539, %v2540
    %2542 = vst [vmem:[#allocation3 + $0x2] sm:$0x1] %v2541
    %v2543 = vld [vmem:[#allocation15] sm:$0xff]
    %v2544 = vld [vmem:[#allocation15 + $0x8] sm:$0xff]
    %v2545 = vld [vmem:[#allocation15 + $0x10] sm:$0xff]
    %v2546 = vld [vmem:[#allocation15 + $0x18] sm:$0xff]
    %v2547 = vld [vmem:[#allocation15 + $0x20] sm:$0xff]
    %v2548 = vld [vmem:[#allocation15 + $0x28] sm:$0xff]
    %v2549 = vld [vmem:[#allocation15 + $0x30] sm:$0xff]
    %v2550 = vld [vmem:[#allocation15 + $0x38] sm:$0xff]
    %v2551 = vld [vmem:[#allocation15 + $0x40] sm:$0xff]
    %v2552 = vld [vmem:[#allocation15 + $0x48] sm:$0xff]
    %v2553 = vld [vmem:[#allocation15 + $0x50] sm:$0xff]
    %v2554 = vld [vmem:[#allocation15 + $0x58] sm:$0xff]
    %v2555 = vld [vmem:[#allocation15 + $0x60] sm:$0xff]
    %v2556 = vld [vmem:[#allocation15 + $0x68] sm:$0xff]
    %v2557 = vld [vmem:[#allocation15 + $0x70] sm:$0xff]
    %v2558 = vld [vmem:[#allocation15 + $0x78] sm:$0xff]
    %v2559 = vld [vmem:[#allocation15 + $0x80] sm:$0xff]
    %v2560 = vld [vmem:[#allocation15 + $0x88] sm:$0xff]
    %v2561 = vld [vmem:[#allocation15 + $0x90] sm:$0xff]
    %v2562 = vld [vmem:[#allocation15 + $0x98] sm:$0xff]
    %v2563 = vld [vmem:[#allocation15 + $0xa0] sm:$0xff]
    %v2564 = vld [vmem:[#allocation15 + $0xa8] sm:$0xff]
    %v2565 = vld [vmem:[#allocation15 + $0xb0] sm:$0xff]
    %v2566 = vld [vmem:[#allocation15 + $0xb8] sm:$0xff]
    %v2567 = vld [vmem:[#allocation15 + $0xc0] sm:$0xff]
    %v2568 = vld [vmem:[#allocation15 + $0xc8] sm:$0xff]
    %v2569 = vld [vmem:[#allocation15 + $0xd0] sm:$0xff]
    %v2570 = vld [vmem:[#allocation15 + $0xd8] sm:$0xff]
    %v2571 = vld [vmem:[#allocation15 + $0xe0] sm:$0xff]
    %v2572 = vld [vmem:[#allocation15 + $0xe8] sm:$0xff]
    %v2573 = vld [vmem:[#allocation15 + $0xf0] sm:$0xff]
    %v2574 = vld [vmem:[#allocation15 + $0xf8] sm:$0xff]
    %v2575 = vld [vmem:[#allocation15 + $0x100] sm:$0xff]
    %v2576 = vld [vmem:[#allocation15 + $0x108] sm:$0xff]
    %v2577 = vld [vmem:[#allocation15 + $0x110] sm:$0xff]
    %v2578 = vld [vmem:[#allocation15 + $0x118] sm:$0xff]
    %v2579 = vld [vmem:[#allocation15 + $0x120] sm:$0xff]
    %v2580 = vld [vmem:[#allocation15 + $0x128] sm:$0xff]
    %v2581 = vld [vmem:[#allocation15 + $0x130] sm:$0xff]
    %v2582 = vld [vmem:[#allocation15 + $0x138] sm:$0xff]
    %v2583 = vld [vmem:[#allocation15 + $0x140] sm:$0xff]
    %v2584 = vld [vmem:[#allocation15 + $0x148] sm:$0xff]
    %v2585 = vld [vmem:[#allocation15 + $0x150] sm:$0xff]
    %v2586 = vld [vmem:[#allocation15 + $0x158] sm:$0xff]
    %v2587 = vld [vmem:[#allocation15 + $0x160] sm:$0xff]
    %v2588 = vld [vmem:[#allocation15 + $0x168] sm:$0xff]
    %v2589 = vld [vmem:[#allocation15 + $0x170] sm:$0xff]
    %v2590 = vld [vmem:[#allocation15 + $0x178] sm:$0xff]
    %v2591 = vld [vmem:[#allocation17] sm:$0x7]
    %v2593 = vperm.slane %v2591, 0
    %v2594 = vperm.slane %v2591, 1
    %v2595 = vperm.slane %v2591, 2
    %2599 = vmatpush.msra.mxu0 %v2588
    %2600 = vmatpush.msra.mxu0 %v2585
    %2601 = vmatpush.msra.mxu0 %v2582
    %2602 = vmatpush.msra.mxu0 %v2579
    %2603 = vmatpush.msra.mxu0 %v2576
    %2604 = vmatpush.msra.mxu0 %v2573
    %2605 = vmatpush.msra.mxu0 %v2570
    %2606 = vmatpush.msra.mxu0 %v2567
    %2607 = vmatpush.msra.mxu0 %v2564
    %2608 = vmatpush.msra.mxu0 %v2561
    %2609 = vmatpush.msra.mxu0 %v2558
    %2610 = vmatpush.msra.mxu0 %v2555
    %2611 = vmatpush.msra.mxu0 %v2552
    %2612 = vmatpush.msra.mxu0 %v2549
    %2613 = vmatpush.msra.mxu0 %v2546
    %2614 = vmatpush.msra.mxu0 %v2543
    %2615 = vmatmul.f32.gmra.mxu0 %v2370
    %v2616 = vpop.f32.mrf.mxu0
    %v2617 = vadd.f32 %v2593, %v2616
    %2618 = vdwg.mxu0
    %2619 = vmatpush.msra.mxu0 %v2589
    %2620 = vmatpush.msra.mxu0 %v2586
    %2621 = vmatpush.msra.mxu0 %v2583
    %2622 = vmatpush.msra.mxu0 %v2580
    %2623 = vmatpush.msra.mxu0 %v2577
    %2624 = vmatpush.msra.mxu0 %v2574
    %2625 = vmatpush.msra.mxu0 %v2571
    %2626 = vmatpush.msra.mxu0 %v2568
    %2627 = vmatpush.msra.mxu0 %v2565
    %2628 = vmatpush.msra.mxu0 %v2562
    %2629 = vmatpush.msra.mxu0 %v2559
    %2630 = vmatpush.msra.mxu0 %v2556
    %2631 = vmatpush.msra.mxu0 %v2553
    %2632 = vmatpush.msra.mxu0 %v2550
    %2633 = vmatpush.msra.mxu0 %v2547
    %2634 = vmatpush.msra.mxu0 %v2544
    %2635 = vmatmul.f32.gmra.mxu0 %v2370
    %v2636 = vpop.f32.mrf.mxu0
    %v2637 = vadd.f32 %v2594, %v2636
    %2638 = vdwg.mxu0
    %2639 = vmatpush.msra.mxu0 %v2590
    %2640 = vmatpush.msra.mxu0 %v2587
    %2641 = vmatpush.msra.mxu0 %v2584
    %2642 = vmatpush.msra.mxu0 %v2581
    %2643 = vmatpush.msra.mxu0 %v2578
    %2644 = vmatpush.msra.mxu0 %v2575
    %2645 = vmatpush.msra.mxu0 %v2572
    %2646 = vmatpush.msra.mxu0 %v2569
    %2647 = vmatpush.msra.mxu0 %v2566
    %2648 = vmatpush.msra.mxu0 %v2563
    %2649 = vmatpush.msra.mxu0 %v2560
    %2650 = vmatpush.msra.mxu0 %v2557
    %2651 = vmatpush.msra.mxu0 %v2554
    %2652 = vmatpush.msra.mxu0 %v2551
    %2653 = vmatpush.msra.mxu0 %v2548
    %2654 = vmatpush.msra.mxu0 %v2545
    %2655 = vmatmul.f32.gmra.mxu0 %v2370
    %v2656 = vpop.f32.mrf.mxu0
    %v2657 = vadd.f32 %v2595, %v2656
    %2658 = vdwg.mxu0
    %s2659 = scalar_lea.vmem [#allocation4], 6
    %v2660 = vld [vmem:[%s2659] ss:$8 sm:$0x7]
    %v2661 = vadd.f32 %v2660, %v2617
    %v2662 = vxor.u32 %v2661, 2147483648
    %v2663 = vmul.f32 %v2662, 1.442695
    %v2664 = vpow.pop %v2663
    %v2665 = vadd.f32 %v2664, 1.0
    %v2666 = vrcp.pop %v2665
    %v2667 = vmul.f32 %v2665, %v2666
    %v2668 = vsub.f32 1.0, %v2667
    %v2669 = vmul.f32 %v2666, %v2668
    %v2670 = vadd.f32 %v2666, %v2669
    %vm2671 = vweird.f32 %v2665
    %vm2672 = vweird.f32 %v2666
    %vm2673 = vmor %vm2671, %vm2672
    %v2674 = vsel %vm2673, %v2666, %v2670
    %v2675 = vand.u32 2147483647, %v2665
    %vm2676 = vcmp.eq.f32.partialorder %v2675, 8.507059e+37
    %v2677 = vand.u32 %v2665, 2147483648
    %v2678 = vor.u32 1.1754944e-38, %v2677
    %v2679 = vsel %vm2676, %v2678, %v2674
    %v2680 = vmul.f32 1.0, %v2679
    %v2682 = vrot.slane %v2660, 1
    %v2684 = vadd.f32 %v2682, %v2637
    %v2685 = vxor.u32 %v2684, 2147483648
    %v2686 = vmul.f32 %v2685, 1.442695
    %v2687 = vpow.pop %v2686
    %v2688 = vadd.f32 %v2687, 1.0
    %v2689 = vrcp.pop %v2688
    %v2690 = vmul.f32 %v2688, %v2689
    %v2691 = vsub.f32 1.0, %v2690
    %v2692 = vmul.f32 %v2689, %v2691
    %v2693 = vadd.f32 %v2689, %v2692
    %vm2694 = vweird.f32 %v2688
    %vm2695 = vweird.f32 %v2689
    %vm2696 = vmor %vm2694, %vm2695
    %v2697 = vsel %vm2696, %v2689, %v2693
    %v2698 = vand.u32 2147483647, %v2688
    %vm2699 = vcmp.eq.f32.partialorder %v2698, 8.507059e+37
    %v2700 = vand.u32 %v2688, 2147483648
    %v2701 = vor.u32 1.1754944e-38, %v2700
    %v2702 = vsel %vm2699, %v2701, %v2697
    %v2703 = vmul.f32 1.0, %v2702
    %v2704 = vmul.f32 %v2680, %v2657
    %v2705 = vrot.slane %v2660, 2
    %v2707 = vadd.f32 %v2705, %v2704
    %v2708 = vtanh.pop %v2707
    %v2709 = vsub.f32 1.0, %v2703
    %v2710 = vmul.f32 %v2709, %v2708
    %v2711 = vmul.f32 %v2703, %v2370
    %v2712 = vadd.f32 %v2710, %v2711
    %2713 = vst [vmem:[#allocation2 + $0x6] sm:$0x1] %v2712
    %v2714 = vld [vmem:[#allocation20] sm:$0xff]
    %v2715 = vld [vmem:[#allocation20 + $0x8] sm:$0xff]
    %v2716 = vld [vmem:[#allocation20 + $0x10] sm:$0xff]
    %v2717 = vld [vmem:[#allocation20 + $0x18] sm:$0xff]
    %v2718 = vld [vmem:[#allocation20 + $0x20] sm:$0xff]
    %v2719 = vld [vmem:[#allocation20 + $0x28] sm:$0xff]
    %v2720 = vld [vmem:[#allocation20 + $0x30] sm:$0xff]
    %v2721 = vld [vmem:[#allocation20 + $0x38] sm:$0xff]
    %v2722 = vld [vmem:[#allocation20 + $0x40] sm:$0xff]
    %v2723 = vld [vmem:[#allocation20 + $0x48] sm:$0xff]
    %v2724 = vld [vmem:[#allocation20 + $0x50] sm:$0xff]
    %v2725 = vld [vmem:[#allocation20 + $0x58] sm:$0xff]
    %v2726 = vld [vmem:[#allocation20 + $0x60] sm:$0xff]
    %v2727 = vld [vmem:[#allocation20 + $0x68] sm:$0xff]
    %v2728 = vld [vmem:[#allocation20 + $0x70] sm:$0xff]
    %v2729 = vld [vmem:[#allocation20 + $0x78] sm:$0xff]
    %v2730 = vld [vmem:[#allocation20 + $0x80] sm:$0xff]
    %v2731 = vld [vmem:[#allocation20 + $0x88] sm:$0xff]
    %v2732 = vld [vmem:[#allocation20 + $0x90] sm:$0xff]
    %v2733 = vld [vmem:[#allocation20 + $0x98] sm:$0xff]
    %v2734 = vld [vmem:[#allocation20 + $0xa0] sm:$0xff]
    %v2735 = vld [vmem:[#allocation20 + $0xa8] sm:$0xff]
    %v2736 = vld [vmem:[#allocation20 + $0xb0] sm:$0xff]
    %v2737 = vld [vmem:[#allocation20 + $0xb8] sm:$0xff]
    %v2738 = vld [vmem:[#allocation20 + $0xc0] sm:$0xff]
    %v2739 = vld [vmem:[#allocation20 + $0xc8] sm:$0xff]
    %v2740 = vld [vmem:[#allocation20 + $0xd0] sm:$0xff]
    %v2741 = vld [vmem:[#allocation20 + $0xd8] sm:$0xff]
    %v2742 = vld [vmem:[#allocation20 + $0xe0] sm:$0xff]
    %v2743 = vld [vmem:[#allocation20 + $0xe8] sm:$0xff]
    %v2744 = vld [vmem:[#allocation20 + $0xf0] sm:$0xff]
    %v2745 = vld [vmem:[#allocation20 + $0xf8] sm:$0xff]
    %v2746 = vld [vmem:[#allocation20 + $0x100] sm:$0xff]
    %v2747 = vld [vmem:[#allocation20 + $0x108] sm:$0xff]
    %v2748 = vld [vmem:[#allocation20 + $0x110] sm:$0xff]
    %v2749 = vld [vmem:[#allocation20 + $0x118] sm:$0xff]
    %v2750 = vld [vmem:[#allocation20 + $0x120] sm:$0xff]
    %v2751 = vld [vmem:[#allocation20 + $0x128] sm:$0xff]
    %v2752 = vld [vmem:[#allocation20 + $0x130] sm:$0xff]
    %v2753 = vld [vmem:[#allocation20 + $0x138] sm:$0xff]
    %v2754 = vld [vmem:[#allocation20 + $0x140] sm:$0xff]
    %v2755 = vld [vmem:[#allocation20 + $0x148] sm:$0xff]
    %v2756 = vld [vmem:[#allocation20 + $0x150] sm:$0xff]
    %v2757 = vld [vmem:[#allocation20 + $0x158] sm:$0xff]
    %v2758 = vld [vmem:[#allocation20 + $0x160] sm:$0xff]
    %v2759 = vld [vmem:[#allocation20 + $0x168] sm:$0xff]
    %v2760 = vld [vmem:[#allocation20 + $0x170] sm:$0xff]
    %v2761 = vld [vmem:[#allocation20 + $0x178] sm:$0xff]
    %v2762 = vld [vmem:[#allocation21] sm:$0x7]
    %v2764 = vperm.slane %v2762, 0
    %v2765 = vperm.slane %v2762, 1
    %v2766 = vperm.slane %v2762, 2
    %2770 = vmatpush.msra.mxu0 %v2759
    %2771 = vmatpush.msra.mxu0 %v2756
    %2772 = vmatpush.msra.mxu0 %v2753
    %2773 = vmatpush.msra.mxu0 %v2750
    %2774 = vmatpush.msra.mxu0 %v2747
    %2775 = vmatpush.msra.mxu0 %v2744
    %2776 = vmatpush.msra.mxu0 %v2741
    %2777 = vmatpush.msra.mxu0 %v2738
    %2778 = vmatpush.msra.mxu0 %v2735
    %2779 = vmatpush.msra.mxu0 %v2732
    %2780 = vmatpush.msra.mxu0 %v2729
    %2781 = vmatpush.msra.mxu0 %v2726
    %2782 = vmatpush.msra.mxu0 %v2723
    %2783 = vmatpush.msra.mxu0 %v2720
    %2784 = vmatpush.msra.mxu0 %v2717
    %2785 = vmatpush.msra.mxu0 %v2714
    %2786 = vmatmul.f32.gmra.mxu0 %v2541
    %v2787 = vpop.f32.mrf.mxu0
    %v2788 = vadd.f32 %v2764, %v2787
    %2789 = vdwg.mxu0
    %2790 = vmatpush.msra.mxu0 %v2760
    %2791 = vmatpush.msra.mxu0 %v2757
    %2792 = vmatpush.msra.mxu0 %v2754
    %2793 = vmatpush.msra.mxu0 %v2751
    %2794 = vmatpush.msra.mxu0 %v2748
    %2795 = vmatpush.msra.mxu0 %v2745
    %2796 = vmatpush.msra.mxu0 %v2742
    %2797 = vmatpush.msra.mxu0 %v2739
    %2798 = vmatpush.msra.mxu0 %v2736
    %2799 = vmatpush.msra.mxu0 %v2733
    %2800 = vmatpush.msra.mxu0 %v2730
    %2801 = vmatpush.msra.mxu0 %v2727
    %2802 = vmatpush.msra.mxu0 %v2724
    %2803 = vmatpush.msra.mxu0 %v2721
    %2804 = vmatpush.msra.mxu0 %v2718
    %2805 = vmatpush.msra.mxu0 %v2715
    %2806 = vmatmul.f32.gmra.mxu0 %v2541
    %v2807 = vpop.f32.mrf.mxu0
    %v2808 = vadd.f32 %v2765, %v2807
    %2809 = vdwg.mxu0
    %2810 = vmatpush.msra.mxu0 %v2761
    %2811 = vmatpush.msra.mxu0 %v2758
    %2812 = vmatpush.msra.mxu0 %v2755
    %2813 = vmatpush.msra.mxu0 %v2752
    %2814 = vmatpush.msra.mxu0 %v2749
    %2815 = vmatpush.msra.mxu0 %v2746
    %2816 = vmatpush.msra.mxu0 %v2743
    %2817 = vmatpush.msra.mxu0 %v2740
    %2818 = vmatpush.msra.mxu0 %v2737
    %2819 = vmatpush.msra.mxu0 %v2734
    %2820 = vmatpush.msra.mxu0 %v2731
    %2821 = vmatpush.msra.mxu0 %v2728
    %2822 = vmatpush.msra.mxu0 %v2725
    %2823 = vmatpush.msra.mxu0 %v2722
    %2824 = vmatpush.msra.mxu0 %v2719
    %2825 = vmatpush.msra.mxu0 %v2716
    %2826 = vmatmul.f32.gmra.mxu0 %v2541
    %v2827 = vpop.f32.mrf.mxu0
    %v2828 = vadd.f32 %v2766, %v2827
    %2829 = vdwg.mxu0
    %s2830 = scalar_lea.vmem [#allocation5], 1
    %v2831 = vld [vmem:[%s2830] ss:$8 sm:$0x7]
    %v2832 = vadd.f32 %v2831, %v2788
    %v2833 = vxor.u32 %v2832, 2147483648
    %v2834 = vmul.f32 %v2833, 1.442695
    %v2835 = vpow.pop %v2834
    %v2836 = vadd.f32 %v2835, 1.0
    %v2837 = vrcp.pop %v2836
    %v2838 = vmul.f32 %v2836, %v2837
    %v2839 = vsub.f32 1.0, %v2838
    %v2840 = vmul.f32 %v2837, %v2839
    %v2841 = vadd.f32 %v2837, %v2840
    %vm2842 = vweird.f32 %v2836
    %vm2843 = vweird.f32 %v2837
    %vm2844 = vmor %vm2842, %vm2843
    %v2845 = vsel %vm2844, %v2837, %v2841
    %v2846 = vand.u32 2147483647, %v2836
    %vm2847 = vcmp.eq.f32.partialorder %v2846, 8.507059e+37
    %v2848 = vand.u32 %v2836, 2147483648
    %v2849 = vor.u32 1.1754944e-38, %v2848
    %v2850 = vsel %vm2847, %v2849, %v2845
    %v2851 = vmul.f32 1.0, %v2850
    %v2853 = vrot.slane %v2831, 1
    %v2855 = vadd.f32 %v2853, %v2808
    %v2856 = vxor.u32 %v2855, 2147483648
    %v2857 = vmul.f32 %v2856, 1.442695
    %v2858 = vpow.pop %v2857
    %v2859 = vadd.f32 %v2858, 1.0
    %v2860 = vrcp.pop %v2859
    %v2861 = vmul.f32 %v2859, %v2860
    %v2862 = vsub.f32 1.0, %v2861
    %v2863 = vmul.f32 %v2860, %v2862
    %v2864 = vadd.f32 %v2860, %v2863
    %vm2865 = vweird.f32 %v2859
    %vm2866 = vweird.f32 %v2860
    %vm2867 = vmor %vm2865, %vm2866
    %v2868 = vsel %vm2867, %v2860, %v2864
    %v2869 = vand.u32 2147483647, %v2859
    %vm2870 = vcmp.eq.f32.partialorder %v2869, 8.507059e+37
    %v2871 = vand.u32 %v2859, 2147483648
    %v2872 = vor.u32 1.1754944e-38, %v2871
    %v2873 = vsel %vm2870, %v2872, %v2868
    %v2874 = vmul.f32 1.0, %v2873
    %v2875 = vmul.f32 %v2851, %v2828
    %v2876 = vrot.slane %v2831, 2
    %v2878 = vadd.f32 %v2876, %v2875
    %v2879 = vtanh.pop %v2878
    %v2880 = vsub.f32 1.0, %v2874
    %v2881 = vmul.f32 %v2880, %v2879
    %v2882 = vmul.f32 %v2874, %v2541
    %v2883 = vadd.f32 %v2881, %v2882
    %2884 = vst [vmem:[#allocation3 + $0x1] sm:$0x1] %v2883
    %v2885 = vld [vmem:[#allocation15] sm:$0xff]
    %v2886 = vld [vmem:[#allocation15 + $0x8] sm:$0xff]
    %v2887 = vld [vmem:[#allocation15 + $0x10] sm:$0xff]
    %v2888 = vld [vmem:[#allocation15 + $0x18] sm:$0xff]
    %v2889 = vld [vmem:[#allocation15 + $0x20] sm:$0xff]
    %v2890 = vld [vmem:[#allocation15 + $0x28] sm:$0xff]
    %v2891 = vld [vmem:[#allocation15 + $0x30] sm:$0xff]
    %v2892 = vld [vmem:[#allocation15 + $0x38] sm:$0xff]
    %v2893 = vld [vmem:[#allocation15 + $0x40] sm:$0xff]
    %v2894 = vld [vmem:[#allocation15 + $0x48] sm:$0xff]
    %v2895 = vld [vmem:[#allocation15 + $0x50] sm:$0xff]
    %v2896 = vld [vmem:[#allocation15 + $0x58] sm:$0xff]
    %v2897 = vld [vmem:[#allocation15 + $0x60] sm:$0xff]
    %v2898 = vld [vmem:[#allocation15 + $0x68] sm:$0xff]
    %v2899 = vld [vmem:[#allocation15 + $0x70] sm:$0xff]
    %v2900 = vld [vmem:[#allocation15 + $0x78] sm:$0xff]
    %v2901 = vld [vmem:[#allocation15 + $0x80] sm:$0xff]
    %v2902 = vld [vmem:[#allocation15 + $0x88] sm:$0xff]
    %v2903 = vld [vmem:[#allocation15 + $0x90] sm:$0xff]
    %v2904 = vld [vmem:[#allocation15 + $0x98] sm:$0xff]
    %v2905 = vld [vmem:[#allocation15 + $0xa0] sm:$0xff]
    %v2906 = vld [vmem:[#allocation15 + $0xa8] sm:$0xff]
    %v2907 = vld [vmem:[#allocation15 + $0xb0] sm:$0xff]
    %v2908 = vld [vmem:[#allocation15 + $0xb8] sm:$0xff]
    %v2909 = vld [vmem:[#allocation15 + $0xc0] sm:$0xff]
    %v2910 = vld [vmem:[#allocation15 + $0xc8] sm:$0xff]
    %v2911 = vld [vmem:[#allocation15 + $0xd0] sm:$0xff]
    %v2912 = vld [vmem:[#allocation15 + $0xd8] sm:$0xff]
    %v2913 = vld [vmem:[#allocation15 + $0xe0] sm:$0xff]
    %v2914 = vld [vmem:[#allocation15 + $0xe8] sm:$0xff]
    %v2915 = vld [vmem:[#allocation15 + $0xf0] sm:$0xff]
    %v2916 = vld [vmem:[#allocation15 + $0xf8] sm:$0xff]
    %v2917 = vld [vmem:[#allocation15 + $0x100] sm:$0xff]
    %v2918 = vld [vmem:[#allocation15 + $0x108] sm:$0xff]
    %v2919 = vld [vmem:[#allocation15 + $0x110] sm:$0xff]
    %v2920 = vld [vmem:[#allocation15 + $0x118] sm:$0xff]
    %v2921 = vld [vmem:[#allocation15 + $0x120] sm:$0xff]
    %v2922 = vld [vmem:[#allocation15 + $0x128] sm:$0xff]
    %v2923 = vld [vmem:[#allocation15 + $0x130] sm:$0xff]
    %v2924 = vld [vmem:[#allocation15 + $0x138] sm:$0xff]
    %v2925 = vld [vmem:[#allocation15 + $0x140] sm:$0xff]
    %v2926 = vld [vmem:[#allocation15 + $0x148] sm:$0xff]
    %v2927 = vld [vmem:[#allocation15 + $0x150] sm:$0xff]
    %v2928 = vld [vmem:[#allocation15 + $0x158] sm:$0xff]
    %v2929 = vld [vmem:[#allocation15 + $0x160] sm:$0xff]
    %v2930 = vld [vmem:[#allocation15 + $0x168] sm:$0xff]
    %v2931 = vld [vmem:[#allocation15 + $0x170] sm:$0xff]
    %v2932 = vld [vmem:[#allocation15 + $0x178] sm:$0xff]
    %v2933 = vld [vmem:[#allocation17] sm:$0x7]
    %v2935 = vperm.slane %v2933, 0
    %v2936 = vperm.slane %v2933, 1
    %v2937 = vperm.slane %v2933, 2
    %2941 = vmatpush.msra.mxu0 %v2930
    %2942 = vmatpush.msra.mxu0 %v2927
    %2943 = vmatpush.msra.mxu0 %v2924
    %2944 = vmatpush.msra.mxu0 %v2921
    %2945 = vmatpush.msra.mxu0 %v2918
    %2946 = vmatpush.msra.mxu0 %v2915
    %2947 = vmatpush.msra.mxu0 %v2912
    %2948 = vmatpush.msra.mxu0 %v2909
    %2949 = vmatpush.msra.mxu0 %v2906
    %2950 = vmatpush.msra.mxu0 %v2903
    %2951 = vmatpush.msra.mxu0 %v2900
    %2952 = vmatpush.msra.mxu0 %v2897
    %2953 = vmatpush.msra.mxu0 %v2894
    %2954 = vmatpush.msra.mxu0 %v2891
    %2955 = vmatpush.msra.mxu0 %v2888
    %2956 = vmatpush.msra.mxu0 %v2885
    %2957 = vmatmul.f32.gmra.mxu0 %v2712
    %v2958 = vpop.f32.mrf.mxu0
    %v2959 = vadd.f32 %v2935, %v2958
    %2960 = vdwg.mxu0
    %2961 = vmatpush.msra.mxu0 %v2931
    %2962 = vmatpush.msra.mxu0 %v2928
    %2963 = vmatpush.msra.mxu0 %v2925
    %2964 = vmatpush.msra.mxu0 %v2922
    %2965 = vmatpush.msra.mxu0 %v2919
    %2966 = vmatpush.msra.mxu0 %v2916
    %2967 = vmatpush.msra.mxu0 %v2913
    %2968 = vmatpush.msra.mxu0 %v2910
    %2969 = vmatpush.msra.mxu0 %v2907
    %2970 = vmatpush.msra.mxu0 %v2904
    %2971 = vmatpush.msra.mxu0 %v2901
    %2972 = vmatpush.msra.mxu0 %v2898
    %2973 = vmatpush.msra.mxu0 %v2895
    %2974 = vmatpush.msra.mxu0 %v2892
    %2975 = vmatpush.msra.mxu0 %v2889
    %2976 = vmatpush.msra.mxu0 %v2886
    %2977 = vmatmul.f32.gmra.mxu0 %v2712
    %v2978 = vpop.f32.mrf.mxu0
    %v2979 = vadd.f32 %v2936, %v2978
    %2980 = vdwg.mxu0
    %2981 = vmatpush.msra.mxu0 %v2932
    %2982 = vmatpush.msra.mxu0 %v2929
    %2983 = vmatpush.msra.mxu0 %v2926
    %2984 = vmatpush.msra.mxu0 %v2923
    %2985 = vmatpush.msra.mxu0 %v2920
    %2986 = vmatpush.msra.mxu0 %v2917
    %2987 = vmatpush.msra.mxu0 %v2914
    %2988 = vmatpush.msra.mxu0 %v2911
    %2989 = vmatpush.msra.mxu0 %v2908
    %2990 = vmatpush.msra.mxu0 %v2905
    %2991 = vmatpush.msra.mxu0 %v2902
    %2992 = vmatpush.msra.mxu0 %v2899
    %2993 = vmatpush.msra.mxu0 %v2896
    %2994 = vmatpush.msra.mxu0 %v2893
    %2995 = vmatpush.msra.mxu0 %v2890
    %2996 = vmatpush.msra.mxu0 %v2887
    %2997 = vmatmul.f32.gmra.mxu0 %v2712
    %v2998 = vpop.f32.mrf.mxu0
    %v2999 = vadd.f32 %v2937, %v2998
    %3000 = vdwg.mxu0
    %s3001 = scalar_lea.vmem [#allocation4], 7
    %v3002 = vld [vmem:[%s3001] ss:$8 sm:$0x7]
    %v3003 = vadd.f32 %v3002, %v2959
    %v3004 = vxor.u32 %v3003, 2147483648
    %v3005 = vmul.f32 %v3004, 1.442695
    %v3006 = vpow.pop %v3005
    %v3007 = vadd.f32 %v3006, 1.0
    %v3008 = vrcp.pop %v3007
    %v3009 = vmul.f32 %v3007, %v3008
    %v3010 = vsub.f32 1.0, %v3009
    %v3011 = vmul.f32 %v3008, %v3010
    %v3012 = vadd.f32 %v3008, %v3011
    %vm3013 = vweird.f32 %v3007
    %vm3014 = vweird.f32 %v3008
    %vm3015 = vmor %vm3013, %vm3014
    %v3016 = vsel %vm3015, %v3008, %v3012
    %v3017 = vand.u32 2147483647, %v3007
    %vm3018 = vcmp.eq.f32.partialorder %v3017, 8.507059e+37
    %v3019 = vand.u32 %v3007, 2147483648
    %v3020 = vor.u32 1.1754944e-38, %v3019
    %v3021 = vsel %vm3018, %v3020, %v3016
    %v3022 = vmul.f32 1.0, %v3021
    %v3024 = vrot.slane %v3002, 1
    %v3026 = vadd.f32 %v3024, %v2979
    %v3027 = vxor.u32 %v3026, 2147483648
    %v3028 = vmul.f32 %v3027, 1.442695
    %v3029 = vpow.pop %v3028
    %v3030 = vadd.f32 %v3029, 1.0
    %v3031 = vrcp.pop %v3030
    %v3032 = vmul.f32 %v3030, %v3031
    %v3033 = vsub.f32 1.0, %v3032
    %v3034 = vmul.f32 %v3031, %v3033
    %v3035 = vadd.f32 %v3031, %v3034
    %vm3036 = vweird.f32 %v3030
    %vm3037 = vweird.f32 %v3031
    %vm3038 = vmor %vm3036, %vm3037
    %v3039 = vsel %vm3038, %v3031, %v3035
    %v3040 = vand.u32 2147483647, %v3030
    %vm3041 = vcmp.eq.f32.partialorder %v3040, 8.507059e+37
    %v3042 = vand.u32 %v3030, 2147483648
    %v3043 = vor.u32 1.1754944e-38, %v3042
    %v3044 = vsel %vm3041, %v3043, %v3039
    %v3045 = vmul.f32 1.0, %v3044
    %v3046 = vmul.f32 %v3022, %v2999
    %v3047 = vrot.slane %v3002, 2
    %v3049 = vadd.f32 %v3047, %v3046
    %v3050 = vtanh.pop %v3049
    %v3051 = vsub.f32 1.0, %v3045
    %v3052 = vmul.f32 %v3051, %v3050
    %v3053 = vmul.f32 %v3045, %v2712
    %v3054 = vadd.f32 %v3052, %v3053
    %3055 = vst [vmem:[#allocation2 + $0x7] sm:$0x1] %v3054
    %v3056 = vld [vmem:[#allocation20] sm:$0xff]
    %v3057 = vld [vmem:[#allocation20 + $0x8] sm:$0xff]
    %v3058 = vld [vmem:[#allocation20 + $0x10] sm:$0xff]
    %v3059 = vld [vmem:[#allocation20 + $0x18] sm:$0xff]
    %v3060 = vld [vmem:[#allocation20 + $0x20] sm:$0xff]
    %v3061 = vld [vmem:[#allocation20 + $0x28] sm:$0xff]
    %v3062 = vld [vmem:[#allocation20 + $0x30] sm:$0xff]
    %v3063 = vld [vmem:[#allocation20 + $0x38] sm:$0xff]
    %v3064 = vld [vmem:[#allocation20 + $0x40] sm:$0xff]
    %v3065 = vld [vmem:[#allocation20 + $0x48] sm:$0xff]
    %v3066 = vld [vmem:[#allocation20 + $0x50] sm:$0xff]
    %v3067 = vld [vmem:[#allocation20 + $0x58] sm:$0xff]
    %v3068 = vld [vmem:[#allocation20 + $0x60] sm:$0xff]
    %v3069 = vld [vmem:[#allocation20 + $0x68] sm:$0xff]
    %v3070 = vld [vmem:[#allocation20 + $0x70] sm:$0xff]
    %v3071 = vld [vmem:[#allocation20 + $0x78] sm:$0xff]
    %v3072 = vld [vmem:[#allocation20 + $0x80] sm:$0xff]
    %v3073 = vld [vmem:[#allocation20 + $0x88] sm:$0xff]
    %v3074 = vld [vmem:[#allocation20 + $0x90] sm:$0xff]
    %v3075 = vld [vmem:[#allocation20 + $0x98] sm:$0xff]
    %v3076 = vld [vmem:[#allocation20 + $0xa0] sm:$0xff]
    %v3077 = vld [vmem:[#allocation20 + $0xa8] sm:$0xff]
    %v3078 = vld [vmem:[#allocation20 + $0xb0] sm:$0xff]
    %v3079 = vld [vmem:[#allocation20 + $0xb8] sm:$0xff]
    %v3080 = vld [vmem:[#allocation20 + $0xc0] sm:$0xff]
    %v3081 = vld [vmem:[#allocation20 + $0xc8] sm:$0xff]
    %v3082 = vld [vmem:[#allocation20 + $0xd0] sm:$0xff]
    %v3083 = vld [vmem:[#allocation20 + $0xd8] sm:$0xff]
    %v3084 = vld [vmem:[#allocation20 + $0xe0] sm:$0xff]
    %v3085 = vld [vmem:[#allocation20 + $0xe8] sm:$0xff]
    %v3086 = vld [vmem:[#allocation20 + $0xf0] sm:$0xff]
    %v3087 = vld [vmem:[#allocation20 + $0xf8] sm:$0xff]
    %v3088 = vld [vmem:[#allocation20 + $0x100] sm:$0xff]
    %v3089 = vld [vmem:[#allocation20 + $0x108] sm:$0xff]
    %v3090 = vld [vmem:[#allocation20 + $0x110] sm:$0xff]
    %v3091 = vld [vmem:[#allocation20 + $0x118] sm:$0xff]
    %v3092 = vld [vmem:[#allocation20 + $0x120] sm:$0xff]
    %v3093 = vld [vmem:[#allocation20 + $0x128] sm:$0xff]
    %v3094 = vld [vmem:[#allocation20 + $0x130] sm:$0xff]
    %v3095 = vld [vmem:[#allocation20 + $0x138] sm:$0xff]
    %v3096 = vld [vmem:[#allocation20 + $0x140] sm:$0xff]
    %v3097 = vld [vmem:[#allocation20 + $0x148] sm:$0xff]
    %v3098 = vld [vmem:[#allocation20 + $0x150] sm:$0xff]
    %v3099 = vld [vmem:[#allocation20 + $0x158] sm:$0xff]
    %v3100 = vld [vmem:[#allocation20 + $0x160] sm:$0xff]
    %v3101 = vld [vmem:[#allocation20 + $0x168] sm:$0xff]
    %v3102 = vld [vmem:[#allocation20 + $0x170] sm:$0xff]
    %v3103 = vld [vmem:[#allocation20 + $0x178] sm:$0xff]
    %v3104 = vld [vmem:[#allocation21] sm:$0x7]
    %v3106 = vperm.slane %v3104, 0
    %v3107 = vperm.slane %v3104, 1
    %v3108 = vperm.slane %v3104, 2
    %3112 = vmatpush.msra.mxu0 %v3101
    %3113 = vmatpush.msra.mxu0 %v3098
    %3114 = vmatpush.msra.mxu0 %v3095
    %3115 = vmatpush.msra.mxu0 %v3092
    %3116 = vmatpush.msra.mxu0 %v3089
    %3117 = vmatpush.msra.mxu0 %v3086
    %3118 = vmatpush.msra.mxu0 %v3083
    %3119 = vmatpush.msra.mxu0 %v3080
    %3120 = vmatpush.msra.mxu0 %v3077
    %3121 = vmatpush.msra.mxu0 %v3074
    %3122 = vmatpush.msra.mxu0 %v3071
    %3123 = vmatpush.msra.mxu0 %v3068
    %3124 = vmatpush.msra.mxu0 %v3065
    %3125 = vmatpush.msra.mxu0 %v3062
    %3126 = vmatpush.msra.mxu0 %v3059
    %3127 = vmatpush.msra.mxu0 %v3056
    %3128 = vmatmul.f32.gmra.mxu0 %v2883
    %v3129 = vpop.f32.mrf.mxu0
    %v3130 = vadd.f32 %v3106, %v3129
    %3131 = vdwg.mxu0
    %3132 = vmatpush.msra.mxu0 %v3102
    %3133 = vmatpush.msra.mxu0 %v3099
    %3134 = vmatpush.msra.mxu0 %v3096
    %3135 = vmatpush.msra.mxu0 %v3093
    %3136 = vmatpush.msra.mxu0 %v3090
    %3137 = vmatpush.msra.mxu0 %v3087
    %3138 = vmatpush.msra.mxu0 %v3084
    %3139 = vmatpush.msra.mxu0 %v3081
    %3140 = vmatpush.msra.mxu0 %v3078
    %3141 = vmatpush.msra.mxu0 %v3075
    %3142 = vmatpush.msra.mxu0 %v3072
    %3143 = vmatpush.msra.mxu0 %v3069
    %3144 = vmatpush.msra.mxu0 %v3066
    %3145 = vmatpush.msra.mxu0 %v3063
    %3146 = vmatpush.msra.mxu0 %v3060
    %3147 = vmatpush.msra.mxu0 %v3057
    %3148 = vmatmul.f32.gmra.mxu0 %v2883
    %v3149 = vpop.f32.mrf.mxu0
    %v3150 = vadd.f32 %v3107, %v3149
    %3151 = vdwg.mxu0
    %3152 = vmatpush.msra.mxu0 %v3103
    %3153 = vmatpush.msra.mxu0 %v3100
    %3154 = vmatpush.msra.mxu0 %v3097
    %3155 = vmatpush.msra.mxu0 %v3094
    %3156 = vmatpush.msra.mxu0 %v3091
    %3157 = vmatpush.msra.mxu0 %v3088
    %3158 = vmatpush.msra.mxu0 %v3085
    %3159 = vmatpush.msra.mxu0 %v3082
    %3160 = vmatpush.msra.mxu0 %v3079
    %3161 = vmatpush.msra.mxu0 %v3076
    %3162 = vmatpush.msra.mxu0 %v3073
    %3163 = vmatpush.msra.mxu0 %v3070
    %3164 = vmatpush.msra.mxu0 %v3067
    %3165 = vmatpush.msra.mxu0 %v3064
    %3166 = vmatpush.msra.mxu0 %v3061
    %3167 = vmatpush.msra.mxu0 %v3058
    %3168 = vmatmul.f32.gmra.mxu0 %v2883
    %v3169 = vpop.f32.mrf.mxu0
    %v3170 = vadd.f32 %v3108, %v3169
    %3171 = vdwg.mxu0
    %v3172 = vld [vmem:[#allocation5] ss:$8 sm:$0x7]
    %v3173 = vadd.f32 %v3172, %v3130
    %v3174 = vxor.u32 %v3173, 2147483648
    %v3175 = vmul.f32 %v3174, 1.442695
    %v3176 = vpow.pop %v3175
    %v3177 = vadd.f32 %v3176, 1.0
    %v3178 = vrcp.pop %v3177
    %v3179 = vmul.f32 %v3177, %v3178
    %v3180 = vsub.f32 1.0, %v3179
    %v3181 = vmul.f32 %v3178, %v3180
    %v3182 = vadd.f32 %v3178, %v3181
    %vm3183 = vweird.f32 %v3177
    %vm3184 = vweird.f32 %v3178
    %vm3185 = vmor %vm3183, %vm3184
    %v3186 = vsel %vm3185, %v3178, %v3182
    %v3187 = vand.u32 2147483647, %v3177
    %vm3188 = vcmp.eq.f32.partialorder %v3187, 8.507059e+37
    %v3189 = vand.u32 %v3177, 2147483648
    %v3190 = vor.u32 1.1754944e-38, %v3189
    %v3191 = vsel %vm3188, %v3190, %v3186
    %v3192 = vmul.f32 1.0, %v3191
    %v3194 = vrot.slane %v3172, 1
    %v3196 = vadd.f32 %v3194, %v3150
    %v3197 = vxor.u32 %v3196, 2147483648
    %v3198 = vmul.f32 %v3197, 1.442695
    %v3199 = vpow.pop %v3198
    %v3200 = vadd.f32 %v3199, 1.0
    %v3201 = vrcp.pop %v3200
    %v3202 = vmul.f32 %v3200, %v3201
    %v3203 = vsub.f32 1.0, %v3202
    %v3204 = vmul.f32 %v3201, %v3203
    %v3205 = vadd.f32 %v3201, %v3204
    %vm3206 = vweird.f32 %v3200
    %vm3207 = vweird.f32 %v3201
    %vm3208 = vmor %vm3206, %vm3207
    %v3209 = vsel %vm3208, %v3201, %v3205
    %v3210 = vand.u32 2147483647, %v3200
    %vm3211 = vcmp.eq.f32.partialorder %v3210, 8.507059e+37
    %v3212 = vand.u32 %v3200, 2147483648
    %v3213 = vor.u32 1.1754944e-38, %v3212
    %v3214 = vsel %vm3211, %v3213, %v3209
    %v3215 = vmul.f32 1.0, %v3214
    %v3216 = vmul.f32 %v3192, %v3170
    %v3217 = vrot.slane %v3172, 2
    %v3219 = vadd.f32 %v3217, %v3216
    %v3220 = vtanh.pop %v3219
    %v3221 = vsub.f32 1.0, %v3215
    %v3222 = vmul.f32 %v3221, %v3220
    %v3223 = vmul.f32 %v3215, %v2883
    %v3224 = vadd.f32 %v3222, %v3223
    %3225 = vst [vmem:[#allocation3] sm:$0x1] %v3224
    %v3226 = vld [vmem:[#allocation2] sm:$0xff]
    %v3227 = vld [vmem:[#allocation3] sm:$0xff]
    %v3228 = vadd.f32 %v3226, %v3227
    %3229 = vst [vmem:[#allocation2] sm:$0xff] %v3228
    %v3230 = vld [vmem:[#allocation2] sm:$0xff]
    %vm3231 = vcmask 57344
    %3232 = vst.msk [vmem:[#allocation29] sm:$0x1] %vm3231, 0
    %3233 = vst.msk [vmem:[#allocation30] sm:$0x1] %vm3231, 0.0
    %v3234 = vlaneseq
    %v3235 = vand.u32 %v3234, 127
    %v3236 = vadd.s32 %v3235, 128
    %v3237 = vld [vmem:[#allocation12 + $0x1] sm:$0x1]
    %s3238 = smul.u32 4, 16
    %s3239 = smul.u32 %s3238, 2
    %s3240 = sshll.u32 %s3239, 4
    %3241 = dma.done [#allocation7], %s3240
    %v3242 = vld [vmem:[#allocation23] sm:$0xff]
    %v3243 = vld [vmem:[#allocation23 + $0x8] sm:$0xff]
    %v3244 = vld [vmem:[#allocation23 + $0x10] sm:$0xff]
    %v3245 = vld [vmem:[#allocation23 + $0x18] sm:$0xff]
    %v3246 = vld [vmem:[#allocation23 + $0x20] sm:$0xff]
    %v3247 = vld [vmem:[#allocation23 + $0x28] sm:$0xff]
    %v3248 = vld [vmem:[#allocation23 + $0x30] sm:$0xff]
    %v3249 = vld [vmem:[#allocation23 + $0x38] sm:$0xff]
    %v3250 = vld [vmem:[#allocation23 + $0x40] sm:$0xff]
    %v3251 = vld [vmem:[#allocation23 + $0x48] sm:$0xff]
    %v3252 = vld [vmem:[#allocation23 + $0x50] sm:$0xff]
    %v3253 = vld [vmem:[#allocation23 + $0x58] sm:$0xff]
    %v3254 = vld [vmem:[#allocation23 + $0x60] sm:$0xff]
    %v3255 = vld [vmem:[#allocation23 + $0x68] sm:$0xff]
    %v3256 = vld [vmem:[#allocation23 + $0x70] sm:$0xff]
    %v3257 = vld [vmem:[#allocation23 + $0x78] sm:$0xff]
    %v3258 = vld [vmem:[#allocation23 + $0x80] sm:$0xff]
    %v3259 = vld [vmem:[#allocation23 + $0x88] sm:$0xff]
    %v3260 = vld [vmem:[#allocation23 + $0x90] sm:$0xff]
    %v3261 = vld [vmem:[#allocation23 + $0x98] sm:$0xff]
    %v3262 = vld [vmem:[#allocation23 + $0xa0] sm:$0xff]
    %v3263 = vld [vmem:[#allocation23 + $0xa8] sm:$0xff]
    %v3264 = vld [vmem:[#allocation23 + $0xb0] sm:$0xff]
    %v3265 = vld [vmem:[#allocation23 + $0xb8] sm:$0xff]
    %v3266 = vld [vmem:[#allocation23 + $0xc0] sm:$0xff]
    %v3267 = vld [vmem:[#allocation23 + $0xc8] sm:$0xff]
    %v3268 = vld [vmem:[#allocation23 + $0xd0] sm:$0xff]
    %v3269 = vld [vmem:[#allocation23 + $0xd8] sm:$0xff]
    %v3270 = vld [vmem:[#allocation23 + $0xe0] sm:$0xff]
    %v3271 = vld [vmem:[#allocation23 + $0xe8] sm:$0xff]
    %v3272 = vld [vmem:[#allocation23 + $0xf0] sm:$0xff]
    %v3273 = vld [vmem:[#allocation23 + $0xf8] sm:$0xff]
    %v3274 = vld [vmem:[#allocation23 + $0x100] sm:$0xff]
    %v3275 = vld [vmem:[#allocation23 + $0x108] sm:$0xff]
    %v3276 = vld [vmem:[#allocation23 + $0x110] sm:$0xff]
    %v3277 = vld [vmem:[#allocation23 + $0x118] sm:$0xff]
    %v3278 = vld [vmem:[#allocation23 + $0x120] sm:$0xff]
    %v3279 = vld [vmem:[#allocation23 + $0x128] sm:$0xff]
    %v3280 = vld [vmem:[#allocation23 + $0x130] sm:$0xff]
    %v3281 = vld [vmem:[#allocation23 + $0x138] sm:$0xff]
    %v3282 = vld [vmem:[#allocation23 + $0x140] sm:$0xff]
    %v3283 = vld [vmem:[#allocation23 + $0x148] sm:$0xff]
    %v3284 = vld [vmem:[#allocation23 + $0x150] sm:$0xff]
    %v3285 = vld [vmem:[#allocation23 + $0x158] sm:$0xff]
    %v3286 = vld [vmem:[#allocation23 + $0x160] sm:$0xff]
    %v3287 = vld [vmem:[#allocation23 + $0x168] sm:$0xff]
    %v3288 = vld [vmem:[#allocation23 + $0x170] sm:$0xff]
    %v3289 = vld [vmem:[#allocation23 + $0x178] sm:$0xff]
    %v3290 = vld [vmem:[%s12] sm:$0x7]
    %v3292 = vperm.slane %v3290, 0
    %v3293 = vperm.slane %v3290, 1
    %v3294 = vperm.slane %v3290, 2
    %3298 = vmatpush.msra.mxu0 %v3287
    %3299 = vmatpush.msra.mxu0 %v3284
    %3300 = vmatpush.msra.mxu0 %v3281
    %3301 = vmatpush.msra.mxu0 %v3278
    %3302 = vmatpush.msra.mxu0 %v3275
    %3303 = vmatpush.msra.mxu0 %v3272
    %3304 = vmatpush.msra.mxu0 %v3269
    %3305 = vmatpush.msra.mxu0 %v3266
    %3306 = vmatpush.msra.mxu0 %v3263
    %3307 = vmatpush.msra.mxu0 %v3260
    %3308 = vmatpush.msra.mxu0 %v3257
    %3309 = vmatpush.msra.mxu0 %v3254
    %3310 = vmatpush.msra.mxu0 %v3251
    %3311 = vmatpush.msra.mxu0 %v3248
    %3312 = vmatpush.msra.mxu0 %v3245
    %3313 = vmatpush.msra.mxu0 %v3242
    %3314 = vmatmul.f32.gmra.mxu0 %v3237
    %v3315 = vpop.f32.mrf.mxu0
    %v3316 = vadd.f32 %v3292, %v3315
    %3317 = vdwg.mxu0
    %3318 = vmatpush.msra.mxu0 %v3288
    %3319 = vmatpush.msra.mxu0 %v3285
    %3320 = vmatpush.msra.mxu0 %v3282
    %3321 = vmatpush.msra.mxu0 %v3279
    %3322 = vmatpush.msra.mxu0 %v3276
    %3323 = vmatpush.msra.mxu0 %v3273
    %3324 = vmatpush.msra.mxu0 %v3270
    %3325 = vmatpush.msra.mxu0 %v3267
    %3326 = vmatpush.msra.mxu0 %v3264
    %3327 = vmatpush.msra.mxu0 %v3261
    %3328 = vmatpush.msra.mxu0 %v3258
    %3329 = vmatpush.msra.mxu0 %v3255
    %3330 = vmatpush.msra.mxu0 %v3252
    %3331 = vmatpush.msra.mxu0 %v3249
    %3332 = vmatpush.msra.mxu0 %v3246
    %3333 = vmatpush.msra.mxu0 %v3243
    %3334 = vmatmul.f32.gmra.mxu0 %v3237
    %v3335 = vpop.f32.mrf.mxu0
    %v3336 = vadd.f32 %v3293, %v3335
    %3337 = vdwg.mxu0
    %3338 = vmatpush.msra.mxu0 %v3289
    %3339 = vmatpush.msra.mxu0 %v3286
    %3340 = vmatpush.msra.mxu0 %v3283
    %3341 = vmatpush.msra.mxu0 %v3280
    %3342 = vmatpush.msra.mxu0 %v3277
    %3343 = vmatpush.msra.mxu0 %v3274
    %3344 = vmatpush.msra.mxu0 %v3271
    %3345 = vmatpush.msra.mxu0 %v3268
    %3346 = vmatpush.msra.mxu0 %v3265
    %3347 = vmatpush.msra.mxu0 %v3262
    %3348 = vmatpush.msra.mxu0 %v3259
    %3349 = vmatpush.msra.mxu0 %v3256
    %3350 = vmatpush.msra.mxu0 %v3253
    %3351 = vmatpush.msra.mxu0 %v3250
    %3352 = vmatpush.msra.mxu0 %v3247
    %3353 = vmatpush.msra.mxu0 %v3244
    %3354 = vmatmul.f32.gmra.mxu0 %v3237
    %v3355 = vpop.f32.mrf.mxu0
    %v3356 = vadd.f32 %v3294, %v3355
    %3357 = vdwg.mxu0
    %v3358 = vld [vmem:[#allocation24] sm:$0xff]
    %v3359 = vld [vmem:[#allocation24 + $0x8] sm:$0xff]
    %v3360 = vld [vmem:[#allocation24 + $0x10] sm:$0xff]
    %v3361 = vld [vmem:[#allocation24 + $0x18] sm:$0xff]
    %v3362 = vld [vmem:[#allocation24 + $0x20] sm:$0xff]
    %v3363 = vld [vmem:[#allocation24 + $0x28] sm:$0xff]
    %v3364 = vld [vmem:[#allocation24 + $0x30] sm:$0xff]
    %v3365 = vld [vmem:[#allocation24 + $0x38] sm:$0xff]
    %v3366 = vld [vmem:[#allocation24 + $0x40] sm:$0xff]
    %v3367 = vld [vmem:[#allocation24 + $0x48] sm:$0xff]
    %v3368 = vld [vmem:[#allocation24 + $0x50] sm:$0xff]
    %v3369 = vld [vmem:[#allocation24 + $0x58] sm:$0xff]
    %v3370 = vld [vmem:[#allocation24 + $0x60] sm:$0xff]
    %v3371 = vld [vmem:[#allocation24 + $0x68] sm:$0xff]
    %v3372 = vld [vmem:[#allocation24 + $0x70] sm:$0xff]
    %v3373 = vld [vmem:[#allocation24 + $0x78] sm:$0xff]
    %v3374 = vld [vmem:[#allocation24 + $0x80] sm:$0xff]
    %v3375 = vld [vmem:[#allocation24 + $0x88] sm:$0xff]
    %v3376 = vld [vmem:[#allocation24 + $0x90] sm:$0xff]
    %v3377 = vld [vmem:[#allocation24 + $0x98] sm:$0xff]
    %v3378 = vld [vmem:[#allocation24 + $0xa0] sm:$0xff]
    %v3379 = vld [vmem:[#allocation24 + $0xa8] sm:$0xff]
    %v3380 = vld [vmem:[#allocation24 + $0xb0] sm:$0xff]
    %v3381 = vld [vmem:[#allocation24 + $0xb8] sm:$0xff]
    %v3382 = vld [vmem:[#allocation24 + $0xc0] sm:$0xff]
    %v3383 = vld [vmem:[#allocation24 + $0xc8] sm:$0xff]
    %v3384 = vld [vmem:[#allocation24 + $0xd0] sm:$0xff]
    %v3385 = vld [vmem:[#allocation24 + $0xd8] sm:$0xff]
    %v3386 = vld [vmem:[#allocation24 + $0xe0] sm:$0xff]
    %v3387 = vld [vmem:[#allocation24 + $0xe8] sm:$0xff]
    %v3388 = vld [vmem:[#allocation24 + $0xf0] sm:$0xff]
    %v3389 = vld [vmem:[#allocation24 + $0xf8] sm:$0xff]
    %v3390 = vld [vmem:[#allocation24 + $0x100] sm:$0xff]
    %v3391 = vld [vmem:[#allocation24 + $0x108] sm:$0xff]
    %v3392 = vld [vmem:[#allocation24 + $0x110] sm:$0xff]
    %v3393 = vld [vmem:[#allocation24 + $0x118] sm:$0xff]
    %v3394 = vld [vmem:[#allocation24 + $0x120] sm:$0xff]
    %v3395 = vld [vmem:[#allocation24 + $0x128] sm:$0xff]
    %v3396 = vld [vmem:[#allocation24 + $0x130] sm:$0xff]
    %v3397 = vld [vmem:[#allocation24 + $0x138] sm:$0xff]
    %v3398 = vld [vmem:[#allocation24 + $0x140] sm:$0xff]
    %v3399 = vld [vmem:[#allocation24 + $0x148] sm:$0xff]
    %v3400 = vld [vmem:[#allocation24 + $0x150] sm:$0xff]
    %v3401 = vld [vmem:[#allocation24 + $0x158] sm:$0xff]
    %v3402 = vld [vmem:[#allocation24 + $0x160] sm:$0xff]
    %v3403 = vld [vmem:[#allocation24 + $0x168] sm:$0xff]
    %v3404 = vld [vmem:[#allocation24 + $0x170] sm:$0xff]
    %v3405 = vld [vmem:[#allocation24 + $0x178] sm:$0xff]
    %v3406 = vld [vmem:[%s13] sm:$0x7]
    %v3408 = vperm.slane %v3406, 0
    %v3409 = vperm.slane %v3406, 1
    %v3410 = vperm.slane %v3406, 2
    %3414 = vmatpush.msra.mxu0 %v3403
    %3415 = vmatpush.msra.mxu0 %v3400
    %3416 = vmatpush.msra.mxu0 %v3397
    %3417 = vmatpush.msra.mxu0 %v3394
    %3418 = vmatpush.msra.mxu0 %v3391
    %3419 = vmatpush.msra.mxu0 %v3388
    %3420 = vmatpush.msra.mxu0 %v3385
    %3421 = vmatpush.msra.mxu0 %v3382
    %3422 = vmatpush.msra.mxu0 %v3379
    %3423 = vmatpush.msra.mxu0 %v3376
    %3424 = vmatpush.msra.mxu0 %v3373
    %3425 = vmatpush.msra.mxu0 %v3370
    %3426 = vmatpush.msra.mxu0 %v3367
    %3427 = vmatpush.msra.mxu0 %v3364
    %3428 = vmatpush.msra.mxu0 %v3361
    %3429 = vmatpush.msra.mxu0 %v3358
    %3430 = vmatmul.f32.gmra.mxu0 %v3054
    %v3431 = vpop.f32.mrf.mxu0
    %v3432 = vadd.f32 %v3408, %v3431
    %3433 = vdwg.mxu0
    %3434 = vmatpush.msra.mxu0 %v3404
    %3435 = vmatpush.msra.mxu0 %v3401
    %3436 = vmatpush.msra.mxu0 %v3398
    %3437 = vmatpush.msra.mxu0 %v3395
    %3438 = vmatpush.msra.mxu0 %v3392
    %3439 = vmatpush.msra.mxu0 %v3389
    %3440 = vmatpush.msra.mxu0 %v3386
    %3441 = vmatpush.msra.mxu0 %v3383
    %3442 = vmatpush.msra.mxu0 %v3380
    %3443 = vmatpush.msra.mxu0 %v3377
    %3444 = vmatpush.msra.mxu0 %v3374
    %3445 = vmatpush.msra.mxu0 %v3371
    %3446 = vmatpush.msra.mxu0 %v3368
    %3447 = vmatpush.msra.mxu0 %v3365
    %3448 = vmatpush.msra.mxu0 %v3362
    %3449 = vmatpush.msra.mxu0 %v3359
    %3450 = vmatmul.f32.gmra.mxu0 %v3054
    %v3451 = vpop.f32.mrf.mxu0
    %v3452 = vadd.f32 %v3409, %v3451
    %3453 = vdwg.mxu0
    %3454 = vmatpush.msra.mxu0 %v3405
    %3455 = vmatpush.msra.mxu0 %v3402
    %3456 = vmatpush.msra.mxu0 %v3399
    %3457 = vmatpush.msra.mxu0 %v3396
    %3458 = vmatpush.msra.mxu0 %v3393
    %3459 = vmatpush.msra.mxu0 %v3390
    %3460 = vmatpush.msra.mxu0 %v3387
    %3461 = vmatpush.msra.mxu0 %v3384
    %3462 = vmatpush.msra.mxu0 %v3381
    %3463 = vmatpush.msra.mxu0 %v3378
    %3464 = vmatpush.msra.mxu0 %v3375
    %3465 = vmatpush.msra.mxu0 %v3372
    %3466 = vmatpush.msra.mxu0 %v3369
    %3467 = vmatpush.msra.mxu0 %v3366
    %3468 = vmatpush.msra.mxu0 %v3363
    %3469 = vmatpush.msra.mxu0 %v3360
    %3470 = vmatmul.f32.gmra.mxu0 %v3054
    %v3471 = vpop.f32.mrf.mxu0
    %v3472 = vadd.f32 %v3410, %v3471
    %3473 = vdwg.mxu0
    %v3474 = vadd.f32 %v3316, %v3432
    %v3475 = vxor.u32 %v3474, 2147483648
    %v3476 = vmul.f32 %v3475, 1.442695
    %v3477 = vpow.pop %v3476
    %v3478 = vadd.f32 %v3477, 1.0
    %v3479 = vrcp.pop %v3478
    %v3480 = vmul.f32 %v3478, %v3479
    %v3481 = vsub.f32 1.0, %v3480
    %v3482 = vmul.f32 %v3479, %v3481
    %v3483 = vadd.f32 %v3479, %v3482
    %vm3484 = vweird.f32 %v3478
    %vm3485 = vweird.f32 %v3479
    %vm3486 = vmor %vm3484, %vm3485
    %v3487 = vsel %vm3486, %v3479, %v3483
    %v3488 = vand.u32 2147483647, %v3478
    %vm3489 = vcmp.eq.f32.partialorder %v3488, 8.507059e+37
    %v3490 = vand.u32 %v3478, 2147483648
    %v3491 = vor.u32 1.1754944e-38, %v3490
    %v3492 = vsel %vm3489, %v3491, %v3487
    %v3493 = vmul.f32 1.0, %v3492
    %v3494 = vadd.f32 %v3336, %v3452
    %v3495 = vxor.u32 %v3494, 2147483648
    %v3496 = vmul.f32 %v3495, 1.442695
    %v3497 = vpow.pop %v3496
    %v3498 = vadd.f32 %v3497, 1.0
    %v3499 = vrcp.pop %v3498
    %v3500 = vmul.f32 %v3498, %v3499
    %v3501 = vsub.f32 1.0, %v3500
    %v3502 = vmul.f32 %v3499, %v3501
    %v3503 = vadd.f32 %v3499, %v3502
    %vm3504 = vweird.f32 %v3498
    %vm3505 = vweird.f32 %v3499
    %vm3506 = vmor %vm3504, %vm3505
    %v3507 = vsel %vm3506, %v3499, %v3503
    %v3508 = vand.u32 2147483647, %v3498
    %vm3509 = vcmp.eq.f32.partialorder %v3508, 8.507059e+37
    %v3510 = vand.u32 %v3498, 2147483648
    %v3511 = vor.u32 1.1754944e-38, %v3510
    %v3512 = vsel %vm3509, %v3511, %v3507
    %v3513 = vmul.f32 1.0, %v3512
    %v3514 = vmul.f32 %v3493, %v3472
    %v3515 = vadd.f32 %v3356, %v3514
    %v3516 = vtanh.pop %v3515
    %v3517 = vsub.f32 1.0, %v3513
    %v3518 = vmul.f32 %v3517, %v3516
    %v3519 = vmul.f32 %v3513, %v3054
    %v3520 = vadd.f32 %v3518, %v3519
    %3521 = vmatpush.xpose.msra.mxu0 0.0
    %3522 = vmatpush.xpose.msra.mxu0 0.0
    %3523 = vmatpush.xpose.msra.mxu0 0.0
    %3524 = vmatpush.xpose.msra.mxu0 0.0
    %3525 = vmatpush.xpose.msra.mxu0 0.0
    %3526 = vmatpush.xpose.msra.mxu0 0.0
    %3527 = vmatpush.xpose.msra.mxu0 0.0
    %3528 = vmatpush.xpose.msra.mxu0 0.0
    %3529 = vmatpush.xpose.msra.mxu0 0.0
    %3530 = vmatpush.xpose.msra.mxu0 0.0
    %3531 = vmatpush.xpose.msra.mxu0 0.0
    %3532 = vmatpush.xpose.msra.mxu0 0.0
    %3533 = vmatpush.xpose.msra.mxu0 0.0
    %3534 = vmatpush.xpose.msra.mxu0 0.0
    %3535 = vmatpush.xpose.msra.mxu0 0.0
    %3536 = vmatpush.xpose.msra.mxu0 %v3230
    %3537 = vmatmul.f32.gmra.mxu0 %v3520
    %v3538 = vpop.f32.mrf.mxu0
    %v3539 = vadd.f32 0.0, %v3538
    %3540 = vdwg.mxu0
    %v3541 = vsel %vm3231, %v3539, -inf
    %3542 = vmax.xlane.f32.xlu0 %v3541
    %v3543 = vpop.xlane.xlu0 %3542
    %v3544 = vsub.f32 %v3539, %v3543
    %v3545 = vmul.f32 %v3544, 1.442695
    %v3546 = vpow.pop %v3545
    %v3547 = vsel %vm3231, %v3546, 0.0
    %3548 = vadd.xlane.f32.xlu0 %v3547
    %v3549 = vpop.xlane.xlu0 %3548
    %v3550 = vrcp.pop %v3549
    %v3551 = vmul.f32 %v3546, %v3550
    %vm3552 = vcmask 64512
    %v3554 = vsel %vm3552, %v3551, 0
    %3556 = vmatpush.msra.mxu0 0.0
    %3557 = vmatpush.msra.mxu0 0.0
    %3558 = vmatpush.msra.mxu0 0.0
    %3559 = vmatpush.msra.mxu0 0.0
    %3560 = vmatpush.msra.mxu0 0.0
    %3561 = vmatpush.msra.mxu0 0.0
    %3562 = vmatpush.msra.mxu0 0.0
    %3563 = vmatpush.msra.mxu0 0.0
    %3564 = vmatpush.msra.mxu0 0.0
    %3565 = vmatpush.msra.mxu0 0.0
    %3566 = vmatpush.msra.mxu0 0.0
    %3567 = vmatpush.msra.mxu0 0.0
    %3568 = vmatpush.msra.mxu0 0.0
    %3569 = vmatpush.msra.mxu0 0.0
    %3570 = vmatpush.msra.mxu0 0.0
    %3571 = vmatpush.msra.mxu0 %v3230
    %3572 = vmatmul.f32.gmra.mxu0 %v3554
    %v3573 = vpop.f32.mrf.mxu0
    %v3574 = vadd.f32 0.0, %v3573
    %3575 = vdwg.mxu0
    %v3576 = vld [vmem:[#allocation26] sm:$0xff]
    %v3577 = vld [vmem:[#allocation26 + $0x8] sm:$0xff]
    %v3578 = vld [vmem:[#allocation26 + $0x10] sm:$0xff]
    %v3579 = vld [vmem:[#allocation26 + $0x18] sm:$0xff]
    %v3580 = vld [vmem:[#allocation26 + $0x20] sm:$0xff]
    %v3581 = vld [vmem:[#allocation26 + $0x28] sm:$0xff]
    %v3582 = vld [vmem:[#allocation26 + $0x30] sm:$0xff]
    %v3583 = vld [vmem:[#allocation26 + $0x38] sm:$0xff]
    %v3584 = vld [vmem:[#allocation26 + $0x40] sm:$0xff]
    %v3585 = vld [vmem:[#allocation26 + $0x48] sm:$0xff]
    %v3586 = vld [vmem:[#allocation26 + $0x50] sm:$0xff]
    %v3587 = vld [vmem:[#allocation26 + $0x58] sm:$0xff]
    %v3588 = vld [vmem:[#allocation26 + $0x60] sm:$0xff]
    %v3589 = vld [vmem:[#allocation26 + $0x68] sm:$0xff]
    %v3590 = vld [vmem:[#allocation26 + $0x70] sm:$0xff]
    %v3591 = vld [vmem:[#allocation26 + $0x78] sm:$0xff]
    %v3592 = vld [vmem:[#allocation26 + $0x80] sm:$0xff]
    %v3593 = vld [vmem:[#allocation26 + $0x88] sm:$0xff]
    %v3594 = vld [vmem:[#allocation26 + $0x90] sm:$0xff]
    %v3595 = vld [vmem:[#allocation26 + $0x98] sm:$0xff]
    %v3596 = vld [vmem:[#allocation26 + $0xa0] sm:$0xff]
    %v3597 = vld [vmem:[#allocation26 + $0xa8] sm:$0xff]
    %v3598 = vld [vmem:[#allocation26 + $0xb0] sm:$0xff]
    %v3599 = vld [vmem:[#allocation26 + $0xb8] sm:$0xff]
    %v3600 = vld [vmem:[#allocation26 + $0xc0] sm:$0xff]
    %v3601 = vld [vmem:[#allocation26 + $0xc8] sm:$0xff]
    %v3602 = vld [vmem:[#allocation26 + $0xd0] sm:$0xff]
    %v3603 = vld [vmem:[#allocation26 + $0xd8] sm:$0xff]
    %v3604 = vld [vmem:[#allocation26 + $0xe0] sm:$0xff]
    %v3605 = vld [vmem:[#allocation26 + $0xe8] sm:$0xff]
    %v3606 = vld [vmem:[#allocation26 + $0xf0] sm:$0xff]
    %v3607 = vld [vmem:[#allocation26 + $0xf8] sm:$0xff]
    %v3608 = vld [vmem:[#allocation27] sm:$0x1]
    %3609 = vmatpush.msra.mxu0 %v3591
    %3610 = vmatpush.msra.mxu0 %v3590
    %3611 = vmatpush.msra.mxu0 %v3589
    %3612 = vmatpush.msra.mxu0 %v3588
    %3613 = vmatpush.msra.mxu0 %v3587
    %3614 = vmatpush.msra.mxu0 %v3586
    %3615 = vmatpush.msra.mxu0 %v3585
    %3616 = vmatpush.msra.mxu0 %v3584
    %3617 = vmatpush.msra.mxu0 %v3583
    %3618 = vmatpush.msra.mxu0 %v3582
    %3619 = vmatpush.msra.mxu0 %v3581
    %3620 = vmatpush.msra.mxu0 %v3580
    %3621 = vmatpush.msra.mxu0 %v3579
    %3622 = vmatpush.msra.mxu0 %v3578
    %3623 = vmatpush.msra.mxu0 %v3577
    %3624 = vmatpush.msra.mxu0 %v3576
    %3625 = vmatmul.f32.gmra.mxu0 %v3520
    %v3626 = vpop.f32.mrf.mxu0
    %v3627 = vadd.f32 %v3608, %v3626
    %3628 = vdwg.mxu0
    %3629 = vmatpush.msra.mxu0 %v3607
    %3630 = vmatpush.msra.mxu0 %v3606
    %3631 = vmatpush.msra.mxu0 %v3605
    %3632 = vmatpush.msra.mxu0 %v3604
    %3633 = vmatpush.msra.mxu0 %v3603
    %3634 = vmatpush.msra.mxu0 %v3602
    %3635 = vmatpush.msra.mxu0 %v3601
    %3636 = vmatpush.msra.mxu0 %v3600
    %3637 = vmatpush.msra.mxu0 %v3599
    %3638 = vmatpush.msra.mxu0 %v3598
    %3639 = vmatpush.msra.mxu0 %v3597
    %3640 = vmatpush.msra.mxu0 %v3596
    %3641 = vmatpush.msra.mxu0 %v3595
    %3642 = vmatpush.msra.mxu0 %v3594
    %3643 = vmatpush.msra.mxu0 %v3593
    %3644 = vmatpush.msra.mxu0 %v3592
    %3645 = vmatmul.f32.gmra.mxu0 %v3574
    %v3646 = vpop.f32.mrf.mxu0
    %v3647 = vadd.f32 %v3627, %v3646
    %3648 = vdwg.mxu0
    %v3649 = vtanh.pop %v3647
    %v3650 = vpack.c.bf16 %v3649, %v3649
    %v3651 = vld [vmem:[#allocation6] sm:$0xff]
    %v3652 = vld [vmem:[#allocation6 + $0x8] sm:$0xff]
    %v3653 = vld [vmem:[#allocation6 + $0x10] sm:$0xff]
    %v3654 = vld [vmem:[#allocation6 + $0x18] sm:$0xff]
    %v3655 = vld [vmem:[#allocation6 + $0x20] sm:$0xff]
    %v3656 = vld [vmem:[#allocation6 + $0x28] sm:$0xff]
    %v3657 = vld [vmem:[#allocation6 + $0x30] sm:$0xff]
    %v3658 = vld [vmem:[#allocation6 + $0x38] sm:$0xff]
    %v3659 = vld [vmem:[#allocation6 + $0x40] sm:$0xff]
    %v3660 = vld [vmem:[#allocation6 + $0x48] sm:$0xff]
    %v3661 = vld [vmem:[#allocation6 + $0x50] sm:$0xff]
    %v3662 = vld [vmem:[#allocation6 + $0x58] sm:$0xff]
    %v3663 = vld [vmem:[#allocation6 + $0x60] sm:$0xff]
    %v3664 = vld [vmem:[#allocation6 + $0x68] sm:$0xff]
    %v3665 = vld [vmem:[#allocation6 + $0x70] sm:$0xff]
    %v3666 = vld [vmem:[#allocation6 + $0x78] sm:$0xff]
    %v3667 = vld [vmem:[%s17] sm:$0x3]
    %v3684 = vunpack.c.l.b16 %v3651
    %v3685 = vunpack.c.h.b16 %v3651
    %v3686 = vunpack.c.l.b16 %v3652
    %v3687 = vunpack.c.h.b16 %v3652
    %v3688 = vunpack.c.l.b16 %v3653
    %v3689 = vunpack.c.h.b16 %v3653
    %v3690 = vunpack.c.l.b16 %v3654
    %v3691 = vunpack.c.h.b16 %v3654
    %v3692 = vunpack.c.l.b16 %v3655
    %v3693 = vunpack.c.h.b16 %v3655
    %v3694 = vunpack.c.l.b16 %v3656
    %v3695 = vunpack.c.h.b16 %v3656
    %v3696 = vunpack.c.l.b16 %v3657
    %v3697 = vunpack.c.h.b16 %v3657
    %v3698 = vunpack.c.l.b16 %v3658
    %v3699 = vunpack.c.h.b16 %v3658
    %v3700 = vunpack.c.l.b16 %v3659
    %v3701 = vunpack.c.h.b16 %v3659
    %v3702 = vunpack.c.l.b16 %v3660
    %v3703 = vunpack.c.h.b16 %v3660
    %v3704 = vunpack.c.l.b16 %v3661
    %v3705 = vunpack.c.h.b16 %v3661
    %v3706 = vunpack.c.l.b16 %v3662
    %v3707 = vunpack.c.h.b16 %v3662
    %v3708 = vunpack.c.l.b16 %v3663
    %v3709 = vunpack.c.h.b16 %v3663
    %v3710 = vunpack.c.l.b16 %v3664
    %v3711 = vunpack.c.h.b16 %v3664
    %v3712 = vunpack.c.l.b16 %v3665
    %v3713 = vunpack.c.h.b16 %v3665
    %v3714 = vunpack.c.l.b16 %v3666
    %v3715 = vunpack.c.h.b16 %v3666
    %v3716 = vpack.c.b16 %v3686, %v3684
    %v3717 = vpack.c.b16 %v3687, %v3685
    %v3718 = vpack.c.b16 %v3690, %v3688
    %v3719 = vpack.c.b16 %v3691, %v3689
    %v3720 = vpack.c.b16 %v3694, %v3692
    %v3721 = vpack.c.b16 %v3695, %v3693
    %v3722 = vpack.c.b16 %v3698, %v3696
    %v3723 = vpack.c.b16 %v3699, %v3697
    %v3724 = vpack.c.b16 %v3702, %v3700
    %v3725 = vpack.c.b16 %v3703, %v3701
    %v3726 = vpack.c.b16 %v3706, %v3704
    %v3727 = vpack.c.b16 %v3707, %v3705
    %v3728 = vpack.c.b16 %v3710, %v3708
    %v3729 = vpack.c.b16 %v3711, %v3709
    %v3730 = vpack.c.b16 %v3714, %v3712
    %v3731 = vpack.c.b16 %v3715, %v3713
    %v3749 = vperm.slane %v3667, 0
    %v3750 = vperm.slane %v3667, 1
    %3753 = vmatpush.bf16.msra.mxu0 %v3730
    %3754 = vmatpush.bf16.msra.mxu0 %v3728
    %3755 = vmatpush.bf16.msra.mxu0 %v3726
    %3756 = vmatpush.bf16.msra.mxu0 %v3724
    %3757 = vmatpush.bf16.msra.mxu0 %v3722
    %3758 = vmatpush.bf16.msra.mxu0 %v3720
    %3759 = vmatpush.bf16.msra.mxu0 %v3718
    %3760 = vmatpush.bf16.msra.mxu0 %v3716
    %3761 = vmatmul.bf16.gmra.mxu0 %v3650
    %v3762 = vpop.f32.mrf.mxu0
    %v3763 = vadd.f32 %v3749, %v3762
    %v3764 = vpop.f32.mrf.mxu0
    %3765 = vdwg.mxu0
    %3766 = vmatpush.bf16.msra.mxu0 %v3731
    %3767 = vmatpush.bf16.msra.mxu0 %v3729
    %3768 = vmatpush.bf16.msra.mxu0 %v3727
    %3769 = vmatpush.bf16.msra.mxu0 %v3725
    %3770 = vmatpush.bf16.msra.mxu0 %v3723
    %3771 = vmatpush.bf16.msra.mxu0 %v3721
    %3772 = vmatpush.bf16.msra.mxu0 %v3719
    %3773 = vmatpush.bf16.msra.mxu0 %v3717
    %3774 = vmatmul.bf16.gmra.mxu0 %v3650
    %v3775 = vpop.f32.mrf.mxu0
    %v3776 = vadd.f32 %v3750, %v3775
    %v3777 = vpop.f32.mrf.mxu0
    %3778 = vdwg.mxu0
    %vm3779 = vcmask 1040384
    %v3780 = vsel %vm3779, %v3763, -inf
    %v3781 = vsel %vm3779, %v3776, -inf
    %v3782 = vmax.f32 %v3780, %v3781
    %3783 = vmax.xlane.f32.xlu0 %v3782
    %v3784 = vpop.xlane.xlu0 %3783
    %v3785 = vsub.f32 %v3763, %v3784
    %v3786 = vsub.f32 %v3776, %v3784
    %v3787 = vmul.f32 %v3785, 1.442695
    %v3788 = vpow.pop %v3787
    %v3789 = vmul.f32 %v3786, 1.442695
    %v3790 = vpow.pop %v3789
    %v3791 = vsel %vm3779, %v3788, 0.0
    %v3792 = vsel %vm3779, %v3790, 0.0
    %v3793 = vadd.f32 %v3791, %v3792
    %3794 = vadd.xlane.f32.xlu0 %v3793
    %v3795 = vpop.xlane.xlu0 %3794
    %v3796 = vrcp.pop %v3795
    %v3797 = vmul.f32 %v3795, %v3796
    %v3798 = vsub.f32 1.0, %v3797
    %v3799 = vmul.f32 %v3796, %v3798
    %v3800 = vadd.f32 %v3796, %v3799
    %vm3801 = vweird.f32 %v3795
    %vm3802 = vweird.f32 %v3796
    %vm3803 = vmor %vm3801, %vm3802
    %v3804 = vsel %vm3803, %v3796, %v3800
    %v3805 = vand.u32 2147483647, %v3795
    %vm3806 = vcmp.eq.f32.partialorder %v3805, 8.507059e+37
    %v3807 = vand.u32 %v3795, 2147483648
    %v3808 = vor.u32 1.1754944e-38, %v3807
    %v3809 = vsel %vm3806, %v3808, %v3804
    %v3810 = vmul.f32 1.0, %v3809
    %vm3811 = vcmp.eq.f32.partialorder %v3763, %v3784
    %vm3812 = vcmp.eq.f32.partialorder %v3776, %v3784
    %v3813 = vsel %vm3811, %v3235, 256
    %v3814 = vsel %vm3812, %v3236, 256
    %v3815 = vsel %vm3779, %v3813, 2147483647
    %v3816 = vsel %vm3779, %v3814, 2147483647
    %vm3817 = vcmp.lt.s32.totalorder %v3815, %v3816
    %v3818 = vsel %vm3817, %v3815, %v3816
    %v3819 = vand.u32 %v3818, 65535
    %v3820 = vshra.s32 %v3818, 16
    %v3821 = vcvt.s32.f32 %v3819
    %v3822 = vcvt.s32.f32 %v3820
    %3823 = vmin.xlane.f32.xlu0 %v3822
    %v3824 = vpop.xlane.xlu0 %3823
    %vm3825 = vcmp.eq.f32.partialorder %v3822, %v3824
    %v3826 = vsel %vm3825, %v3821, inf
    %3827 = vmin.xlane.f32.xlu0 %v3826
    %v3828 = vpop.xlane.xlu0 %3827
    %v3829 = vcvt.f32.s32 %v3828
    %v3830 = vcvt.f32.s32 %v3824
    %v3831 = vshll.u32 %v3830, 16
    %v3832 = vadd.s32 %v3831, %v3829
    %vm3833 = vcmask 0
    %3834 = vst.msk [vmem:[#allocation8] sm:$0x1] %vm3833, %v3832
    %v3835 = vld [vmem:[#allocation8] sm:$0x1]
    %s3836 = vtos %v3835
    %s3837 = scalar_lea.vmem [#allocation12], %s3836
    %v3838 = vld [vmem:[%s3837] sm:$0x1]
    %vm3839 = vcmp.eq.s32.totalorder %v3235, 0
    %v3840 = vld [vmem:[#allocation29] sm:$0x1]
    %v3841 = vsel %vm3839, %v3832, %v3840
    %3842 = vst.msk [vmem:[#allocation29] sm:$0x1] %vm3231, %v3841
    %v3843 = vld [vmem:[#allocation30] sm:$0x1]
    %v3844 = vsel %vm3839, %v3810, %v3843
    %3845 = vst.msk [vmem:[#allocation30] sm:$0x1] %vm3231, %v3844
    %v3846 = vld [vmem:[#allocation23] sm:$0xff]
    %v3847 = vld [vmem:[#allocation23 + $0x8] sm:$0xff]
    %v3848 = vld [vmem:[#allocation23 + $0x10] sm:$0xff]
    %v3849 = vld [vmem:[#allocation23 + $0x18] sm:$0xff]
    %v3850 = vld [vmem:[#allocation23 + $0x20] sm:$0xff]
    %v3851 = vld [vmem:[#allocation23 + $0x28] sm:$0xff]
    %v3852 = vld [vmem:[#allocation23 + $0x30] sm:$0xff]
    %v3853 = vld [vmem:[#allocation23 + $0x38] sm:$0xff]
    %v3854 = vld [vmem:[#allocation23 + $0x40] sm:$0xff]
    %v3855 = vld [vmem:[#allocation23 + $0x48] sm:$0xff]
    %v3856 = vld [vmem:[#allocation23 + $0x50] sm:$0xff]
    %v3857 = vld [vmem:[#allocation23 + $0x58] sm:$0xff]
    %v3858 = vld [vmem:[#allocation23 + $0x60] sm:$0xff]
    %v3859 = vld [vmem:[#allocation23 + $0x68] sm:$0xff]
    %v3860 = vld [vmem:[#allocation23 + $0x70] sm:$0xff]
    %v3861 = vld [vmem:[#allocation23 + $0x78] sm:$0xff]
    %v3862 = vld [vmem:[#allocation23 + $0x80] sm:$0xff]
    %v3863 = vld [vmem:[#allocation23 + $0x88] sm:$0xff]
    %v3864 = vld [vmem:[#allocation23 + $0x90] sm:$0xff]
    %v3865 = vld [vmem:[#allocation23 + $0x98] sm:$0xff]
    %v3866 = vld [vmem:[#allocation23 + $0xa0] sm:$0xff]
    %v3867 = vld [vmem:[#allocation23 + $0xa8] sm:$0xff]
    %v3868 = vld [vmem:[#allocation23 + $0xb0] sm:$0xff]
    %v3869 = vld [vmem:[#allocation23 + $0xb8] sm:$0xff]
    %v3870 = vld [vmem:[#allocation23 + $0xc0] sm:$0xff]
    %v3871 = vld [vmem:[#allocation23 + $0xc8] sm:$0xff]
    %v3872 = vld [vmem:[#allocation23 + $0xd0] sm:$0xff]
    %v3873 = vld [vmem:[#allocation23 + $0xd8] sm:$0xff]
    %v3874 = vld [vmem:[#allocation23 + $0xe0] sm:$0xff]
    %v3875 = vld [vmem:[#allocation23 + $0xe8] sm:$0xff]
    %v3876 = vld [vmem:[#allocation23 + $0xf0] sm:$0xff]
    %v3877 = vld [vmem:[#allocation23 + $0xf8] sm:$0xff]
    %v3878 = vld [vmem:[#allocation23 + $0x100] sm:$0xff]
    %v3879 = vld [vmem:[#allocation23 + $0x108] sm:$0xff]
    %v3880 = vld [vmem:[#allocation23 + $0x110] sm:$0xff]
    %v3881 = vld [vmem:[#allocation23 + $0x118] sm:$0xff]
    %v3882 = vld [vmem:[#allocation23 + $0x120] sm:$0xff]
    %v3883 = vld [vmem:[#allocation23 + $0x128] sm:$0xff]
    %v3884 = vld [vmem:[#allocation23 + $0x130] sm:$0xff]
    %v3885 = vld [vmem:[#allocation23 + $0x138] sm:$0xff]
    %v3886 = vld [vmem:[#allocation23 + $0x140] sm:$0xff]
    %v3887 = vld [vmem:[#allocation23 + $0x148] sm:$0xff]
    %v3888 = vld [vmem:[#allocation23 + $0x150] sm:$0xff]
    %v3889 = vld [vmem:[#allocation23 + $0x158] sm:$0xff]
    %v3890 = vld [vmem:[#allocation23 + $0x160] sm:$0xff]
    %v3891 = vld [vmem:[#allocation23 + $0x168] sm:$0xff]
    %v3892 = vld [vmem:[#allocation23 + $0x170] sm:$0xff]
    %v3893 = vld [vmem:[#allocation23 + $0x178] sm:$0xff]
    %v3894 = vld [vmem:[%s12] sm:$0x7]
    %v3896 = vperm.slane %v3894, 0
    %v3897 = vperm.slane %v3894, 1
    %v3898 = vperm.slane %v3894, 2
    %3902 = vmatpush.msra.mxu0 %v3891
    %3903 = vmatpush.msra.mxu0 %v3888
    %3904 = vmatpush.msra.mxu0 %v3885
    %3905 = vmatpush.msra.mxu0 %v3882
    %3906 = vmatpush.msra.mxu0 %v3879
    %3907 = vmatpush.msra.mxu0 %v3876
    %3908 = vmatpush.msra.mxu0 %v3873
    %3909 = vmatpush.msra.mxu0 %v3870
    %3910 = vmatpush.msra.mxu0 %v3867
    %3911 = vmatpush.msra.mxu0 %v3864
    %3912 = vmatpush.msra.mxu0 %v3861
    %3913 = vmatpush.msra.mxu0 %v3858
    %3914 = vmatpush.msra.mxu0 %v3855
    %3915 = vmatpush.msra.mxu0 %v3852
    %3916 = vmatpush.msra.mxu0 %v3849
    %3917 = vmatpush.msra.mxu0 %v3846
    %3918 = vmatmul.f32.gmra.mxu0 %v3838
    %v3919 = vpop.f32.mrf.mxu0
    %v3920 = vadd.f32 %v3896, %v3919
    %3921 = vdwg.mxu0
    %3922 = vmatpush.msra.mxu0 %v3892
    %3923 = vmatpush.msra.mxu0 %v3889
    %3924 = vmatpush.msra.mxu0 %v3886
    %3925 = vmatpush.msra.mxu0 %v3883
    %3926 = vmatpush.msra.mxu0 %v3880
    %3927 = vmatpush.msra.mxu0 %v3877
    %3928 = vmatpush.msra.mxu0 %v3874
    %3929 = vmatpush.msra.mxu0 %v3871
    %3930 = vmatpush.msra.mxu0 %v3868
    %3931 = vmatpush.msra.mxu0 %v3865
    %3932 = vmatpush.msra.mxu0 %v3862
    %3933 = vmatpush.msra.mxu0 %v3859
    %3934 = vmatpush.msra.mxu0 %v3856
    %3935 = vmatpush.msra.mxu0 %v3853
    %3936 = vmatpush.msra.mxu0 %v3850
    %3937 = vmatpush.msra.mxu0 %v3847
    %3938 = vmatmul.f32.gmra.mxu0 %v3838
    %v3939 = vpop.f32.mrf.mxu0
    %v3940 = vadd.f32 %v3897, %v3939
    %3941 = vdwg.mxu0
    %3942 = vmatpush.msra.mxu0 %v3893
    %3943 = vmatpush.msra.mxu0 %v3890
    %3944 = vmatpush.msra.mxu0 %v3887
    %3945 = vmatpush.msra.mxu0 %v3884
    %3946 = vmatpush.msra.mxu0 %v3881
    %3947 = vmatpush.msra.mxu0 %v3878
    %3948 = vmatpush.msra.mxu0 %v3875
    %3949 = vmatpush.msra.mxu0 %v3872
    %3950 = vmatpush.msra.mxu0 %v3869
    %3951 = vmatpush.msra.mxu0 %v3866
    %3952 = vmatpush.msra.mxu0 %v3863
    %3953 = vmatpush.msra.mxu0 %v3860
    %3954 = vmatpush.msra.mxu0 %v3857
    %3955 = vmatpush.msra.mxu0 %v3854
    %3956 = vmatpush.msra.mxu0 %v3851
    %3957 = vmatpush.msra.mxu0 %v3848
    %3958 = vmatmul.f32.gmra.mxu0 %v3838
    %v3959 = vpop.f32.mrf.mxu0
    %v3960 = vadd.f32 %v3898, %v3959
    %3961 = vdwg.mxu0
    %v3962 = vld [vmem:[#allocation24] sm:$0xff]
    %v3963 = vld [vmem:[#allocation24 + $0x8] sm:$0xff]
    %v3964 = vld [vmem:[#allocation24 + $0x10] sm:$0xff]
    %v3965 = vld [vmem:[#allocation24 + $0x18] sm:$0xff]
    %v3966 = vld [vmem:[#allocation24 + $0x20] sm:$0xff]
    %v3967 = vld [vmem:[#allocation24 + $0x28] sm:$0xff]
    %v3968 = vld [vmem:[#allocation24 + $0x30] sm:$0xff]
    %v3969 = vld [vmem:[#allocation24 + $0x38] sm:$0xff]
    %v3970 = vld [vmem:[#allocation24 + $0x40] sm:$0xff]
    %v3971 = vld [vmem:[#allocation24 + $0x48] sm:$0xff]
    %v3972 = vld [vmem:[#allocation24 + $0x50] sm:$0xff]
    %v3973 = vld [vmem:[#allocation24 + $0x58] sm:$0xff]
    %v3974 = vld [vmem:[#allocation24 + $0x60] sm:$0xff]
    %v3975 = vld [vmem:[#allocation24 + $0x68] sm:$0xff]
    %v3976 = vld [vmem:[#allocation24 + $0x70] sm:$0xff]
    %v3977 = vld [vmem:[#allocation24 + $0x78] sm:$0xff]
    %v3978 = vld [vmem:[#allocation24 + $0x80] sm:$0xff]
    %v3979 = vld [vmem:[#allocation24 + $0x88] sm:$0xff]
    %v3980 = vld [vmem:[#allocation24 + $0x90] sm:$0xff]
    %v3981 = vld [vmem:[#allocation24 + $0x98] sm:$0xff]
    %v3982 = vld [vmem:[#allocation24 + $0xa0] sm:$0xff]
    %v3983 = vld [vmem:[#allocation24 + $0xa8] sm:$0xff]
    %v3984 = vld [vmem:[#allocation24 + $0xb0] sm:$0xff]
    %v3985 = vld [vmem:[#allocation24 + $0xb8] sm:$0xff]
    %v3986 = vld [vmem:[#allocation24 + $0xc0] sm:$0xff]
    %v3987 = vld [vmem:[#allocation24 + $0xc8] sm:$0xff]
    %v3988 = vld [vmem:[#allocation24 + $0xd0] sm:$0xff]
    %v3989 = vld [vmem:[#allocation24 + $0xd8] sm:$0xff]
    %v3990 = vld [vmem:[#allocation24 + $0xe0] sm:$0xff]
    %v3991 = vld [vmem:[#allocation24 + $0xe8] sm:$0xff]
    %v3992 = vld [vmem:[#allocation24 + $0xf0] sm:$0xff]
    %v3993 = vld [vmem:[#allocation24 + $0xf8] sm:$0xff]
    %v3994 = vld [vmem:[#allocation24 + $0x100] sm:$0xff]
    %v3995 = vld [vmem:[#allocation24 + $0x108] sm:$0xff]
    %v3996 = vld [vmem:[#allocation24 + $0x110] sm:$0xff]
    %v3997 = vld [vmem:[#allocation24 + $0x118] sm:$0xff]
    %v3998 = vld [vmem:[#allocation24 + $0x120] sm:$0xff]
    %v3999 = vld [vmem:[#allocation24 + $0x128] sm:$0xff]
    %v4000 = vld [vmem:[#allocation24 + $0x130] sm:$0xff]
    %v4001 = vld [vmem:[#allocation24 + $0x138] sm:$0xff]
    %v4002 = vld [vmem:[#allocation24 + $0x140] sm:$0xff]
    %v4003 = vld [vmem:[#allocation24 + $0x148] sm:$0xff]
    %v4004 = vld [vmem:[#allocation24 + $0x150] sm:$0xff]
    %v4005 = vld [vmem:[#allocation24 + $0x158] sm:$0xff]
    %v4006 = vld [vmem:[#allocation24 + $0x160] sm:$0xff]
    %v4007 = vld [vmem:[#allocation24 + $0x168] sm:$0xff]
    %v4008 = vld [vmem:[#allocation24 + $0x170] sm:$0xff]
    %v4009 = vld [vmem:[#allocation24 + $0x178] sm:$0xff]
    %v4010 = vld [vmem:[%s13] sm:$0x7]
    %v4012 = vperm.slane %v4010, 0
    %v4013 = vperm.slane %v4010, 1
    %v4014 = vperm.slane %v4010, 2
    %4018 = vmatpush.msra.mxu0 %v4007
    %4019 = vmatpush.msra.mxu0 %v4004
    %4020 = vmatpush.msra.mxu0 %v4001
    %4021 = vmatpush.msra.mxu0 %v3998
    %4022 = vmatpush.msra.mxu0 %v3995
    %4023 = vmatpush.msra.mxu0 %v3992
    %4024 = vmatpush.msra.mxu0 %v3989
    %4025 = vmatpush.msra.mxu0 %v3986
    %4026 = vmatpush.msra.mxu0 %v3983
    %4027 = vmatpush.msra.mxu0 %v3980
    %4028 = vmatpush.msra.mxu0 %v3977
    %4029 = vmatpush.msra.mxu0 %v3974
    %4030 = vmatpush.msra.mxu0 %v3971
    %4031 = vmatpush.msra.mxu0 %v3968
    %4032 = vmatpush.msra.mxu0 %v3965
    %4033 = vmatpush.msra.mxu0 %v3962
    %4034 = vmatmul.f32.gmra.mxu0 %v3520
    %v4035 = vpop.f32.mrf.mxu0
    %v4036 = vadd.f32 %v4012, %v4035
    %4037 = vdwg.mxu0
    %4038 = vmatpush.msra.mxu0 %v4008
    %4039 = vmatpush.msra.mxu0 %v4005
    %4040 = vmatpush.msra.mxu0 %v4002
    %4041 = vmatpush.msra.mxu0 %v3999
    %4042 = vmatpush.msra.mxu0 %v3996
    %4043 = vmatpush.msra.mxu0 %v3993
    %4044 = vmatpush.msra.mxu0 %v3990
    %4045 = vmatpush.msra.mxu0 %v3987
    %4046 = vmatpush.msra.mxu0 %v3984
    %4047 = vmatpush.msra.mxu0 %v3981
    %4048 = vmatpush.msra.mxu0 %v3978
    %4049 = vmatpush.msra.mxu0 %v3975
    %4050 = vmatpush.msra.mxu0 %v3972
    %4051 = vmatpush.msra.mxu0 %v3969
    %4052 = vmatpush.msra.mxu0 %v3966
    %4053 = vmatpush.msra.mxu0 %v3963
    %4054 = vmatmul.f32.gmra.mxu0 %v3520
    %v4055 = vpop.f32.mrf.mxu0
    %v4056 = vadd.f32 %v4013, %v4055
    %4057 = vdwg.mxu0
    %4058 = vmatpush.msra.mxu0 %v4009
    %4059 = vmatpush.msra.mxu0 %v4006
    %4060 = vmatpush.msra.mxu0 %v4003
    %4061 = vmatpush.msra.mxu0 %v4000
    %4062 = vmatpush.msra.mxu0 %v3997
    %4063 = vmatpush.msra.mxu0 %v3994
    %4064 = vmatpush.msra.mxu0 %v3991
    %4065 = vmatpush.msra.mxu0 %v3988
    %4066 = vmatpush.msra.mxu0 %v3985
    %4067 = vmatpush.msra.mxu0 %v3982
    %4068 = vmatpush.msra.mxu0 %v3979
    %4069 = vmatpush.msra.mxu0 %v3976
    %4070 = vmatpush.msra.mxu0 %v3973
    %4071 = vmatpush.msra.mxu0 %v3970
    %4072 = vmatpush.msra.mxu0 %v3967
    %4073 = vmatpush.msra.mxu0 %v3964
    %4074 = vmatmul.f32.gmra.mxu0 %v3520
    %v4075 = vpop.f32.mrf.mxu0
    %v4076 = vadd.f32 %v4014, %v4075
    %4077 = vdwg.mxu0
    %v4078 = vadd.f32 %v3920, %v4036
    %v4079 = vxor.u32 %v4078, 2147483648
    %v4080 = vmul.f32 %v4079, 1.442695
    %v4081 = vpow.pop %v4080
    %v4082 = vadd.f32 %v4081, 1.0
    %v4083 = vrcp.pop %v4082
    %v4084 = vmul.f32 %v4082, %v4083
    %v4085 = vsub.f32 1.0, %v4084
    %v4086 = vmul.f32 %v4083, %v4085
    %v4087 = vadd.f32 %v4083, %v4086
    %vm4088 = vweird.f32 %v4082
    %vm4089 = vweird.f32 %v4083
    %vm4090 = vmor %vm4088, %vm4089
    %v4091 = vsel %vm4090, %v4083, %v4087
    %v4092 = vand.u32 2147483647, %v4082
    %vm4093 = vcmp.eq.f32.partialorder %v4092, 8.507059e+37
    %v4094 = vand.u32 %v4082, 2147483648
    %v4095 = vor.u32 1.1754944e-38, %v4094
    %v4096 = vsel %vm4093, %v4095, %v4091
    %v4097 = vmul.f32 1.0, %v4096
    %v4098 = vadd.f32 %v3940, %v4056
    %v4099 = vxor.u32 %v4098, 2147483648
    %v4100 = vmul.f32 %v4099, 1.442695
    %v4101 = vpow.pop %v4100
    %v4102 = vadd.f32 %v4101, 1.0
    %v4103 = vrcp.pop %v4102
    %v4104 = vmul.f32 %v4102, %v4103
    %v4105 = vsub.f32 1.0, %v4104
    %v4106 = vmul.f32 %v4103, %v4105
    %v4107 = vadd.f32 %v4103, %v4106
    %vm4108 = vweird.f32 %v4102
    %vm4109 = vweird.f32 %v4103
    %vm4110 = vmor %vm4108, %vm4109
    %v4111 = vsel %vm4110, %v4103, %v4107
    %v4112 = vand.u32 2147483647, %v4102
    %vm4113 = vcmp.eq.f32.partialorder %v4112, 8.507059e+37
    %v4114 = vand.u32 %v4102, 2147483648
    %v4115 = vor.u32 1.1754944e-38, %v4114
    %v4116 = vsel %vm4113, %v4115, %v4111
    %v4117 = vmul.f32 1.0, %v4116
    %v4118 = vmul.f32 %v4097, %v4076
    %v4119 = vadd.f32 %v3960, %v4118
    %v4120 = vtanh.pop %v4119
    %v4121 = vsub.f32 1.0, %v4117
    %v4122 = vmul.f32 %v4121, %v4120
    %v4123 = vmul.f32 %v4117, %v3520
    %v4124 = vadd.f32 %v4122, %v4123
    %4125 = vmatpush.xpose.msra.mxu0 0.0
    %4126 = vmatpush.xpose.msra.mxu0 0.0
    %4127 = vmatpush.xpose.msra.mxu0 0.0
    %4128 = vmatpush.xpose.msra.mxu0 0.0
    %4129 = vmatpush.xpose.msra.mxu0 0.0
    %4130 = vmatpush.xpose.msra.mxu0 0.0
    %4131 = vmatpush.xpose.msra.mxu0 0.0
    %4132 = vmatpush.xpose.msra.mxu0 0.0
    %4133 = vmatpush.xpose.msra.mxu0 0.0
    %4134 = vmatpush.xpose.msra.mxu0 0.0
    %4135 = vmatpush.xpose.msra.mxu0 0.0
    %4136 = vmatpush.xpose.msra.mxu0 0.0
    %4137 = vmatpush.xpose.msra.mxu0 0.0
    %4138 = vmatpush.xpose.msra.mxu0 0.0
    %4139 = vmatpush.xpose.msra.mxu0 0.0
    %4140 = vmatpush.xpose.msra.mxu0 %v3230
    %4141 = vmatmul.f32.gmra.mxu0 %v4124
    %v4142 = vpop.f32.mrf.mxu0
    %v4143 = vadd.f32 0.0, %v4142
    %4144 = vdwg.mxu0
    %v4145 = vsel %vm3231, %v4143, -inf
    %4146 = vmax.xlane.f32.xlu0 %v4145
    %v4147 = vpop.xlane.xlu0 %4146
    %v4148 = vsub.f32 %v4143, %v4147
    %v4149 = vmul.f32 %v4148, 1.442695
    %v4150 = vpow.pop %v4149
    %v4151 = vsel %vm3231, %v4150, 0.0
    %4152 = vadd.xlane.f32.xlu0 %v4151
    %v4153 = vpop.xlane.xlu0 %4152
    %v4154 = vrcp.pop %v4153
    %v4155 = vmul.f32 %v4150, %v4154
    %v4157 = vsel %vm3552, %v4155, 0
    %4159 = vmatpush.msra.mxu0 0.0
    %4160 = vmatpush.msra.mxu0 0.0
    %4161 = vmatpush.msra.mxu0 0.0
    %4162 = vmatpush.msra.mxu0 0.0
    %4163 = vmatpush.msra.mxu0 0.0
    %4164 = vmatpush.msra.mxu0 0.0
    %4165 = vmatpush.msra.mxu0 0.0
    %4166 = vmatpush.msra.mxu0 0.0
    %4167 = vmatpush.msra.mxu0 0.0
    %4168 = vmatpush.msra.mxu0 0.0
    %4169 = vmatpush.msra.mxu0 0.0
    %4170 = vmatpush.msra.mxu0 0.0
    %4171 = vmatpush.msra.mxu0 0.0
    %4172 = vmatpush.msra.mxu0 0.0
    %4173 = vmatpush.msra.mxu0 0.0
    %4174 = vmatpush.msra.mxu0 %v3230
    %4175 = vmatmul.f32.gmra.mxu0 %v4157
    %v4176 = vpop.f32.mrf.mxu0
    %v4177 = vadd.f32 0.0, %v4176
    %4178 = vdwg.mxu0
    %v4179 = vld [vmem:[#allocation26] sm:$0xff]
    %v4180 = vld [vmem:[#allocation26 + $0x8] sm:$0xff]
    %v4181 = vld [vmem:[#allocation26 + $0x10] sm:$0xff]
    %v4182 = vld [vmem:[#allocation26 + $0x18] sm:$0xff]
    %v4183 = vld [vmem:[#allocation26 + $0x20] sm:$0xff]
    %v4184 = vld [vmem:[#allocation26 + $0x28] sm:$0xff]
    %v4185 = vld [vmem:[#allocation26 + $0x30] sm:$0xff]
    %v4186 = vld [vmem:[#allocation26 + $0x38] sm:$0xff]
    %v4187 = vld [vmem:[#allocation26 + $0x40] sm:$0xff]
    %v4188 = vld [vmem:[#allocation26 + $0x48] sm:$0xff]
    %v4189 = vld [vmem:[#allocation26 + $0x50] sm:$0xff]
    %v4190 = vld [vmem:[#allocation26 + $0x58] sm:$0xff]
    %v4191 = vld [vmem:[#allocation26 + $0x60] sm:$0xff]
    %v4192 = vld [vmem:[#allocation26 + $0x68] sm:$0xff]
    %v4193 = vld [vmem:[#allocation26 + $0x70] sm:$0xff]
    %v4194 = vld [vmem:[#allocation26 + $0x78] sm:$0xff]
    %v4195 = vld [vmem:[#allocation26 + $0x80] sm:$0xff]
    %v4196 = vld [vmem:[#allocation26 + $0x88] sm:$0xff]
    %v4197 = vld [vmem:[#allocation26 + $0x90] sm:$0xff]
    %v4198 = vld [vmem:[#allocation26 + $0x98] sm:$0xff]
    %v4199 = vld [vmem:[#allocation26 + $0xa0] sm:$0xff]
    %v4200 = vld [vmem:[#allocation26 + $0xa8] sm:$0xff]
    %v4201 = vld [vmem:[#allocation26 + $0xb0] sm:$0xff]
    %v4202 = vld [vmem:[#allocation26 + $0xb8] sm:$0xff]
    %v4203 = vld [vmem:[#allocation26 + $0xc0] sm:$0xff]
    %v4204 = vld [vmem:[#allocation26 + $0xc8] sm:$0xff]
    %v4205 = vld [vmem:[#allocation26 + $0xd0] sm:$0xff]
    %v4206 = vld [vmem:[#allocation26 + $0xd8] sm:$0xff]
    %v4207 = vld [vmem:[#allocation26 + $0xe0] sm:$0xff]
    %v4208 = vld [vmem:[#allocation26 + $0xe8] sm:$0xff]
    %v4209 = vld [vmem:[#allocation26 + $0xf0] sm:$0xff]
    %v4210 = vld [vmem:[#allocation26 + $0xf8] sm:$0xff]
    %v4211 = vld [vmem:[#allocation27] sm:$0x1]
    %4212 = vmatpush.msra.mxu0 %v4194
    %4213 = vmatpush.msra.mxu0 %v4193
    %4214 = vmatpush.msra.mxu0 %v4192
    %4215 = vmatpush.msra.mxu0 %v4191
    %4216 = vmatpush.msra.mxu0 %v4190
    %4217 = vmatpush.msra.mxu0 %v4189
    %4218 = vmatpush.msra.mxu0 %v4188
    %4219 = vmatpush.msra.mxu0 %v4187
    %4220 = vmatpush.msra.mxu0 %v4186
    %4221 = vmatpush.msra.mxu0 %v4185
    %4222 = vmatpush.msra.mxu0 %v4184
    %4223 = vmatpush.msra.mxu0 %v4183
    %4224 = vmatpush.msra.mxu0 %v4182
    %4225 = vmatpush.msra.mxu0 %v4181
    %4226 = vmatpush.msra.mxu0 %v4180
    %4227 = vmatpush.msra.mxu0 %v4179
    %4228 = vmatmul.f32.gmra.mxu0 %v4124
    %v4229 = vpop.f32.mrf.mxu0
    %v4230 = vadd.f32 %v4211, %v4229
    %4231 = vdwg.mxu0
    %4232 = vmatpush.msra.mxu0 %v4210
    %4233 = vmatpush.msra.mxu0 %v4209
    %4234 = vmatpush.msra.mxu0 %v4208
    %4235 = vmatpush.msra.mxu0 %v4207
    %4236 = vmatpush.msra.mxu0 %v4206
    %4237 = vmatpush.msra.mxu0 %v4205
    %4238 = vmatpush.msra.mxu0 %v4204
    %4239 = vmatpush.msra.mxu0 %v4203
    %4240 = vmatpush.msra.mxu0 %v4202
    %4241 = vmatpush.msra.mxu0 %v4201
    %4242 = vmatpush.msra.mxu0 %v4200
    %4243 = vmatpush.msra.mxu0 %v4199
    %4244 = vmatpush.msra.mxu0 %v4198
    %4245 = vmatpush.msra.mxu0 %v4197
    %4246 = vmatpush.msra.mxu0 %v4196
    %4247 = vmatpush.msra.mxu0 %v4195
    %4248 = vmatmul.f32.gmra.mxu0 %v4177
    %v4249 = vpop.f32.mrf.mxu0
    %v4250 = vadd.f32 %v4230, %v4249
    %4251 = vdwg.mxu0
    %v4252 = vtanh.pop %v4250
    %v4253 = vpack.c.bf16 %v4252, %v4252
    %v4254 = vld [vmem:[#allocation6] sm:$0xff]
    %v4255 = vld [vmem:[#allocation6 + $0x8] sm:$0xff]
    %v4256 = vld [vmem:[#allocation6 + $0x10] sm:$0xff]
    %v4257 = vld [vmem:[#allocation6 + $0x18] sm:$0xff]
    %v4258 = vld [vmem:[#allocation6 + $0x20] sm:$0xff]
    %v4259 = vld [vmem:[#allocation6 + $0x28] sm:$0xff]
    %v4260 = vld [vmem:[#allocation6 + $0x30] sm:$0xff]
    %v4261 = vld [vmem:[#allocation6 + $0x38] sm:$0xff]
    %v4262 = vld [vmem:[#allocation6 + $0x40] sm:$0xff]
    %v4263 = vld [vmem:[#allocation6 + $0x48] sm:$0xff]
    %v4264 = vld [vmem:[#allocation6 + $0x50] sm:$0xff]
    %v4265 = vld [vmem:[#allocation6 + $0x58] sm:$0xff]
    %v4266 = vld [vmem:[#allocation6 + $0x60] sm:$0xff]
    %v4267 = vld [vmem:[#allocation6 + $0x68] sm:$0xff]
    %v4268 = vld [vmem:[#allocation6 + $0x70] sm:$0xff]
    %v4269 = vld [vmem:[#allocation6 + $0x78] sm:$0xff]
    %v4270 = vld [vmem:[%s17] sm:$0x3]
    %v4287 = vunpack.c.l.b16 %v4254
    %v4288 = vunpack.c.h.b16 %v4254
    %v4289 = vunpack.c.l.b16 %v4255
    %v4290 = vunpack.c.h.b16 %v4255
    %v4291 = vunpack.c.l.b16 %v4256
    %v4292 = vunpack.c.h.b16 %v4256
    %v4293 = vunpack.c.l.b16 %v4257
    %v4294 = vunpack.c.h.b16 %v4257
    %v4295 = vunpack.c.l.b16 %v4258
    %v4296 = vunpack.c.h.b16 %v4258
    %v4297 = vunpack.c.l.b16 %v4259
    %v4298 = vunpack.c.h.b16 %v4259
    %v4299 = vunpack.c.l.b16 %v4260
    %v4300 = vunpack.c.h.b16 %v4260
    %v4301 = vunpack.c.l.b16 %v4261
    %v4302 = vunpack.c.h.b16 %v4261
    %v4303 = vunpack.c.l.b16 %v4262
    %v4304 = vunpack.c.h.b16 %v4262
    %v4305 = vunpack.c.l.b16 %v4263
    %v4306 = vunpack.c.h.b16 %v4263
    %v4307 = vunpack.c.l.b16 %v4264
    %v4308 = vunpack.c.h.b16 %v4264
    %v4309 = vunpack.c.l.b16 %v4265
    %v4310 = vunpack.c.h.b16 %v4265
    %v4311 = vunpack.c.l.b16 %v4266
    %v4312 = vunpack.c.h.b16 %v4266
    %v4313 = vunpack.c.l.b16 %v4267
    %v4314 = vunpack.c.h.b16 %v4267
    %v4315 = vunpack.c.l.b16 %v4268
    %v4316 = vunpack.c.h.b16 %v4268
    %v4317 = vunpack.c.l.b16 %v4269
    %v4318 = vunpack.c.h.b16 %v4269
    %v4319 = vpack.c.b16 %v4289, %v4287
    %v4320 = vpack.c.b16 %v4290, %v4288
    %v4321 = vpack.c.b16 %v4293, %v4291
    %v4322 = vpack.c.b16 %v4294, %v4292
    %v4323 = vpack.c.b16 %v4297, %v4295
    %v4324 = vpack.c.b16 %v4298, %v4296
    %v4325 = vpack.c.b16 %v4301, %v4299
    %v4326 = vpack.c.b16 %v4302, %v4300
    %v4327 = vpack.c.b16 %v4305, %v4303
    %v4328 = vpack.c.b16 %v4306, %v4304
    %v4329 = vpack.c.b16 %v4309, %v4307
    %v4330 = vpack.c.b16 %v4310, %v4308
    %v4331 = vpack.c.b16 %v4313, %v4311
    %v4332 = vpack.c.b16 %v4314, %v4312
    %v4333 = vpack.c.b16 %v4317, %v4315
    %v4334 = vpack.c.b16 %v4318, %v4316
    %v4352 = vperm.slane %v4270, 0
    %v4353 = vperm.slane %v4270, 1
    %4356 = vmatpush.bf16.msra.mxu0 %v4333
    %4357 = vmatpush.bf16.msra.mxu0 %v4331
    %4358 = vmatpush.bf16.msra.mxu0 %v4329
    %4359 = vmatpush.bf16.msra.mxu0 %v4327
    %4360 = vmatpush.bf16.msra.mxu0 %v4325
    %4361 = vmatpush.bf16.msra.mxu0 %v4323
    %4362 = vmatpush.bf16.msra.mxu0 %v4321
    %4363 = vmatpush.bf16.msra.mxu0 %v4319
    %4364 = vmatmul.bf16.gmra.mxu0 %v4253
    %v4365 = vpop.f32.mrf.mxu0
    %v4366 = vadd.f32 %v4352, %v4365
    %v4367 = vpop.f32.mrf.mxu0
    %4368 = vdwg.mxu0
    %4369 = vmatpush.bf16.msra.mxu0 %v4334
    %4370 = vmatpush.bf16.msra.mxu0 %v4332
    %4371 = vmatpush.bf16.msra.mxu0 %v4330
    %4372 = vmatpush.bf16.msra.mxu0 %v4328
    %4373 = vmatpush.bf16.msra.mxu0 %v4326
    %4374 = vmatpush.bf16.msra.mxu0 %v4324
    %4375 = vmatpush.bf16.msra.mxu0 %v4322
    %4376 = vmatpush.bf16.msra.mxu0 %v4320
    %4377 = vmatmul.bf16.gmra.mxu0 %v4253
    %v4378 = vpop.f32.mrf.mxu0
    %v4379 = vadd.f32 %v4353, %v4378
    %v4380 = vpop.f32.mrf.mxu0
    %4381 = vdwg.mxu0
    %v4382 = vsel %vm3779, %v4366, -inf
    %v4383 = vsel %vm3779, %v4379, -inf
    %v4384 = vmax.f32 %v4382, %v4383
    %4385 = vmax.xlane.f32.xlu0 %v4384
    %v4386 = vpop.xlane.xlu0 %4385
    %v4387 = vsub.f32 %v4366, %v4386
    %v4388 = vsub.f32 %v4379, %v4386
    %v4389 = vmul.f32 %v4387, 1.442695
    %v4390 = vpow.pop %v4389
    %v4391 = vmul.f32 %v4388, 1.442695
    %v4392 = vpow.pop %v4391
    %v4393 = vsel %vm3779, %v4390, 0.0
    %v4394 = vsel %vm3779, %v4392, 0.0
    %v4395 = vadd.f32 %v4393, %v4394
    %4396 = vadd.xlane.f32.xlu0 %v4395
    %v4397 = vpop.xlane.xlu0 %4396
    %v4398 = vrcp.pop %v4397
    %v4399 = vmul.f32 %v4397, %v4398
    %v4400 = vsub.f32 1.0, %v4399
    %v4401 = vmul.f32 %v4398, %v4400
    %v4402 = vadd.f32 %v4398, %v4401
    %vm4403 = vweird.f32 %v4397
    %vm4404 = vweird.f32 %v4398
    %vm4405 = vmor %vm4403, %vm4404
    %v4406 = vsel %vm4405, %v4398, %v4402
    %v4407 = vand.u32 2147483647, %v4397
    %vm4408 = vcmp.eq.f32.partialorder %v4407, 8.507059e+37
    %v4409 = vand.u32 %v4397, 2147483648
    %v4410 = vor.u32 1.1754944e-38, %v4409
    %v4411 = vsel %vm4408, %v4410, %v4406
    %v4412 = vmul.f32 1.0, %v4411
    %vm4413 = vcmp.eq.f32.partialorder %v4366, %v4386
    %vm4414 = vcmp.eq.f32.partialorder %v4379, %v4386
    %v4415 = vsel %vm4413, %v3235, 256
    %v4416 = vsel %vm4414, %v3236, 256
    %v4417 = vsel %vm3779, %v4415, 2147483647
    %v4418 = vsel %vm3779, %v4416, 2147483647
    %vm4419 = vcmp.lt.s32.totalorder %v4417, %v4418
    %v4420 = vsel %vm4419, %v4417, %v4418
    %v4421 = vand.u32 %v4420, 65535
    %v4422 = vshra.s32 %v4420, 16
    %v4423 = vcvt.s32.f32 %v4421
    %v4424 = vcvt.s32.f32 %v4422
    %4425 = vmin.xlane.f32.xlu0 %v4424
    %v4426 = vpop.xlane.xlu0 %4425
    %vm4427 = vcmp.eq.f32.partialorder %v4424, %v4426
    %v4428 = vsel %vm4427, %v4423, inf
    %4429 = vmin.xlane.f32.xlu0 %v4428
    %v4430 = vpop.xlane.xlu0 %4429
    %v4431 = vcvt.f32.s32 %v4430
    %v4432 = vcvt.f32.s32 %v4426
    %v4433 = vshll.u32 %v4432, 16
    %v4434 = vadd.s32 %v4433, %v4431
    %4435 = vst.msk [vmem:[#allocation8] sm:$0x1] %vm3833, %v4434
    %v4436 = vld [vmem:[#allocation8] sm:$0x1]
    %s4437 = vtos %v4436
    %s4438 = scalar_lea.vmem [#allocation12], %s4437
    %v4439 = vld [vmem:[%s4438] sm:$0x1]
    %vm4440 = vcmp.eq.s32.totalorder %v3235, 1
    %v4441 = vld [vmem:[#allocation29] sm:$0x1]
    %v4442 = vsel %vm4440, %v4434, %v4441
    %4443 = vst.msk [vmem:[#allocation29] sm:$0x1] %vm3231, %v4442
    %v4444 = vld [vmem:[#allocation30] sm:$0x1]
    %v4445 = vsel %vm4440, %v4412, %v4444
    %4446 = vst.msk [vmem:[#allocation30] sm:$0x1] %vm3231, %v4445
    %v4447 = vld [vmem:[#allocation23] sm:$0xff]
    %v4448 = vld [vmem:[#allocation23 + $0x8] sm:$0xff]
    %v4449 = vld [vmem:[#allocation23 + $0x10] sm:$0xff]
    %v4450 = vld [vmem:[#allocation23 + $0x18] sm:$0xff]
    %v4451 = vld [vmem:[#allocation23 + $0x20] sm:$0xff]
    %v4452 = vld [vmem:[#allocation23 + $0x28] sm:$0xff]
    %v4453 = vld [vmem:[#allocation23 + $0x30] sm:$0xff]
    %v4454 = vld [vmem:[#allocation23 + $0x38] sm:$0xff]
    %v4455 = vld [vmem:[#allocation23 + $0x40] sm:$0xff]
    %v4456 = vld [vmem:[#allocation23 + $0x48] sm:$0xff]
    %v4457 = vld [vmem:[#allocation23 + $0x50] sm:$0xff]
    %v4458 = vld [vmem:[#allocation23 + $0x58] sm:$0xff]
    %v4459 = vld [vmem:[#allocation23 + $0x60] sm:$0xff]
    %v4460 = vld [vmem:[#allocation23 + $0x68] sm:$0xff]
    %v4461 = vld [vmem:[#allocation23 + $0x70] sm:$0xff]
    %v4462 = vld [vmem:[#allocation23 + $0x78] sm:$0xff]
    %v4463 = vld [vmem:[#allocation23 + $0x80] sm:$0xff]
    %v4464 = vld [vmem:[#allocation23 + $0x88] sm:$0xff]
    %v4465 = vld [vmem:[#allocation23 + $0x90] sm:$0xff]
    %v4466 = vld [vmem:[#allocation23 + $0x98] sm:$0xff]
    %v4467 = vld [vmem:[#allocation23 + $0xa0] sm:$0xff]
    %v4468 = vld [vmem:[#allocation23 + $0xa8] sm:$0xff]
    %v4469 = vld [vmem:[#allocation23 + $0xb0] sm:$0xff]
    %v4470 = vld [vmem:[#allocation23 + $0xb8] sm:$0xff]
    %v4471 = vld [vmem:[#allocation23 + $0xc0] sm:$0xff]
    %v4472 = vld [vmem:[#allocation23 + $0xc8] sm:$0xff]
    %v4473 = vld [vmem:[#allocation23 + $0xd0] sm:$0xff]
    %v4474 = vld [vmem:[#allocation23 + $0xd8] sm:$0xff]
    %v4475 = vld [vmem:[#allocation23 + $0xe0] sm:$0xff]
    %v4476 = vld [vmem:[#allocation23 + $0xe8] sm:$0xff]
    %v4477 = vld [vmem:[#allocation23 + $0xf0] sm:$0xff]
    %v4478 = vld [vmem:[#allocation23 + $0xf8] sm:$0xff]
    %v4479 = vld [vmem:[#allocation23 + $0x100] sm:$0xff]
    %v4480 = vld [vmem:[#allocation23 + $0x108] sm:$0xff]
    %v4481 = vld [vmem:[#allocation23 + $0x110] sm:$0xff]
    %v4482 = vld [vmem:[#allocation23 + $0x118] sm:$0xff]
    %v4483 = vld [vmem:[#allocation23 + $0x120] sm:$0xff]
    %v4484 = vld [vmem:[#allocation23 + $0x128] sm:$0xff]
    %v4485 = vld [vmem:[#allocation23 + $0x130] sm:$0xff]
    %v4486 = vld [vmem:[#allocation23 + $0x138] sm:$0xff]
    %v4487 = vld [vmem:[#allocation23 + $0x140] sm:$0xff]
    %v4488 = vld [vmem:[#allocation23 + $0x148] sm:$0xff]
    %v4489 = vld [vmem:[#allocation23 + $0x150] sm:$0xff]
    %v4490 = vld [vmem:[#allocation23 + $0x158] sm:$0xff]
    %v4491 = vld [vmem:[#allocation23 + $0x160] sm:$0xff]
    %v4492 = vld [vmem:[#allocation23 + $0x168] sm:$0xff]
    %v4493 = vld [vmem:[#allocation23 + $0x170] sm:$0xff]
    %v4494 = vld [vmem:[#allocation23 + $0x178] sm:$0xff]
    %v4495 = vld [vmem:[%s12] sm:$0x7]
    %v4497 = vperm.slane %v4495, 0
    %v4498 = vperm.slane %v4495, 1
    %v4499 = vperm.slane %v4495, 2
    %4503 = vmatpush.msra.mxu0 %v4492
    %4504 = vmatpush.msra.mxu0 %v4489
    %4505 = vmatpush.msra.mxu0 %v4486
    %4506 = vmatpush.msra.mxu0 %v4483
    %4507 = vmatpush.msra.mxu0 %v4480
    %4508 = vmatpush.msra.mxu0 %v4477
    %4509 = vmatpush.msra.mxu0 %v4474
    %4510 = vmatpush.msra.mxu0 %v4471
    %4511 = vmatpush.msra.mxu0 %v4468
    %4512 = vmatpush.msra.mxu0 %v4465
    %4513 = vmatpush.msra.mxu0 %v4462
    %4514 = vmatpush.msra.mxu0 %v4459
    %4515 = vmatpush.msra.mxu0 %v4456
    %4516 = vmatpush.msra.mxu0 %v4453
    %4517 = vmatpush.msra.mxu0 %v4450
    %4518 = vmatpush.msra.mxu0 %v4447
    %4519 = vmatmul.f32.gmra.mxu0 %v4439
    %v4520 = vpop.f32.mrf.mxu0
    %v4521 = vadd.f32 %v4497, %v4520
    %4522 = vdwg.mxu0
    %4523 = vmatpush.msra.mxu0 %v4493
    %4524 = vmatpush.msra.mxu0 %v4490
    %4525 = vmatpush.msra.mxu0 %v4487
    %4526 = vmatpush.msra.mxu0 %v4484
    %4527 = vmatpush.msra.mxu0 %v4481
    %4528 = vmatpush.msra.mxu0 %v4478
    %4529 = vmatpush.msra.mxu0 %v4475
    %4530 = vmatpush.msra.mxu0 %v4472
    %4531 = vmatpush.msra.mxu0 %v4469
    %4532 = vmatpush.msra.mxu0 %v4466
    %4533 = vmatpush.msra.mxu0 %v4463
    %4534 = vmatpush.msra.mxu0 %v4460
    %4535 = vmatpush.msra.mxu0 %v4457
    %4536 = vmatpush.msra.mxu0 %v4454
    %4537 = vmatpush.msra.mxu0 %v4451
    %4538 = vmatpush.msra.mxu0 %v4448
    %4539 = vmatmul.f32.gmra.mxu0 %v4439
    %v4540 = vpop.f32.mrf.mxu0
    %v4541 = vadd.f32 %v4498, %v4540
    %4542 = vdwg.mxu0
    %4543 = vmatpush.msra.mxu0 %v4494
    %4544 = vmatpush.msra.mxu0 %v4491
    %4545 = vmatpush.msra.mxu0 %v4488
    %4546 = vmatpush.msra.mxu0 %v4485
    %4547 = vmatpush.msra.mxu0 %v4482
    %4548 = vmatpush.msra.mxu0 %v4479
    %4549 = vmatpush.msra.mxu0 %v4476
    %4550 = vmatpush.msra.mxu0 %v4473
    %4551 = vmatpush.msra.mxu0 %v4470
    %4552 = vmatpush.msra.mxu0 %v4467
    %4553 = vmatpush.msra.mxu0 %v4464
    %4554 = vmatpush.msra.mxu0 %v4461
    %4555 = vmatpush.msra.mxu0 %v4458
    %4556 = vmatpush.msra.mxu0 %v4455
    %4557 = vmatpush.msra.mxu0 %v4452
    %4558 = vmatpush.msra.mxu0 %v4449
    %4559 = vmatmul.f32.gmra.mxu0 %v4439
    %v4560 = vpop.f32.mrf.mxu0
    %v4561 = vadd.f32 %v4499, %v4560
    %4562 = vdwg.mxu0
    %v4563 = vld [vmem:[#allocation24] sm:$0xff]
    %v4564 = vld [vmem:[#allocation24 + $0x8] sm:$0xff]
    %v4565 = vld [vmem:[#allocation24 + $0x10] sm:$0xff]
    %v4566 = vld [vmem:[#allocation24 + $0x18] sm:$0xff]
    %v4567 = vld [vmem:[#allocation24 + $0x20] sm:$0xff]
    %v4568 = vld [vmem:[#allocation24 + $0x28] sm:$0xff]
    %v4569 = vld [vmem:[#allocation24 + $0x30] sm:$0xff]
    %v4570 = vld [vmem:[#allocation24 + $0x38] sm:$0xff]
    %v4571 = vld [vmem:[#allocation24 + $0x40] sm:$0xff]
    %v4572 = vld [vmem:[#allocation24 + $0x48] sm:$0xff]
    %v4573 = vld [vmem:[#allocation24 + $0x50] sm:$0xff]
    %v4574 = vld [vmem:[#allocation24 + $0x58] sm:$0xff]
    %v4575 = vld [vmem:[#allocation24 + $0x60] sm:$0xff]
    %v4576 = vld [vmem:[#allocation24 + $0x68] sm:$0xff]
    %v4577 = vld [vmem:[#allocation24 + $0x70] sm:$0xff]
    %v4578 = vld [vmem:[#allocation24 + $0x78] sm:$0xff]
    %v4579 = vld [vmem:[#allocation24 + $0x80] sm:$0xff]
    %v4580 = vld [vmem:[#allocation24 + $0x88] sm:$0xff]
    %v4581 = vld [vmem:[#allocation24 + $0x90] sm:$0xff]
    %v4582 = vld [vmem:[#allocation24 + $0x98] sm:$0xff]
    %v4583 = vld [vmem:[#allocation24 + $0xa0] sm:$0xff]
    %v4584 = vld [vmem:[#allocation24 + $0xa8] sm:$0xff]
    %v4585 = vld [vmem:[#allocation24 + $0xb0] sm:$0xff]
    %v4586 = vld [vmem:[#allocation24 + $0xb8] sm:$0xff]
    %v4587 = vld [vmem:[#allocation24 + $0xc0] sm:$0xff]
    %v4588 = vld [vmem:[#allocation24 + $0xc8] sm:$0xff]
    %v4589 = vld [vmem:[#allocation24 + $0xd0] sm:$0xff]
    %v4590 = vld [vmem:[#allocation24 + $0xd8] sm:$0xff]
    %v4591 = vld [vmem:[#allocation24 + $0xe0] sm:$0xff]
    %v4592 = vld [vmem:[#allocation24 + $0xe8] sm:$0xff]
    %v4593 = vld [vmem:[#allocation24 + $0xf0] sm:$0xff]
    %v4594 = vld [vmem:[#allocation24 + $0xf8] sm:$0xff]
    %v4595 = vld [vmem:[#allocation24 + $0x100] sm:$0xff]
    %v4596 = vld [vmem:[#allocation24 + $0x108] sm:$0xff]
    %v4597 = vld [vmem:[#allocation24 + $0x110] sm:$0xff]
    %v4598 = vld [vmem:[#allocation24 + $0x118] sm:$0xff]
    %v4599 = vld [vmem:[#allocation24 + $0x120] sm:$0xff]
    %v4600 = vld [vmem:[#allocation24 + $0x128] sm:$0xff]
    %v4601 = vld [vmem:[#allocation24 + $0x130] sm:$0xff]
    %v4602 = vld [vmem:[#allocation24 + $0x138] sm:$0xff]
    %v4603 = vld [vmem:[#allocation24 + $0x140] sm:$0xff]
    %v4604 = vld [vmem:[#allocation24 + $0x148] sm:$0xff]
    %v4605 = vld [vmem:[#allocation24 + $0x150] sm:$0xff]
    %v4606 = vld [vmem:[#allocation24 + $0x158] sm:$0xff]
    %v4607 = vld [vmem:[#allocation24 + $0x160] sm:$0xff]
    %v4608 = vld [vmem:[#allocation24 + $0x168] sm:$0xff]
    %v4609 = vld [vmem:[#allocation24 + $0x170] sm:$0xff]
    %v4610 = vld [vmem:[#allocation24 + $0x178] sm:$0xff]
    %v4611 = vld [vmem:[%s13] sm:$0x7]
    %v4613 = vperm.slane %v4611, 0
    %v4614 = vperm.slane %v4611, 1
    %v4615 = vperm.slane %v4611, 2
    %4619 = vmatpush.msra.mxu0 %v4608
    %4620 = vmatpush.msra.mxu0 %v4605
    %4621 = vmatpush.msra.mxu0 %v4602
    %4622 = vmatpush.msra.mxu0 %v4599
    %4623 = vmatpush.msra.mxu0 %v4596
    %4624 = vmatpush.msra.mxu0 %v4593
    %4625 = vmatpush.msra.mxu0 %v4590
    %4626 = vmatpush.msra.mxu0 %v4587
    %4627 = vmatpush.msra.mxu0 %v4584
    %4628 = vmatpush.msra.mxu0 %v4581
    %4629 = vmatpush.msra.mxu0 %v4578
    %4630 = vmatpush.msra.mxu0 %v4575
    %4631 = vmatpush.msra.mxu0 %v4572
    %4632 = vmatpush.msra.mxu0 %v4569
    %4633 = vmatpush.msra.mxu0 %v4566
    %4634 = vmatpush.msra.mxu0 %v4563
    %4635 = vmatmul.f32.gmra.mxu0 %v4124
    %v4636 = vpop.f32.mrf.mxu0
    %v4637 = vadd.f32 %v4613, %v4636
    %4638 = vdwg.mxu0
    %4639 = vmatpush.msra.mxu0 %v4609
    %4640 = vmatpush.msra.mxu0 %v4606
    %4641 = vmatpush.msra.mxu0 %v4603
    %4642 = vmatpush.msra.mxu0 %v4600
    %4643 = vmatpush.msra.mxu0 %v4597
    %4644 = vmatpush.msra.mxu0 %v4594
    %4645 = vmatpush.msra.mxu0 %v4591
    %4646 = vmatpush.msra.mxu0 %v4588
    %4647 = vmatpush.msra.mxu0 %v4585
    %4648 = vmatpush.msra.mxu0 %v4582
    %4649 = vmatpush.msra.mxu0 %v4579
    %4650 = vmatpush.msra.mxu0 %v4576
    %4651 = vmatpush.msra.mxu0 %v4573
    %4652 = vmatpush.msra.mxu0 %v4570
    %4653 = vmatpush.msra.mxu0 %v4567
    %4654 = vmatpush.msra.mxu0 %v4564
    %4655 = vmatmul.f32.gmra.mxu0 %v4124
    %v4656 = vpop.f32.mrf.mxu0
    %v4657 = vadd.f32 %v4614, %v4656
    %4658 = vdwg.mxu0
    %4659 = vmatpush.msra.mxu0 %v4610
    %4660 = vmatpush.msra.mxu0 %v4607
    %4661 = vmatpush.msra.mxu0 %v4604
    %4662 = vmatpush.msra.mxu0 %v4601
    %4663 = vmatpush.msra.mxu0 %v4598
    %4664 = vmatpush.msra.mxu0 %v4595
    %4665 = vmatpush.msra.mxu0 %v4592
    %4666 = vmatpush.msra.mxu0 %v4589
    %4667 = vmatpush.msra.mxu0 %v4586
    %4668 = vmatpush.msra.mxu0 %v4583
    %4669 = vmatpush.msra.mxu0 %v4580
    %4670 = vmatpush.msra.mxu0 %v4577
    %4671 = vmatpush.msra.mxu0 %v4574
    %4672 = vmatpush.msra.mxu0 %v4571
    %4673 = vmatpush.msra.mxu0 %v4568
    %4674 = vmatpush.msra.mxu0 %v4565
    %4675 = vmatmul.f32.gmra.mxu0 %v4124
    %v4676 = vpop.f32.mrf.mxu0
    %v4677 = vadd.f32 %v4615, %v4676
    %4678 = vdwg.mxu0
    %v4679 = vadd.f32 %v4521, %v4637
    %v4680 = vxor.u32 %v4679, 2147483648
    %v4681 = vmul.f32 %v4680, 1.442695
    %v4682 = vpow.pop %v4681
    %v4683 = vadd.f32 %v4682, 1.0
    %v4684 = vrcp.pop %v4683
    %v4685 = vmul.f32 %v4683, %v4684
    %v4686 = vsub.f32 1.0, %v4685
    %v4687 = vmul.f32 %v4684, %v4686
    %v4688 = vadd.f32 %v4684, %v4687
    %vm4689 = vweird.f32 %v4683
    %vm4690 = vweird.f32 %v4684
    %vm4691 = vmor %vm4689, %vm4690
    %v4692 = vsel %vm4691, %v4684, %v4688
    %v4693 = vand.u32 2147483647, %v4683
    %vm4694 = vcmp.eq.f32.partialorder %v4693, 8.507059e+37
    %v4695 = vand.u32 %v4683, 2147483648
    %v4696 = vor.u32 1.1754944e-38, %v4695
    %v4697 = vsel %vm4694, %v4696, %v4692
    %v4698 = vmul.f32 1.0, %v4697
    %v4699 = vadd.f32 %v4541, %v4657
    %v4700 = vxor.u32 %v4699, 2147483648
    %v4701 = vmul.f32 %v4700, 1.442695
    %v4702 = vpow.pop %v4701
    %v4703 = vadd.f32 %v4702, 1.0
    %v4704 = vrcp.pop %v4703
    %v4705 = vmul.f32 %v4703, %v4704
    %v4706 = vsub.f32 1.0, %v4705
    %v4707 = vmul.f32 %v4704, %v4706
    %v4708 = vadd.f32 %v4704, %v4707
    %vm4709 = vweird.f32 %v4703
    %vm4710 = vweird.f32 %v4704
    %vm4711 = vmor %vm4709, %vm4710
    %v4712 = vsel %vm4711, %v4704, %v4708
    %v4713 = vand.u32 2147483647, %v4703
    %vm4714 = vcmp.eq.f32.partialorder %v4713, 8.507059e+37
    %v4715 = vand.u32 %v4703, 2147483648
    %v4716 = vor.u32 1.1754944e-38, %v4715
    %v4717 = vsel %vm4714, %v4716, %v4712
    %v4718 = vmul.f32 1.0, %v4717
    %v4719 = vmul.f32 %v4698, %v4677
    %v4720 = vadd.f32 %v4561, %v4719
    %v4721 = vtanh.pop %v4720
    %v4722 = vsub.f32 1.0, %v4718
    %v4723 = vmul.f32 %v4722, %v4721
    %v4724 = vmul.f32 %v4718, %v4124
    %v4725 = vadd.f32 %v4723, %v4724
    %4726 = vmatpush.xpose.msra.mxu0 0.0
    %4727 = vmatpush.xpose.msra.mxu0 0.0
    %4728 = vmatpush.xpose.msra.mxu0 0.0
    %4729 = vmatpush.xpose.msra.mxu0 0.0
    %4730 = vmatpush.xpose.msra.mxu0 0.0
    %4731 = vmatpush.xpose.msra.mxu0 0.0
    %4732 = vmatpush.xpose.msra.mxu0 0.0
    %4733 = vmatpush.xpose.msra.mxu0 0.0
    %4734 = vmatpush.xpose.msra.mxu0 0.0
    %4735 = vmatpush.xpose.msra.mxu0 0.0
    %4736 = vmatpush.xpose.msra.mxu0 0.0
    %4737 = vmatpush.xpose.msra.mxu0 0.0
    %4738 = vmatpush.xpose.msra.mxu0 0.0
    %4739 = vmatpush.xpose.msra.mxu0 0.0
    %4740 = vmatpush.xpose.msra.mxu0 0.0
    %4741 = vmatpush.xpose.msra.mxu0 %v3230
    %4742 = vmatmul.f32.gmra.mxu0 %v4725
    %v4743 = vpop.f32.mrf.mxu0
    %v4744 = vadd.f32 0.0, %v4743
    %4745 = vdwg.mxu0
    %v4746 = vsel %vm3231, %v4744, -inf
    %4747 = vmax.xlane.f32.xlu0 %v4746
    %v4748 = vpop.xlane.xlu0 %4747
    %v4749 = vsub.f32 %v4744, %v4748
    %v4750 = vmul.f32 %v4749, 1.442695
    %v4751 = vpow.pop %v4750
    %v4752 = vsel %vm3231, %v4751, 0.0
    %4753 = vadd.xlane.f32.xlu0 %v4752
    %v4754 = vpop.xlane.xlu0 %4753
    %v4755 = vrcp.pop %v4754
    %v4756 = vmul.f32 %v4751, %v4755
    %v4758 = vsel %vm3552, %v4756, 0
    %4760 = vmatpush.msra.mxu0 0.0
    %4761 = vmatpush.msra.mxu0 0.0
    %4762 = vmatpush.msra.mxu0 0.0
    %4763 = vmatpush.msra.mxu0 0.0
    %4764 = vmatpush.msra.mxu0 0.0
    %4765 = vmatpush.msra.mxu0 0.0
    %4766 = vmatpush.msra.mxu0 0.0
    %4767 = vmatpush.msra.mxu0 0.0
    %4768 = vmatpush.msra.mxu0 0.0
    %4769 = vmatpush.msra.mxu0 0.0
    %4770 = vmatpush.msra.mxu0 0.0
    %4771 = vmatpush.msra.mxu0 0.0
    %4772 = vmatpush.msra.mxu0 0.0
    %4773 = vmatpush.msra.mxu0 0.0
    %4774 = vmatpush.msra.mxu0 0.0
    %4775 = vmatpush.msra.mxu0 %v3230
    %4776 = vmatmul.f32.gmra.mxu0 %v4758
    %v4777 = vpop.f32.mrf.mxu0
    %v4778 = vadd.f32 0.0, %v4777
    %4779 = vdwg.mxu0
    %v4780 = vld [vmem:[#allocation26] sm:$0xff]
    %v4781 = vld [vmem:[#allocation26 + $0x8] sm:$0xff]
    %v4782 = vld [vmem:[#allocation26 + $0x10] sm:$0xff]
    %v4783 = vld [vmem:[#allocation26 + $0x18] sm:$0xff]
    %v4784 = vld [vmem:[#allocation26 + $0x20] sm:$0xff]
    %v4785 = vld [vmem:[#allocation26 + $0x28] sm:$0xff]
    %v4786 = vld [vmem:[#allocation26 + $0x30] sm:$0xff]
    %v4787 = vld [vmem:[#allocation26 + $0x38] sm:$0xff]
    %v4788 = vld [vmem:[#allocation26 + $0x40] sm:$0xff]
    %v4789 = vld [vmem:[#allocation26 + $0x48] sm:$0xff]
    %v4790 = vld [vmem:[#allocation26 + $0x50] sm:$0xff]
    %v4791 = vld [vmem:[#allocation26 + $0x58] sm:$0xff]
    %v4792 = vld [vmem:[#allocation26 + $0x60] sm:$0xff]
    %v4793 = vld [vmem:[#allocation26 + $0x68] sm:$0xff]
    %v4794 = vld [vmem:[#allocation26 + $0x70] sm:$0xff]
    %v4795 = vld [vmem:[#allocation26 + $0x78] sm:$0xff]
    %v4796 = vld [vmem:[#allocation26 + $0x80] sm:$0xff]
    %v4797 = vld [vmem:[#allocation26 + $0x88] sm:$0xff]
    %v4798 = vld [vmem:[#allocation26 + $0x90] sm:$0xff]
    %v4799 = vld [vmem:[#allocation26 + $0x98] sm:$0xff]
    %v4800 = vld [vmem:[#allocation26 + $0xa0] sm:$0xff]
    %v4801 = vld [vmem:[#allocation26 + $0xa8] sm:$0xff]
    %v4802 = vld [vmem:[#allocation26 + $0xb0] sm:$0xff]
    %v4803 = vld [vmem:[#allocation26 + $0xb8] sm:$0xff]
    %v4804 = vld [vmem:[#allocation26 + $0xc0] sm:$0xff]
    %v4805 = vld [vmem:[#allocation26 + $0xc8] sm:$0xff]
    %v4806 = vld [vmem:[#allocation26 + $0xd0] sm:$0xff]
    %v4807 = vld [vmem:[#allocation26 + $0xd8] sm:$0xff]
    %v4808 = vld [vmem:[#allocation26 + $0xe0] sm:$0xff]
    %v4809 = vld [vmem:[#allocation26 + $0xe8] sm:$0xff]
    %v4810 = vld [vmem:[#allocation26 + $0xf0] sm:$0xff]
    %v4811 = vld [vmem:[#allocation26 + $0xf8] sm:$0xff]
    %v4812 = vld [vmem:[#allocation27] sm:$0x1]
    %4813 = vmatpush.msra.mxu0 %v4795
    %4814 = vmatpush.msra.mxu0 %v4794
    %4815 = vmatpush.msra.mxu0 %v4793
    %4816 = vmatpush.msra.mxu0 %v4792
    %4817 = vmatpush.msra.mxu0 %v4791
    %4818 = vmatpush.msra.mxu0 %v4790
    %4819 = vmatpush.msra.mxu0 %v4789
    %4820 = vmatpush.msra.mxu0 %v4788
    %4821 = vmatpush.msra.mxu0 %v4787
    %4822 = vmatpush.msra.mxu0 %v4786
    %4823 = vmatpush.msra.mxu0 %v4785
    %4824 = vmatpush.msra.mxu0 %v4784
    %4825 = vmatpush.msra.mxu0 %v4783
    %4826 = vmatpush.msra.mxu0 %v4782
    %4827 = vmatpush.msra.mxu0 %v4781
    %4828 = vmatpush.msra.mxu0 %v4780
    %4829 = vmatmul.f32.gmra.mxu0 %v4725
    %v4830 = vpop.f32.mrf.mxu0
    %v4831 = vadd.f32 %v4812, %v4830
    %4832 = vdwg.mxu0
    %4833 = vmatpush.msra.mxu0 %v4811
    %4834 = vmatpush.msra.mxu0 %v4810
    %4835 = vmatpush.msra.mxu0 %v4809
    %4836 = vmatpush.msra.mxu0 %v4808
    %4837 = vmatpush.msra.mxu0 %v4807
    %4838 = vmatpush.msra.mxu0 %v4806
    %4839 = vmatpush.msra.mxu0 %v4805
    %4840 = vmatpush.msra.mxu0 %v4804
    %4841 = vmatpush.msra.mxu0 %v4803
    %4842 = vmatpush.msra.mxu0 %v4802
    %4843 = vmatpush.msra.mxu0 %v4801
    %4844 = vmatpush.msra.mxu0 %v4800
    %4845 = vmatpush.msra.mxu0 %v4799
    %4846 = vmatpush.msra.mxu0 %v4798
    %4847 = vmatpush.msra.mxu0 %v4797
    %4848 = vmatpush.msra.mxu0 %v4796
    %4849 = vmatmul.f32.gmra.mxu0 %v4778
    %v4850 = vpop.f32.mrf.mxu0
    %v4851 = vadd.f32 %v4831, %v4850
    %4852 = vdwg.mxu0
    %v4853 = vtanh.pop %v4851
    %v4854 = vpack.c.bf16 %v4853, %v4853
    %v4855 = vld [vmem:[#allocation6] sm:$0xff]
    %v4856 = vld [vmem:[#allocation6 + $0x8] sm:$0xff]
    %v4857 = vld [vmem:[#allocation6 + $0x10] sm:$0xff]
    %v4858 = vld [vmem:[#allocation6 + $0x18] sm:$0xff]
    %v4859 = vld [vmem:[#allocation6 + $0x20] sm:$0xff]
    %v4860 = vld [vmem:[#allocation6 + $0x28] sm:$0xff]
    %v4861 = vld [vmem:[#allocation6 + $0x30] sm:$0xff]
    %v4862 = vld [vmem:[#allocation6 + $0x38] sm:$0xff]
    %v4863 = vld [vmem:[#allocation6 + $0x40] sm:$0xff]
    %v4864 = vld [vmem:[#allocation6 + $0x48] sm:$0xff]
    %v4865 = vld [vmem:[#allocation6 + $0x50] sm:$0xff]
    %v4866 = vld [vmem:[#allocation6 + $0x58] sm:$0xff]
    %v4867 = vld [vmem:[#allocation6 + $0x60] sm:$0xff]
    %v4868 = vld [vmem:[#allocation6 + $0x68] sm:$0xff]
    %v4869 = vld [vmem:[#allocation6 + $0x70] sm:$0xff]
    %v4870 = vld [vmem:[#allocation6 + $0x78] sm:$0xff]
    %v4871 = vld [vmem:[%s17] sm:$0x3]
    %v4888 = vunpack.c.l.b16 %v4855
    %v4889 = vunpack.c.h.b16 %v4855
    %v4890 = vunpack.c.l.b16 %v4856
    %v4891 = vunpack.c.h.b16 %v4856
    %v4892 = vunpack.c.l.b16 %v4857
    %v4893 = vunpack.c.h.b16 %v4857
    %v4894 = vunpack.c.l.b16 %v4858
    %v4895 = vunpack.c.h.b16 %v4858
    %v4896 = vunpack.c.l.b16 %v4859
    %v4897 = vunpack.c.h.b16 %v4859
    %v4898 = vunpack.c.l.b16 %v4860
    %v4899 = vunpack.c.h.b16 %v4860
    %v4900 = vunpack.c.l.b16 %v4861
    %v4901 = vunpack.c.h.b16 %v4861
    %v4902 = vunpack.c.l.b16 %v4862
    %v4903 = vunpack.c.h.b16 %v4862
    %v4904 = vunpack.c.l.b16 %v4863
    %v4905 = vunpack.c.h.b16 %v4863
    %v4906 = vunpack.c.l.b16 %v4864
    %v4907 = vunpack.c.h.b16 %v4864
    %v4908 = vunpack.c.l.b16 %v4865
    %v4909 = vunpack.c.h.b16 %v4865
    %v4910 = vunpack.c.l.b16 %v4866
    %v4911 = vunpack.c.h.b16 %v4866
    %v4912 = vunpack.c.l.b16 %v4867
    %v4913 = vunpack.c.h.b16 %v4867
    %v4914 = vunpack.c.l.b16 %v4868
    %v4915 = vunpack.c.h.b16 %v4868
    %v4916 = vunpack.c.l.b16 %v4869
    %v4917 = vunpack.c.h.b16 %v4869
    %v4918 = vunpack.c.l.b16 %v4870
    %v4919 = vunpack.c.h.b16 %v4870
    %v4920 = vpack.c.b16 %v4890, %v4888
    %v4921 = vpack.c.b16 %v4891, %v4889
    %v4922 = vpack.c.b16 %v4894, %v4892
    %v4923 = vpack.c.b16 %v4895, %v4893
    %v4924 = vpack.c.b16 %v4898, %v4896
    %v4925 = vpack.c.b16 %v4899, %v4897
    %v4926 = vpack.c.b16 %v4902, %v4900
    %v4927 = vpack.c.b16 %v4903, %v4901
    %v4928 = vpack.c.b16 %v4906, %v4904
    %v4929 = vpack.c.b16 %v4907, %v4905
    %v4930 = vpack.c.b16 %v4910, %v4908
    %v4931 = vpack.c.b16 %v4911, %v4909
    %v4932 = vpack.c.b16 %v4914, %v4912
    %v4933 = vpack.c.b16 %v4915, %v4913
    %v4934 = vpack.c.b16 %v4918, %v4916
    %v4935 = vpack.c.b16 %v4919, %v4917
    %v4953 = vperm.slane %v4871, 0
    %v4954 = vperm.slane %v4871, 1
    %4957 = vmatpush.bf16.msra.mxu0 %v4934
    %4958 = vmatpush.bf16.msra.mxu0 %v4932
    %4959 = vmatpush.bf16.msra.mxu0 %v4930
    %4960 = vmatpush.bf16.msra.mxu0 %v4928
    %4961 = vmatpush.bf16.msra.mxu0 %v4926
    %4962 = vmatpush.bf16.msra.mxu0 %v4924
    %4963 = vmatpush.bf16.msra.mxu0 %v4922
    %4964 = vmatpush.bf16.msra.mxu0 %v4920
    %4965 = vmatmul.bf16.gmra.mxu0 %v4854
    %v4966 = vpop.f32.mrf.mxu0
    %v4967 = vadd.f32 %v4953, %v4966
    %v4968 = vpop.f32.mrf.mxu0
    %4969 = vdwg.mxu0
    %4970 = vmatpush.bf16.msra.mxu0 %v4935
    %4971 = vmatpush.bf16.msra.mxu0 %v4933
    %4972 = vmatpush.bf16.msra.mxu0 %v4931
    %4973 = vmatpush.bf16.msra.mxu0 %v4929
    %4974 = vmatpush.bf16.msra.mxu0 %v4927
    %4975 = vmatpush.bf16.msra.mxu0 %v4925
    %4976 = vmatpush.bf16.msra.mxu0 %v4923
    %4977 = vmatpush.bf16.msra.mxu0 %v4921
    %4978 = vmatmul.bf16.gmra.mxu0 %v4854
    %v4979 = vpop.f32.mrf.mxu0
    %v4980 = vadd.f32 %v4954, %v4979
    %v4981 = vpop.f32.mrf.mxu0
    %4982 = vdwg.mxu0
    %v4983 = vsel %vm3779, %v4967, -inf
    %v4984 = vsel %vm3779, %v4980, -inf
    %v4985 = vmax.f32 %v4983, %v4984
    %4986 = vmax.xlane.f32.xlu0 %v4985
    %v4987 = vpop.xlane.xlu0 %4986
    %v4988 = vsub.f32 %v4967, %v4987
    %v4989 = vsub.f32 %v4980, %v4987
    %v4990 = vmul.f32 %v4988, 1.442695
    %v4991 = vpow.pop %v4990
    %v4992 = vmul.f32 %v4989, 1.442695
    %v4993 = vpow.pop %v4992
    %v4994 = vsel %vm3779, %v4991, 0.0
    %v4995 = vsel %vm3779, %v4993, 0.0
    %v4996 = vadd.f32 %v4994, %v4995
    %4997 = vadd.xlane.f32.xlu0 %v4996
    %v4998 = vpop.xlane.xlu0 %4997
    %v4999 = vrcp.pop %v4998
    %v5000 = vmul.f32 %v4998, %v4999
    %v5001 = vsub.f32 1.0, %v5000
    %v5002 = vmul.f32 %v4999, %v5001
    %v5003 = vadd.f32 %v4999, %v5002
    %vm5004 = vweird.f32 %v4998
    %vm5005 = vweird.f32 %v4999
    %vm5006 = vmor %vm5004, %vm5005
    %v5007 = vsel %vm5006, %v4999, %v5003
    %v5008 = vand.u32 2147483647, %v4998
    %vm5009 = vcmp.eq.f32.partialorder %v5008, 8.507059e+37
    %v5010 = vand.u32 %v4998, 2147483648
    %v5011 = vor.u32 1.1754944e-38, %v5010
    %v5012 = vsel %vm5009, %v5011, %v5007
    %v5013 = vmul.f32 1.0, %v5012
    %vm5014 = vcmp.eq.f32.partialorder %v4967, %v4987
    %vm5015 = vcmp.eq.f32.partialorder %v4980, %v4987
    %v5016 = vsel %vm5014, %v3235, 256
    %v5017 = vsel %vm5015, %v3236, 256
    %v5018 = vsel %vm3779, %v5016, 2147483647
    %v5019 = vsel %vm3779, %v5017, 2147483647
    %vm5020 = vcmp.lt.s32.totalorder %v5018, %v5019
    %v5021 = vsel %vm5020, %v5018, %v5019
    %v5022 = vand.u32 %v5021, 65535
    %v5023 = vshra.s32 %v5021, 16
    %v5024 = vcvt.s32.f32 %v5022
    %v5025 = vcvt.s32.f32 %v5023
    %5026 = vmin.xlane.f32.xlu0 %v5025
    %v5027 = vpop.xlane.xlu0 %5026
    %vm5028 = vcmp.eq.f32.partialorder %v5025, %v5027
    %v5029 = vsel %vm5028, %v5024, inf
    %5030 = vmin.xlane.f32.xlu0 %v5029
    %v5031 = vpop.xlane.xlu0 %5030
    %v5032 = vcvt.f32.s32 %v5031
    %v5033 = vcvt.f32.s32 %v5027
    %v5034 = vshll.u32 %v5033, 16
    %v5035 = vadd.s32 %v5034, %v5032
    %5036 = vst.msk [vmem:[#allocation8] sm:$0x1] %vm3833, %v5035
    %v5037 = vld [vmem:[#allocation8] sm:$0x1]
    %s5038 = vtos %v5037
    %s5039 = scalar_lea.vmem [#allocation12], %s5038
    %v5040 = vld [vmem:[%s5039] sm:$0x1]
    %vm5041 = vcmp.eq.s32.totalorder %v3235, 2
    %v5042 = vld [vmem:[#allocation29] sm:$0x1]
    %v5043 = vsel %vm5041, %v5035, %v5042
    %5044 = vst.msk [vmem:[#allocation29] sm:$0x1] %vm3231, %v5043
    %v5045 = vld [vmem:[#allocation30] sm:$0x1]
    %v5046 = vsel %vm5041, %v5013, %v5045
    %5047 = vst.msk [vmem:[#allocation30] sm:$0x1] %vm3231, %v5046
    %v5048 = vld [vmem:[#allocation23] sm:$0xff]
    %v5049 = vld [vmem:[#allocation23 + $0x8] sm:$0xff]
    %v5050 = vld [vmem:[#allocation23 + $0x10] sm:$0xff]
    %v5051 = vld [vmem:[#allocation23 + $0x18] sm:$0xff]
    %v5052 = vld [vmem:[#allocation23 + $0x20] sm:$0xff]
    %v5053 = vld [vmem:[#allocation23 + $0x28] sm:$0xff]
    %v5054 = vld [vmem:[#allocation23 + $0x30] sm:$0xff]
    %v5055 = vld [vmem:[#allocation23 + $0x38] sm:$0xff]
    %v5056 = vld [vmem:[#allocation23 + $0x40] sm:$0xff]
    %v5057 = vld [vmem:[#allocation23 + $0x48] sm:$0xff]
    %v5058 = vld [vmem:[#allocation23 + $0x50] sm:$0xff]
    %v5059 = vld [vmem:[#allocation23 + $0x58] sm:$0xff]
    %v5060 = vld [vmem:[#allocation23 + $0x60] sm:$0xff]
    %v5061 = vld [vmem:[#allocation23 + $0x68] sm:$0xff]
    %v5062 = vld [vmem:[#allocation23 + $0x70] sm:$0xff]
    %v5063 = vld [vmem:[#allocation23 + $0x78] sm:$0xff]
    %v5064 = vld [vmem:[#allocation23 + $0x80] sm:$0xff]
    %v5065 = vld [vmem:[#allocation23 + $0x88] sm:$0xff]
    %v5066 = vld [vmem:[#allocation23 + $0x90] sm:$0xff]
    %v5067 = vld [vmem:[#allocation23 + $0x98] sm:$0xff]
    %v5068 = vld [vmem:[#allocation23 + $0xa0] sm:$0xff]
    %v5069 = vld [vmem:[#allocation23 + $0xa8] sm:$0xff]
    %v5070 = vld [vmem:[#allocation23 + $0xb0] sm:$0xff]
    %v5071 = vld [vmem:[#allocation23 + $0xb8] sm:$0xff]
    %v5072 = vld [vmem:[#allocation23 + $0xc0] sm:$0xff]
    %v5073 = vld [vmem:[#allocation23 + $0xc8] sm:$0xff]
    %v5074 = vld [vmem:[#allocation23 + $0xd0] sm:$0xff]
    %v5075 = vld [vmem:[#allocation23 + $0xd8] sm:$0xff]
    %v5076 = vld [vmem:[#allocation23 + $0xe0] sm:$0xff]
    %v5077 = vld [vmem:[#allocation23 + $0xe8] sm:$0xff]
    %v5078 = vld [vmem:[#allocation23 + $0xf0] sm:$0xff]
    %v5079 = vld [vmem:[#allocation23 + $0xf8] sm:$0xff]
    %v5080 = vld [vmem:[#allocation23 + $0x100] sm:$0xff]
    %v5081 = vld [vmem:[#allocation23 + $0x108] sm:$0xff]
    %v5082 = vld [vmem:[#allocation23 + $0x110] sm:$0xff]
    %v5083 = vld [vmem:[#allocation23 + $0x118] sm:$0xff]
    %v5084 = vld [vmem:[#allocation23 + $0x120] sm:$0xff]
    %v5085 = vld [vmem:[#allocation23 + $0x128] sm:$0xff]
    %v5086 = vld [vmem:[#allocation23 + $0x130] sm:$0xff]
    %v5087 = vld [vmem:[#allocation23 + $0x138] sm:$0xff]
    %v5088 = vld [vmem:[#allocation23 + $0x140] sm:$0xff]
    %v5089 = vld [vmem:[#allocation23 + $0x148] sm:$0xff]
    %v5090 = vld [vmem:[#allocation23 + $0x150] sm:$0xff]
    %v5091 = vld [vmem:[#allocation23 + $0x158] sm:$0xff]
    %v5092 = vld [vmem:[#allocation23 + $0x160] sm:$0xff]
    %v5093 = vld [vmem:[#allocation23 + $0x168] sm:$0xff]
    %v5094 = vld [vmem:[#allocation23 + $0x170] sm:$0xff]
    %v5095 = vld [vmem:[#allocation23 + $0x178] sm:$0xff]
    %v5096 = vld [vmem:[%s12] sm:$0x7]
    %v5098 = vperm.slane %v5096, 0
    %v5099 = vperm.slane %v5096, 1
    %v5100 = vperm.slane %v5096, 2
    %5104 = vmatpush.msra.mxu0 %v5093
    %5105 = vmatpush.msra.mxu0 %v5090
    %5106 = vmatpush.msra.mxu0 %v5087
    %5107 = vmatpush.msra.mxu0 %v5084
    %5108 = vmatpush.msra.mxu0 %v5081
    %5109 = vmatpush.msra.mxu0 %v5078
    %5110 = vmatpush.msra.mxu0 %v5075
    %5111 = vmatpush.msra.mxu0 %v5072
    %5112 = vmatpush.msra.mxu0 %v5069
    %5113 = vmatpush.msra.mxu0 %v5066
    %5114 = vmatpush.msra.mxu0 %v5063
    %5115 = vmatpush.msra.mxu0 %v5060
    %5116 = vmatpush.msra.mxu0 %v5057
    %5117 = vmatpush.msra.mxu0 %v5054
    %5118 = vmatpush.msra.mxu0 %v5051
    %5119 = vmatpush.msra.mxu0 %v5048
    %5120 = vmatmul.f32.gmra.mxu0 %v5040
    %v5121 = vpop.f32.mrf.mxu0
    %v5122 = vadd.f32 %v5098, %v5121
    %5123 = vdwg.mxu0
    %5124 = vmatpush.msra.mxu0 %v5094
    %5125 = vmatpush.msra.mxu0 %v5091
    %5126 = vmatpush.msra.mxu0 %v5088
    %5127 = vmatpush.msra.mxu0 %v5085
    %5128 = vmatpush.msra.mxu0 %v5082
    %5129 = vmatpush.msra.mxu0 %v5079
    %5130 = vmatpush.msra.mxu0 %v5076
    %5131 = vmatpush.msra.mxu0 %v5073
    %5132 = vmatpush.msra.mxu0 %v5070
    %5133 = vmatpush.msra.mxu0 %v5067
    %5134 = vmatpush.msra.mxu0 %v5064
    %5135 = vmatpush.msra.mxu0 %v5061
    %5136 = vmatpush.msra.mxu0 %v5058
    %5137 = vmatpush.msra.mxu0 %v5055
    %5138 = vmatpush.msra.mxu0 %v5052
    %5139 = vmatpush.msra.mxu0 %v5049
    %5140 = vmatmul.f32.gmra.mxu0 %v5040
    %v5141 = vpop.f32.mrf.mxu0
    %v5142 = vadd.f32 %v5099, %v5141
    %5143 = vdwg.mxu0
    %5144 = vmatpush.msra.mxu0 %v5095
    %5145 = vmatpush.msra.mxu0 %v5092
    %5146 = vmatpush.msra.mxu0 %v5089
    %5147 = vmatpush.msra.mxu0 %v5086
    %5148 = vmatpush.msra.mxu0 %v5083
    %5149 = vmatpush.msra.mxu0 %v5080
    %5150 = vmatpush.msra.mxu0 %v5077
    %5151 = vmatpush.msra.mxu0 %v5074
    %5152 = vmatpush.msra.mxu0 %v5071
    %5153 = vmatpush.msra.mxu0 %v5068
    %5154 = vmatpush.msra.mxu0 %v5065
    %5155 = vmatpush.msra.mxu0 %v5062
    %5156 = vmatpush.msra.mxu0 %v5059
    %5157 = vmatpush.msra.mxu0 %v5056
    %5158 = vmatpush.msra.mxu0 %v5053
    %5159 = vmatpush.msra.mxu0 %v5050
    %5160 = vmatmul.f32.gmra.mxu0 %v5040
    %v5161 = vpop.f32.mrf.mxu0
    %v5162 = vadd.f32 %v5100, %v5161
    %5163 = vdwg.mxu0
    %v5164 = vld [vmem:[#allocation24] sm:$0xff]
    %v5165 = vld [vmem:[#allocation24 + $0x8] sm:$0xff]
    %v5166 = vld [vmem:[#allocation24 + $0x10] sm:$0xff]
    %v5167 = vld [vmem:[#allocation24 + $0x18] sm:$0xff]
    %v5168 = vld [vmem:[#allocation24 + $0x20] sm:$0xff]
    %v5169 = vld [vmem:[#allocation24 + $0x28] sm:$0xff]
    %v5170 = vld [vmem:[#allocation24 + $0x30] sm:$0xff]
    %v5171 = vld [vmem:[#allocation24 + $0x38] sm:$0xff]
    %v5172 = vld [vmem:[#allocation24 + $0x40] sm:$0xff]
    %v5173 = vld [vmem:[#allocation24 + $0x48] sm:$0xff]
    %v5174 = vld [vmem:[#allocation24 + $0x50] sm:$0xff]
    %v5175 = vld [vmem:[#allocation24 + $0x58] sm:$0xff]
    %v5176 = vld [vmem:[#allocation24 + $0x60] sm:$0xff]
    %v5177 = vld [vmem:[#allocation24 + $0x68] sm:$0xff]
    %v5178 = vld [vmem:[#allocation24 + $0x70] sm:$0xff]
    %v5179 = vld [vmem:[#allocation24 + $0x78] sm:$0xff]
    %v5180 = vld [vmem:[#allocation24 + $0x80] sm:$0xff]
    %v5181 = vld [vmem:[#allocation24 + $0x88] sm:$0xff]
    %v5182 = vld [vmem:[#allocation24 + $0x90] sm:$0xff]
    %v5183 = vld [vmem:[#allocation24 + $0x98] sm:$0xff]
    %v5184 = vld [vmem:[#allocation24 + $0xa0] sm:$0xff]
    %v5185 = vld [vmem:[#allocation24 + $0xa8] sm:$0xff]
    %v5186 = vld [vmem:[#allocation24 + $0xb0] sm:$0xff]
    %v5187 = vld [vmem:[#allocation24 + $0xb8] sm:$0xff]
    %v5188 = vld [vmem:[#allocation24 + $0xc0] sm:$0xff]
    %v5189 = vld [vmem:[#allocation24 + $0xc8] sm:$0xff]
    %v5190 = vld [vmem:[#allocation24 + $0xd0] sm:$0xff]
    %v5191 = vld [vmem:[#allocation24 + $0xd8] sm:$0xff]
    %v5192 = vld [vmem:[#allocation24 + $0xe0] sm:$0xff]
    %v5193 = vld [vmem:[#allocation24 + $0xe8] sm:$0xff]
    %v5194 = vld [vmem:[#allocation24 + $0xf0] sm:$0xff]
    %v5195 = vld [vmem:[#allocation24 + $0xf8] sm:$0xff]
    %v5196 = vld [vmem:[#allocation24 + $0x100] sm:$0xff]
    %v5197 = vld [vmem:[#allocation24 + $0x108] sm:$0xff]
    %v5198 = vld [vmem:[#allocation24 + $0x110] sm:$0xff]
    %v5199 = vld [vmem:[#allocation24 + $0x118] sm:$0xff]
    %v5200 = vld [vmem:[#allocation24 + $0x120] sm:$0xff]
    %v5201 = vld [vmem:[#allocation24 + $0x128] sm:$0xff]
    %v5202 = vld [vmem:[#allocation24 + $0x130] sm:$0xff]
    %v5203 = vld [vmem:[#allocation24 + $0x138] sm:$0xff]
    %v5204 = vld [vmem:[#allocation24 + $0x140] sm:$0xff]
    %v5205 = vld [vmem:[#allocation24 + $0x148] sm:$0xff]
    %v5206 = vld [vmem:[#allocation24 + $0x150] sm:$0xff]
    %v5207 = vld [vmem:[#allocation24 + $0x158] sm:$0xff]
    %v5208 = vld [vmem:[#allocation24 + $0x160] sm:$0xff]
    %v5209 = vld [vmem:[#allocation24 + $0x168] sm:$0xff]
    %v5210 = vld [vmem:[#allocation24 + $0x170] sm:$0xff]
    %v5211 = vld [vmem:[#allocation24 + $0x178] sm:$0xff]
    %v5212 = vld [vmem:[%s13] sm:$0x7]
    %v5214 = vperm.slane %v5212, 0
    %v5215 = vperm.slane %v5212, 1
    %v5216 = vperm.slane %v5212, 2
    %5220 = vmatpush.msra.mxu0 %v5209
    %5221 = vmatpush.msra.mxu0 %v5206
    %5222 = vmatpush.msra.mxu0 %v5203
    %5223 = vmatpush.msra.mxu0 %v5200
    %5224 = vmatpush.msra.mxu0 %v5197
    %5225 = vmatpush.msra.mxu0 %v5194
    %5226 = vmatpush.msra.mxu0 %v5191
    %5227 = vmatpush.msra.mxu0 %v5188
    %5228 = vmatpush.msra.mxu0 %v5185
    %5229 = vmatpush.msra.mxu0 %v5182
    %5230 = vmatpush.msra.mxu0 %v5179
    %5231 = vmatpush.msra.mxu0 %v5176
    %5232 = vmatpush.msra.mxu0 %v5173
    %5233 = vmatpush.msra.mxu0 %v5170
    %5234 = vmatpush.msra.mxu0 %v5167
    %5235 = vmatpush.msra.mxu0 %v5164
    %5236 = vmatmul.f32.gmra.mxu0 %v4725
    %v5237 = vpop.f32.mrf.mxu0
    %v5238 = vadd.f32 %v5214, %v5237
    %5239 = vdwg.mxu0
    %5240 = vmatpush.msra.mxu0 %v5210
    %5241 = vmatpush.msra.mxu0 %v5207
    %5242 = vmatpush.msra.mxu0 %v5204
    %5243 = vmatpush.msra.mxu0 %v5201
    %5244 = vmatpush.msra.mxu0 %v5198
    %5245 = vmatpush.msra.mxu0 %v5195
    %5246 = vmatpush.msra.mxu0 %v5192
    %5247 = vmatpush.msra.mxu0 %v5189
    %5248 = vmatpush.msra.mxu0 %v5186
    %5249 = vmatpush.msra.mxu0 %v5183
    %5250 = vmatpush.msra.mxu0 %v5180
    %5251 = vmatpush.msra.mxu0 %v5177
    %5252 = vmatpush.msra.mxu0 %v5174
    %5253 = vmatpush.msra.mxu0 %v5171
    %5254 = vmatpush.msra.mxu0 %v5168
    %5255 = vmatpush.msra.mxu0 %v5165
    %5256 = vmatmul.f32.gmra.mxu0 %v4725
    %v5257 = vpop.f32.mrf.mxu0
    %v5258 = vadd.f32 %v5215, %v5257
    %5259 = vdwg.mxu0
    %5260 = vmatpush.msra.mxu0 %v5211
    %5261 = vmatpush.msra.mxu0 %v5208
    %5262 = vmatpush.msra.mxu0 %v5205
    %5263 = vmatpush.msra.mxu0 %v5202
    %5264 = vmatpush.msra.mxu0 %v5199
    %5265 = vmatpush.msra.mxu0 %v5196
    %5266 = vmatpush.msra.mxu0 %v5193
    %5267 = vmatpush.msra.mxu0 %v5190
    %5268 = vmatpush.msra.mxu0 %v5187
    %5269 = vmatpush.msra.mxu0 %v5184
    %5270 = vmatpush.msra.mxu0 %v5181
    %5271 = vmatpush.msra.mxu0 %v5178
    %5272 = vmatpush.msra.mxu0 %v5175
    %5273 = vmatpush.msra.mxu0 %v5172
    %5274 = vmatpush.msra.mxu0 %v5169
    %5275 = vmatpush.msra.mxu0 %v5166
    %5276 = vmatmul.f32.gmra.mxu0 %v4725
    %v5277 = vpop.f32.mrf.mxu0
    %v5278 = vadd.f32 %v5216, %v5277
    %5279 = vdwg.mxu0
    %v5280 = vadd.f32 %v5122, %v5238
    %v5281 = vxor.u32 %v5280, 2147483648
    %v5282 = vmul.f32 %v5281, 1.442695
    %v5283 = vpow.pop %v5282
    %v5284 = vadd.f32 %v5283, 1.0
    %v5285 = vrcp.pop %v5284
    %v5286 = vmul.f32 %v5284, %v5285
    %v5287 = vsub.f32 1.0, %v5286
    %v5288 = vmul.f32 %v5285, %v5287
    %v5289 = vadd.f32 %v5285, %v5288
    %vm5290 = vweird.f32 %v5284
    %vm5291 = vweird.f32 %v5285
    %vm5292 = vmor %vm5290, %vm5291
    %v5293 = vsel %vm5292, %v5285, %v5289
    %v5294 = vand.u32 2147483647, %v5284
    %vm5295 = vcmp.eq.f32.partialorder %v5294, 8.507059e+37
    %v5296 = vand.u32 %v5284, 2147483648
    %v5297 = vor.u32 1.1754944e-38, %v5296
    %v5298 = vsel %vm5295, %v5297, %v5293
    %v5299 = vmul.f32 1.0, %v5298
    %v5300 = vadd.f32 %v5142, %v5258
    %v5301 = vxor.u32 %v5300, 2147483648
    %v5302 = vmul.f32 %v5301, 1.442695
    %v5303 = vpow.pop %v5302
    %v5304 = vadd.f32 %v5303, 1.0
    %v5305 = vrcp.pop %v5304
    %v5306 = vmul.f32 %v5304, %v5305
    %v5307 = vsub.f32 1.0, %v5306
    %v5308 = vmul.f32 %v5305, %v5307
    %v5309 = vadd.f32 %v5305, %v5308
    %vm5310 = vweird.f32 %v5304
    %vm5311 = vweird.f32 %v5305
    %vm5312 = vmor %vm5310, %vm5311
    %v5313 = vsel %vm5312, %v5305, %v5309
    %v5314 = vand.u32 2147483647, %v5304
    %vm5315 = vcmp.eq.f32.partialorder %v5314, 8.507059e+37
    %v5316 = vand.u32 %v5304, 2147483648
    %v5317 = vor.u32 1.1754944e-38, %v5316
    %v5318 = vsel %vm5315, %v5317, %v5313
    %v5319 = vmul.f32 1.0, %v5318
    %v5320 = vmul.f32 %v5299, %v5278
    %v5321 = vadd.f32 %v5162, %v5320
    %v5322 = vtanh.pop %v5321
    %v5323 = vsub.f32 1.0, %v5319
    %v5324 = vmul.f32 %v5323, %v5322
    %v5325 = vmul.f32 %v5319, %v4725
    %v5326 = vadd.f32 %v5324, %v5325
    %5327 = vmatpush.xpose.msra.mxu0 0.0
    %5328 = vmatpush.xpose.msra.mxu0 0.0
    %5329 = vmatpush.xpose.msra.mxu0 0.0
    %5330 = vmatpush.xpose.msra.mxu0 0.0
    %5331 = vmatpush.xpose.msra.mxu0 0.0
    %5332 = vmatpush.xpose.msra.mxu0 0.0
    %5333 = vmatpush.xpose.msra.mxu0 0.0
    %5334 = vmatpush.xpose.msra.mxu0 0.0
    %5335 = vmatpush.xpose.msra.mxu0 0.0
    %5336 = vmatpush.xpose.msra.mxu0 0.0
    %5337 = vmatpush.xpose.msra.mxu0 0.0
    %5338 = vmatpush.xpose.msra.mxu0 0.0
    %5339 = vmatpush.xpose.msra.mxu0 0.0
    %5340 = vmatpush.xpose.msra.mxu0 0.0
    %5341 = vmatpush.xpose.msra.mxu0 0.0
    %5342 = vmatpush.xpose.msra.mxu0 %v3230
    %5343 = vmatmul.f32.gmra.mxu0 %v5326
    %v5344 = vpop.f32.mrf.mxu0
    %v5345 = vadd.f32 0.0, %v5344
    %5346 = vdwg.mxu0
    %v5347 = vsel %vm3231, %v5345, -inf
    %5348 = vmax.xlane.f32.xlu0 %v5347
    %v5349 = vpop.xlane.xlu0 %5348
    %v5350 = vsub.f32 %v5345, %v5349
    %v5351 = vmul.f32 %v5350, 1.442695
    %v5352 = vpow.pop %v5351
    %v5353 = vsel %vm3231, %v5352, 0.0
    %5354 = vadd.xlane.f32.xlu0 %v5353
    %v5355 = vpop.xlane.xlu0 %5354
    %v5356 = vrcp.pop %v5355
    %v5357 = vmul.f32 %v5352, %v5356
    %v5359 = vsel %vm3552, %v5357, 0
    %5361 = vmatpush.msra.mxu0 0.0
    %5362 = vmatpush.msra.mxu0 0.0
    %5363 = vmatpush.msra.mxu0 0.0
    %5364 = vmatpush.msra.mxu0 0.0
    %5365 = vmatpush.msra.mxu0 0.0
    %5366 = vmatpush.msra.mxu0 0.0
    %5367 = vmatpush.msra.mxu0 0.0
    %5368 = vmatpush.msra.mxu0 0.0
    %5369 = vmatpush.msra.mxu0 0.0
    %5370 = vmatpush.msra.mxu0 0.0
    %5371 = vmatpush.msra.mxu0 0.0
    %5372 = vmatpush.msra.mxu0 0.0
    %5373 = vmatpush.msra.mxu0 0.0
    %5374 = vmatpush.msra.mxu0 0.0
    %5375 = vmatpush.msra.mxu0 0.0
    %5376 = vmatpush.msra.mxu0 %v3230
    %5377 = vmatmul.f32.gmra.mxu0 %v5359
    %v5378 = vpop.f32.mrf.mxu0
    %v5379 = vadd.f32 0.0, %v5378
    %5380 = vdwg.mxu0
    %v5381 = vld [vmem:[#allocation26] sm:$0xff]
    %v5382 = vld [vmem:[#allocation26 + $0x8] sm:$0xff]
    %v5383 = vld [vmem:[#allocation26 + $0x10] sm:$0xff]
    %v5384 = vld [vmem:[#allocation26 + $0x18] sm:$0xff]
    %v5385 = vld [vmem:[#allocation26 + $0x20] sm:$0xff]
    %v5386 = vld [vmem:[#allocation26 + $0x28] sm:$0xff]
    %v5387 = vld [vmem:[#allocation26 + $0x30] sm:$0xff]
    %v5388 = vld [vmem:[#allocation26 + $0x38] sm:$0xff]
    %v5389 = vld [vmem:[#allocation26 + $0x40] sm:$0xff]
    %v5390 = vld [vmem:[#allocation26 + $0x48] sm:$0xff]
    %v5391 = vld [vmem:[#allocation26 + $0x50] sm:$0xff]
    %v5392 = vld [vmem:[#allocation26 + $0x58] sm:$0xff]
    %v5393 = vld [vmem:[#allocation26 + $0x60] sm:$0xff]
    %v5394 = vld [vmem:[#allocation26 + $0x68] sm:$0xff]
    %v5395 = vld [vmem:[#allocation26 + $0x70] sm:$0xff]
    %v5396 = vld [vmem:[#allocation26 + $0x78] sm:$0xff]
    %v5397 = vld [vmem:[#allocation26 + $0x80] sm:$0xff]
    %v5398 = vld [vmem:[#allocation26 + $0x88] sm:$0xff]
    %v5399 = vld [vmem:[#allocation26 + $0x90] sm:$0xff]
    %v5400 = vld [vmem:[#allocation26 + $0x98] sm:$0xff]
    %v5401 = vld [vmem:[#allocation26 + $0xa0] sm:$0xff]
    %v5402 = vld [vmem:[#allocation26 + $0xa8] sm:$0xff]
    %v5403 = vld [vmem:[#allocation26 + $0xb0] sm:$0xff]
    %v5404 = vld [vmem:[#allocation26 + $0xb8] sm:$0xff]
    %v5405 = vld [vmem:[#allocation26 + $0xc0] sm:$0xff]
    %v5406 = vld [vmem:[#allocation26 + $0xc8] sm:$0xff]
    %v5407 = vld [vmem:[#allocation26 + $0xd0] sm:$0xff]
    %v5408 = vld [vmem:[#allocation26 + $0xd8] sm:$0xff]
    %v5409 = vld [vmem:[#allocation26 + $0xe0] sm:$0xff]
    %v5410 = vld [vmem:[#allocation26 + $0xe8] sm:$0xff]
    %v5411 = vld [vmem:[#allocation26 + $0xf0] sm:$0xff]
    %v5412 = vld [vmem:[#allocation26 + $0xf8] sm:$0xff]
    %v5413 = vld [vmem:[#allocation27] sm:$0x1]
    %5414 = vmatpush.msra.mxu0 %v5396
    %5415 = vmatpush.msra.mxu0 %v5395
    %5416 = vmatpush.msra.mxu0 %v5394
    %5417 = vmatpush.msra.mxu0 %v5393
    %5418 = vmatpush.msra.mxu0 %v5392
    %5419 = vmatpush.msra.mxu0 %v5391
    %5420 = vmatpush.msra.mxu0 %v5390
    %5421 = vmatpush.msra.mxu0 %v5389
    %5422 = vmatpush.msra.mxu0 %v5388
    %5423 = vmatpush.msra.mxu0 %v5387
    %5424 = vmatpush.msra.mxu0 %v5386
    %5425 = vmatpush.msra.mxu0 %v5385
    %5426 = vmatpush.msra.mxu0 %v5384
    %5427 = vmatpush.msra.mxu0 %v5383
    %5428 = vmatpush.msra.mxu0 %v5382
    %5429 = vmatpush.msra.mxu0 %v5381
    %5430 = vmatmul.f32.gmra.mxu0 %v5326
    %v5431 = vpop.f32.mrf.mxu0
    %v5432 = vadd.f32 %v5413, %v5431
    %5433 = vdwg.mxu0
    %5434 = vmatpush.msra.mxu0 %v5412
    %5435 = vmatpush.msra.mxu0 %v5411
    %5436 = vmatpush.msra.mxu0 %v5410
    %5437 = vmatpush.msra.mxu0 %v5409
    %5438 = vmatpush.msra.mxu0 %v5408
    %5439 = vmatpush.msra.mxu0 %v5407
    %5440 = vmatpush.msra.mxu0 %v5406
    %5441 = vmatpush.msra.mxu0 %v5405
    %5442 = vmatpush.msra.mxu0 %v5404
    %5443 = vmatpush.msra.mxu0 %v5403
    %5444 = vmatpush.msra.mxu0 %v5402
    %5445 = vmatpush.msra.mxu0 %v5401
    %5446 = vmatpush.msra.mxu0 %v5400
    %5447 = vmatpush.msra.mxu0 %v5399
    %5448 = vmatpush.msra.mxu0 %v5398
    %5449 = vmatpush.msra.mxu0 %v5397
    %5450 = vmatmul.f32.gmra.mxu0 %v5379
    %v5451 = vpop.f32.mrf.mxu0
    %v5452 = vadd.f32 %v5432, %v5451
    %5453 = vdwg.mxu0
    %v5454 = vtanh.pop %v5452
    %v5455 = vpack.c.bf16 %v5454, %v5454
    %v5456 = vld [vmem:[#allocation6] sm:$0xff]
    %v5457 = vld [vmem:[#allocation6 + $0x8] sm:$0xff]
    %v5458 = vld [vmem:[#allocation6 + $0x10] sm:$0xff]
    %v5459 = vld [vmem:[#allocation6 + $0x18] sm:$0xff]
    %v5460 = vld [vmem:[#allocation6 + $0x20] sm:$0xff]
    %v5461 = vld [vmem:[#allocation6 + $0x28] sm:$0xff]
    %v5462 = vld [vmem:[#allocation6 + $0x30] sm:$0xff]
    %v5463 = vld [vmem:[#allocation6 + $0x38] sm:$0xff]
    %v5464 = vld [vmem:[#allocation6 + $0x40] sm:$0xff]
    %v5465 = vld [vmem:[#allocation6 + $0x48] sm:$0xff]
    %v5466 = vld [vmem:[#allocation6 + $0x50] sm:$0xff]
    %v5467 = vld [vmem:[#allocation6 + $0x58] sm:$0xff]
    %v5468 = vld [vmem:[#allocation6 + $0x60] sm:$0xff]
    %v5469 = vld [vmem:[#allocation6 + $0x68] sm:$0xff]
    %v5470 = vld [vmem:[#allocation6 + $0x70] sm:$0xff]
    %v5471 = vld [vmem:[#allocation6 + $0x78] sm:$0xff]
    %v5472 = vld [vmem:[%s17] sm:$0x3]
    %v5489 = vunpack.c.l.b16 %v5456
    %v5490 = vunpack.c.h.b16 %v5456
    %v5491 = vunpack.c.l.b16 %v5457
    %v5492 = vunpack.c.h.b16 %v5457
    %v5493 = vunpack.c.l.b16 %v5458
    %v5494 = vunpack.c.h.b16 %v5458
    %v5495 = vunpack.c.l.b16 %v5459
    %v5496 = vunpack.c.h.b16 %v5459
    %v5497 = vunpack.c.l.b16 %v5460
    %v5498 = vunpack.c.h.b16 %v5460
    %v5499 = vunpack.c.l.b16 %v5461
    %v5500 = vunpack.c.h.b16 %v5461
    %v5501 = vunpack.c.l.b16 %v5462
    %v5502 = vunpack.c.h.b16 %v5462
    %v5503 = vunpack.c.l.b16 %v5463
    %v5504 = vunpack.c.h.b16 %v5463
    %v5505 = vunpack.c.l.b16 %v5464
    %v5506 = vunpack.c.h.b16 %v5464
    %v5507 = vunpack.c.l.b16 %v5465
    %v5508 = vunpack.c.h.b16 %v5465
    %v5509 = vunpack.c.l.b16 %v5466
    %v5510 = vunpack.c.h.b16 %v5466
    %v5511 = vunpack.c.l.b16 %v5467
    %v5512 = vunpack.c.h.b16 %v5467
    %v5513 = vunpack.c.l.b16 %v5468
    %v5514 = vunpack.c.h.b16 %v5468
    %v5515 = vunpack.c.l.b16 %v5469
    %v5516 = vunpack.c.h.b16 %v5469
    %v5517 = vunpack.c.l.b16 %v5470
    %v5518 = vunpack.c.h.b16 %v5470
    %v5519 = vunpack.c.l.b16 %v5471
    %v5520 = vunpack.c.h.b16 %v5471
    %v5521 = vpack.c.b16 %v5491, %v5489
    %v5522 = vpack.c.b16 %v5492, %v5490
    %v5523 = vpack.c.b16 %v5495, %v5493
    %v5524 = vpack.c.b16 %v5496, %v5494
    %v5525 = vpack.c.b16 %v5499, %v5497
    %v5526 = vpack.c.b16 %v5500, %v5498
    %v5527 = vpack.c.b16 %v5503, %v5501
    %v5528 = vpack.c.b16 %v5504, %v5502
    %v5529 = vpack.c.b16 %v5507, %v5505
    %v5530 = vpack.c.b16 %v5508, %v5506
    %v5531 = vpack.c.b16 %v5511, %v5509
    %v5532 = vpack.c.b16 %v5512, %v5510
    %v5533 = vpack.c.b16 %v5515, %v5513
    %v5534 = vpack.c.b16 %v5516, %v5514
    %v5535 = vpack.c.b16 %v5519, %v5517
    %v5536 = vpack.c.b16 %v5520, %v5518
    %v5554 = vperm.slane %v5472, 0
    %v5555 = vperm.slane %v5472, 1
    %5558 = vmatpush.bf16.msra.mxu0 %v5535
    %5559 = vmatpush.bf16.msra.mxu0 %v5533
    %5560 = vmatpush.bf16.msra.mxu0 %v5531
    %5561 = vmatpush.bf16.msra.mxu0 %v5529
    %5562 = vmatpush.bf16.msra.mxu0 %v5527
    %5563 = vmatpush.bf16.msra.mxu0 %v5525
    %5564 = vmatpush.bf16.msra.mxu0 %v5523
    %5565 = vmatpush.bf16.msra.mxu0 %v5521
    %5566 = vmatmul.bf16.gmra.mxu0 %v5455
    %v5567 = vpop.f32.mrf.mxu0
    %v5568 = vadd.f32 %v5554, %v5567
    %v5569 = vpop.f32.mrf.mxu0
    %5570 = vdwg.mxu0
    %5571 = vmatpush.bf16.msra.mxu0 %v5536
    %5572 = vmatpush.bf16.msra.mxu0 %v5534
    %5573 = vmatpush.bf16.msra.mxu0 %v5532
    %5574 = vmatpush.bf16.msra.mxu0 %v5530
    %5575 = vmatpush.bf16.msra.mxu0 %v5528
    %5576 = vmatpush.bf16.msra.mxu0 %v5526
    %5577 = vmatpush.bf16.msra.mxu0 %v5524
    %5578 = vmatpush.bf16.msra.mxu0 %v5522
    %5579 = vmatmul.bf16.gmra.mxu0 %v5455
    %v5580 = vpop.f32.mrf.mxu0
    %v5581 = vadd.f32 %v5555, %v5580
    %v5582 = vpop.f32.mrf.mxu0
    %5583 = vdwg.mxu0
    %v5584 = vsel %vm3779, %v5568, -inf
    %v5585 = vsel %vm3779, %v5581, -inf
    %v5586 = vmax.f32 %v5584, %v5585
    %5587 = vmax.xlane.f32.xlu0 %v5586
    %v5588 = vpop.xlane.xlu0 %5587
    %v5589 = vsub.f32 %v5568, %v5588
    %v5590 = vsub.f32 %v5581, %v5588
    %v5591 = vmul.f32 %v5589, 1.442695
    %v5592 = vpow.pop %v5591
    %v5593 = vmul.f32 %v5590, 1.442695
    %v5594 = vpow.pop %v5593
    %v5595 = vsel %vm3779, %v5592, 0.0
    %v5596 = vsel %vm3779, %v5594, 0.0
    %v5597 = vadd.f32 %v5595, %v5596
    %5598 = vadd.xlane.f32.xlu0 %v5597
    %v5599 = vpop.xlane.xlu0 %5598
    %v5600 = vrcp.pop %v5599
    %v5601 = vmul.f32 %v5599, %v5600
    %v5602 = vsub.f32 1.0, %v5601
    %v5603 = vmul.f32 %v5600, %v5602
    %v5604 = vadd.f32 %v5600, %v5603
    %vm5605 = vweird.f32 %v5599
    %vm5606 = vweird.f32 %v5600
    %vm5607 = vmor %vm5605, %vm5606
    %v5608 = vsel %vm5607, %v5600, %v5604
    %v5609 = vand.u32 2147483647, %v5599
    %vm5610 = vcmp.eq.f32.partialorder %v5609, 8.507059e+37
    %v5611 = vand.u32 %v5599, 2147483648
    %v5612 = vor.u32 1.1754944e-38, %v5611
    %v5613 = vsel %vm5610, %v5612, %v5608
    %v5614 = vmul.f32 1.0, %v5613
    %vm5615 = vcmp.eq.f32.partialorder %v5568, %v5588
    %vm5616 = vcmp.eq.f32.partialorder %v5581, %v5588
    %v5617 = vsel %vm5615, %v3235, 256
    %v5618 = vsel %vm5616, %v3236, 256
    %v5619 = vsel %vm3779, %v5617, 2147483647
    %v5620 = vsel %vm3779, %v5618, 2147483647
    %vm5621 = vcmp.lt.s32.totalorder %v5619, %v5620
    %v5622 = vsel %vm5621, %v5619, %v5620
    %v5623 = vand.u32 %v5622, 65535
    %v5624 = vshra.s32 %v5622, 16
    %v5625 = vcvt.s32.f32 %v5623
    %v5626 = vcvt.s32.f32 %v5624
    %5627 = vmin.xlane.f32.xlu0 %v5626
    %v5628 = vpop.xlane.xlu0 %5627
    %vm5629 = vcmp.eq.f32.partialorder %v5626, %v5628
    %v5630 = vsel %vm5629, %v5625, inf
    %5631 = vmin.xlane.f32.xlu0 %v5630
    %v5632 = vpop.xlane.xlu0 %5631
    %v5633 = vcvt.f32.s32 %v5632
    %v5634 = vcvt.f32.s32 %v5628
    %v5635 = vshll.u32 %v5634, 16
    %v5636 = vadd.s32 %v5635, %v5633
    %5637 = vst.msk [vmem:[#allocation8] sm:$0x1] %vm3833, %v5636
    %v5638 = vld [vmem:[#allocation8] sm:$0x1]
    %s5639 = vtos %v5638
    %s5640 = scalar_lea.vmem [#allocation12], %s5639
    %v5641 = vld [vmem:[%s5640] sm:$0x1]
    %vm5642 = vcmp.eq.s32.totalorder %v3235, 3
    %v5643 = vld [vmem:[#allocation29] sm:$0x1]
    %v5644 = vsel %vm5642, %v5636, %v5643
    %5645 = vst.msk [vmem:[#allocation29] sm:$0x1] %vm3231, %v5644
    %v5646 = vld [vmem:[#allocation30] sm:$0x1]
    %v5647 = vsel %vm5642, %v5614, %v5646
    %5648 = vst.msk [vmem:[#allocation30] sm:$0x1] %vm3231, %v5647
    %v5649 = vld [vmem:[#allocation23] sm:$0xff]
    %v5650 = vld [vmem:[#allocation23 + $0x8] sm:$0xff]
    %v5651 = vld [vmem:[#allocation23 + $0x10] sm:$0xff]
    %v5652 = vld [vmem:[#allocation23 + $0x18] sm:$0xff]
    %v5653 = vld [vmem:[#allocation23 + $0x20] sm:$0xff]
    %v5654 = vld [vmem:[#allocation23 + $0x28] sm:$0xff]
    %v5655 = vld [vmem:[#allocation23 + $0x30] sm:$0xff]
    %v5656 = vld [vmem:[#allocation23 + $0x38] sm:$0xff]
    %v5657 = vld [vmem:[#allocation23 + $0x40] sm:$0xff]
    %v5658 = vld [vmem:[#allocation23 + $0x48] sm:$0xff]
    %v5659 = vld [vmem:[#allocation23 + $0x50] sm:$0xff]
    %v5660 = vld [vmem:[#allocation23 + $0x58] sm:$0xff]
    %v5661 = vld [vmem:[#allocation23 + $0x60] sm:$0xff]
    %v5662 = vld [vmem:[#allocation23 + $0x68] sm:$0xff]
    %v5663 = vld [vmem:[#allocation23 + $0x70] sm:$0xff]
    %v5664 = vld [vmem:[#allocation23 + $0x78] sm:$0xff]
    %v5665 = vld [vmem:[#allocation23 + $0x80] sm:$0xff]
    %v5666 = vld [vmem:[#allocation23 + $0x88] sm:$0xff]
    %v5667 = vld [vmem:[#allocation23 + $0x90] sm:$0xff]
    %v5668 = vld [vmem:[#allocation23 + $0x98] sm:$0xff]
    %v5669 = vld [vmem:[#allocation23 + $0xa0] sm:$0xff]
    %v5670 = vld [vmem:[#allocation23 + $0xa8] sm:$0xff]
    %v5671 = vld [vmem:[#allocation23 + $0xb0] sm:$0xff]
    %v5672 = vld [vmem:[#allocation23 + $0xb8] sm:$0xff]
    %v5673 = vld [vmem:[#allocation23 + $0xc0] sm:$0xff]
    %v5674 = vld [vmem:[#allocation23 + $0xc8] sm:$0xff]
    %v5675 = vld [vmem:[#allocation23 + $0xd0] sm:$0xff]
    %v5676 = vld [vmem:[#allocation23 + $0xd8] sm:$0xff]
    %v5677 = vld [vmem:[#allocation23 + $0xe0] sm:$0xff]
    %v5678 = vld [vmem:[#allocation23 + $0xe8] sm:$0xff]
    %v5679 = vld [vmem:[#allocation23 + $0xf0] sm:$0xff]
    %v5680 = vld [vmem:[#allocation23 + $0xf8] sm:$0xff]
    %v5681 = vld [vmem:[#allocation23 + $0x100] sm:$0xff]
    %v5682 = vld [vmem:[#allocation23 + $0x108] sm:$0xff]
    %v5683 = vld [vmem:[#allocation23 + $0x110] sm:$0xff]
    %v5684 = vld [vmem:[#allocation23 + $0x118] sm:$0xff]
    %v5685 = vld [vmem:[#allocation23 + $0x120] sm:$0xff]
    %v5686 = vld [vmem:[#allocation23 + $0x128] sm:$0xff]
    %v5687 = vld [vmem:[#allocation23 + $0x130] sm:$0xff]
    %v5688 = vld [vmem:[#allocation23 + $0x138] sm:$0xff]
    %v5689 = vld [vmem:[#allocation23 + $0x140] sm:$0xff]
    %v5690 = vld [vmem:[#allocation23 + $0x148] sm:$0xff]
    %v5691 = vld [vmem:[#allocation23 + $0x150] sm:$0xff]
    %v5692 = vld [vmem:[#allocation23 + $0x158] sm:$0xff]
    %v5693 = vld [vmem:[#allocation23 + $0x160] sm:$0xff]
    %v5694 = vld [vmem:[#allocation23 + $0x168] sm:$0xff]
    %v5695 = vld [vmem:[#allocation23 + $0x170] sm:$0xff]
    %v5696 = vld [vmem:[#allocation23 + $0x178] sm:$0xff]
    %v5697 = vld [vmem:[%s12] sm:$0x7]
    %v5699 = vperm.slane %v5697, 0
    %v5700 = vperm.slane %v5697, 1
    %v5701 = vperm.slane %v5697, 2
    %5705 = vmatpush.msra.mxu0 %v5694
    %5706 = vmatpush.msra.mxu0 %v5691
    %5707 = vmatpush.msra.mxu0 %v5688
    %5708 = vmatpush.msra.mxu0 %v5685
    %5709 = vmatpush.msra.mxu0 %v5682
    %5710 = vmatpush.msra.mxu0 %v5679
    %5711 = vmatpush.msra.mxu0 %v5676
    %5712 = vmatpush.msra.mxu0 %v5673
    %5713 = vmatpush.msra.mxu0 %v5670
    %5714 = vmatpush.msra.mxu0 %v5667
    %5715 = vmatpush.msra.mxu0 %v5664
    %5716 = vmatpush.msra.mxu0 %v5661
    %5717 = vmatpush.msra.mxu0 %v5658
    %5718 = vmatpush.msra.mxu0 %v5655
    %5719 = vmatpush.msra.mxu0 %v5652
    %5720 = vmatpush.msra.mxu0 %v5649
    %5721 = vmatmul.f32.gmra.mxu0 %v5641
    %v5722 = vpop.f32.mrf.mxu0
    %v5723 = vadd.f32 %v5699, %v5722
    %5724 = vdwg.mxu0
    %5725 = vmatpush.msra.mxu0 %v5695
    %5726 = vmatpush.msra.mxu0 %v5692
    %5727 = vmatpush.msra.mxu0 %v5689
    %5728 = vmatpush.msra.mxu0 %v5686
    %5729 = vmatpush.msra.mxu0 %v5683
    %5730 = vmatpush.msra.mxu0 %v5680
    %5731 = vmatpush.msra.mxu0 %v5677
    %5732 = vmatpush.msra.mxu0 %v5674
    %5733 = vmatpush.msra.mxu0 %v5671
    %5734 = vmatpush.msra.mxu0 %v5668
    %5735 = vmatpush.msra.mxu0 %v5665
    %5736 = vmatpush.msra.mxu0 %v5662
    %5737 = vmatpush.msra.mxu0 %v5659
    %5738 = vmatpush.msra.mxu0 %v5656
    %5739 = vmatpush.msra.mxu0 %v5653
    %5740 = vmatpush.msra.mxu0 %v5650
    %5741 = vmatmul.f32.gmra.mxu0 %v5641
    %v5742 = vpop.f32.mrf.mxu0
    %v5743 = vadd.f32 %v5700, %v5742
    %5744 = vdwg.mxu0
    %5745 = vmatpush.msra.mxu0 %v5696
    %5746 = vmatpush.msra.mxu0 %v5693
    %5747 = vmatpush.msra.mxu0 %v5690
    %5748 = vmatpush.msra.mxu0 %v5687
    %5749 = vmatpush.msra.mxu0 %v5684
    %5750 = vmatpush.msra.mxu0 %v5681
    %5751 = vmatpush.msra.mxu0 %v5678
    %5752 = vmatpush.msra.mxu0 %v5675
    %5753 = vmatpush.msra.mxu0 %v5672
    %5754 = vmatpush.msra.mxu0 %v5669
    %5755 = vmatpush.msra.mxu0 %v5666
    %5756 = vmatpush.msra.mxu0 %v5663
    %5757 = vmatpush.msra.mxu0 %v5660
    %5758 = vmatpush.msra.mxu0 %v5657
    %5759 = vmatpush.msra.mxu0 %v5654
    %5760 = vmatpush.msra.mxu0 %v5651
    %5761 = vmatmul.f32.gmra.mxu0 %v5641
    %v5762 = vpop.f32.mrf.mxu0
    %v5763 = vadd.f32 %v5701, %v5762
    %5764 = vdwg.mxu0
    %v5765 = vld [vmem:[#allocation24] sm:$0xff]
    %v5766 = vld [vmem:[#allocation24 + $0x8] sm:$0xff]
    %v5767 = vld [vmem:[#allocation24 + $0x10] sm:$0xff]
    %v5768 = vld [vmem:[#allocation24 + $0x18] sm:$0xff]
    %v5769 = vld [vmem:[#allocation24 + $0x20] sm:$0xff]
    %v5770 = vld [vmem:[#allocation24 + $0x28] sm:$0xff]
    %v5771 = vld [vmem:[#allocation24 + $0x30] sm:$0xff]
    %v5772 = vld [vmem:[#allocation24 + $0x38] sm:$0xff]
    %v5773 = vld [vmem:[#allocation24 + $0x40] sm:$0xff]
    %v5774 = vld [vmem:[#allocation24 + $0x48] sm:$0xff]
    %v5775 = vld [vmem:[#allocation24 + $0x50] sm:$0xff]
    %v5776 = vld [vmem:[#allocation24 + $0x58] sm:$0xff]
    %v5777 = vld [vmem:[#allocation24 + $0x60] sm:$0xff]
    %v5778 = vld [vmem:[#allocation24 + $0x68] sm:$0xff]
    %v5779 = vld [vmem:[#allocation24 + $0x70] sm:$0xff]
    %v5780 = vld [vmem:[#allocation24 + $0x78] sm:$0xff]
    %v5781 = vld [vmem:[#allocation24 + $0x80] sm:$0xff]
    %v5782 = vld [vmem:[#allocation24 + $0x88] sm:$0xff]
    %v5783 = vld [vmem:[#allocation24 + $0x90] sm:$0xff]
    %v5784 = vld [vmem:[#allocation24 + $0x98] sm:$0xff]
    %v5785 = vld [vmem:[#allocation24 + $0xa0] sm:$0xff]
    %v5786 = vld [vmem:[#allocation24 + $0xa8] sm:$0xff]
    %v5787 = vld [vmem:[#allocation24 + $0xb0] sm:$0xff]
    %v5788 = vld [vmem:[#allocation24 + $0xb8] sm:$0xff]
    %v5789 = vld [vmem:[#allocation24 + $0xc0] sm:$0xff]
    %v5790 = vld [vmem:[#allocation24 + $0xc8] sm:$0xff]
    %v5791 = vld [vmem:[#allocation24 + $0xd0] sm:$0xff]
    %v5792 = vld [vmem:[#allocation24 + $0xd8] sm:$0xff]
    %v5793 = vld [vmem:[#allocation24 + $0xe0] sm:$0xff]
    %v5794 = vld [vmem:[#allocation24 + $0xe8] sm:$0xff]
    %v5795 = vld [vmem:[#allocation24 + $0xf0] sm:$0xff]
    %v5796 = vld [vmem:[#allocation24 + $0xf8] sm:$0xff]
    %v5797 = vld [vmem:[#allocation24 + $0x100] sm:$0xff]
    %v5798 = vld [vmem:[#allocation24 + $0x108] sm:$0xff]
    %v5799 = vld [vmem:[#allocation24 + $0x110] sm:$0xff]
    %v5800 = vld [vmem:[#allocation24 + $0x118] sm:$0xff]
    %v5801 = vld [vmem:[#allocation24 + $0x120] sm:$0xff]
    %v5802 = vld [vmem:[#allocation24 + $0x128] sm:$0xff]
    %v5803 = vld [vmem:[#allocation24 + $0x130] sm:$0xff]
    %v5804 = vld [vmem:[#allocation24 + $0x138] sm:$0xff]
    %v5805 = vld [vmem:[#allocation24 + $0x140] sm:$0xff]
    %v5806 = vld [vmem:[#allocation24 + $0x148] sm:$0xff]
    %v5807 = vld [vmem:[#allocation24 + $0x150] sm:$0xff]
    %v5808 = vld [vmem:[#allocation24 + $0x158] sm:$0xff]
    %v5809 = vld [vmem:[#allocation24 + $0x160] sm:$0xff]
    %v5810 = vld [vmem:[#allocation24 + $0x168] sm:$0xff]
    %v5811 = vld [vmem:[#allocation24 + $0x170] sm:$0xff]
    %v5812 = vld [vmem:[#allocation24 + $0x178] sm:$0xff]
    %v5813 = vld [vmem:[%s13] sm:$0x7]
    %v5815 = vperm.slane %v5813, 0
    %v5816 = vperm.slane %v5813, 1
    %v5817 = vperm.slane %v5813, 2
    %5821 = vmatpush.msra.mxu0 %v5810
    %5822 = vmatpush.msra.mxu0 %v5807
    %5823 = vmatpush.msra.mxu0 %v5804
    %5824 = vmatpush.msra.mxu0 %v5801
    %5825 = vmatpush.msra.mxu0 %v5798
    %5826 = vmatpush.msra.mxu0 %v5795
    %5827 = vmatpush.msra.mxu0 %v5792
    %5828 = vmatpush.msra.mxu0 %v5789
    %5829 = vmatpush.msra.mxu0 %v5786
    %5830 = vmatpush.msra.mxu0 %v5783
    %5831 = vmatpush.msra.mxu0 %v5780
    %5832 = vmatpush.msra.mxu0 %v5777
    %5833 = vmatpush.msra.mxu0 %v5774
    %5834 = vmatpush.msra.mxu0 %v5771
    %5835 = vmatpush.msra.mxu0 %v5768
    %5836 = vmatpush.msra.mxu0 %v5765
    %5837 = vmatmul.f32.gmra.mxu0 %v5326
    %v5838 = vpop.f32.mrf.mxu0
    %v5839 = vadd.f32 %v5815, %v5838
    %5840 = vdwg.mxu0
    %5841 = vmatpush.msra.mxu0 %v5811
    %5842 = vmatpush.msra.mxu0 %v5808
    %5843 = vmatpush.msra.mxu0 %v5805
    %5844 = vmatpush.msra.mxu0 %v5802
    %5845 = vmatpush.msra.mxu0 %v5799
    %5846 = vmatpush.msra.mxu0 %v5796
    %5847 = vmatpush.msra.mxu0 %v5793
    %5848 = vmatpush.msra.mxu0 %v5790
    %5849 = vmatpush.msra.mxu0 %v5787
    %5850 = vmatpush.msra.mxu0 %v5784
    %5851 = vmatpush.msra.mxu0 %v5781
    %5852 = vmatpush.msra.mxu0 %v5778
    %5853 = vmatpush.msra.mxu0 %v5775
    %5854 = vmatpush.msra.mxu0 %v5772
    %5855 = vmatpush.msra.mxu0 %v5769
    %5856 = vmatpush.msra.mxu0 %v5766
    %5857 = vmatmul.f32.gmra.mxu0 %v5326
    %v5858 = vpop.f32.mrf.mxu0
    %v5859 = vadd.f32 %v5816, %v5858
    %5860 = vdwg.mxu0
    %5861 = vmatpush.msra.mxu0 %v5812
    %5862 = vmatpush.msra.mxu0 %v5809
    %5863 = vmatpush.msra.mxu0 %v5806
    %5864 = vmatpush.msra.mxu0 %v5803
    %5865 = vmatpush.msra.mxu0 %v5800
    %5866 = vmatpush.msra.mxu0 %v5797
    %5867 = vmatpush.msra.mxu0 %v5794
    %5868 = vmatpush.msra.mxu0 %v5791
    %5869 = vmatpush.msra.mxu0 %v5788
    %5870 = vmatpush.msra.mxu0 %v5785
    %5871 = vmatpush.msra.mxu0 %v5782
    %5872 = vmatpush.msra.mxu0 %v5779
    %5873 = vmatpush.msra.mxu0 %v5776
    %5874 = vmatpush.msra.mxu0 %v5773
    %5875 = vmatpush.msra.mxu0 %v5770
    %5876 = vmatpush.msra.mxu0 %v5767
    %5877 = vmatmul.f32.gmra.mxu0 %v5326
    %v5878 = vpop.f32.mrf.mxu0
    %v5879 = vadd.f32 %v5817, %v5878
    %5880 = vdwg.mxu0
    %v5881 = vadd.f32 %v5723, %v5839
    %v5882 = vxor.u32 %v5881, 2147483648
    %v5883 = vmul.f32 %v5882, 1.442695
    %v5884 = vpow.pop %v5883
    %v5885 = vadd.f32 %v5884, 1.0
    %v5886 = vrcp.pop %v5885
    %v5887 = vmul.f32 %v5885, %v5886
    %v5888 = vsub.f32 1.0, %v5887
    %v5889 = vmul.f32 %v5886, %v5888
    %v5890 = vadd.f32 %v5886, %v5889
    %vm5891 = vweird.f32 %v5885
    %vm5892 = vweird.f32 %v5886
    %vm5893 = vmor %vm5891, %vm5892
    %v5894 = vsel %vm5893, %v5886, %v5890
    %v5895 = vand.u32 2147483647, %v5885
    %vm5896 = vcmp.eq.f32.partialorder %v5895, 8.507059e+37
    %v5897 = vand.u32 %v5885, 2147483648
    %v5898 = vor.u32 1.1754944e-38, %v5897
    %v5899 = vsel %vm5896, %v5898, %v5894
    %v5900 = vmul.f32 1.0, %v5899
    %v5901 = vadd.f32 %v5743, %v5859
    %v5902 = vxor.u32 %v5901, 2147483648
    %v5903 = vmul.f32 %v5902, 1.442695
    %v5904 = vpow.pop %v5903
    %v5905 = vadd.f32 %v5904, 1.0
    %v5906 = vrcp.pop %v5905
    %v5907 = vmul.f32 %v5905, %v5906
    %v5908 = vsub.f32 1.0, %v5907
    %v5909 = vmul.f32 %v5906, %v5908
    %v5910 = vadd.f32 %v5906, %v5909
    %vm5911 = vweird.f32 %v5905
    %vm5912 = vweird.f32 %v5906
    %vm5913 = vmor %vm5911, %vm5912
    %v5914 = vsel %vm5913, %v5906, %v5910
    %v5915 = vand.u32 2147483647, %v5905
    %vm5916 = vcmp.eq.f32.partialorder %v5915, 8.507059e+37
    %v5917 = vand.u32 %v5905, 2147483648
    %v5918 = vor.u32 1.1754944e-38, %v5917
    %v5919 = vsel %vm5916, %v5918, %v5914
    %v5920 = vmul.f32 1.0, %v5919
    %v5921 = vmul.f32 %v5900, %v5879
    %v5922 = vadd.f32 %v5763, %v5921
    %v5923 = vtanh.pop %v5922
    %v5924 = vsub.f32 1.0, %v5920
    %v5925 = vmul.f32 %v5924, %v5923
    %v5926 = vmul.f32 %v5920, %v5326
    %v5927 = vadd.f32 %v5925, %v5926
    %5928 = vmatpush.xpose.msra.mxu0 0.0
    %5929 = vmatpush.xpose.msra.mxu0 0.0
    %5930 = vmatpush.xpose.msra.mxu0 0.0
    %5931 = vmatpush.xpose.msra.mxu0 0.0
    %5932 = vmatpush.xpose.msra.mxu0 0.0
    %5933 = vmatpush.xpose.msra.mxu0 0.0
    %5934 = vmatpush.xpose.msra.mxu0 0.0
    %5935 = vmatpush.xpose.msra.mxu0 0.0
    %5936 = vmatpush.xpose.msra.mxu0 0.0
    %5937 = vmatpush.xpose.msra.mxu0 0.0
    %5938 = vmatpush.xpose.msra.mxu0 0.0
    %5939 = vmatpush.xpose.msra.mxu0 0.0
    %5940 = vmatpush.xpose.msra.mxu0 0.0
    %5941 = vmatpush.xpose.msra.mxu0 0.0
    %5942 = vmatpush.xpose.msra.mxu0 0.0
    %5943 = vmatpush.xpose.msra.mxu0 %v3230
    %5944 = vmatmul.f32.gmra.mxu0 %v5927
    %v5945 = vpop.f32.mrf.mxu0
    %v5946 = vadd.f32 0.0, %v5945
    %5947 = vdwg.mxu0
    %v5948 = vsel %vm3231, %v5946, -inf
    %5949 = vmax.xlane.f32.xlu0 %v5948
    %v5950 = vpop.xlane.xlu0 %5949
    %v5951 = vsub.f32 %v5946, %v5950
    %v5952 = vmul.f32 %v5951, 1.442695
    %v5953 = vpow.pop %v5952
    %v5954 = vsel %vm3231, %v5953, 0.0
    %5955 = vadd.xlane.f32.xlu0 %v5954
    %v5956 = vpop.xlane.xlu0 %5955
    %v5957 = vrcp.pop %v5956
    %v5958 = vmul.f32 %v5953, %v5957
    %v5960 = vsel %vm3552, %v5958, 0
    %5962 = vmatpush.msra.mxu0 0.0
    %5963 = vmatpush.msra.mxu0 0.0
    %5964 = vmatpush.msra.mxu0 0.0
    %5965 = vmatpush.msra.mxu0 0.0
    %5966 = vmatpush.msra.mxu0 0.0
    %5967 = vmatpush.msra.mxu0 0.0
    %5968 = vmatpush.msra.mxu0 0.0
    %5969 = vmatpush.msra.mxu0 0.0
    %5970 = vmatpush.msra.mxu0 0.0
    %5971 = vmatpush.msra.mxu0 0.0
    %5972 = vmatpush.msra.mxu0 0.0
    %5973 = vmatpush.msra.mxu0 0.0
    %5974 = vmatpush.msra.mxu0 0.0
    %5975 = vmatpush.msra.mxu0 0.0
    %5976 = vmatpush.msra.mxu0 0.0
    %5977 = vmatpush.msra.mxu0 %v3230
    %5978 = vmatmul.f32.gmra.mxu0 %v5960
    %v5979 = vpop.f32.mrf.mxu0
    %v5980 = vadd.f32 0.0, %v5979
    %5981 = vdwg.mxu0
    %v5982 = vld [vmem:[#allocation26] sm:$0xff]
    %v5983 = vld [vmem:[#allocation26 + $0x8] sm:$0xff]
    %v5984 = vld [vmem:[#allocation26 + $0x10] sm:$0xff]
    %v5985 = vld [vmem:[#allocation26 + $0x18] sm:$0xff]
    %v5986 = vld [vmem:[#allocation26 + $0x20] sm:$0xff]
    %v5987 = vld [vmem:[#allocation26 + $0x28] sm:$0xff]
    %v5988 = vld [vmem:[#allocation26 + $0x30] sm:$0xff]
    %v5989 = vld [vmem:[#allocation26 + $0x38] sm:$0xff]
    %v5990 = vld [vmem:[#allocation26 + $0x40] sm:$0xff]
    %v5991 = vld [vmem:[#allocation26 + $0x48] sm:$0xff]
    %v5992 = vld [vmem:[#allocation26 + $0x50] sm:$0xff]
    %v5993 = vld [vmem:[#allocation26 + $0x58] sm:$0xff]
    %v5994 = vld [vmem:[#allocation26 + $0x60] sm:$0xff]
    %v5995 = vld [vmem:[#allocation26 + $0x68] sm:$0xff]
    %v5996 = vld [vmem:[#allocation26 + $0x70] sm:$0xff]
    %v5997 = vld [vmem:[#allocation26 + $0x78] sm:$0xff]
    %v5998 = vld [vmem:[#allocation26 + $0x80] sm:$0xff]
    %v5999 = vld [vmem:[#allocation26 + $0x88] sm:$0xff]
    %v6000 = vld [vmem:[#allocation26 + $0x90] sm:$0xff]
    %v6001 = vld [vmem:[#allocation26 + $0x98] sm:$0xff]
    %v6002 = vld [vmem:[#allocation26 + $0xa0] sm:$0xff]
    %v6003 = vld [vmem:[#allocation26 + $0xa8] sm:$0xff]
    %v6004 = vld [vmem:[#allocation26 + $0xb0] sm:$0xff]
    %v6005 = vld [vmem:[#allocation26 + $0xb8] sm:$0xff]
    %v6006 = vld [vmem:[#allocation26 + $0xc0] sm:$0xff]
    %v6007 = vld [vmem:[#allocation26 + $0xc8] sm:$0xff]
    %v6008 = vld [vmem:[#allocation26 + $0xd0] sm:$0xff]
    %v6009 = vld [vmem:[#allocation26 + $0xd8] sm:$0xff]
    %v6010 = vld [vmem:[#allocation26 + $0xe0] sm:$0xff]
    %v6011 = vld [vmem:[#allocation26 + $0xe8] sm:$0xff]
    %v6012 = vld [vmem:[#allocation26 + $0xf0] sm:$0xff]
    %v6013 = vld [vmem:[#allocation26 + $0xf8] sm:$0xff]
    %v6014 = vld [vmem:[#allocation27] sm:$0x1]
    %6015 = vmatpush.msra.mxu0 %v5997
    %6016 = vmatpush.msra.mxu0 %v5996
    %6017 = vmatpush.msra.mxu0 %v5995
    %6018 = vmatpush.msra.mxu0 %v5994
    %6019 = vmatpush.msra.mxu0 %v5993
    %6020 = vmatpush.msra.mxu0 %v5992
    %6021 = vmatpush.msra.mxu0 %v5991
    %6022 = vmatpush.msra.mxu0 %v5990
    %6023 = vmatpush.msra.mxu0 %v5989
    %6024 = vmatpush.msra.mxu0 %v5988
    %6025 = vmatpush.msra.mxu0 %v5987
    %6026 = vmatpush.msra.mxu0 %v5986
    %6027 = vmatpush.msra.mxu0 %v5985
    %6028 = vmatpush.msra.mxu0 %v5984
    %6029 = vmatpush.msra.mxu0 %v5983
    %6030 = vmatpush.msra.mxu0 %v5982
    %6031 = vmatmul.f32.gmra.mxu0 %v5927
    %v6032 = vpop.f32.mrf.mxu0
    %v6033 = vadd.f32 %v6014, %v6032
    %6034 = vdwg.mxu0
    %6035 = vmatpush.msra.mxu0 %v6013
    %6036 = vmatpush.msra.mxu0 %v6012
    %6037 = vmatpush.msra.mxu0 %v6011
    %6038 = vmatpush.msra.mxu0 %v6010
    %6039 = vmatpush.msra.mxu0 %v6009
    %6040 = vmatpush.msra.mxu0 %v6008
    %6041 = vmatpush.msra.mxu0 %v6007
    %6042 = vmatpush.msra.mxu0 %v6006
    %6043 = vmatpush.msra.mxu0 %v6005
    %6044 = vmatpush.msra.mxu0 %v6004
    %6045 = vmatpush.msra.mxu0 %v6003
    %6046 = vmatpush.msra.mxu0 %v6002
    %6047 = vmatpush.msra.mxu0 %v6001
    %6048 = vmatpush.msra.mxu0 %v6000
    %6049 = vmatpush.msra.mxu0 %v5999
    %6050 = vmatpush.msra.mxu0 %v5998
    %6051 = vmatmul.f32.gmra.mxu0 %v5980
    %v6052 = vpop.f32.mrf.mxu0
    %v6053 = vadd.f32 %v6033, %v6052
    %6054 = vdwg.mxu0
    %v6055 = vtanh.pop %v6053
    %v6056 = vpack.c.bf16 %v6055, %v6055
    %v6057 = vld [vmem:[#allocation6] sm:$0xff]
    %v6058 = vld [vmem:[#allocation6 + $0x8] sm:$0xff]
    %v6059 = vld [vmem:[#allocation6 + $0x10] sm:$0xff]
    %v6060 = vld [vmem:[#allocation6 + $0x18] sm:$0xff]
    %v6061 = vld [vmem:[#allocation6 + $0x20] sm:$0xff]
    %v6062 = vld [vmem:[#allocation6 + $0x28] sm:$0xff]
    %v6063 = vld [vmem:[#allocation6 + $0x30] sm:$0xff]
    %v6064 = vld [vmem:[#allocation6 + $0x38] sm:$0xff]
    %v6065 = vld [vmem:[#allocation6 + $0x40] sm:$0xff]
    %v6066 = vld [vmem:[#allocation6 + $0x48] sm:$0xff]
    %v6067 = vld [vmem:[#allocation6 + $0x50] sm:$0xff]
    %v6068 = vld [vmem:[#allocation6 + $0x58] sm:$0xff]
    %v6069 = vld [vmem:[#allocation6 + $0x60] sm:$0xff]
    %v6070 = vld [vmem:[#allocation6 + $0x68] sm:$0xff]
    %v6071 = vld [vmem:[#allocation6 + $0x70] sm:$0xff]
    %v6072 = vld [vmem:[#allocation6 + $0x78] sm:$0xff]
    %v6073 = vld [vmem:[%s17] sm:$0x3]
    %v6090 = vunpack.c.l.b16 %v6057
    %v6091 = vunpack.c.h.b16 %v6057
    %v6092 = vunpack.c.l.b16 %v6058
    %v6093 = vunpack.c.h.b16 %v6058
    %v6094 = vunpack.c.l.b16 %v6059
    %v6095 = vunpack.c.h.b16 %v6059
    %v6096 = vunpack.c.l.b16 %v6060
    %v6097 = vunpack.c.h.b16 %v6060
    %v6098 = vunpack.c.l.b16 %v6061
    %v6099 = vunpack.c.h.b16 %v6061
    %v6100 = vunpack.c.l.b16 %v6062
    %v6101 = vunpack.c.h.b16 %v6062
    %v6102 = vunpack.c.l.b16 %v6063
    %v6103 = vunpack.c.h.b16 %v6063
    %v6104 = vunpack.c.l.b16 %v6064
    %v6105 = vunpack.c.h.b16 %v6064
    %v6106 = vunpack.c.l.b16 %v6065
    %v6107 = vunpack.c.h.b16 %v6065
    %v6108 = vunpack.c.l.b16 %v6066
    %v6109 = vunpack.c.h.b16 %v6066
    %v6110 = vunpack.c.l.b16 %v6067
    %v6111 = vunpack.c.h.b16 %v6067
    %v6112 = vunpack.c.l.b16 %v6068
    %v6113 = vunpack.c.h.b16 %v6068
    %v6114 = vunpack.c.l.b16 %v6069
    %v6115 = vunpack.c.h.b16 %v6069
    %v6116 = vunpack.c.l.b16 %v6070
    %v6117 = vunpack.c.h.b16 %v6070
    %v6118 = vunpack.c.l.b16 %v6071
    %v6119 = vunpack.c.h.b16 %v6071
    %v6120 = vunpack.c.l.b16 %v6072
    %v6121 = vunpack.c.h.b16 %v6072
    %v6122 = vpack.c.b16 %v6092, %v6090
    %v6123 = vpack.c.b16 %v6093, %v6091
    %v6124 = vpack.c.b16 %v6096, %v6094
    %v6125 = vpack.c.b16 %v6097, %v6095
    %v6126 = vpack.c.b16 %v6100, %v6098
    %v6127 = vpack.c.b16 %v6101, %v6099
    %v6128 = vpack.c.b16 %v6104, %v6102
    %v6129 = vpack.c.b16 %v6105, %v6103
    %v6130 = vpack.c.b16 %v6108, %v6106
    %v6131 = vpack.c.b16 %v6109, %v6107
    %v6132 = vpack.c.b16 %v6112, %v6110
    %v6133 = vpack.c.b16 %v6113, %v6111
    %v6134 = vpack.c.b16 %v6116, %v6114
    %v6135 = vpack.c.b16 %v6117, %v6115
    %v6136 = vpack.c.b16 %v6120, %v6118
    %v6137 = vpack.c.b16 %v6121, %v6119
    %v6155 = vperm.slane %v6073, 0
    %v6156 = vperm.slane %v6073, 1
    %6159 = vmatpush.bf16.msra.mxu0 %v6136
    %6160 = vmatpush.bf16.msra.mxu0 %v6134
    %6161 = vmatpush.bf16.msra.mxu0 %v6132
    %6162 = vmatpush.bf16.msra.mxu0 %v6130
    %6163 = vmatpush.bf16.msra.mxu0 %v6128
    %6164 = vmatpush.bf16.msra.mxu0 %v6126
    %6165 = vmatpush.bf16.msra.mxu0 %v6124
    %6166 = vmatpush.bf16.msra.mxu0 %v6122
    %6167 = vmatmul.bf16.gmra.mxu0 %v6056
    %v6168 = vpop.f32.mrf.mxu0
    %v6169 = vadd.f32 %v6155, %v6168
    %v6170 = vpop.f32.mrf.mxu0
    %6171 = vdwg.mxu0
    %6172 = vmatpush.bf16.msra.mxu0 %v6137
    %6173 = vmatpush.bf16.msra.mxu0 %v6135
    %6174 = vmatpush.bf16.msra.mxu0 %v6133
    %6175 = vmatpush.bf16.msra.mxu0 %v6131
    %6176 = vmatpush.bf16.msra.mxu0 %v6129
    %6177 = vmatpush.bf16.msra.mxu0 %v6127
    %6178 = vmatpush.bf16.msra.mxu0 %v6125
    %6179 = vmatpush.bf16.msra.mxu0 %v6123
    %6180 = vmatmul.bf16.gmra.mxu0 %v6056
    %v6181 = vpop.f32.mrf.mxu0
    %v6182 = vadd.f32 %v6156, %v6181
    %v6183 = vpop.f32.mrf.mxu0
    %6184 = vdwg.mxu0
    %v6185 = vsel %vm3779, %v6169, -inf
    %v6186 = vsel %vm3779, %v6182, -inf
    %v6187 = vmax.f32 %v6185, %v6186
    %6188 = vmax.xlane.f32.xlu0 %v6187
    %v6189 = vpop.xlane.xlu0 %6188
    %v6190 = vsub.f32 %v6169, %v6189
    %v6191 = vsub.f32 %v6182, %v6189
    %v6192 = vmul.f32 %v6190, 1.442695
    %v6193 = vpow.pop %v6192
    %v6194 = vmul.f32 %v6191, 1.442695
    %v6195 = vpow.pop %v6194
    %v6196 = vsel %vm3779, %v6193, 0.0
    %v6197 = vsel %vm3779, %v6195, 0.0
    %v6198 = vadd.f32 %v6196, %v6197
    %6199 = vadd.xlane.f32.xlu0 %v6198
    %v6200 = vpop.xlane.xlu0 %6199
    %v6201 = vrcp.pop %v6200
    %v6202 = vmul.f32 %v6200, %v6201
    %v6203 = vsub.f32 1.0, %v6202
    %v6204 = vmul.f32 %v6201, %v6203
    %v6205 = vadd.f32 %v6201, %v6204
    %vm6206 = vweird.f32 %v6200
    %vm6207 = vweird.f32 %v6201
    %vm6208 = vmor %vm6206, %vm6207
    %v6209 = vsel %vm6208, %v6201, %v6205
    %v6210 = vand.u32 2147483647, %v6200
    %vm6211 = vcmp.eq.f32.partialorder %v6210, 8.507059e+37
    %v6212 = vand.u32 %v6200, 2147483648
    %v6213 = vor.u32 1.1754944e-38, %v6212
    %v6214 = vsel %vm6211, %v6213, %v6209
    %v6215 = vmul.f32 1.0, %v6214
    %vm6216 = vcmp.eq.f32.partialorder %v6169, %v6189
    %vm6217 = vcmp.eq.f32.partialorder %v6182, %v6189
    %v6218 = vsel %vm6216, %v3235, 256
    %v6219 = vsel %vm6217, %v3236, 256
    %v6220 = vsel %vm3779, %v6218, 2147483647
    %v6221 = vsel %vm3779, %v6219, 2147483647
    %vm6222 = vcmp.lt.s32.totalorder %v6220, %v6221
    %v6223 = vsel %vm6222, %v6220, %v6221
    %v6224 = vand.u32 %v6223, 65535
    %v6225 = vshra.s32 %v6223, 16
    %v6226 = vcvt.s32.f32 %v6224
    %v6227 = vcvt.s32.f32 %v6225
    %6228 = vmin.xlane.f32.xlu0 %v6227
    %v6229 = vpop.xlane.xlu0 %6228
    %vm6230 = vcmp.eq.f32.partialorder %v6227, %v6229
    %v6231 = vsel %vm6230, %v6226, inf
    %6232 = vmin.xlane.f32.xlu0 %v6231
    %v6233 = vpop.xlane.xlu0 %6232
    %v6234 = vcvt.f32.s32 %v6233
    %v6235 = vcvt.f32.s32 %v6229
    %v6236 = vshll.u32 %v6235, 16
    %v6237 = vadd.s32 %v6236, %v6234
    %6238 = vst.msk [vmem:[#allocation8] sm:$0x1] %vm3833, %v6237
    %v6239 = vld [vmem:[#allocation8] sm:$0x1]
    %s6240 = vtos %v6239
    %s6241 = scalar_lea.vmem [#allocation12], %s6240
    %v6242 = vld [vmem:[%s6241] sm:$0x1]
    %vm6243 = vcmp.eq.s32.totalorder %v3235, 4
    %v6244 = vld [vmem:[#allocation29] sm:$0x1]
    %v6245 = vsel %vm6243, %v6237, %v6244
    %6246 = vst.msk [vmem:[#allocation29] sm:$0x1] %vm3231, %v6245
    %v6247 = vld [vmem:[#allocation30] sm:$0x1]
    %v6248 = vsel %vm6243, %v6215, %v6247
    %6249 = vst.msk [vmem:[#allocation30] sm:$0x1] %vm3231, %v6248
    %v6250 = vld [vmem:[#allocation23] sm:$0xff]
    %v6251 = vld [vmem:[#allocation23 + $0x8] sm:$0xff]
    %v6252 = vld [vmem:[#allocation23 + $0x10] sm:$0xff]
    %v6253 = vld [vmem:[#allocation23 + $0x18] sm:$0xff]
    %v6254 = vld [vmem:[#allocation23 + $0x20] sm:$0xff]
    %v6255 = vld [vmem:[#allocation23 + $0x28] sm:$0xff]
    %v6256 = vld [vmem:[#allocation23 + $0x30] sm:$0xff]
    %v6257 = vld [vmem:[#allocation23 + $0x38] sm:$0xff]
    %v6258 = vld [vmem:[#allocation23 + $0x40] sm:$0xff]
    %v6259 = vld [vmem:[#allocation23 + $0x48] sm:$0xff]
    %v6260 = vld [vmem:[#allocation23 + $0x50] sm:$0xff]
    %v6261 = vld [vmem:[#allocation23 + $0x58] sm:$0xff]
    %v6262 = vld [vmem:[#allocation23 + $0x60] sm:$0xff]
    %v6263 = vld [vmem:[#allocation23 + $0x68] sm:$0xff]
    %v6264 = vld [vmem:[#allocation23 + $0x70] sm:$0xff]
    %v6265 = vld [vmem:[#allocation23 + $0x78] sm:$0xff]
    %v6266 = vld [vmem:[#allocation23 + $0x80] sm:$0xff]
    %v6267 = vld [vmem:[#allocation23 + $0x88] sm:$0xff]
    %v6268 = vld [vmem:[#allocation23 + $0x90] sm:$0xff]
    %v6269 = vld [vmem:[#allocation23 + $0x98] sm:$0xff]
    %v6270 = vld [vmem:[#allocation23 + $0xa0] sm:$0xff]
    %v6271 = vld [vmem:[#allocation23 + $0xa8] sm:$0xff]
    %v6272 = vld [vmem:[#allocation23 + $0xb0] sm:$0xff]
    %v6273 = vld [vmem:[#allocation23 + $0xb8] sm:$0xff]
    %v6274 = vld [vmem:[#allocation23 + $0xc0] sm:$0xff]
    %v6275 = vld [vmem:[#allocation23 + $0xc8] sm:$0xff]
    %v6276 = vld [vmem:[#allocation23 + $0xd0] sm:$0xff]
    %v6277 = vld [vmem:[#allocation23 + $0xd8] sm:$0xff]
    %v6278 = vld [vmem:[#allocation23 + $0xe0] sm:$0xff]
    %v6279 = vld [vmem:[#allocation23 + $0xe8] sm:$0xff]
    %v6280 = vld [vmem:[#allocation23 + $0xf0] sm:$0xff]
    %v6281 = vld [vmem:[#allocation23 + $0xf8] sm:$0xff]
    %v6282 = vld [vmem:[#allocation23 + $0x100] sm:$0xff]
    %v6283 = vld [vmem:[#allocation23 + $0x108] sm:$0xff]
    %v6284 = vld [vmem:[#allocation23 + $0x110] sm:$0xff]
    %v6285 = vld [vmem:[#allocation23 + $0x118] sm:$0xff]
    %v6286 = vld [vmem:[#allocation23 + $0x120] sm:$0xff]
    %v6287 = vld [vmem:[#allocation23 + $0x128] sm:$0xff]
    %v6288 = vld [vmem:[#allocation23 + $0x130] sm:$0xff]
    %v6289 = vld [vmem:[#allocation23 + $0x138] sm:$0xff]
    %v6290 = vld [vmem:[#allocation23 + $0x140] sm:$0xff]
    %v6291 = vld [vmem:[#allocation23 + $0x148] sm:$0xff]
    %v6292 = vld [vmem:[#allocation23 + $0x150] sm:$0xff]
    %v6293 = vld [vmem:[#allocation23 + $0x158] sm:$0xff]
    %v6294 = vld [vmem:[#allocation23 + $0x160] sm:$0xff]
    %v6295 = vld [vmem:[#allocation23 + $0x168] sm:$0xff]
    %v6296 = vld [vmem:[#allocation23 + $0x170] sm:$0xff]
    %v6297 = vld [vmem:[#allocation23 + $0x178] sm:$0xff]
    %v6298 = vld [vmem:[%s12] sm:$0x7]
    %v6300 = vperm.slane %v6298, 0
    %v6301 = vperm.slane %v6298, 1
    %v6302 = vperm.slane %v6298, 2
    %6306 = vmatpush.msra.mxu0 %v6295
    %6307 = vmatpush.msra.mxu0 %v6292
    %6308 = vmatpush.msra.mxu0 %v6289
    %6309 = vmatpush.msra.mxu0 %v6286
    %6310 = vmatpush.msra.mxu0 %v6283
    %6311 = vmatpush.msra.mxu0 %v6280
    %6312 = vmatpush.msra.mxu0 %v6277
    %6313 = vmatpush.msra.mxu0 %v6274
    %6314 = vmatpush.msra.mxu0 %v6271
    %6315 = vmatpush.msra.mxu0 %v6268
    %6316 = vmatpush.msra.mxu0 %v6265
    %6317 = vmatpush.msra.mxu0 %v6262
    %6318 = vmatpush.msra.mxu0 %v6259
    %6319 = vmatpush.msra.mxu0 %v6256
    %6320 = vmatpush.msra.mxu0 %v6253
    %6321 = vmatpush.msra.mxu0 %v6250
    %6322 = vmatmul.f32.gmra.mxu0 %v6242
    %v6323 = vpop.f32.mrf.mxu0
    %v6324 = vadd.f32 %v6300, %v6323
    %6325 = vdwg.mxu0
    %6326 = vmatpush.msra.mxu0 %v6296
    %6327 = vmatpush.msra.mxu0 %v6293
    %6328 = vmatpush.msra.mxu0 %v6290
    %6329 = vmatpush.msra.mxu0 %v6287
    %6330 = vmatpush.msra.mxu0 %v6284
    %6331 = vmatpush.msra.mxu0 %v6281
    %6332 = vmatpush.msra.mxu0 %v6278
    %6333 = vmatpush.msra.mxu0 %v6275
    %6334 = vmatpush.msra.mxu0 %v6272
    %6335 = vmatpush.msra.mxu0 %v6269
    %6336 = vmatpush.msra.mxu0 %v6266
    %6337 = vmatpush.msra.mxu0 %v6263
    %6338 = vmatpush.msra.mxu0 %v6260
    %6339 = vmatpush.msra.mxu0 %v6257
    %6340 = vmatpush.msra.mxu0 %v6254
    %6341 = vmatpush.msra.mxu0 %v6251
    %6342 = vmatmul.f32.gmra.mxu0 %v6242
    %v6343 = vpop.f32.mrf.mxu0
    %v6344 = vadd.f32 %v6301, %v6343
    %6345 = vdwg.mxu0
    %6346 = vmatpush.msra.mxu0 %v6297
    %6347 = vmatpush.msra.mxu0 %v6294
    %6348 = vmatpush.msra.mxu0 %v6291
    %6349 = vmatpush.msra.mxu0 %v6288
    %6350 = vmatpush.msra.mxu0 %v6285
    %6351 = vmatpush.msra.mxu0 %v6282
    %6352 = vmatpush.msra.mxu0 %v6279
    %6353 = vmatpush.msra.mxu0 %v6276
    %6354 = vmatpush.msra.mxu0 %v6273
    %6355 = vmatpush.msra.mxu0 %v6270
    %6356 = vmatpush.msra.mxu0 %v6267
    %6357 = vmatpush.msra.mxu0 %v6264
    %6358 = vmatpush.msra.mxu0 %v6261
    %6359 = vmatpush.msra.mxu0 %v6258
    %6360 = vmatpush.msra.mxu0 %v6255
    %6361 = vmatpush.msra.mxu0 %v6252
    %6362 = vmatmul.f32.gmra.mxu0 %v6242
    %v6363 = vpop.f32.mrf.mxu0
    %v6364 = vadd.f32 %v6302, %v6363
    %6365 = vdwg.mxu0
    %v6366 = vld [vmem:[#allocation24] sm:$0xff]
    %v6367 = vld [vmem:[#allocation24 + $0x8] sm:$0xff]
    %v6368 = vld [vmem:[#allocation24 + $0x10] sm:$0xff]
    %v6369 = vld [vmem:[#allocation24 + $0x18] sm:$0xff]
    %v6370 = vld [vmem:[#allocation24 + $0x20] sm:$0xff]
    %v6371 = vld [vmem:[#allocation24 + $0x28] sm:$0xff]
    %v6372 = vld [vmem:[#allocation24 + $0x30] sm:$0xff]
    %v6373 = vld [vmem:[#allocation24 + $0x38] sm:$0xff]
    %v6374 = vld [vmem:[#allocation24 + $0x40] sm:$0xff]
    %v6375 = vld [vmem:[#allocation24 + $0x48] sm:$0xff]
    %v6376 = vld [vmem:[#allocation24 + $0x50] sm:$0xff]
    %v6377 = vld [vmem:[#allocation24 + $0x58] sm:$0xff]
    %v6378 = vld [vmem:[#allocation24 + $0x60] sm:$0xff]
    %v6379 = vld [vmem:[#allocation24 + $0x68] sm:$0xff]
    %v6380 = vld [vmem:[#allocation24 + $0x70] sm:$0xff]
    %v6381 = vld [vmem:[#allocation24 + $0x78] sm:$0xff]
    %v6382 = vld [vmem:[#allocation24 + $0x80] sm:$0xff]
    %v6383 = vld [vmem:[#allocation24 + $0x88] sm:$0xff]
    %v6384 = vld [vmem:[#allocation24 + $0x90] sm:$0xff]
    %v6385 = vld [vmem:[#allocation24 + $0x98] sm:$0xff]
    %v6386 = vld [vmem:[#allocation24 + $0xa0] sm:$0xff]
    %v6387 = vld [vmem:[#allocation24 + $0xa8] sm:$0xff]
    %v6388 = vld [vmem:[#allocation24 + $0xb0] sm:$0xff]
    %v6389 = vld [vmem:[#allocation24 + $0xb8] sm:$0xff]
    %v6390 = vld [vmem:[#allocation24 + $0xc0] sm:$0xff]
    %v6391 = vld [vmem:[#allocation24 + $0xc8] sm:$0xff]
    %v6392 = vld [vmem:[#allocation24 + $0xd0] sm:$0xff]
    %v6393 = vld [vmem:[#allocation24 + $0xd8] sm:$0xff]
    %v6394 = vld [vmem:[#allocation24 + $0xe0] sm:$0xff]
    %v6395 = vld [vmem:[#allocation24 + $0xe8] sm:$0xff]
    %v6396 = vld [vmem:[#allocation24 + $0xf0] sm:$0xff]
    %v6397 = vld [vmem:[#allocation24 + $0xf8] sm:$0xff]
    %v6398 = vld [vmem:[#allocation24 + $0x100] sm:$0xff]
    %v6399 = vld [vmem:[#allocation24 + $0x108] sm:$0xff]
    %v6400 = vld [vmem:[#allocation24 + $0x110] sm:$0xff]
    %v6401 = vld [vmem:[#allocation24 + $0x118] sm:$0xff]
    %v6402 = vld [vmem:[#allocation24 + $0x120] sm:$0xff]
    %v6403 = vld [vmem:[#allocation24 + $0x128] sm:$0xff]
    %v6404 = vld [vmem:[#allocation24 + $0x130] sm:$0xff]
    %v6405 = vld [vmem:[#allocation24 + $0x138] sm:$0xff]
    %v6406 = vld [vmem:[#allocation24 + $0x140] sm:$0xff]
    %v6407 = vld [vmem:[#allocation24 + $0x148] sm:$0xff]
    %v6408 = vld [vmem:[#allocation24 + $0x150] sm:$0xff]
    %v6409 = vld [vmem:[#allocation24 + $0x158] sm:$0xff]
    %v6410 = vld [vmem:[#allocation24 + $0x160] sm:$0xff]
    %v6411 = vld [vmem:[#allocation24 + $0x168] sm:$0xff]
    %v6412 = vld [vmem:[#allocation24 + $0x170] sm:$0xff]
    %v6413 = vld [vmem:[#allocation24 + $0x178] sm:$0xff]
    %v6414 = vld [vmem:[%s13] sm:$0x7]
    %v6416 = vperm.slane %v6414, 0
    %v6417 = vperm.slane %v6414, 1
    %v6418 = vperm.slane %v6414, 2
    %6422 = vmatpush.msra.mxu0 %v6411
    %6423 = vmatpush.msra.mxu0 %v6408
    %6424 = vmatpush.msra.mxu0 %v6405
    %6425 = vmatpush.msra.mxu0 %v6402
    %6426 = vmatpush.msra.mxu0 %v6399
    %6427 = vmatpush.msra.mxu0 %v6396
    %6428 = vmatpush.msra.mxu0 %v6393
    %6429 = vmatpush.msra.mxu0 %v6390
    %6430 = vmatpush.msra.mxu0 %v6387
    %6431 = vmatpush.msra.mxu0 %v6384
    %6432 = vmatpush.msra.mxu0 %v6381
    %6433 = vmatpush.msra.mxu0 %v6378
    %6434 = vmatpush.msra.mxu0 %v6375
    %6435 = vmatpush.msra.mxu0 %v6372
    %6436 = vmatpush.msra.mxu0 %v6369
    %6437 = vmatpush.msra.mxu0 %v6366
    %6438 = vmatmul.f32.gmra.mxu0 %v5927
    %v6439 = vpop.f32.mrf.mxu0
    %v6440 = vadd.f32 %v6416, %v6439
    %6441 = vdwg.mxu0
    %6442 = vmatpush.msra.mxu0 %v6412
    %6443 = vmatpush.msra.mxu0 %v6409
    %6444 = vmatpush.msra.mxu0 %v6406
    %6445 = vmatpush.msra.mxu0 %v6403
    %6446 = vmatpush.msra.mxu0 %v6400
    %6447 = vmatpush.msra.mxu0 %v6397
    %6448 = vmatpush.msra.mxu0 %v6394
    %6449 = vmatpush.msra.mxu0 %v6391
    %6450 = vmatpush.msra.mxu0 %v6388
    %6451 = vmatpush.msra.mxu0 %v6385
    %6452 = vmatpush.msra.mxu0 %v6382
    %6453 = vmatpush.msra.mxu0 %v6379
    %6454 = vmatpush.msra.mxu0 %v6376
    %6455 = vmatpush.msra.mxu0 %v6373
    %6456 = vmatpush.msra.mxu0 %v6370
    %6457 = vmatpush.msra.mxu0 %v6367
    %6458 = vmatmul.f32.gmra.mxu0 %v5927
    %v6459 = vpop.f32.mrf.mxu0
    %v6460 = vadd.f32 %v6417, %v6459
    %6461 = vdwg.mxu0
    %6462 = vmatpush.msra.mxu0 %v6413
    %6463 = vmatpush.msra.mxu0 %v6410
    %6464 = vmatpush.msra.mxu0 %v6407
    %6465 = vmatpush.msra.mxu0 %v6404
    %6466 = vmatpush.msra.mxu0 %v6401
    %6467 = vmatpush.msra.mxu0 %v6398
    %6468 = vmatpush.msra.mxu0 %v6395
    %6469 = vmatpush.msra.mxu0 %v6392
    %6470 = vmatpush.msra.mxu0 %v6389
    %6471 = vmatpush.msra.mxu0 %v6386
    %6472 = vmatpush.msra.mxu0 %v6383
    %6473 = vmatpush.msra.mxu0 %v6380
    %6474 = vmatpush.msra.mxu0 %v6377
    %6475 = vmatpush.msra.mxu0 %v6374
    %6476 = vmatpush.msra.mxu0 %v6371
    %6477 = vmatpush.msra.mxu0 %v6368
    %6478 = vmatmul.f32.gmra.mxu0 %v5927
    %v6479 = vpop.f32.mrf.mxu0
    %v6480 = vadd.f32 %v6418, %v6479
    %6481 = vdwg.mxu0
    %v6482 = vadd.f32 %v6324, %v6440
    %v6483 = vxor.u32 %v6482, 2147483648
    %v6484 = vmul.f32 %v6483, 1.442695
    %v6485 = vpow.pop %v6484
    %v6486 = vadd.f32 %v6485, 1.0
    %v6487 = vrcp.pop %v6486
    %v6488 = vmul.f32 %v6486, %v6487
    %v6489 = vsub.f32 1.0, %v6488
    %v6490 = vmul.f32 %v6487, %v6489
    %v6491 = vadd.f32 %v6487, %v6490
    %vm6492 = vweird.f32 %v6486
    %vm6493 = vweird.f32 %v6487
    %vm6494 = vmor %vm6492, %vm6493
    %v6495 = vsel %vm6494, %v6487, %v6491
    %v6496 = vand.u32 2147483647, %v6486
    %vm6497 = vcmp.eq.f32.partialorder %v6496, 8.507059e+37
    %v6498 = vand.u32 %v6486, 2147483648
    %v6499 = vor.u32 1.1754944e-38, %v6498
    %v6500 = vsel %vm6497, %v6499, %v6495
    %v6501 = vmul.f32 1.0, %v6500
    %v6502 = vadd.f32 %v6344, %v6460
    %v6503 = vxor.u32 %v6502, 2147483648
    %v6504 = vmul.f32 %v6503, 1.442695
    %v6505 = vpow.pop %v6504
    %v6506 = vadd.f32 %v6505, 1.0
    %v6507 = vrcp.pop %v6506
    %v6508 = vmul.f32 %v6506, %v6507
    %v6509 = vsub.f32 1.0, %v6508
    %v6510 = vmul.f32 %v6507, %v6509
    %v6511 = vadd.f32 %v6507, %v6510
    %vm6512 = vweird.f32 %v6506
    %vm6513 = vweird.f32 %v6507
    %vm6514 = vmor %vm6512, %vm6513
    %v6515 = vsel %vm6514, %v6507, %v6511
    %v6516 = vand.u32 2147483647, %v6506
    %vm6517 = vcmp.eq.f32.partialorder %v6516, 8.507059e+37
    %v6518 = vand.u32 %v6506, 2147483648
    %v6519 = vor.u32 1.1754944e-38, %v6518
    %v6520 = vsel %vm6517, %v6519, %v6515
    %v6521 = vmul.f32 1.0, %v6520
    %v6522 = vmul.f32 %v6501, %v6480
    %v6523 = vadd.f32 %v6364, %v6522
    %v6524 = vtanh.pop %v6523
    %v6525 = vsub.f32 1.0, %v6521
    %v6526 = vmul.f32 %v6525, %v6524
    %v6527 = vmul.f32 %v6521, %v5927
    %v6528 = vadd.f32 %v6526, %v6527
    %6529 = vmatpush.xpose.msra.mxu0 0.0
    %6530 = vmatpush.xpose.msra.mxu0 0.0
    %6531 = vmatpush.xpose.msra.mxu0 0.0
    %6532 = vmatpush.xpose.msra.mxu0 0.0
    %6533 = vmatpush.xpose.msra.mxu0 0.0
    %6534 = vmatpush.xpose.msra.mxu0 0.0
    %6535 = vmatpush.xpose.msra.mxu0 0.0
    %6536 = vmatpush.xpose.msra.mxu0 0.0
    %6537 = vmatpush.xpose.msra.mxu0 0.0
    %6538 = vmatpush.xpose.msra.mxu0 0.0
    %6539 = vmatpush.xpose.msra.mxu0 0.0
    %6540 = vmatpush.xpose.msra.mxu0 0.0
    %6541 = vmatpush.xpose.msra.mxu0 0.0
    %6542 = vmatpush.xpose.msra.mxu0 0.0
    %6543 = vmatpush.xpose.msra.mxu0 0.0
    %6544 = vmatpush.xpose.msra.mxu0 %v3230
    %6545 = vmatmul.f32.gmra.mxu0 %v6528
    %v6546 = vpop.f32.mrf.mxu0
    %v6547 = vadd.f32 0.0, %v6546
    %6548 = vdwg.mxu0
    %v6549 = vsel %vm3231, %v6547, -inf
    %6550 = vmax.xlane.f32.xlu0 %v6549
    %v6551 = vpop.xlane.xlu0 %6550
    %v6552 = vsub.f32 %v6547, %v6551
    %v6553 = vmul.f32 %v6552, 1.442695
    %v6554 = vpow.pop %v6553
    %v6555 = vsel %vm3231, %v6554, 0.0
    %6556 = vadd.xlane.f32.xlu0 %v6555
    %v6557 = vpop.xlane.xlu0 %6556
    %v6558 = vrcp.pop %v6557
    %v6559 = vmul.f32 %v6554, %v6558
    %v6561 = vsel %vm3552, %v6559, 0
    %6563 = vmatpush.msra.mxu0 0.0
    %6564 = vmatpush.msra.mxu0 0.0
    %6565 = vmatpush.msra.mxu0 0.0
    %6566 = vmatpush.msra.mxu0 0.0
    %6567 = vmatpush.msra.mxu0 0.0
    %6568 = vmatpush.msra.mxu0 0.0
    %6569 = vmatpush.msra.mxu0 0.0
    %6570 = vmatpush.msra.mxu0 0.0
    %6571 = vmatpush.msra.mxu0 0.0
    %6572 = vmatpush.msra.mxu0 0.0
    %6573 = vmatpush.msra.mxu0 0.0
    %6574 = vmatpush.msra.mxu0 0.0
    %6575 = vmatpush.msra.mxu0 0.0
    %6576 = vmatpush.msra.mxu0 0.0
    %6577 = vmatpush.msra.mxu0 0.0
    %6578 = vmatpush.msra.mxu0 %v3230
    %6579 = vmatmul.f32.gmra.mxu0 %v6561
    %v6580 = vpop.f32.mrf.mxu0
    %v6581 = vadd.f32 0.0, %v6580
    %6582 = vdwg.mxu0
    %v6583 = vld [vmem:[#allocation26] sm:$0xff]
    %v6584 = vld [vmem:[#allocation26 + $0x8] sm:$0xff]
    %v6585 = vld [vmem:[#allocation26 + $0x10] sm:$0xff]
    %v6586 = vld [vmem:[#allocation26 + $0x18] sm:$0xff]
    %v6587 = vld [vmem:[#allocation26 + $0x20] sm:$0xff]
    %v6588 = vld [vmem:[#allocation26 + $0x28] sm:$0xff]
    %v6589 = vld [vmem:[#allocation26 + $0x30] sm:$0xff]
    %v6590 = vld [vmem:[#allocation26 + $0x38] sm:$0xff]
    %v6591 = vld [vmem:[#allocation26 + $0x40] sm:$0xff]
    %v6592 = vld [vmem:[#allocation26 + $0x48] sm:$0xff]
    %v6593 = vld [vmem:[#allocation26 + $0x50] sm:$0xff]
    %v6594 = vld [vmem:[#allocation26 + $0x58] sm:$0xff]
    %v6595 = vld [vmem:[#allocation26 + $0x60] sm:$0xff]
    %v6596 = vld [vmem:[#allocation26 + $0x68] sm:$0xff]
    %v6597 = vld [vmem:[#allocation26 + $0x70] sm:$0xff]
    %v6598 = vld [vmem:[#allocation26 + $0x78] sm:$0xff]
    %v6599 = vld [vmem:[#allocation26 + $0x80] sm:$0xff]
    %v6600 = vld [vmem:[#allocation26 + $0x88] sm:$0xff]
    %v6601 = vld [vmem:[#allocation26 + $0x90] sm:$0xff]
    %v6602 = vld [vmem:[#allocation26 + $0x98] sm:$0xff]
    %v6603 = vld [vmem:[#allocation26 + $0xa0] sm:$0xff]
    %v6604 = vld [vmem:[#allocation26 + $0xa8] sm:$0xff]
    %v6605 = vld [vmem:[#allocation26 + $0xb0] sm:$0xff]
    %v6606 = vld [vmem:[#allocation26 + $0xb8] sm:$0xff]
    %v6607 = vld [vmem:[#allocation26 + $0xc0] sm:$0xff]
    %v6608 = vld [vmem:[#allocation26 + $0xc8] sm:$0xff]
    %v6609 = vld [vmem:[#allocation26 + $0xd0] sm:$0xff]
    %v6610 = vld [vmem:[#allocation26 + $0xd8] sm:$0xff]
    %v6611 = vld [vmem:[#allocation26 + $0xe0] sm:$0xff]
    %v6612 = vld [vmem:[#allocation26 + $0xe8] sm:$0xff]
    %v6613 = vld [vmem:[#allocation26 + $0xf0] sm:$0xff]
    %v6614 = vld [vmem:[#allocation26 + $0xf8] sm:$0xff]
    %v6615 = vld [vmem:[#allocation27] sm:$0x1]
    %6616 = vmatpush.msra.mxu0 %v6598
    %6617 = vmatpush.msra.mxu0 %v6597
    %6618 = vmatpush.msra.mxu0 %v6596
    %6619 = vmatpush.msra.mxu0 %v6595
    %6620 = vmatpush.msra.mxu0 %v6594
    %6621 = vmatpush.msra.mxu0 %v6593
    %6622 = vmatpush.msra.mxu0 %v6592
    %6623 = vmatpush.msra.mxu0 %v6591
    %6624 = vmatpush.msra.mxu0 %v6590
    %6625 = vmatpush.msra.mxu0 %v6589
    %6626 = vmatpush.msra.mxu0 %v6588
    %6627 = vmatpush.msra.mxu0 %v6587
    %6628 = vmatpush.msra.mxu0 %v6586
    %6629 = vmatpush.msra.mxu0 %v6585
    %6630 = vmatpush.msra.mxu0 %v6584
    %6631 = vmatpush.msra.mxu0 %v6583
    %6632 = vmatmul.f32.gmra.mxu0 %v6528
    %v6633 = vpop.f32.mrf.mxu0
    %v6634 = vadd.f32 %v6615, %v6633
    %6635 = vdwg.mxu0
    %6636 = vmatpush.msra.mxu0 %v6614
    %6637 = vmatpush.msra.mxu0 %v6613
    %6638 = vmatpush.msra.mxu0 %v6612
    %6639 = vmatpush.msra.mxu0 %v6611
    %6640 = vmatpush.msra.mxu0 %v6610
    %6641 = vmatpush.msra.mxu0 %v6609
    %6642 = vmatpush.msra.mxu0 %v6608
    %6643 = vmatpush.msra.mxu0 %v6607
    %6644 = vmatpush.msra.mxu0 %v6606
    %6645 = vmatpush.msra.mxu0 %v6605
    %6646 = vmatpush.msra.mxu0 %v6604
    %6647 = vmatpush.msra.mxu0 %v6603
    %6648 = vmatpush.msra.mxu0 %v6602
    %6649 = vmatpush.msra.mxu0 %v6601
    %6650 = vmatpush.msra.mxu0 %v6600
    %6651 = vmatpush.msra.mxu0 %v6599
    %6652 = vmatmul.f32.gmra.mxu0 %v6581
    %v6653 = vpop.f32.mrf.mxu0
    %v6654 = vadd.f32 %v6634, %v6653
    %6655 = vdwg.mxu0
    %v6656 = vtanh.pop %v6654
    %v6657 = vpack.c.bf16 %v6656, %v6656
    %v6658 = vld [vmem:[#allocation6] sm:$0xff]
    %v6659 = vld [vmem:[#allocation6 + $0x8] sm:$0xff]
    %v6660 = vld [vmem:[#allocation6 + $0x10] sm:$0xff]
    %v6661 = vld [vmem:[#allocation6 + $0x18] sm:$0xff]
    %v6662 = vld [vmem:[#allocation6 + $0x20] sm:$0xff]
    %v6663 = vld [vmem:[#allocation6 + $0x28] sm:$0xff]
    %v6664 = vld [vmem:[#allocation6 + $0x30] sm:$0xff]
    %v6665 = vld [vmem:[#allocation6 + $0x38] sm:$0xff]
    %v6666 = vld [vmem:[#allocation6 + $0x40] sm:$0xff]
    %v6667 = vld [vmem:[#allocation6 + $0x48] sm:$0xff]
    %v6668 = vld [vmem:[#allocation6 + $0x50] sm:$0xff]
    %v6669 = vld [vmem:[#allocation6 + $0x58] sm:$0xff]
    %v6670 = vld [vmem:[#allocation6 + $0x60] sm:$0xff]
    %v6671 = vld [vmem:[#allocation6 + $0x68] sm:$0xff]
    %v6672 = vld [vmem:[#allocation6 + $0x70] sm:$0xff]
    %v6673 = vld [vmem:[#allocation6 + $0x78] sm:$0xff]
    %v6674 = vld [vmem:[%s17] sm:$0x3]
    %v6691 = vunpack.c.l.b16 %v6658
    %v6692 = vunpack.c.h.b16 %v6658
    %v6693 = vunpack.c.l.b16 %v6659
    %v6694 = vunpack.c.h.b16 %v6659
    %v6695 = vunpack.c.l.b16 %v6660
    %v6696 = vunpack.c.h.b16 %v6660
    %v6697 = vunpack.c.l.b16 %v6661
    %v6698 = vunpack.c.h.b16 %v6661
    %v6699 = vunpack.c.l.b16 %v6662
    %v6700 = vunpack.c.h.b16 %v6662
    %v6701 = vunpack.c.l.b16 %v6663
    %v6702 = vunpack.c.h.b16 %v6663
    %v6703 = vunpack.c.l.b16 %v6664
    %v6704 = vunpack.c.h.b16 %v6664
    %v6705 = vunpack.c.l.b16 %v6665
    %v6706 = vunpack.c.h.b16 %v6665
    %v6707 = vunpack.c.l.b16 %v6666
    %v6708 = vunpack.c.h.b16 %v6666
    %v6709 = vunpack.c.l.b16 %v6667
    %v6710 = vunpack.c.h.b16 %v6667
    %v6711 = vunpack.c.l.b16 %v6668
    %v6712 = vunpack.c.h.b16 %v6668
    %v6713 = vunpack.c.l.b16 %v6669
    %v6714 = vunpack.c.h.b16 %v6669
    %v6715 = vunpack.c.l.b16 %v6670
    %v6716 = vunpack.c.h.b16 %v6670
    %v6717 = vunpack.c.l.b16 %v6671
    %v6718 = vunpack.c.h.b16 %v6671
    %v6719 = vunpack.c.l.b16 %v6672
    %v6720 = vunpack.c.h.b16 %v6672
    %v6721 = vunpack.c.l.b16 %v6673
    %v6722 = vunpack.c.h.b16 %v6673
    %v6723 = vpack.c.b16 %v6693, %v6691
    %v6724 = vpack.c.b16 %v6694, %v6692
    %v6725 = vpack.c.b16 %v6697, %v6695
    %v6726 = vpack.c.b16 %v6698, %v6696
    %v6727 = vpack.c.b16 %v6701, %v6699
    %v6728 = vpack.c.b16 %v6702, %v6700
    %v6729 = vpack.c.b16 %v6705, %v6703
    %v6730 = vpack.c.b16 %v6706, %v6704
    %v6731 = vpack.c.b16 %v6709, %v6707
    %v6732 = vpack.c.b16 %v6710, %v6708
    %v6733 = vpack.c.b16 %v6713, %v6711
    %v6734 = vpack.c.b16 %v6714, %v6712
    %v6735 = vpack.c.b16 %v6717, %v6715
    %v6736 = vpack.c.b16 %v6718, %v6716
    %v6737 = vpack.c.b16 %v6721, %v6719
    %v6738 = vpack.c.b16 %v6722, %v6720
    %v6756 = vperm.slane %v6674, 0
    %v6757 = vperm.slane %v6674, 1
    %6760 = vmatpush.bf16.msra.mxu0 %v6737
    %6761 = vmatpush.bf16.msra.mxu0 %v6735
    %6762 = vmatpush.bf16.msra.mxu0 %v6733
    %6763 = vmatpush.bf16.msra.mxu0 %v6731
    %6764 = vmatpush.bf16.msra.mxu0 %v6729
    %6765 = vmatpush.bf16.msra.mxu0 %v6727
    %6766 = vmatpush.bf16.msra.mxu0 %v6725
    %6767 = vmatpush.bf16.msra.mxu0 %v6723
    %6768 = vmatmul.bf16.gmra.mxu0 %v6657
    %v6769 = vpop.f32.mrf.mxu0
    %v6770 = vadd.f32 %v6756, %v6769
    %v6771 = vpop.f32.mrf.mxu0
    %6772 = vdwg.mxu0
    %6773 = vmatpush.bf16.msra.mxu0 %v6738
    %6774 = vmatpush.bf16.msra.mxu0 %v6736
    %6775 = vmatpush.bf16.msra.mxu0 %v6734
    %6776 = vmatpush.bf16.msra.mxu0 %v6732
    %6777 = vmatpush.bf16.msra.mxu0 %v6730
    %6778 = vmatpush.bf16.msra.mxu0 %v6728
    %6779 = vmatpush.bf16.msra.mxu0 %v6726
    %6780 = vmatpush.bf16.msra.mxu0 %v6724
    %6781 = vmatmul.bf16.gmra.mxu0 %v6657
    %v6782 = vpop.f32.mrf.mxu0
    %v6783 = vadd.f32 %v6757, %v6782
    %v6784 = vpop.f32.mrf.mxu0
    %6785 = vdwg.mxu0
    %v6786 = vsel %vm3779, %v6770, -inf
    %v6787 = vsel %vm3779, %v6783, -inf
    %v6788 = vmax.f32 %v6786, %v6787
    %6789 = vmax.xlane.f32.xlu0 %v6788
    %v6790 = vpop.xlane.xlu0 %6789
    %v6791 = vsub.f32 %v6770, %v6790
    %v6792 = vsub.f32 %v6783, %v6790
    %v6793 = vmul.f32 %v6791, 1.442695
    %v6794 = vpow.pop %v6793
    %v6795 = vmul.f32 %v6792, 1.442695
    %v6796 = vpow.pop %v6795
    %v6797 = vsel %vm3779, %v6794, 0.0
    %v6798 = vsel %vm3779, %v6796, 0.0
    %v6799 = vadd.f32 %v6797, %v6798
    %6800 = vadd.xlane.f32.xlu0 %v6799
    %v6801 = vpop.xlane.xlu0 %6800
    %v6802 = vrcp.pop %v6801
    %v6803 = vmul.f32 %v6801, %v6802
    %v6804 = vsub.f32 1.0, %v6803
    %v6805 = vmul.f32 %v6802, %v6804
    %v6806 = vadd.f32 %v6802, %v6805
    %vm6807 = vweird.f32 %v6801
    %vm6808 = vweird.f32 %v6802
    %vm6809 = vmor %vm6807, %vm6808
    %v6810 = vsel %vm6809, %v6802, %v6806
    %v6811 = vand.u32 2147483647, %v6801
    %vm6812 = vcmp.eq.f32.partialorder %v6811, 8.507059e+37
    %v6813 = vand.u32 %v6801, 2147483648
    %v6814 = vor.u32 1.1754944e-38, %v6813
    %v6815 = vsel %vm6812, %v6814, %v6810
    %v6816 = vmul.f32 1.0, %v6815
    %vm6817 = vcmp.eq.f32.partialorder %v6770, %v6790
    %vm6818 = vcmp.eq.f32.partialorder %v6783, %v6790
    %v6819 = vsel %vm6817, %v3235, 256
    %v6820 = vsel %vm6818, %v3236, 256
    %v6821 = vsel %vm3779, %v6819, 2147483647
    %v6822 = vsel %vm3779, %v6820, 2147483647
    %vm6823 = vcmp.lt.s32.totalorder %v6821, %v6822
    %v6824 = vsel %vm6823, %v6821, %v6822
    %v6825 = vand.u32 %v6824, 65535
    %v6826 = vshra.s32 %v6824, 16
    %v6827 = vcvt.s32.f32 %v6825
    %v6828 = vcvt.s32.f32 %v6826
    %6829 = vmin.xlane.f32.xlu0 %v6828
    %v6830 = vpop.xlane.xlu0 %6829
    %vm6831 = vcmp.eq.f32.partialorder %v6828, %v6830
    %v6832 = vsel %vm6831, %v6827, inf
    %6833 = vmin.xlane.f32.xlu0 %v6832
    %v6834 = vpop.xlane.xlu0 %6833
    %v6835 = vcvt.f32.s32 %v6834
    %v6836 = vcvt.f32.s32 %v6830
    %v6837 = vshll.u32 %v6836, 16
    %v6838 = vadd.s32 %v6837, %v6835
    %6839 = vst.msk [vmem:[#allocation8] sm:$0x1] %vm3833, %v6838
    %v6840 = vld [vmem:[#allocation8] sm:$0x1]
    %s6841 = vtos %v6840
    %s6842 = scalar_lea.vmem [#allocation12], %s6841
    %v6843 = vld [vmem:[%s6842] sm:$0x1]
    %vm6844 = vcmp.eq.s32.totalorder %v3235, 5
    %v6845 = vld [vmem:[#allocation29] sm:$0x1]
    %v6846 = vsel %vm6844, %v6838, %v6845
    %6847 = vst.msk [vmem:[#allocation29] sm:$0x1] %vm3231, %v6846
    %v6848 = vld [vmem:[#allocation30] sm:$0x1]
    %v6849 = vsel %vm6844, %v6816, %v6848
    %6850 = vst.msk [vmem:[#allocation30] sm:$0x1] %vm3231, %v6849
    %v6851 = vld [vmem:[#allocation23] sm:$0xff]
    %v6852 = vld [vmem:[#allocation23 + $0x8] sm:$0xff]
    %v6853 = vld [vmem:[#allocation23 + $0x10] sm:$0xff]
    %v6854 = vld [vmem:[#allocation23 + $0x18] sm:$0xff]
    %v6855 = vld [vmem:[#allocation23 + $0x20] sm:$0xff]
    %v6856 = vld [vmem:[#allocation23 + $0x28] sm:$0xff]
    %v6857 = vld [vmem:[#allocation23 + $0x30] sm:$0xff]
    %v6858 = vld [vmem:[#allocation23 + $0x38] sm:$0xff]
    %v6859 = vld [vmem:[#allocation23 + $0x40] sm:$0xff]
    %v6860 = vld [vmem:[#allocation23 + $0x48] sm:$0xff]
    %v6861 = vld [vmem:[#allocation23 + $0x50] sm:$0xff]
    %v6862 = vld [vmem:[#allocation23 + $0x58] sm:$0xff]
    %v6863 = vld [vmem:[#allocation23 + $0x60] sm:$0xff]
    %v6864 = vld [vmem:[#allocation23 + $0x68] sm:$0xff]
    %v6865 = vld [vmem:[#allocation23 + $0x70] sm:$0xff]
    %v6866 = vld [vmem:[#allocation23 + $0x78] sm:$0xff]
    %v6867 = vld [vmem:[#allocation23 + $0x80] sm:$0xff]
    %v6868 = vld [vmem:[#allocation23 + $0x88] sm:$0xff]
    %v6869 = vld [vmem:[#allocation23 + $0x90] sm:$0xff]
    %v6870 = vld [vmem:[#allocation23 + $0x98] sm:$0xff]
    %v6871 = vld [vmem:[#allocation23 + $0xa0] sm:$0xff]
    %v6872 = vld [vmem:[#allocation23 + $0xa8] sm:$0xff]
    %v6873 = vld [vmem:[#allocation23 + $0xb0] sm:$0xff]
    %v6874 = vld [vmem:[#allocation23 + $0xb8] sm:$0xff]
    %v6875 = vld [vmem:[#allocation23 + $0xc0] sm:$0xff]
    %v6876 = vld [vmem:[#allocation23 + $0xc8] sm:$0xff]
    %v6877 = vld [vmem:[#allocation23 + $0xd0] sm:$0xff]
    %v6878 = vld [vmem:[#allocation23 + $0xd8] sm:$0xff]
    %v6879 = vld [vmem:[#allocation23 + $0xe0] sm:$0xff]
    %v6880 = vld [vmem:[#allocation23 + $0xe8] sm:$0xff]
    %v6881 = vld [vmem:[#allocation23 + $0xf0] sm:$0xff]
    %v6882 = vld [vmem:[#allocation23 + $0xf8] sm:$0xff]
    %v6883 = vld [vmem:[#allocation23 + $0x100] sm:$0xff]
    %v6884 = vld [vmem:[#allocation23 + $0x108] sm:$0xff]
    %v6885 = vld [vmem:[#allocation23 + $0x110] sm:$0xff]
    %v6886 = vld [vmem:[#allocation23 + $0x118] sm:$0xff]
    %v6887 = vld [vmem:[#allocation23 + $0x120] sm:$0xff]
    %v6888 = vld [vmem:[#allocation23 + $0x128] sm:$0xff]
    %v6889 = vld [vmem:[#allocation23 + $0x130] sm:$0xff]
    %v6890 = vld [vmem:[#allocation23 + $0x138] sm:$0xff]
    %v6891 = vld [vmem:[#allocation23 + $0x140] sm:$0xff]
    %v6892 = vld [vmem:[#allocation23 + $0x148] sm:$0xff]
    %v6893 = vld [vmem:[#allocation23 + $0x150] sm:$0xff]
    %v6894 = vld [vmem:[#allocation23 + $0x158] sm:$0xff]
    %v6895 = vld [vmem:[#allocation23 + $0x160] sm:$0xff]
    %v6896 = vld [vmem:[#allocation23 + $0x168] sm:$0xff]
    %v6897 = vld [vmem:[#allocation23 + $0x170] sm:$0xff]
    %v6898 = vld [vmem:[#allocation23 + $0x178] sm:$0xff]
    %v6899 = vld [vmem:[%s12] sm:$0x7]
    %v6901 = vperm.slane %v6899, 0
    %v6902 = vperm.slane %v6899, 1
    %v6903 = vperm.slane %v6899, 2
    %6907 = vmatpush.msra.mxu0 %v6896
    %6908 = vmatpush.msra.mxu0 %v6893
    %6909 = vmatpush.msra.mxu0 %v6890
    %6910 = vmatpush.msra.mxu0 %v6887
    %6911 = vmatpush.msra.mxu0 %v6884
    %6912 = vmatpush.msra.mxu0 %v6881
    %6913 = vmatpush.msra.mxu0 %v6878
    %6914 = vmatpush.msra.mxu0 %v6875
    %6915 = vmatpush.msra.mxu0 %v6872
    %6916 = vmatpush.msra.mxu0 %v6869
    %6917 = vmatpush.msra.mxu0 %v6866
    %6918 = vmatpush.msra.mxu0 %v6863
    %6919 = vmatpush.msra.mxu0 %v6860
    %6920 = vmatpush.msra.mxu0 %v6857
    %6921 = vmatpush.msra.mxu0 %v6854
    %6922 = vmatpush.msra.mxu0 %v6851
    %6923 = vmatmul.f32.gmra.mxu0 %v6843
    %v6924 = vpop.f32.mrf.mxu0
    %v6925 = vadd.f32 %v6901, %v6924
    %6926 = vdwg.mxu0
    %6927 = vmatpush.msra.mxu0 %v6897
    %6928 = vmatpush.msra.mxu0 %v6894
    %6929 = vmatpush.msra.mxu0 %v6891
    %6930 = vmatpush.msra.mxu0 %v6888
    %6931 = vmatpush.msra.mxu0 %v6885
    %6932 = vmatpush.msra.mxu0 %v6882
    %6933 = vmatpush.msra.mxu0 %v6879
    %6934 = vmatpush.msra.mxu0 %v6876
    %6935 = vmatpush.msra.mxu0 %v6873
    %6936 = vmatpush.msra.mxu0 %v6870
    %6937 = vmatpush.msra.mxu0 %v6867
    %6938 = vmatpush.msra.mxu0 %v6864
    %6939 = vmatpush.msra.mxu0 %v6861
    %6940 = vmatpush.msra.mxu0 %v6858
    %6941 = vmatpush.msra.mxu0 %v6855
    %6942 = vmatpush.msra.mxu0 %v6852
    %6943 = vmatmul.f32.gmra.mxu0 %v6843
    %v6944 = vpop.f32.mrf.mxu0
    %v6945 = vadd.f32 %v6902, %v6944
    %6946 = vdwg.mxu0
    %6947 = vmatpush.msra.mxu0 %v6898
    %6948 = vmatpush.msra.mxu0 %v6895
    %6949 = vmatpush.msra.mxu0 %v6892
    %6950 = vmatpush.msra.mxu0 %v6889
    %6951 = vmatpush.msra.mxu0 %v6886
    %6952 = vmatpush.msra.mxu0 %v6883
    %6953 = vmatpush.msra.mxu0 %v6880
    %6954 = vmatpush.msra.mxu0 %v6877
    %6955 = vmatpush.msra.mxu0 %v6874
    %6956 = vmatpush.msra.mxu0 %v6871
    %6957 = vmatpush.msra.mxu0 %v6868
    %6958 = vmatpush.msra.mxu0 %v6865
    %6959 = vmatpush.msra.mxu0 %v6862
    %6960 = vmatpush.msra.mxu0 %v6859
    %6961 = vmatpush.msra.mxu0 %v6856
    %6962 = vmatpush.msra.mxu0 %v6853
    %6963 = vmatmul.f32.gmra.mxu0 %v6843
    %v6964 = vpop.f32.mrf.mxu0
    %v6965 = vadd.f32 %v6903, %v6964
    %6966 = vdwg.mxu0
    %v6967 = vld [vmem:[#allocation24] sm:$0xff]
    %v6968 = vld [vmem:[#allocation24 + $0x8] sm:$0xff]
    %v6969 = vld [vmem:[#allocation24 + $0x10] sm:$0xff]
    %v6970 = vld [vmem:[#allocation24 + $0x18] sm:$0xff]
    %v6971 = vld [vmem:[#allocation24 + $0x20] sm:$0xff]
    %v6972 = vld [vmem:[#allocation24 + $0x28] sm:$0xff]
    %v6973 = vld [vmem:[#allocation24 + $0x30] sm:$0xff]
    %v6974 = vld [vmem:[#allocation24 + $0x38] sm:$0xff]
    %v6975 = vld [vmem:[#allocation24 + $0x40] sm:$0xff]
    %v6976 = vld [vmem:[#allocation24 + $0x48] sm:$0xff]
    %v6977 = vld [vmem:[#allocation24 + $0x50] sm:$0xff]
    %v6978 = vld [vmem:[#allocation24 + $0x58] sm:$0xff]
    %v6979 = vld [vmem:[#allocation24 + $0x60] sm:$0xff]
    %v6980 = vld [vmem:[#allocation24 + $0x68] sm:$0xff]
    %v6981 = vld [vmem:[#allocation24 + $0x70] sm:$0xff]
    %v6982 = vld [vmem:[#allocation24 + $0x78] sm:$0xff]
    %v6983 = vld [vmem:[#allocation24 + $0x80] sm:$0xff]
    %v6984 = vld [vmem:[#allocation24 + $0x88] sm:$0xff]
    %v6985 = vld [vmem:[#allocation24 + $0x90] sm:$0xff]
    %v6986 = vld [vmem:[#allocation24 + $0x98] sm:$0xff]
    %v6987 = vld [vmem:[#allocation24 + $0xa0] sm:$0xff]
    %v6988 = vld [vmem:[#allocation24 + $0xa8] sm:$0xff]
    %v6989 = vld [vmem:[#allocation24 + $0xb0] sm:$0xff]
    %v6990 = vld [vmem:[#allocation24 + $0xb8] sm:$0xff]
    %v6991 = vld [vmem:[#allocation24 + $0xc0] sm:$0xff]
    %v6992 = vld [vmem:[#allocation24 + $0xc8] sm:$0xff]
    %v6993 = vld [vmem:[#allocation24 + $0xd0] sm:$0xff]
    %v6994 = vld [vmem:[#allocation24 + $0xd8] sm:$0xff]
    %v6995 = vld [vmem:[#allocation24 + $0xe0] sm:$0xff]
    %v6996 = vld [vmem:[#allocation24 + $0xe8] sm:$0xff]
    %v6997 = vld [vmem:[#allocation24 + $0xf0] sm:$0xff]
    %v6998 = vld [vmem:[#allocation24 + $0xf8] sm:$0xff]
    %v6999 = vld [vmem:[#allocation24 + $0x100] sm:$0xff]
    %v7000 = vld [vmem:[#allocation24 + $0x108] sm:$0xff]
    %v7001 = vld [vmem:[#allocation24 + $0x110] sm:$0xff]
    %v7002 = vld [vmem:[#allocation24 + $0x118] sm:$0xff]
    %v7003 = vld [vmem:[#allocation24 + $0x120] sm:$0xff]
    %v7004 = vld [vmem:[#allocation24 + $0x128] sm:$0xff]
    %v7005 = vld [vmem:[#allocation24 + $0x130] sm:$0xff]
    %v7006 = vld [vmem:[#allocation24 + $0x138] sm:$0xff]
    %v7007 = vld [vmem:[#allocation24 + $0x140] sm:$0xff]
    %v7008 = vld [vmem:[#allocation24 + $0x148] sm:$0xff]
    %v7009 = vld [vmem:[#allocation24 + $0x150] sm:$0xff]
    %v7010 = vld [vmem:[#allocation24 + $0x158] sm:$0xff]
    %v7011 = vld [vmem:[#allocation24 + $0x160] sm:$0xff]
    %v7012 = vld [vmem:[#allocation24 + $0x168] sm:$0xff]
    %v7013 = vld [vmem:[#allocation24 + $0x170] sm:$0xff]
    %v7014 = vld [vmem:[#allocation24 + $0x178] sm:$0xff]
    %v7015 = vld [vmem:[%s13] sm:$0x7]
    %v7017 = vperm.slane %v7015, 0
    %v7018 = vperm.slane %v7015, 1
    %v7019 = vperm.slane %v7015, 2
    %7023 = vmatpush.msra.mxu0 %v7012
    %7024 = vmatpush.msra.mxu0 %v7009
    %7025 = vmatpush.msra.mxu0 %v7006
    %7026 = vmatpush.msra.mxu0 %v7003
    %7027 = vmatpush.msra.mxu0 %v7000
    %7028 = vmatpush.msra.mxu0 %v6997
    %7029 = vmatpush.msra.mxu0 %v6994
    %7030 = vmatpush.msra.mxu0 %v6991
    %7031 = vmatpush.msra.mxu0 %v6988
    %7032 = vmatpush.msra.mxu0 %v6985
    %7033 = vmatpush.msra.mxu0 %v6982
    %7034 = vmatpush.msra.mxu0 %v6979
    %7035 = vmatpush.msra.mxu0 %v6976
    %7036 = vmatpush.msra.mxu0 %v6973
    %7037 = vmatpush.msra.mxu0 %v6970
    %7038 = vmatpush.msra.mxu0 %v6967
    %7039 = vmatmul.f32.gmra.mxu0 %v6528
    %v7040 = vpop.f32.mrf.mxu0
    %v7041 = vadd.f32 %v7017, %v7040
    %7042 = vdwg.mxu0
    %7043 = vmatpush.msra.mxu0 %v7013
    %7044 = vmatpush.msra.mxu0 %v7010
    %7045 = vmatpush.msra.mxu0 %v7007
    %7046 = vmatpush.msra.mxu0 %v7004
    %7047 = vmatpush.msra.mxu0 %v7001
    %7048 = vmatpush.msra.mxu0 %v6998
    %7049 = vmatpush.msra.mxu0 %v6995
    %7050 = vmatpush.msra.mxu0 %v6992
    %7051 = vmatpush.msra.mxu0 %v6989
    %7052 = vmatpush.msra.mxu0 %v6986
    %7053 = vmatpush.msra.mxu0 %v6983
    %7054 = vmatpush.msra.mxu0 %v6980
    %7055 = vmatpush.msra.mxu0 %v6977
    %7056 = vmatpush.msra.mxu0 %v6974
    %7057 = vmatpush.msra.mxu0 %v6971
    %7058 = vmatpush.msra.mxu0 %v6968
    %7059 = vmatmul.f32.gmra.mxu0 %v6528
    %v7060 = vpop.f32.mrf.mxu0
    %v7061 = vadd.f32 %v7018, %v7060
    %7062 = vdwg.mxu0
    %7063 = vmatpush.msra.mxu0 %v7014
    %7064 = vmatpush.msra.mxu0 %v7011
    %7065 = vmatpush.msra.mxu0 %v7008
    %7066 = vmatpush.msra.mxu0 %v7005
    %7067 = vmatpush.msra.mxu0 %v7002
    %7068 = vmatpush.msra.mxu0 %v6999
    %7069 = vmatpush.msra.mxu0 %v6996
    %7070 = vmatpush.msra.mxu0 %v6993
    %7071 = vmatpush.msra.mxu0 %v6990
    %7072 = vmatpush.msra.mxu0 %v6987
    %7073 = vmatpush.msra.mxu0 %v6984
    %7074 = vmatpush.msra.mxu0 %v6981
    %7075 = vmatpush.msra.mxu0 %v6978
    %7076 = vmatpush.msra.mxu0 %v6975
    %7077 = vmatpush.msra.mxu0 %v6972
    %7078 = vmatpush.msra.mxu0 %v6969
    %7079 = vmatmul.f32.gmra.mxu0 %v6528
    %v7080 = vpop.f32.mrf.mxu0
    %v7081 = vadd.f32 %v7019, %v7080
    %7082 = vdwg.mxu0
    %v7083 = vadd.f32 %v6925, %v7041
    %v7084 = vxor.u32 %v7083, 2147483648
    %v7085 = vmul.f32 %v7084, 1.442695
    %v7086 = vpow.pop %v7085
    %v7087 = vadd.f32 %v7086, 1.0
    %v7088 = vrcp.pop %v7087
    %v7089 = vmul.f32 %v7087, %v7088
    %v7090 = vsub.f32 1.0, %v7089
    %v7091 = vmul.f32 %v7088, %v7090
    %v7092 = vadd.f32 %v7088, %v7091
    %vm7093 = vweird.f32 %v7087
    %vm7094 = vweird.f32 %v7088
    %vm7095 = vmor %vm7093, %vm7094
    %v7096 = vsel %vm7095, %v7088, %v7092
    %v7097 = vand.u32 2147483647, %v7087
    %vm7098 = vcmp.eq.f32.partialorder %v7097, 8.507059e+37
    %v7099 = vand.u32 %v7087, 2147483648
    %v7100 = vor.u32 1.1754944e-38, %v7099
    %v7101 = vsel %vm7098, %v7100, %v7096
    %v7102 = vmul.f32 1.0, %v7101
    %v7103 = vadd.f32 %v6945, %v7061
    %v7104 = vxor.u32 %v7103, 2147483648
    %v7105 = vmul.f32 %v7104, 1.442695
    %v7106 = vpow.pop %v7105
    %v7107 = vadd.f32 %v7106, 1.0
    %v7108 = vrcp.pop %v7107
    %v7109 = vmul.f32 %v7107, %v7108
    %v7110 = vsub.f32 1.0, %v7109
    %v7111 = vmul.f32 %v7108, %v7110
    %v7112 = vadd.f32 %v7108, %v7111
    %vm7113 = vweird.f32 %v7107
    %vm7114 = vweird.f32 %v7108
    %vm7115 = vmor %vm7113, %vm7114
    %v7116 = vsel %vm7115, %v7108, %v7112
    %v7117 = vand.u32 2147483647, %v7107
    %vm7118 = vcmp.eq.f32.partialorder %v7117, 8.507059e+37
    %v7119 = vand.u32 %v7107, 2147483648
    %v7120 = vor.u32 1.1754944e-38, %v7119
    %v7121 = vsel %vm7118, %v7120, %v7116
    %v7122 = vmul.f32 1.0, %v7121
    %v7123 = vmul.f32 %v7102, %v7081
    %v7124 = vadd.f32 %v6965, %v7123
    %v7125 = vtanh.pop %v7124
    %v7126 = vsub.f32 1.0, %v7122
    %v7127 = vmul.f32 %v7126, %v7125
    %v7128 = vmul.f32 %v7122, %v6528
    %v7129 = vadd.f32 %v7127, %v7128
    %7130 = vmatpush.xpose.msra.mxu0 0.0
    %7131 = vmatpush.xpose.msra.mxu0 0.0
    %7132 = vmatpush.xpose.msra.mxu0 0.0
    %7133 = vmatpush.xpose.msra.mxu0 0.0
    %7134 = vmatpush.xpose.msra.mxu0 0.0
    %7135 = vmatpush.xpose.msra.mxu0 0.0
    %7136 = vmatpush.xpose.msra.mxu0 0.0
    %7137 = vmatpush.xpose.msra.mxu0 0.0
    %7138 = vmatpush.xpose.msra.mxu0 0.0
    %7139 = vmatpush.xpose.msra.mxu0 0.0
    %7140 = vmatpush.xpose.msra.mxu0 0.0
    %7141 = vmatpush.xpose.msra.mxu0 0.0
    %7142 = vmatpush.xpose.msra.mxu0 0.0
    %7143 = vmatpush.xpose.msra.mxu0 0.0
    %7144 = vmatpush.xpose.msra.mxu0 0.0
    %7145 = vmatpush.xpose.msra.mxu0 %v3230
    %7146 = vmatmul.f32.gmra.mxu0 %v7129
    %v7147 = vpop.f32.mrf.mxu0
    %v7148 = vadd.f32 0.0, %v7147
    %7149 = vdwg.mxu0
    %v7150 = vsel %vm3231, %v7148, -inf
    %7151 = vmax.xlane.f32.xlu0 %v7150
    %v7152 = vpop.xlane.xlu0 %7151
    %v7153 = vsub.f32 %v7148, %v7152
    %v7154 = vmul.f32 %v7153, 1.442695
    %v7155 = vpow.pop %v7154
    %v7156 = vsel %vm3231, %v7155, 0.0
    %7157 = vadd.xlane.f32.xlu0 %v7156
    %v7158 = vpop.xlane.xlu0 %7157
    %v7159 = vrcp.pop %v7158
    %v7160 = vmul.f32 %v7155, %v7159
    %v7162 = vsel %vm3552, %v7160, 0
    %7164 = vmatpush.msra.mxu0 0.0
    %7165 = vmatpush.msra.mxu0 0.0
    %7166 = vmatpush.msra.mxu0 0.0
    %7167 = vmatpush.msra.mxu0 0.0
    %7168 = vmatpush.msra.mxu0 0.0
    %7169 = vmatpush.msra.mxu0 0.0
    %7170 = vmatpush.msra.mxu0 0.0
    %7171 = vmatpush.msra.mxu0 0.0
    %7172 = vmatpush.msra.mxu0 0.0
    %7173 = vmatpush.msra.mxu0 0.0
    %7174 = vmatpush.msra.mxu0 0.0
    %7175 = vmatpush.msra.mxu0 0.0
    %7176 = vmatpush.msra.mxu0 0.0
    %7177 = vmatpush.msra.mxu0 0.0
    %7178 = vmatpush.msra.mxu0 0.0
    %7179 = vmatpush.msra.mxu0 %v3230
    %7180 = vmatmul.f32.gmra.mxu0 %v7162
    %v7181 = vpop.f32.mrf.mxu0
    %v7182 = vadd.f32 0.0, %v7181
    %7183 = vdwg.mxu0
    %v7184 = vld [vmem:[#allocation26] sm:$0xff]
    %v7185 = vld [vmem:[#allocation26 + $0x8] sm:$0xff]
    %v7186 = vld [vmem:[#allocation26 + $0x10] sm:$0xff]
    %v7187 = vld [vmem:[#allocation26 + $0x18] sm:$0xff]
    %v7188 = vld [vmem:[#allocation26 + $0x20] sm:$0xff]
    %v7189 = vld [vmem:[#allocation26 + $0x28] sm:$0xff]
    %v7190 = vld [vmem:[#allocation26 + $0x30] sm:$0xff]
    %v7191 = vld [vmem:[#allocation26 + $0x38] sm:$0xff]
    %v7192 = vld [vmem:[#allocation26 + $0x40] sm:$0xff]
    %v7193 = vld [vmem:[#allocation26 + $0x48] sm:$0xff]
    %v7194 = vld [vmem:[#allocation26 + $0x50] sm:$0xff]
    %v7195 = vld [vmem:[#allocation26 + $0x58] sm:$0xff]
    %v7196 = vld [vmem:[#allocation26 + $0x60] sm:$0xff]
    %v7197 = vld [vmem:[#allocation26 + $0x68] sm:$0xff]
    %v7198 = vld [vmem:[#allocation26 + $0x70] sm:$0xff]
    %v7199 = vld [vmem:[#allocation26 + $0x78] sm:$0xff]
    %v7200 = vld [vmem:[#allocation26 + $0x80] sm:$0xff]
    %v7201 = vld [vmem:[#allocation26 + $0x88] sm:$0xff]
    %v7202 = vld [vmem:[#allocation26 + $0x90] sm:$0xff]
    %v7203 = vld [vmem:[#allocation26 + $0x98] sm:$0xff]
    %v7204 = vld [vmem:[#allocation26 + $0xa0] sm:$0xff]
    %v7205 = vld [vmem:[#allocation26 + $0xa8] sm:$0xff]
    %v7206 = vld [vmem:[#allocation26 + $0xb0] sm:$0xff]
    %v7207 = vld [vmem:[#allocation26 + $0xb8] sm:$0xff]
    %v7208 = vld [vmem:[#allocation26 + $0xc0] sm:$0xff]
    %v7209 = vld [vmem:[#allocation26 + $0xc8] sm:$0xff]
    %v7210 = vld [vmem:[#allocation26 + $0xd0] sm:$0xff]
    %v7211 = vld [vmem:[#allocation26 + $0xd8] sm:$0xff]
    %v7212 = vld [vmem:[#allocation26 + $0xe0] sm:$0xff]
    %v7213 = vld [vmem:[#allocation26 + $0xe8] sm:$0xff]
    %v7214 = vld [vmem:[#allocation26 + $0xf0] sm:$0xff]
    %v7215 = vld [vmem:[#allocation26 + $0xf8] sm:$0xff]
    %v7216 = vld [vmem:[#allocation27] sm:$0x1]
    %7217 = vmatpush.msra.mxu0 %v7199
    %7218 = vmatpush.msra.mxu0 %v7198
    %7219 = vmatpush.msra.mxu0 %v7197
    %7220 = vmatpush.msra.mxu0 %v7196
    %7221 = vmatpush.msra.mxu0 %v7195
    %7222 = vmatpush.msra.mxu0 %v7194
    %7223 = vmatpush.msra.mxu0 %v7193
    %7224 = vmatpush.msra.mxu0 %v7192
    %7225 = vmatpush.msra.mxu0 %v7191
    %7226 = vmatpush.msra.mxu0 %v7190
    %7227 = vmatpush.msra.mxu0 %v7189
    %7228 = vmatpush.msra.mxu0 %v7188
    %7229 = vmatpush.msra.mxu0 %v7187
    %7230 = vmatpush.msra.mxu0 %v7186
    %7231 = vmatpush.msra.mxu0 %v7185
    %7232 = vmatpush.msra.mxu0 %v7184
    %7233 = vmatmul.f32.gmra.mxu0 %v7129
    %v7234 = vpop.f32.mrf.mxu0
    %v7235 = vadd.f32 %v7216, %v7234
    %7236 = vdwg.mxu0
    %7237 = vmatpush.msra.mxu0 %v7215
    %7238 = vmatpush.msra.mxu0 %v7214
    %7239 = vmatpush.msra.mxu0 %v7213
    %7240 = vmatpush.msra.mxu0 %v7212
    %7241 = vmatpush.msra.mxu0 %v7211
    %7242 = vmatpush.msra.mxu0 %v7210
    %7243 = vmatpush.msra.mxu0 %v7209
    %7244 = vmatpush.msra.mxu0 %v7208
    %7245 = vmatpush.msra.mxu0 %v7207
    %7246 = vmatpush.msra.mxu0 %v7206
    %7247 = vmatpush.msra.mxu0 %v7205
    %7248 = vmatpush.msra.mxu0 %v7204
    %7249 = vmatpush.msra.mxu0 %v7203
    %7250 = vmatpush.msra.mxu0 %v7202
    %7251 = vmatpush.msra.mxu0 %v7201
    %7252 = vmatpush.msra.mxu0 %v7200
    %7253 = vmatmul.f32.gmra.mxu0 %v7182
    %v7254 = vpop.f32.mrf.mxu0
    %v7255 = vadd.f32 %v7235, %v7254
    %7256 = vdwg.mxu0
    %v7257 = vtanh.pop %v7255
    %v7258 = vpack.c.bf16 %v7257, %v7257
    %v7259 = vld [vmem:[#allocation6] sm:$0xff]
    %v7260 = vld [vmem:[#allocation6 + $0x8] sm:$0xff]
    %v7261 = vld [vmem:[#allocation6 + $0x10] sm:$0xff]
    %v7262 = vld [vmem:[#allocation6 + $0x18] sm:$0xff]
    %v7263 = vld [vmem:[#allocation6 + $0x20] sm:$0xff]
    %v7264 = vld [vmem:[#allocation6 + $0x28] sm:$0xff]
    %v7265 = vld [vmem:[#allocation6 + $0x30] sm:$0xff]
    %v7266 = vld [vmem:[#allocation6 + $0x38] sm:$0xff]
    %v7267 = vld [vmem:[#allocation6 + $0x40] sm:$0xff]
    %v7268 = vld [vmem:[#allocation6 + $0x48] sm:$0xff]
    %v7269 = vld [vmem:[#allocation6 + $0x50] sm:$0xff]
    %v7270 = vld [vmem:[#allocation6 + $0x58] sm:$0xff]
    %v7271 = vld [vmem:[#allocation6 + $0x60] sm:$0xff]
    %v7272 = vld [vmem:[#allocation6 + $0x68] sm:$0xff]
    %v7273 = vld [vmem:[#allocation6 + $0x70] sm:$0xff]
    %v7274 = vld [vmem:[#allocation6 + $0x78] sm:$0xff]
    %v7275 = vld [vmem:[%s17] sm:$0x3]
    %v7292 = vunpack.c.l.b16 %v7259
    %v7293 = vunpack.c.h.b16 %v7259
    %v7294 = vunpack.c.l.b16 %v7260
    %v7295 = vunpack.c.h.b16 %v7260
    %v7296 = vunpack.c.l.b16 %v7261
    %v7297 = vunpack.c.h.b16 %v7261
    %v7298 = vunpack.c.l.b16 %v7262
    %v7299 = vunpack.c.h.b16 %v7262
    %v7300 = vunpack.c.l.b16 %v7263
    %v7301 = vunpack.c.h.b16 %v7263
    %v7302 = vunpack.c.l.b16 %v7264
    %v7303 = vunpack.c.h.b16 %v7264
    %v7304 = vunpack.c.l.b16 %v7265
    %v7305 = vunpack.c.h.b16 %v7265
    %v7306 = vunpack.c.l.b16 %v7266
    %v7307 = vunpack.c.h.b16 %v7266
    %v7308 = vunpack.c.l.b16 %v7267
    %v7309 = vunpack.c.h.b16 %v7267
    %v7310 = vunpack.c.l.b16 %v7268
    %v7311 = vunpack.c.h.b16 %v7268
    %v7312 = vunpack.c.l.b16 %v7269
    %v7313 = vunpack.c.h.b16 %v7269
    %v7314 = vunpack.c.l.b16 %v7270
    %v7315 = vunpack.c.h.b16 %v7270
    %v7316 = vunpack.c.l.b16 %v7271
    %v7317 = vunpack.c.h.b16 %v7271
    %v7318 = vunpack.c.l.b16 %v7272
    %v7319 = vunpack.c.h.b16 %v7272
    %v7320 = vunpack.c.l.b16 %v7273
    %v7321 = vunpack.c.h.b16 %v7273
    %v7322 = vunpack.c.l.b16 %v7274
    %v7323 = vunpack.c.h.b16 %v7274
    %v7324 = vpack.c.b16 %v7294, %v7292
    %v7325 = vpack.c.b16 %v7295, %v7293
    %v7326 = vpack.c.b16 %v7298, %v7296
    %v7327 = vpack.c.b16 %v7299, %v7297
    %v7328 = vpack.c.b16 %v7302, %v7300
    %v7329 = vpack.c.b16 %v7303, %v7301
    %v7330 = vpack.c.b16 %v7306, %v7304
    %v7331 = vpack.c.b16 %v7307, %v7305
    %v7332 = vpack.c.b16 %v7310, %v7308
    %v7333 = vpack.c.b16 %v7311, %v7309
    %v7334 = vpack.c.b16 %v7314, %v7312
    %v7335 = vpack.c.b16 %v7315, %v7313
    %v7336 = vpack.c.b16 %v7318, %v7316
    %v7337 = vpack.c.b16 %v7319, %v7317
    %v7338 = vpack.c.b16 %v7322, %v7320
    %v7339 = vpack.c.b16 %v7323, %v7321
    %v7357 = vperm.slane %v7275, 0
    %v7358 = vperm.slane %v7275, 1
    %7361 = vmatpush.bf16.msra.mxu0 %v7338
    %7362 = vmatpush.bf16.msra.mxu0 %v7336
    %7363 = vmatpush.bf16.msra.mxu0 %v7334
    %7364 = vmatpush.bf16.msra.mxu0 %v7332
    %7365 = vmatpush.bf16.msra.mxu0 %v7330
    %7366 = vmatpush.bf16.msra.mxu0 %v7328
    %7367 = vmatpush.bf16.msra.mxu0 %v7326
    %7368 = vmatpush.bf16.msra.mxu0 %v7324
    %7369 = vmatmul.bf16.gmra.mxu0 %v7258
    %v7370 = vpop.f32.mrf.mxu0
    %v7371 = vadd.f32 %v7357, %v7370
    %v7372 = vpop.f32.mrf.mxu0
    %7373 = vdwg.mxu0
    %7374 = vmatpush.bf16.msra.mxu0 %v7339
    %7375 = vmatpush.bf16.msra.mxu0 %v7337
    %7376 = vmatpush.bf16.msra.mxu0 %v7335
    %7377 = vmatpush.bf16.msra.mxu0 %v7333
    %7378 = vmatpush.bf16.msra.mxu0 %v7331
    %7379 = vmatpush.bf16.msra.mxu0 %v7329
    %7380 = vmatpush.bf16.msra.mxu0 %v7327
    %7381 = vmatpush.bf16.msra.mxu0 %v7325
    %7382 = vmatmul.bf16.gmra.mxu0 %v7258
    %v7383 = vpop.f32.mrf.mxu0
    %v7384 = vadd.f32 %v7358, %v7383
    %v7385 = vpop.f32.mrf.mxu0
    %7386 = vdwg.mxu0
    %v7387 = vsel %vm3779, %v7371, -inf
    %v7388 = vsel %vm3779, %v7384, -inf
    %v7389 = vmax.f32 %v7387, %v7388
    %7390 = vmax.xlane.f32.xlu0 %v7389
    %v7391 = vpop.xlane.xlu0 %7390
    %v7392 = vsub.f32 %v7371, %v7391
    %v7393 = vsub.f32 %v7384, %v7391
    %v7394 = vmul.f32 %v7392, 1.442695
    %v7395 = vpow.pop %v7394
    %v7396 = vmul.f32 %v7393, 1.442695
    %v7397 = vpow.pop %v7396
    %v7398 = vsel %vm3779, %v7395, 0.0
    %v7399 = vsel %vm3779, %v7397, 0.0
    %v7400 = vadd.f32 %v7398, %v7399
    %7401 = vadd.xlane.f32.xlu0 %v7400
    %v7402 = vpop.xlane.xlu0 %7401
    %v7403 = vrcp.pop %v7402
    %v7404 = vmul.f32 %v7402, %v7403
    %v7405 = vsub.f32 1.0, %v7404
    %v7406 = vmul.f32 %v7403, %v7405
    %v7407 = vadd.f32 %v7403, %v7406
    %vm7408 = vweird.f32 %v7402
    %vm7409 = vweird.f32 %v7403
    %vm7410 = vmor %vm7408, %vm7409
    %v7411 = vsel %vm7410, %v7403, %v7407
    %v7412 = vand.u32 2147483647, %v7402
    %vm7413 = vcmp.eq.f32.partialorder %v7412, 8.507059e+37
    %v7414 = vand.u32 %v7402, 2147483648
    %v7415 = vor.u32 1.1754944e-38, %v7414
    %v7416 = vsel %vm7413, %v7415, %v7411
    %v7417 = vmul.f32 1.0, %v7416
    %vm7418 = vcmp.eq.f32.partialorder %v7371, %v7391
    %vm7419 = vcmp.eq.f32.partialorder %v7384, %v7391
    %v7420 = vsel %vm7418, %v3235, 256
    %v7421 = vsel %vm7419, %v3236, 256
    %v7422 = vsel %vm3779, %v7420, 2147483647
    %v7423 = vsel %vm3779, %v7421, 2147483647
    %vm7424 = vcmp.lt.s32.totalorder %v7422, %v7423
    %v7425 = vsel %vm7424, %v7422, %v7423
    %v7426 = vand.u32 %v7425, 65535
    %v7427 = vshra.s32 %v7425, 16
    %v7428 = vcvt.s32.f32 %v7426
    %v7429 = vcvt.s32.f32 %v7427
    %7430 = vmin.xlane.f32.xlu0 %v7429
    %v7431 = vpop.xlane.xlu0 %7430
    %vm7432 = vcmp.eq.f32.partialorder %v7429, %v7431
    %v7433 = vsel %vm7432, %v7428, inf
    %7434 = vmin.xlane.f32.xlu0 %v7433
    %v7435 = vpop.xlane.xlu0 %7434
    %v7436 = vcvt.f32.s32 %v7435
    %v7437 = vcvt.f32.s32 %v7431
    %v7438 = vshll.u32 %v7437, 16
    %v7439 = vadd.s32 %v7438, %v7436
    %7440 = vst.msk [vmem:[#allocation8] sm:$0x1] %vm3833, %v7439
    %v7441 = vld [vmem:[#allocation8] sm:$0x1]
    %s7442 = vtos %v7441
    %s7443 = scalar_lea.vmem [#allocation12], %s7442
    %v7444 = vld [vmem:[%s7443] sm:$0x1]
    %vm7445 = vcmp.eq.s32.totalorder %v3235, 6
    %v7446 = vld [vmem:[#allocation29] sm:$0x1]
    %v7447 = vsel %vm7445, %v7439, %v7446
    %7448 = vst.msk [vmem:[#allocation29] sm:$0x1] %vm3231, %v7447
    %v7449 = vld [vmem:[#allocation30] sm:$0x1]
    %v7450 = vsel %vm7445, %v7417, %v7449
    %7451 = vst.msk [vmem:[#allocation30] sm:$0x1] %vm3231, %v7450
    %v7452 = vld [vmem:[#allocation23] sm:$0xff]
    %v7453 = vld [vmem:[#allocation23 + $0x8] sm:$0xff]
    %v7454 = vld [vmem:[#allocation23 + $0x10] sm:$0xff]
    %v7455 = vld [vmem:[#allocation23 + $0x18] sm:$0xff]
    %v7456 = vld [vmem:[#allocation23 + $0x20] sm:$0xff]
    %v7457 = vld [vmem:[#allocation23 + $0x28] sm:$0xff]
    %v7458 = vld [vmem:[#allocation23 + $0x30] sm:$0xff]
    %v7459 = vld [vmem:[#allocation23 + $0x38] sm:$0xff]
    %v7460 = vld [vmem:[#allocation23 + $0x40] sm:$0xff]
    %v7461 = vld [vmem:[#allocation23 + $0x48] sm:$0xff]
    %v7462 = vld [vmem:[#allocation23 + $0x50] sm:$0xff]
    %v7463 = vld [vmem:[#allocation23 + $0x58] sm:$0xff]
    %v7464 = vld [vmem:[#allocation23 + $0x60] sm:$0xff]
    %v7465 = vld [vmem:[#allocation23 + $0x68] sm:$0xff]
    %v7466 = vld [vmem:[#allocation23 + $0x70] sm:$0xff]
    %v7467 = vld [vmem:[#allocation23 + $0x78] sm:$0xff]
    %v7468 = vld [vmem:[#allocation23 + $0x80] sm:$0xff]
    %v7469 = vld [vmem:[#allocation23 + $0x88] sm:$0xff]
    %v7470 = vld [vmem:[#allocation23 + $0x90] sm:$0xff]
    %v7471 = vld [vmem:[#allocation23 + $0x98] sm:$0xff]
    %v7472 = vld [vmem:[#allocation23 + $0xa0] sm:$0xff]
    %v7473 = vld [vmem:[#allocation23 + $0xa8] sm:$0xff]
    %v7474 = vld [vmem:[#allocation23 + $0xb0] sm:$0xff]
    %v7475 = vld [vmem:[#allocation23 + $0xb8] sm:$0xff]
    %v7476 = vld [vmem:[#allocation23 + $0xc0] sm:$0xff]
    %v7477 = vld [vmem:[#allocation23 + $0xc8] sm:$0xff]
    %v7478 = vld [vmem:[#allocation23 + $0xd0] sm:$0xff]
    %v7479 = vld [vmem:[#allocation23 + $0xd8] sm:$0xff]
    %v7480 = vld [vmem:[#allocation23 + $0xe0] sm:$0xff]
    %v7481 = vld [vmem:[#allocation23 + $0xe8] sm:$0xff]
    %v7482 = vld [vmem:[#allocation23 + $0xf0] sm:$0xff]
    %v7483 = vld [vmem:[#allocation23 + $0xf8] sm:$0xff]
    %v7484 = vld [vmem:[#allocation23 + $0x100] sm:$0xff]
    %v7485 = vld [vmem:[#allocation23 + $0x108] sm:$0xff]
    %v7486 = vld [vmem:[#allocation23 + $0x110] sm:$0xff]
    %v7487 = vld [vmem:[#allocation23 + $0x118] sm:$0xff]
    %v7488 = vld [vmem:[#allocation23 + $0x120] sm:$0xff]
    %v7489 = vld [vmem:[#allocation23 + $0x128] sm:$0xff]
    %v7490 = vld [vmem:[#allocation23 + $0x130] sm:$0xff]
    %v7491 = vld [vmem:[#allocation23 + $0x138] sm:$0xff]
    %v7492 = vld [vmem:[#allocation23 + $0x140] sm:$0xff]
    %v7493 = vld [vmem:[#allocation23 + $0x148] sm:$0xff]
    %v7494 = vld [vmem:[#allocation23 + $0x150] sm:$0xff]
    %v7495 = vld [vmem:[#allocation23 + $0x158] sm:$0xff]
    %v7496 = vld [vmem:[#allocation23 + $0x160] sm:$0xff]
    %v7497 = vld [vmem:[#allocation23 + $0x168] sm:$0xff]
    %v7498 = vld [vmem:[#allocation23 + $0x170] sm:$0xff]
    %v7499 = vld [vmem:[#allocation23 + $0x178] sm:$0xff]
    %v7500 = vld [vmem:[%s12] sm:$0x7]
    %v7502 = vperm.slane %v7500, 0
    %v7503 = vperm.slane %v7500, 1
    %v7504 = vperm.slane %v7500, 2
    %7508 = vmatpush.msra.mxu0 %v7497
    %7509 = vmatpush.msra.mxu0 %v7494
    %7510 = vmatpush.msra.mxu0 %v7491
    %7511 = vmatpush.msra.mxu0 %v7488
    %7512 = vmatpush.msra.mxu0 %v7485
    %7513 = vmatpush.msra.mxu0 %v7482
    %7514 = vmatpush.msra.mxu0 %v7479
    %7515 = vmatpush.msra.mxu0 %v7476
    %7516 = vmatpush.msra.mxu0 %v7473
    %7517 = vmatpush.msra.mxu0 %v7470
    %7518 = vmatpush.msra.mxu0 %v7467
    %7519 = vmatpush.msra.mxu0 %v7464
    %7520 = vmatpush.msra.mxu0 %v7461
    %7521 = vmatpush.msra.mxu0 %v7458
    %7522 = vmatpush.msra.mxu0 %v7455
    %7523 = vmatpush.msra.mxu0 %v7452
    %7524 = vmatmul.f32.gmra.mxu0 %v7444
    %v7525 = vpop.f32.mrf.mxu0
    %v7526 = vadd.f32 %v7502, %v7525
    %7527 = vdwg.mxu0
    %7528 = vmatpush.msra.mxu0 %v7498
    %7529 = vmatpush.msra.mxu0 %v7495
    %7530 = vmatpush.msra.mxu0 %v7492
    %7531 = vmatpush.msra.mxu0 %v7489
    %7532 = vmatpush.msra.mxu0 %v7486
    %7533 = vmatpush.msra.mxu0 %v7483
    %7534 = vmatpush.msra.mxu0 %v7480
    %7535 = vmatpush.msra.mxu0 %v7477
    %7536 = vmatpush.msra.mxu0 %v7474
    %7537 = vmatpush.msra.mxu0 %v7471
    %7538 = vmatpush.msra.mxu0 %v7468
    %7539 = vmatpush.msra.mxu0 %v7465
    %7540 = vmatpush.msra.mxu0 %v7462
    %7541 = vmatpush.msra.mxu0 %v7459
    %7542 = vmatpush.msra.mxu0 %v7456
    %7543 = vmatpush.msra.mxu0 %v7453
    %7544 = vmatmul.f32.gmra.mxu0 %v7444
    %v7545 = vpop.f32.mrf.mxu0
    %v7546 = vadd.f32 %v7503, %v7545
    %7547 = vdwg.mxu0
    %7548 = vmatpush.msra.mxu0 %v7499
    %7549 = vmatpush.msra.mxu0 %v7496
    %7550 = vmatpush.msra.mxu0 %v7493
    %7551 = vmatpush.msra.mxu0 %v7490
    %7552 = vmatpush.msra.mxu0 %v7487
    %7553 = vmatpush.msra.mxu0 %v7484
    %7554 = vmatpush.msra.mxu0 %v7481
    %7555 = vmatpush.msra.mxu0 %v7478
    %7556 = vmatpush.msra.mxu0 %v7475
    %7557 = vmatpush.msra.mxu0 %v7472
    %7558 = vmatpush.msra.mxu0 %v7469
    %7559 = vmatpush.msra.mxu0 %v7466
    %7560 = vmatpush.msra.mxu0 %v7463
    %7561 = vmatpush.msra.mxu0 %v7460
    %7562 = vmatpush.msra.mxu0 %v7457
    %7563 = vmatpush.msra.mxu0 %v7454
    %7564 = vmatmul.f32.gmra.mxu0 %v7444
    %v7565 = vpop.f32.mrf.mxu0
    %v7566 = vadd.f32 %v7504, %v7565
    %7567 = vdwg.mxu0
    %v7568 = vld [vmem:[#allocation24] sm:$0xff]
    %v7569 = vld [vmem:[#allocation24 + $0x8] sm:$0xff]
    %v7570 = vld [vmem:[#allocation24 + $0x10] sm:$0xff]
    %v7571 = vld [vmem:[#allocation24 + $0x18] sm:$0xff]
    %v7572 = vld [vmem:[#allocation24 + $0x20] sm:$0xff]
    %v7573 = vld [vmem:[#allocation24 + $0x28] sm:$0xff]
    %v7574 = vld [vmem:[#allocation24 + $0x30] sm:$0xff]
    %v7575 = vld [vmem:[#allocation24 + $0x38] sm:$0xff]
    %v7576 = vld [vmem:[#allocation24 + $0x40] sm:$0xff]
    %v7577 = vld [vmem:[#allocation24 + $0x48] sm:$0xff]
    %v7578 = vld [vmem:[#allocation24 + $0x50] sm:$0xff]
    %v7579 = vld [vmem:[#allocation24 + $0x58] sm:$0xff]
    %v7580 = vld [vmem:[#allocation24 + $0x60] sm:$0xff]
    %v7581 = vld [vmem:[#allocation24 + $0x68] sm:$0xff]
    %v7582 = vld [vmem:[#allocation24 + $0x70] sm:$0xff]
    %v7583 = vld [vmem:[#allocation24 + $0x78] sm:$0xff]
    %v7584 = vld [vmem:[#allocation24 + $0x80] sm:$0xff]
    %v7585 = vld [vmem:[#allocation24 + $0x88] sm:$0xff]
    %v7586 = vld [vmem:[#allocation24 + $0x90] sm:$0xff]
    %v7587 = vld [vmem:[#allocation24 + $0x98] sm:$0xff]
    %v7588 = vld [vmem:[#allocation24 + $0xa0] sm:$0xff]
    %v7589 = vld [vmem:[#allocation24 + $0xa8] sm:$0xff]
    %v7590 = vld [vmem:[#allocation24 + $0xb0] sm:$0xff]
    %v7591 = vld [vmem:[#allocation24 + $0xb8] sm:$0xff]
    %v7592 = vld [vmem:[#allocation24 + $0xc0] sm:$0xff]
    %v7593 = vld [vmem:[#allocation24 + $0xc8] sm:$0xff]
    %v7594 = vld [vmem:[#allocation24 + $0xd0] sm:$0xff]
    %v7595 = vld [vmem:[#allocation24 + $0xd8] sm:$0xff]
    %v7596 = vld [vmem:[#allocation24 + $0xe0] sm:$0xff]
    %v7597 = vld [vmem:[#allocation24 + $0xe8] sm:$0xff]
    %v7598 = vld [vmem:[#allocation24 + $0xf0] sm:$0xff]
    %v7599 = vld [vmem:[#allocation24 + $0xf8] sm:$0xff]
    %v7600 = vld [vmem:[#allocation24 + $0x100] sm:$0xff]
    %v7601 = vld [vmem:[#allocation24 + $0x108] sm:$0xff]
    %v7602 = vld [vmem:[#allocation24 + $0x110] sm:$0xff]
    %v7603 = vld [vmem:[#allocation24 + $0x118] sm:$0xff]
    %v7604 = vld [vmem:[#allocation24 + $0x120] sm:$0xff]
    %v7605 = vld [vmem:[#allocation24 + $0x128] sm:$0xff]
    %v7606 = vld [vmem:[#allocation24 + $0x130] sm:$0xff]
    %v7607 = vld [vmem:[#allocation24 + $0x138] sm:$0xff]
    %v7608 = vld [vmem:[#allocation24 + $0x140] sm:$0xff]
    %v7609 = vld [vmem:[#allocation24 + $0x148] sm:$0xff]
    %v7610 = vld [vmem:[#allocation24 + $0x150] sm:$0xff]
    %v7611 = vld [vmem:[#allocation24 + $0x158] sm:$0xff]
    %v7612 = vld [vmem:[#allocation24 + $0x160] sm:$0xff]
    %v7613 = vld [vmem:[#allocation24 + $0x168] sm:$0xff]
    %v7614 = vld [vmem:[#allocation24 + $0x170] sm:$0xff]
    %v7615 = vld [vmem:[#allocation24 + $0x178] sm:$0xff]
    %v7616 = vld [vmem:[%s13] sm:$0x7]
    %v7618 = vperm.slane %v7616, 0
    %v7619 = vperm.slane %v7616, 1
    %v7620 = vperm.slane %v7616, 2
    %7624 = vmatpush.msra.mxu0 %v7613
    %7625 = vmatpush.msra.mxu0 %v7610
    %7626 = vmatpush.msra.mxu0 %v7607
    %7627 = vmatpush.msra.mxu0 %v7604
    %7628 = vmatpush.msra.mxu0 %v7601
    %7629 = vmatpush.msra.mxu0 %v7598
    %7630 = vmatpush.msra.mxu0 %v7595
    %7631 = vmatpush.msra.mxu0 %v7592
    %7632 = vmatpush.msra.mxu0 %v7589
    %7633 = vmatpush.msra.mxu0 %v7586
    %7634 = vmatpush.msra.mxu0 %v7583
    %7635 = vmatpush.msra.mxu0 %v7580
    %7636 = vmatpush.msra.mxu0 %v7577
    %7637 = vmatpush.msra.mxu0 %v7574
    %7638 = vmatpush.msra.mxu0 %v7571
    %7639 = vmatpush.msra.mxu0 %v7568
    %7640 = vmatmul.f32.gmra.mxu0 %v7129
    %v7641 = vpop.f32.mrf.mxu0
    %v7642 = vadd.f32 %v7618, %v7641
    %7643 = vdwg.mxu0
    %7644 = vmatpush.msra.mxu0 %v7614
    %7645 = vmatpush.msra.mxu0 %v7611
    %7646 = vmatpush.msra.mxu0 %v7608
    %7647 = vmatpush.msra.mxu0 %v7605
    %7648 = vmatpush.msra.mxu0 %v7602
    %7649 = vmatpush.msra.mxu0 %v7599
    %7650 = vmatpush.msra.mxu0 %v7596
    %7651 = vmatpush.msra.mxu0 %v7593
    %7652 = vmatpush.msra.mxu0 %v7590
    %7653 = vmatpush.msra.mxu0 %v7587
    %7654 = vmatpush.msra.mxu0 %v7584
    %7655 = vmatpush.msra.mxu0 %v7581
    %7656 = vmatpush.msra.mxu0 %v7578
    %7657 = vmatpush.msra.mxu0 %v7575
    %7658 = vmatpush.msra.mxu0 %v7572
    %7659 = vmatpush.msra.mxu0 %v7569
    %7660 = vmatmul.f32.gmra.mxu0 %v7129
    %v7661 = vpop.f32.mrf.mxu0
    %v7662 = vadd.f32 %v7619, %v7661
    %7663 = vdwg.mxu0
    %7664 = vmatpush.msra.mxu0 %v7615
    %7665 = vmatpush.msra.mxu0 %v7612
    %7666 = vmatpush.msra.mxu0 %v7609
    %7667 = vmatpush.msra.mxu0 %v7606
    %7668 = vmatpush.msra.mxu0 %v7603
    %7669 = vmatpush.msra.mxu0 %v7600
    %7670 = vmatpush.msra.mxu0 %v7597
    %7671 = vmatpush.msra.mxu0 %v7594
    %7672 = vmatpush.msra.mxu0 %v7591
    %7673 = vmatpush.msra.mxu0 %v7588
    %7674 = vmatpush.msra.mxu0 %v7585
    %7675 = vmatpush.msra.mxu0 %v7582
    %7676 = vmatpush.msra.mxu0 %v7579
    %7677 = vmatpush.msra.mxu0 %v7576
    %7678 = vmatpush.msra.mxu0 %v7573
    %7679 = vmatpush.msra.mxu0 %v7570
    %7680 = vmatmul.f32.gmra.mxu0 %v7129
    %v7681 = vpop.f32.mrf.mxu0
    %v7682 = vadd.f32 %v7620, %v7681
    %7683 = vdwg.mxu0
    %v7684 = vadd.f32 %v7526, %v7642
    %v7685 = vxor.u32 %v7684, 2147483648
    %v7686 = vmul.f32 %v7685, 1.442695
    %v7687 = vpow.pop %v7686
    %v7688 = vadd.f32 %v7687, 1.0
    %v7689 = vrcp.pop %v7688
    %v7690 = vmul.f32 %v7688, %v7689
    %v7691 = vsub.f32 1.0, %v7690
    %v7692 = vmul.f32 %v7689, %v7691
    %v7693 = vadd.f32 %v7689, %v7692
    %vm7694 = vweird.f32 %v7688
    %vm7695 = vweird.f32 %v7689
    %vm7696 = vmor %vm7694, %vm7695
    %v7697 = vsel %vm7696, %v7689, %v7693
    %v7698 = vand.u32 2147483647, %v7688
    %vm7699 = vcmp.eq.f32.partialorder %v7698, 8.507059e+37
    %v7700 = vand.u32 %v7688, 2147483648
    %v7701 = vor.u32 1.1754944e-38, %v7700
    %v7702 = vsel %vm7699, %v7701, %v7697
    %v7703 = vmul.f32 1.0, %v7702
    %v7704 = vadd.f32 %v7546, %v7662
    %v7705 = vxor.u32 %v7704, 2147483648
    %v7706 = vmul.f32 %v7705, 1.442695
    %v7707 = vpow.pop %v7706
    %v7708 = vadd.f32 %v7707, 1.0
    %v7709 = vrcp.pop %v7708
    %v7710 = vmul.f32 %v7708, %v7709
    %v7711 = vsub.f32 1.0, %v7710
    %v7712 = vmul.f32 %v7709, %v7711
    %v7713 = vadd.f32 %v7709, %v7712
    %vm7714 = vweird.f32 %v7708
    %vm7715 = vweird.f32 %v7709
    %vm7716 = vmor %vm7714, %vm7715
    %v7717 = vsel %vm7716, %v7709, %v7713
    %v7718 = vand.u32 2147483647, %v7708
    %vm7719 = vcmp.eq.f32.partialorder %v7718, 8.507059e+37
    %v7720 = vand.u32 %v7708, 2147483648
    %v7721 = vor.u32 1.1754944e-38, %v7720
    %v7722 = vsel %vm7719, %v7721, %v7717
    %v7723 = vmul.f32 1.0, %v7722
    %v7724 = vmul.f32 %v7703, %v7682
    %v7725 = vadd.f32 %v7566, %v7724
    %v7726 = vtanh.pop %v7725
    %v7727 = vsub.f32 1.0, %v7723
    %v7728 = vmul.f32 %v7727, %v7726
    %v7729 = vmul.f32 %v7723, %v7129
    %v7730 = vadd.f32 %v7728, %v7729
    %7731 = vmatpush.xpose.msra.mxu0 0.0
    %7732 = vmatpush.xpose.msra.mxu0 0.0
    %7733 = vmatpush.xpose.msra.mxu0 0.0
    %7734 = vmatpush.xpose.msra.mxu0 0.0
    %7735 = vmatpush.xpose.msra.mxu0 0.0
    %7736 = vmatpush.xpose.msra.mxu0 0.0
    %7737 = vmatpush.xpose.msra.mxu0 0.0
    %7738 = vmatpush.xpose.msra.mxu0 0.0
    %7739 = vmatpush.xpose.msra.mxu0 0.0
    %7740 = vmatpush.xpose.msra.mxu0 0.0
    %7741 = vmatpush.xpose.msra.mxu0 0.0
    %7742 = vmatpush.xpose.msra.mxu0 0.0
    %7743 = vmatpush.xpose.msra.mxu0 0.0
    %7744 = vmatpush.xpose.msra.mxu0 0.0
    %7745 = vmatpush.xpose.msra.mxu0 0.0
    %7746 = vmatpush.xpose.msra.mxu0 %v3230
    %7747 = vmatmul.f32.gmra.mxu0 %v7730
    %v7748 = vpop.f32.mrf.mxu0
    %v7749 = vadd.f32 0.0, %v7748
    %7750 = vdwg.mxu0
    %v7751 = vsel %vm3231, %v7749, -inf
    %7752 = vmax.xlane.f32.xlu0 %v7751
    %v7753 = vpop.xlane.xlu0 %7752
    %v7754 = vsub.f32 %v7749, %v7753
    %v7755 = vmul.f32 %v7754, 1.442695
    %v7756 = vpow.pop %v7755
    %v7757 = vsel %vm3231, %v7756, 0.0
    %7758 = vadd.xlane.f32.xlu0 %v7757
    %v7759 = vpop.xlane.xlu0 %7758
    %v7760 = vrcp.pop %v7759
    %v7761 = vmul.f32 %v7756, %v7760
    %v7763 = vsel %vm3552, %v7761, 0
    %7765 = vmatpush.msra.mxu0 0.0
    %7766 = vmatpush.msra.mxu0 0.0
    %7767 = vmatpush.msra.mxu0 0.0
    %7768 = vmatpush.msra.mxu0 0.0
    %7769 = vmatpush.msra.mxu0 0.0
    %7770 = vmatpush.msra.mxu0 0.0
    %7771 = vmatpush.msra.mxu0 0.0
    %7772 = vmatpush.msra.mxu0 0.0
    %7773 = vmatpush.msra.mxu0 0.0
    %7774 = vmatpush.msra.mxu0 0.0
    %7775 = vmatpush.msra.mxu0 0.0
    %7776 = vmatpush.msra.mxu0 0.0
    %7777 = vmatpush.msra.mxu0 0.0
    %7778 = vmatpush.msra.mxu0 0.0
    %7779 = vmatpush.msra.mxu0 0.0
    %7780 = vmatpush.msra.mxu0 %v3230
    %7781 = vmatmul.f32.gmra.mxu0 %v7763
    %v7782 = vpop.f32.mrf.mxu0
    %v7783 = vadd.f32 0.0, %v7782
    %7784 = vdwg.mxu0
    %v7785 = vld [vmem:[#allocation26] sm:$0xff]
    %v7786 = vld [vmem:[#allocation26 + $0x8] sm:$0xff]
    %v7787 = vld [vmem:[#allocation26 + $0x10] sm:$0xff]
    %v7788 = vld [vmem:[#allocation26 + $0x18] sm:$0xff]
    %v7789 = vld [vmem:[#allocation26 + $0x20] sm:$0xff]
    %v7790 = vld [vmem:[#allocation26 + $0x28] sm:$0xff]
    %v7791 = vld [vmem:[#allocation26 + $0x30] sm:$0xff]
    %v7792 = vld [vmem:[#allocation26 + $0x38] sm:$0xff]
    %v7793 = vld [vmem:[#allocation26 + $0x40] sm:$0xff]
    %v7794 = vld [vmem:[#allocation26 + $0x48] sm:$0xff]
    %v7795 = vld [vmem:[#allocation26 + $0x50] sm:$0xff]
    %v7796 = vld [vmem:[#allocation26 + $0x58] sm:$0xff]
    %v7797 = vld [vmem:[#allocation26 + $0x60] sm:$0xff]
    %v7798 = vld [vmem:[#allocation26 + $0x68] sm:$0xff]
    %v7799 = vld [vmem:[#allocation26 + $0x70] sm:$0xff]
    %v7800 = vld [vmem:[#allocation26 + $0x78] sm:$0xff]
    %v7801 = vld [vmem:[#allocation26 + $0x80] sm:$0xff]
    %v7802 = vld [vmem:[#allocation26 + $0x88] sm:$0xff]
    %v7803 = vld [vmem:[#allocation26 + $0x90] sm:$0xff]
    %v7804 = vld [vmem:[#allocation26 + $0x98] sm:$0xff]
    %v7805 = vld [vmem:[#allocation26 + $0xa0] sm:$0xff]
    %v7806 = vld [vmem:[#allocation26 + $0xa8] sm:$0xff]
    %v7807 = vld [vmem:[#allocation26 + $0xb0] sm:$0xff]
    %v7808 = vld [vmem:[#allocation26 + $0xb8] sm:$0xff]
    %v7809 = vld [vmem:[#allocation26 + $0xc0] sm:$0xff]
    %v7810 = vld [vmem:[#allocation26 + $0xc8] sm:$0xff]
    %v7811 = vld [vmem:[#allocation26 + $0xd0] sm:$0xff]
    %v7812 = vld [vmem:[#allocation26 + $0xd8] sm:$0xff]
    %v7813 = vld [vmem:[#allocation26 + $0xe0] sm:$0xff]
    %v7814 = vld [vmem:[#allocation26 + $0xe8] sm:$0xff]
    %v7815 = vld [vmem:[#allocation26 + $0xf0] sm:$0xff]
    %v7816 = vld [vmem:[#allocation26 + $0xf8] sm:$0xff]
    %v7817 = vld [vmem:[#allocation27] sm:$0x1]
    %7818 = vmatpush.msra.mxu0 %v7800
    %7819 = vmatpush.msra.mxu0 %v7799
    %7820 = vmatpush.msra.mxu0 %v7798
    %7821 = vmatpush.msra.mxu0 %v7797
    %7822 = vmatpush.msra.mxu0 %v7796
    %7823 = vmatpush.msra.mxu0 %v7795
    %7824 = vmatpush.msra.mxu0 %v7794
    %7825 = vmatpush.msra.mxu0 %v7793
    %7826 = vmatpush.msra.mxu0 %v7792
    %7827 = vmatpush.msra.mxu0 %v7791
    %7828 = vmatpush.msra.mxu0 %v7790
    %7829 = vmatpush.msra.mxu0 %v7789
    %7830 = vmatpush.msra.mxu0 %v7788
    %7831 = vmatpush.msra.mxu0 %v7787
    %7832 = vmatpush.msra.mxu0 %v7786
    %7833 = vmatpush.msra.mxu0 %v7785
    %7834 = vmatmul.f32.gmra.mxu0 %v7730
    %v7835 = vpop.f32.mrf.mxu0
    %v7836 = vadd.f32 %v7817, %v7835
    %7837 = vdwg.mxu0
    %7838 = vmatpush.msra.mxu0 %v7816
    %7839 = vmatpush.msra.mxu0 %v7815
    %7840 = vmatpush.msra.mxu0 %v7814
    %7841 = vmatpush.msra.mxu0 %v7813
    %7842 = vmatpush.msra.mxu0 %v7812
    %7843 = vmatpush.msra.mxu0 %v7811
    %7844 = vmatpush.msra.mxu0 %v7810
    %7845 = vmatpush.msra.mxu0 %v7809
    %7846 = vmatpush.msra.mxu0 %v7808
    %7847 = vmatpush.msra.mxu0 %v7807
    %7848 = vmatpush.msra.mxu0 %v7806
    %7849 = vmatpush.msra.mxu0 %v7805
    %7850 = vmatpush.msra.mxu0 %v7804
    %7851 = vmatpush.msra.mxu0 %v7803
    %7852 = vmatpush.msra.mxu0 %v7802
    %7853 = vmatpush.msra.mxu0 %v7801
    %7854 = vmatmul.f32.gmra.mxu0 %v7783
    %v7855 = vpop.f32.mrf.mxu0
    %v7856 = vadd.f32 %v7836, %v7855
    %7857 = vdwg.mxu0
    %v7858 = vtanh.pop %v7856
    %v7859 = vpack.c.bf16 %v7858, %v7858
    %v7860 = vld [vmem:[#allocation6] sm:$0xff]
    %v7861 = vld [vmem:[#allocation6 + $0x8] sm:$0xff]
    %v7862 = vld [vmem:[#allocation6 + $0x10] sm:$0xff]
    %v7863 = vld [vmem:[#allocation6 + $0x18] sm:$0xff]
    %v7864 = vld [vmem:[#allocation6 + $0x20] sm:$0xff]
    %v7865 = vld [vmem:[#allocation6 + $0x28] sm:$0xff]
    %v7866 = vld [vmem:[#allocation6 + $0x30] sm:$0xff]
    %v7867 = vld [vmem:[#allocation6 + $0x38] sm:$0xff]
    %v7868 = vld [vmem:[#allocation6 + $0x40] sm:$0xff]
    %v7869 = vld [vmem:[#allocation6 + $0x48] sm:$0xff]
    %v7870 = vld [vmem:[#allocation6 + $0x50] sm:$0xff]
    %v7871 = vld [vmem:[#allocation6 + $0x58] sm:$0xff]
    %v7872 = vld [vmem:[#allocation6 + $0x60] sm:$0xff]
    %v7873 = vld [vmem:[#allocation6 + $0x68] sm:$0xff]
    %v7874 = vld [vmem:[#allocation6 + $0x70] sm:$0xff]
    %v7875 = vld [vmem:[#allocation6 + $0x78] sm:$0xff]
    %v7876 = vld [vmem:[%s17] sm:$0x3]
    %v7893 = vunpack.c.l.b16 %v7860
    %v7894 = vunpack.c.h.b16 %v7860
    %v7895 = vunpack.c.l.b16 %v7861
    %v7896 = vunpack.c.h.b16 %v7861
    %v7897 = vunpack.c.l.b16 %v7862
    %v7898 = vunpack.c.h.b16 %v7862
    %v7899 = vunpack.c.l.b16 %v7863
    %v7900 = vunpack.c.h.b16 %v7863
    %v7901 = vunpack.c.l.b16 %v7864
    %v7902 = vunpack.c.h.b16 %v7864
    %v7903 = vunpack.c.l.b16 %v7865
    %v7904 = vunpack.c.h.b16 %v7865
    %v7905 = vunpack.c.l.b16 %v7866
    %v7906 = vunpack.c.h.b16 %v7866
    %v7907 = vunpack.c.l.b16 %v7867
    %v7908 = vunpack.c.h.b16 %v7867
    %v7909 = vunpack.c.l.b16 %v7868
    %v7910 = vunpack.c.h.b16 %v7868
    %v7911 = vunpack.c.l.b16 %v7869
    %v7912 = vunpack.c.h.b16 %v7869
    %v7913 = vunpack.c.l.b16 %v7870
    %v7914 = vunpack.c.h.b16 %v7870
    %v7915 = vunpack.c.l.b16 %v7871
    %v7916 = vunpack.c.h.b16 %v7871
    %v7917 = vunpack.c.l.b16 %v7872
    %v7918 = vunpack.c.h.b16 %v7872
    %v7919 = vunpack.c.l.b16 %v7873
    %v7920 = vunpack.c.h.b16 %v7873
    %v7921 = vunpack.c.l.b16 %v7874
    %v7922 = vunpack.c.h.b16 %v7874
    %v7923 = vunpack.c.l.b16 %v7875
    %v7924 = vunpack.c.h.b16 %v7875
    %v7925 = vpack.c.b16 %v7895, %v7893
    %v7926 = vpack.c.b16 %v7896, %v7894
    %v7927 = vpack.c.b16 %v7899, %v7897
    %v7928 = vpack.c.b16 %v7900, %v7898
    %v7929 = vpack.c.b16 %v7903, %v7901
    %v7930 = vpack.c.b16 %v7904, %v7902
    %v7931 = vpack.c.b16 %v7907, %v7905
    %v7932 = vpack.c.b16 %v7908, %v7906
    %v7933 = vpack.c.b16 %v7911, %v7909
    %v7934 = vpack.c.b16 %v7912, %v7910
    %v7935 = vpack.c.b16 %v7915, %v7913
    %v7936 = vpack.c.b16 %v7916, %v7914
    %v7937 = vpack.c.b16 %v7919, %v7917
    %v7938 = vpack.c.b16 %v7920, %v7918
    %v7939 = vpack.c.b16 %v7923, %v7921
    %v7940 = vpack.c.b16 %v7924, %v7922
    %v7958 = vperm.slane %v7876, 0
    %v7959 = vperm.slane %v7876, 1
    %7962 = vmatpush.bf16.msra.mxu0 %v7939
    %7963 = vmatpush.bf16.msra.mxu0 %v7937
    %7964 = vmatpush.bf16.msra.mxu0 %v7935
    %7965 = vmatpush.bf16.msra.mxu0 %v7933
    %7966 = vmatpush.bf16.msra.mxu0 %v7931
    %7967 = vmatpush.bf16.msra.mxu0 %v7929
    %7968 = vmatpush.bf16.msra.mxu0 %v7927
    %7969 = vmatpush.bf16.msra.mxu0 %v7925
    %7970 = vmatmul.bf16.gmra.mxu0 %v7859
    %v7971 = vpop.f32.mrf.mxu0
    %v7972 = vadd.f32 %v7958, %v7971
    %v7973 = vpop.f32.mrf.mxu0
    %7974 = vdwg.mxu0
    %7975 = vmatpush.bf16.msra.mxu0 %v7940
    %7976 = vmatpush.bf16.msra.mxu0 %v7938
    %7977 = vmatpush.bf16.msra.mxu0 %v7936
    %7978 = vmatpush.bf16.msra.mxu0 %v7934
    %7979 = vmatpush.bf16.msra.mxu0 %v7932
    %7980 = vmatpush.bf16.msra.mxu0 %v7930
    %7981 = vmatpush.bf16.msra.mxu0 %v7928
    %7982 = vmatpush.bf16.msra.mxu0 %v7926
    %7983 = vmatmul.bf16.gmra.mxu0 %v7859
    %v7984 = vpop.f32.mrf.mxu0
    %v7985 = vadd.f32 %v7959, %v7984
    %v7986 = vpop.f32.mrf.mxu0
    %7987 = vdwg.mxu0
    %v7988 = vsel %vm3779, %v7972, -inf
    %v7989 = vsel %vm3779, %v7985, -inf
    %v7990 = vmax.f32 %v7988, %v7989
    %7991 = vmax.xlane.f32.xlu0 %v7990
    %v7992 = vpop.xlane.xlu0 %7991
    %v7993 = vsub.f32 %v7972, %v7992
    %v7994 = vsub.f32 %v7985, %v7992
    %v7995 = vmul.f32 %v7993, 1.442695
    %v7996 = vpow.pop %v7995
    %v7997 = vmul.f32 %v7994, 1.442695
    %v7998 = vpow.pop %v7997
    %v7999 = vsel %vm3779, %v7996, 0.0
    %v8000 = vsel %vm3779, %v7998, 0.0
    %v8001 = vadd.f32 %v7999, %v8000
    %8002 = vadd.xlane.f32.xlu0 %v8001
    %v8003 = vpop.xlane.xlu0 %8002
    %v8004 = vrcp.pop %v8003
    %v8005 = vmul.f32 %v8003, %v8004
    %v8006 = vsub.f32 1.0, %v8005
    %v8007 = vmul.f32 %v8004, %v8006
    %v8008 = vadd.f32 %v8004, %v8007
    %vm8009 = vweird.f32 %v8003
    %vm8010 = vweird.f32 %v8004
    %vm8011 = vmor %vm8009, %vm8010
    %v8012 = vsel %vm8011, %v8004, %v8008
    %v8013 = vand.u32 2147483647, %v8003
    %vm8014 = vcmp.eq.f32.partialorder %v8013, 8.507059e+37
    %v8015 = vand.u32 %v8003, 2147483648
    %v8016 = vor.u32 1.1754944e-38, %v8015
    %v8017 = vsel %vm8014, %v8016, %v8012
    %v8018 = vmul.f32 1.0, %v8017
    %vm8019 = vcmp.eq.f32.partialorder %v7972, %v7992
    %vm8020 = vcmp.eq.f32.partialorder %v7985, %v7992
    %v8021 = vsel %vm8019, %v3235, 256
    %v8022 = vsel %vm8020, %v3236, 256
    %v8023 = vsel %vm3779, %v8021, 2147483647
    %v8024 = vsel %vm3779, %v8022, 2147483647
    %vm8025 = vcmp.lt.s32.totalorder %v8023, %v8024
    %v8026 = vsel %vm8025, %v8023, %v8024
    %v8027 = vand.u32 %v8026, 65535
    %v8028 = vshra.s32 %v8026, 16
    %v8029 = vcvt.s32.f32 %v8027
    %v8030 = vcvt.s32.f32 %v8028
    %8031 = vmin.xlane.f32.xlu0 %v8030
    %v8032 = vpop.xlane.xlu0 %8031
    %vm8033 = vcmp.eq.f32.partialorder %v8030, %v8032
    %v8034 = vsel %vm8033, %v8029, inf
    %8035 = vmin.xlane.f32.xlu0 %v8034
    %v8036 = vpop.xlane.xlu0 %8035
    %v8037 = vcvt.f32.s32 %v8036
    %v8038 = vcvt.f32.s32 %v8032
    %v8039 = vshll.u32 %v8038, 16
    %v8040 = vadd.s32 %v8039, %v8037
    %8041 = vst.msk [vmem:[#allocation8] sm:$0x1] %vm3833, %v8040
    %vm8042 = vcmp.eq.s32.totalorder %v3235, 7
    %v8043 = vld [vmem:[#allocation29] sm:$0x1]
    %v8044 = vsel %vm8042, %v8040, %v8043
    %8045 = vst.msk [vmem:[#allocation29] sm:$0x1] %vm3231, %v8044
    %v8046 = vld [vmem:[#allocation30] sm:$0x1]
    %v8047 = vsel %vm8042, %v8018, %v8046
    %8048 = vst.msk [vmem:[#allocation30] sm:$0x1] %vm3231, %v8047
    // Predicated region
    $region122: #{tpu_custom_call.1} parent=1 // pred_check
      _
    $region123: #{tpu_custom_call.1} parent=1 // pred_check_branch
      %8050 = sbr.rel (0) target = $region125
    $region124: #{tpu_custom_call.1} parent=1 // pred_region
      %8052 = vsyncadd [#allocation11], 0
      %s8054 = sshll.u32 [#allocation29], 4
      %s8055 = int_to_ptr.vmem [resolvable:$true] %s8054
      %s8056 = sshll.u32 %s18, 4
      %s8057 = int_to_ptr.hbm [resolvable:$true] %s8056
      %8059 = dma.vmem_to_hbm [thread:$0]  %s8055, 16, %s8057, [#allocation11]
    $region125: #{tpu_custom_call.1} parent=1 // pred_fallthru
      _
    // Predicated region
    $region126: #{tpu_custom_call.1} parent=1 // pred_check
      _
    $region127: #{tpu_custom_call.1} parent=1 // pred_check_branch
      %8061 = sbr.rel (0) target = $region129
    $region128: #{tpu_custom_call.1} parent=1 // pred_region
      %8063 = vsyncadd [#allocation31], 0
      %s8065 = sshll.u32 [#allocation30], 4
      %s8066 = int_to_ptr.vmem [resolvable:$true] %s8065
      %s8067 = sshll.u32 %s19, 4
      %s8068 = int_to_ptr.hbm [resolvable:$true] %s8067
      %8070 = dma.vmem_to_hbm [thread:$0]  %s8066, 16, %s8068, [#allocation31]
    $region129: #{tpu_custom_call.1} parent=1 // pred_fallthru
      _
    // Predicated region
    $region130: #{tpu_custom_call.1} parent=1 // pred_check
      _
    $region131: #{tpu_custom_call.1} parent=1 // pred_check_branch
      %8072 = sbr.rel (0) target = $region133
    $region132: #{tpu_custom_call.1} parent=1 // pred_region
      %8074 = dma.done [#allocation11], 16
    $region133: #{tpu_custom_call.1} parent=1 // pred_fallthru
      _
    // Predicated region
    $region134: #{tpu_custom_call.1} parent=1 // pred_check
      _
    $region135: #{tpu_custom_call.1} parent=1 // pred_check_branch
      %8076 = sbr.rel (0) target = $region137
    $region136: #{tpu_custom_call.1} parent=1 // pred_region
      %8078 = dma.done [#allocation31], 16
    $region137: #{tpu_custom_call.1} parent=1 // pred_fallthru
      _
    %8079 = vsyncpa [#allocation10], 1
    %8080 = vsyncpa [#allocation13], 1
    %8081 = vsyncpa [#allocation16], 1
    %8082 = vsyncpa [#allocation19], 1
    %8083 = vsyncpa [#allocation22], 1
    %8084 = vsyncpa [#allocation25], 1
    %8085 = vsyncpa [#allocation28], 1
    %8086 = vsyncpa [#allocation11], 1
    %8087 = vsyncpa [#allocation31], 1
  %8088 = vsyncmov [#allocation7]
  %s8089 = vpop.sfrf %8088
  %p8090 = scmp.eq.s32.totalorder %s8089, 0
  %p8091 = pneg %p8090
  %8093 = shalt.err (%p8091)

</llo_original>
